<compile_context>
chip_gen: v7x
topology: tpu7x:2x2x1
jax: 0.10.0
libtpu: 0.0.40
codegen_flags: <defaults>
</compile_context>

<pallas_src>
import jax
import jax.numpy as jnp
from jax.experimental import pallas as pl
from jax.experimental.pallas import tpu as pltpu

_NEG_SLOPE = 0.2   # LeakyReLU(0.2)
_BN_EPS = 0.8      # nn.BatchNorm2d(out, 0.8): the positional arg is eps


# ----------------------------- kernel helpers -------------------------------

def _zero_plane_borders(planes):
    """Zero only the zero-padding border cells (they are never written by emit)."""
    for pr in range(2):
        for pc in range(2):
            p = planes[pr][pc]
            hp, wp, bb, c = p.shape
            r = 0 if pr == 0 else hp - 1
            w = 0 if pc == 0 else wp - 1
            p[r:r + 1, :, :, :] = jnp.zeros((1, wp, bb, c), p.dtype)
            p[:, w:w + 1, :, :] = jnp.zeros((hp, 1, bb, c), p.dtype)


def _emit_to_planes(y, planes):
    """Scatter activation y [H, W, BB, C] into the four padded parity planes.

    Padded pixel (h+1, w+1) <- y[h, w]  =>  plane[(h+1)%2][(w+1)%2] at
    ((h+1)//2, (w+1)//2).  Four contiguous static-slice stores per layer.
    """
    h, w, bb, c = y.shape
    y6 = y.reshape(h // 2, 2, w // 2, 2, bb, c)          # leading-dims-only reshape
    for qr in range(2):
        for qc in range(2):
            quad = y6[:, qr, :, qc, :, :]                # [h//2, w//2, bb, c]
            dst = planes[1 - qr][1 - qc]
            dst[qr:qr + h // 2, qc:qc + w // 2, :, :] = quad


def _conv_block(planes, w_ref, bss_ref):
    """Conv2d(Cin,Cout,3,s=2,p=1)+bias -> LeakyReLU(0.2) -> Dropout2d(id) -> folded BN.

    One whole-layer MXU matmul per tap: M = Ho*Wo*BB, K = Cin, N = Cout.
    """
    hp, wp, bb, cin = planes[0][0].shape
    ho, wo = hp - 1, wp - 1
    cout = w_ref.shape[2]
    m = ho * wo * bb

    acc = jnp.zeros((m, cout), jnp.float32)
    for ky in range(3):
        for kx in range(3):
            src = planes[ky % 2][kx % 2]
            slab = src[ky // 2:ky // 2 + ho, kx // 2:kx // 2 + wo, :, :]
            lhs = slab.reshape(m, cin).astype(jnp.bfloat16)   # BB==8 keeps this tile-aligned
            acc = acc + jnp.dot(lhs, w_ref[3 * ky + kx],
                                preferred_element_type=jnp.float32)

    y = acc + bss_ref[0]                                  # conv bias
    y = jnp.where(y > 0, y, _NEG_SLOPE * y)               # LeakyReLU(0.2)
    # TODO(synk): training-mode Dropout2d(0.25) channel masking is not modeled.
    y = y * bss_ref[1] + bss_ref[2]                       # eval BatchNorm2d (eps=0.8), folded
    return y.reshape(ho, wo, bb, cout)


# ------------------------------ Pallas kernel --------------------------------

def _discriminator_kernel(x_ref, w1, b1, w2, b2, w3, b3, w4, b4, aw_ref, ab_ref,
                          o_ref, *plane_refs):
    planes = []
    for l in range(4):
        p = plane_refs[4 * l: 4 * (l + 1)]
        planes.append(((p[0], p[1]), (p[2], p[3])))       # [row parity][col parity]

    for plane_set in planes:
        _zero_plane_borders(plane_set)

    # Stage this batch block [H, W, BB, C] into layer-1 parity planes (4 bulk stores).
    _emit_to_planes(x_ref[...], planes[0])

    y = _conv_block(planes[0], w1, b1)
    _emit_to_planes(y, planes[1])
    y = _conv_block(planes[1], w2, b2)
    _emit_to_planes(y, planes[2])
    y = _conv_block(planes[2], w3, b3)
    _emit_to_planes(y, planes[3])
    y = _conv_block(planes[3], w4, b4)                    # [ds, ds, BB, 128] f32

    # Linear(128*ds*ds, 1) + Sigmoid head, fused as multiply + reduction.
    prod = y * aw_ref[...]                                # aw: [ds, ds, 1, 128]
    s = jnp.sum(prod, axis=3, keepdims=True)              # lane reduce -> [ds, ds, BB, 1]
    logit = jnp.sum(s, axis=(0, 1)) + ab_ref[...]         # [BB, 1]
    o_ref[...] = 1.0 / (1.0 + jnp.exp(-logit))            # Sigmoid


# ------------------------------ JAX wrapper ----------------------------------

def discriminator_forward(img_nchw, params, *, block_batch=8):
    """img_nchw: [B, C, H, W] float32 -> validity [B, 1]."""
    assert block_batch % 8 == 0, "block_batch must be a multiple of 8 (f32 sublanes)"
    b, c, h, w = img_nchw.shape
    assert h == w and h % 16 == 0, "img_size must be a multiple of 16"

    # [H, W, B, C]: spatial dims leading, (batch, channel) on (sublane, lane).
    x = jnp.transpose(img_nchw, (2, 3, 0, 1)).astype(jnp.float32)
    bb = block_batch
    b_pad = -(-b // bb) * bb
    if b_pad != b:
        x = jnp.pad(x, ((0, 0), (0, 0), (0, b_pad - b), (0, 0)))

    blocks = params["blocks"]                     # [(w9 bf16 [9,Cin,Cout], bss f32 [3,1,Cout])] * 4
    assert len(blocks) == 4 and blocks[0][0].shape[1] == c

    # Four f32 VMEM parity planes per conv-layer input: [Hi/2+1, Wi/2+1, BB, Cin].
    scratch = []
    hh, ww, cin = h, w, c
    for w9, _ in blocks:
        scratch += [pltpu.VMEM((hh // 2 + 1, ww // 2 + 1, bb, cin), jnp.float32)
                    for _ in range(4)]
        hh, ww, cin = hh // 2, ww // 2, w9.shape[2]

    vmem = pl.BlockSpec(memory_space=pltpu.MemorySpace.VMEM)
    in_specs = [pl.BlockSpec((h, w, bb, c), lambda i: (0, 0, i, 0))]
    args = [x]
    for w9, bss in blocks:
        args += [w9, bss]
        in_specs += [vmem, vmem]
    args += [params["adv_w"], params["adv_b"]]
    in_specs += [vmem, vmem]

    out = pl.pallas_call(
        _discriminator_kernel,
        out_shape=jax.ShapeDtypeStruct((b_pad, 1), jnp.float32),
        grid=(b_pad // bb,),
        in_specs=in_specs,
        out_specs=pl.BlockSpec((bb, 1), lambda i: (i, 0)),
        scratch_shapes=scratch,
        compiler_params=pltpu.CompilerParams(
            # On v7x, pltpu.CORE_PARALLEL on this axis splits batch blocks
            # across the two TensorCores; "parallel" is the portable default.
            dimension_semantics=("parallel",),
            vmem_limit_bytes=32 * 1024 * 1024),
    )(*args)
    return out[:b]


def init_params(key, channels, img_size):
    """Deterministic synthetic parameters matching the module's shapes."""
    filt = [(channels, 16, False), (16, 32, True), (32, 64, True), (64, 128, True)]
    blocks = []
    for cin, cout, bn in filt:
        key, k1, k2 = jax.random.split(key, 3)
        wt = jax.random.normal(k1, (cout, cin, 3, 3), jnp.float32) * 0.05   # torch layout
        bias = jax.random.normal(k2, (cout,), jnp.float32) * 0.05
        # (cout,cin,ky,kx) -> (ky,kx,cin,cout) -> [9, cin, cout]; bf16 for the MXU
        w9 = jnp.transpose(wt, (2, 3, 1, 0)).reshape(9, cin, cout).astype(jnp.bfloat16)
        if bn:
            gamma = jnp.ones((cout,), jnp.float32)
            beta = jnp.zeros((cout,), jnp.float32)
            run_mean = jnp.zeros((cout,), jnp.float32)
            run_var = jnp.ones((cout,), jnp.float32)
            scale = gamma / jnp.sqrt(run_var + _BN_EPS)
            shift = beta - run_mean * scale
        else:
            scale = jnp.ones((cout,), jnp.float32)
            shift = jnp.zeros((cout,), jnp.float32)
        bss = jnp.stack([bias, scale, shift]).reshape(3, 1, cout)           # f32
        blocks.append((w9, bss))

    ds = img_size // 2 ** 4
    in_feat = 128 * ds * ds
    key, k1, k2 = jax.random.split(key, 3)
    adv_w_torch = jax.random.normal(k1, (1, in_feat), jnp.float32) * 0.05
    adv_b = jax.random.normal(k2, (1,), jnp.float32) * 0.05
    # torch .view flatten order is (c, h, w); reorder to (h, w, c) for the kernel reduce.
    adv_w = jnp.transpose(adv_w_torch.reshape(128, ds, ds), (1, 2, 0)).reshape(ds, ds, 1, 128)
    return {"blocks": blocks, "adv_w": adv_w, "adv_b": adv_b.reshape(1, 1)}


def _reference_forward(img_nchw, params):
    """Pure-JAX (XLA) reference of the same math, for a numerical sanity check."""
    x = jnp.transpose(img_nchw, (0, 2, 3, 1)).astype(jnp.float32)   # NHWC
    for w9, bss in params["blocks"]:
        _, cin, cout = w9.shape
        b_, h_, w_, _ = x.shape
        ho, wo = h_ // 2, w_ // 2
        xp = jnp.pad(x, ((0, 0), (1, 1), (1, 1), (0, 0)))
        cols = []
        for ky in range(3):
            for kx in range(3):
                cols.append(xp[:, ky:ky + 2 * ho:2, kx:kx + 2 * wo:2, :])
        patches = jnp.stack(cols, axis=3).reshape(b_ * ho * wo, 9 * cin)
        patches = patches.astype(jnp.bfloat16).astype(jnp.float32)   # mirror kernel's bf16 lhs
        wmat = w9.astype(jnp.float32).reshape(9 * cin, cout)
        y = patches @ wmat + bss[0]
        y = jnp.where(y > 0, y, _NEG_SLOPE * y)
        y = y * bss[1] + bss[2]
        x = y.reshape(b_, ho, wo, cout)
    b_, ds = x.shape[0], x.shape[1]
    aw = params["adv_w"].reshape(ds, ds, 128)
    logit = jnp.sum(x * aw[None], axis=(1, 2, 3)).reshape(b_, 1) + params["adv_b"]
    return jax.nn.sigmoid(logit)


# ---------------------------------- main -------------------------------------

if __name__ == "__main__":
    B, CHANNELS, IMG_SIZE = 2, 4, 16
    key = jax.random.PRNGKey(0)
    key, kimg = jax.random.split(key)
    img = jax.random.normal(kimg, (B, CHANNELS, IMG_SIZE, IMG_SIZE), jnp.float32)

    params = init_params(key, CHANNELS, IMG_SIZE)

    validity = jax.jit(discriminator_forward)(img, params)
    validity = jax.block_until_ready(validity)

    assert validity.shape == (B, 1)
    assert bool(jnp.all((validity >= 0.0) & (validity <= 1.0)))

    ref = _reference_forward(img, params)
    max_diff = float(jnp.max(jnp.abs(validity - ref)))
    assert bool(jnp.allclose(validity, ref, atol=3e-2)), f"mismatch vs reference: {max_diff}"

    print("KERNEL_OK")
</pallas_src>

<mosaic_0001>
module attributes {stable_mosaic.version = 11 : i64} {
  func.func @_discriminator_kernel(%arg0: i32, %arg1: memref<16x16x8x4xf32, #tpu.memory_space<vmem>>, %arg2: memref<9x4x16xbf16, #tpu.memory_space<vmem>>, %arg3: memref<3x1x16xf32, #tpu.memory_space<vmem>>, %arg4: memref<9x16x32xbf16, #tpu.memory_space<vmem>>, %arg5: memref<3x1x32xf32, #tpu.memory_space<vmem>>, %arg6: memref<9x32x64xbf16, #tpu.memory_space<vmem>>, %arg7: memref<3x1x64xf32, #tpu.memory_space<vmem>>, %arg8: memref<9x64x128xbf16, #tpu.memory_space<vmem>>, %arg9: memref<3x1x128xf32, #tpu.memory_space<vmem>>, %arg10: memref<1x1x1x128xf32, #tpu.memory_space<vmem>>, %arg11: memref<1x1xf32, #tpu.memory_space<vmem>>, %arg12: memref<8x1xf32, #tpu.memory_space<vmem>>, %arg13: memref<9x9x8x4xf32, #tpu.memory_space<vmem>>, %arg14: memref<9x9x8x4xf32, #tpu.memory_space<vmem>>, %arg15: memref<9x9x8x4xf32, #tpu.memory_space<vmem>>, %arg16: memref<9x9x8x4xf32, #tpu.memory_space<vmem>>, %arg17: memref<5x5x8x16xf32, #tpu.memory_space<vmem>>, %arg18: memref<5x5x8x16xf32, #tpu.memory_space<vmem>>, %arg19: memref<5x5x8x16xf32, #tpu.memory_space<vmem>>, %arg20: memref<5x5x8x16xf32, #tpu.memory_space<vmem>>, %arg21: memref<3x3x8x32xf32, #tpu.memory_space<vmem>>, %arg22: memref<3x3x8x32xf32, #tpu.memory_space<vmem>>, %arg23: memref<3x3x8x32xf32, #tpu.memory_space<vmem>>, %arg24: memref<3x3x8x32xf32, #tpu.memory_space<vmem>>, %arg25: memref<2x2x8x64xf32, #tpu.memory_space<vmem>>, %arg26: memref<2x2x8x64xf32, #tpu.memory_space<vmem>>, %arg27: memref<2x2x8x64xf32, #tpu.memory_space<vmem>>, %arg28: memref<2x2x8x64xf32, #tpu.memory_space<vmem>>) attributes {dimension_semantics = [#tpu.dimension_semantics<parallel>], iteration_bounds = array<i64: 1>, scalar_prefetch = 0 : i64, scratch_operands = 16 : i64, tpu.core_type = #tpu.core_type<tc>, window_params = [{transform_indices = @transform_0, window_bounds = array<i64: 16, 16, 8, 4>}, {pipeline_mode = #tpu.pipeline_mode<synchronous>, transform_indices = @transform_1, window_bounds = array<i64: 9, 4, 16>}, {pipeline_mode = #tpu.pipeline_mode<synchronous>, transform_indices = @transform_2, window_bounds = array<i64: 3, 1, 16>}, {pipeline_mode = #tpu.pipeline_mode<synchronous>, transform_indices = @transform_3, window_bounds = array<i64: 9, 16, 32>}, {pipeline_mode = #tpu.pipeline_mode<synchronous>, transform_indices = @transform_4, window_bounds = array<i64: 3, 1, 32>}, {pipeline_mode = #tpu.pipeline_mode<synchronous>, transform_indices = @transform_5, window_bounds = array<i64: 9, 32, 64>}, {pipeline_mode = #tpu.pipeline_mode<synchronous>, transform_indices = @transform_6, window_bounds = array<i64: 3, 1, 64>}, {pipeline_mode = #tpu.pipeline_mode<synchronous>, transform_indices = @transform_7, window_bounds = array<i64: 9, 64, 128>}, {pipeline_mode = #tpu.pipeline_mode<synchronous>, transform_indices = @transform_8, window_bounds = array<i64: 3, 1, 128>}, {pipeline_mode = #tpu.pipeline_mode<synchronous>, transform_indices = @transform_9, window_bounds = array<i64: 1, 1, 1, 128>}, {pipeline_mode = #tpu.pipeline_mode<synchronous>, transform_indices = @transform_10, window_bounds = array<i64: 1, 1>}, {transform_indices = @transform_11, window_bounds = array<i64: 8, 1>}]} {
    %cst = arith.constant 0.000000e+00 : f32
    %0 = vector.broadcast %cst : f32 to vector<1x9x8x4xf32>
    %c0 = arith.constant 0 : index
    %c0_0 = arith.constant 0 : index
    %c0_1 = arith.constant 0 : index
    %c0_2 = arith.constant 0 : index
    %1 = vector.load %arg13[%c0, %c0_0, %c0_1, %c0_2] : memref<9x9x8x4xf32, #tpu.memory_space<vmem>>, vector<1x9x8x4xf32>
    tpu.vector_store %arg13[%c0, %c0_0, %c0_1, %c0_2], %0 {strides = array<i32>} : memref<9x9x8x4xf32, #tpu.memory_space<vmem>>, vector<1x9x8x4xf32>,
    %cst_3 = arith.constant 0.000000e+00 : f32
    %2 = vector.broadcast %cst_3 : f32 to vector<9x1x8x4xf32>
    %c0_4 = arith.constant 0 : index
    %c0_5 = arith.constant 0 : index
    %c0_6 = arith.constant 0 : index
    %c0_7 = arith.constant 0 : index
    %3 = vector.load %arg13[%c0_4, %c0_5, %c0_6, %c0_7] : memref<9x9x8x4xf32, #tpu.memory_space<vmem>>, vector<9x1x8x4xf32>
    tpu.vector_store %arg13[%c0_4, %c0_5, %c0_6, %c0_7], %2 {strides = array<i32>} : memref<9x9x8x4xf32, #tpu.memory_space<vmem>>, vector<9x1x8x4xf32>,
    %cst_8 = arith.constant 0.000000e+00 : f32
    %4 = vector.broadcast %cst_8 : f32 to vector<1x9x8x4xf32>
    %c0_9 = arith.constant 0 : index
    %c0_10 = arith.constant 0 : index
    %c0_11 = arith.constant 0 : index
    %c0_12 = arith.constant 0 : index
    %5 = vector.load %arg14[%c0_9, %c0_10, %c0_11, %c0_12] : memref<9x9x8x4xf32, #tpu.memory_space<vmem>>, vector<1x9x8x4xf32>
    tpu.vector_store %arg14[%c0_9, %c0_10, %c0_11, %c0_12], %4 {strides = array<i32>} : memref<9x9x8x4xf32, #tpu.memory_space<vmem>>, vector<1x9x8x4xf32>,
    %cst_13 = arith.constant 0.000000e+00 : f32
    %6 = vector.broadcast %cst_13 : f32 to vector<9x1x8x4xf32>
    %c0_14 = arith.constant 0 : index
    %c8 = arith.constant 8 : index
    %c0_15 = arith.constant 0 : index
    %c0_16 = arith.constant 0 : index
    %7 = vector.load %arg14[%c0_14, %c8, %c0_15, %c0_16] : memref<9x9x8x4xf32, #tpu.memory_space<vmem>>, vector<9x1x8x4xf32>
    tpu.vector_store %arg14[%c0_14, %c8, %c0_15, %c0_16], %6 {strides = array<i32>} : memref<9x9x8x4xf32, #tpu.memory_space<vmem>>, vector<9x1x8x4xf32>,
    %cst_17 = arith.constant 0.000000e+00 : f32
    %8 = vector.broadcast %cst_17 : f32 to vector<1x9x8x4xf32>
    %c8_18 = arith.constant 8 : index
    %c0_19 = arith.constant 0 : index
    %c0_20 = arith.constant 0 : index
    %c0_21 = arith.constant 0 : index
    %9 = vector.load %arg15[%c8_18, %c0_19, %c0_20, %c0_21] : memref<9x9x8x4xf32, #tpu.memory_space<vmem>>, vector<1x9x8x4xf32>
    tpu.vector_store %arg15[%c8_18, %c0_19, %c0_20, %c0_21], %8 {strides = array<i32>} : memref<9x9x8x4xf32, #tpu.memory_space<vmem>>, vector<1x9x8x4xf32>,
    %cst_22 = arith.constant 0.000000e+00 : f32
    %10 = vector.broadcast %cst_22 : f32 to vector<9x1x8x4xf32>
    %c0_23 = arith.constant 0 : index
    %c0_24 = arith.constant 0 : index
    %c0_25 = arith.constant 0 : index
    %c0_26 = arith.constant 0 : index
    %11 = vector.load %arg15[%c0_23, %c0_24, %c0_25, %c0_26] : memref<9x9x8x4xf32, #tpu.memory_space<vmem>>, vector<9x1x8x4xf32>
    tpu.vector_store %arg15[%c0_23, %c0_24, %c0_25, %c0_26], %10 {strides = array<i32>} : memref<9x9x8x4xf32, #tpu.memory_space<vmem>>, vector<9x1x8x4xf32>,
    %cst_27 = arith.constant 0.000000e+00 : f32
    %12 = vector.broadcast %cst_27 : f32 to vector<1x9x8x4xf32>
    %c8_28 = arith.constant 8 : index
    %c0_29 = arith.constant 0 : index
    %c0_30 = arith.constant 0 : index
    %c0_31 = arith.constant 0 : index
    %13 = vector.load %arg16[%c8_28, %c0_29, %c0_30, %c0_31] : memref<9x9x8x4xf32, #tpu.memory_space<vmem>>, vector<1x9x8x4xf32>
    tpu.vector_store %arg16[%c8_28, %c0_29, %c0_30, %c0_31], %12 {strides = array<i32>} : memref<9x9x8x4xf32, #tpu.memory_space<vmem>>, vector<1x9x8x4xf32>,
    %cst_32 = arith.constant 0.000000e+00 : f32
    %14 = vector.broadcast %cst_32 : f32 to vector<9x1x8x4xf32>
    %c0_33 = arith.constant 0 : index
    %c8_34 = arith.constant 8 : index
    %c0_35 = arith.constant 0 : index
    %c0_36 = arith.constant 0 : index
    %15 = vector.load %arg16[%c0_33, %c8_34, %c0_35, %c0_36] : memref<9x9x8x4xf32, #tpu.memory_space<vmem>>, vector<9x1x8x4xf32>
    tpu.vector_store %arg16[%c0_33, %c8_34, %c0_35, %c0_36], %14 {strides = array<i32>} : memref<9x9x8x4xf32, #tpu.memory_space<vmem>>, vector<9x1x8x4xf32>,
    %cst_37 = arith.constant 0.000000e+00 : f32
    %16 = vector.broadcast %cst_37 : f32 to vector<1x5x8x16xf32>
    %c0_38 = arith.constant 0 : index
    %c0_39 = arith.constant 0 : index
    %c0_40 = arith.constant 0 : index
    %c0_41 = arith.constant 0 : index
    %17 = vector.load %arg17[%c0_38, %c0_39, %c0_40, %c0_41] : memref<5x5x8x16xf32, #tpu.memory_space<vmem>>, vector<1x5x8x16xf32>
    tpu.vector_store %arg17[%c0_38, %c0_39, %c0_40, %c0_41], %16 {strides = array<i32>} : memref<5x5x8x16xf32, #tpu.memory_space<vmem>>, vector<1x5x8x16xf32>,
    %cst_42 = arith.constant 0.000000e+00 : f32
    %18 = vector.broadcast %cst_42 : f32 to vector<5x1x8x16xf32>
    %c0_43 = arith.constant 0 : index
    %c0_44 = arith.constant 0 : index
    %c0_45 = arith.constant 0 : index
    %c0_46 = arith.constant 0 : index
    %19 = vector.load %arg17[%c0_43, %c0_44, %c0_45, %c0_46] : memref<5x5x8x16xf32, #tpu.memory_space<vmem>>, vector<5x1x8x16xf32>
    tpu.vector_store %arg17[%c0_43, %c0_44, %c0_45, %c0_46], %18 {strides = array<i32>} : memref<5x5x8x16xf32, #tpu.memory_space<vmem>>, vector<5x1x8x16xf32>,
    %cst_47 = arith.constant 0.000000e+00 : f32
    %20 = vector.broadcast %cst_47 : f32 to vector<1x5x8x16xf32>
    %c0_48 = arith.constant 0 : index
    %c0_49 = arith.constant 0 : index
    %c0_50 = arith.constant 0 : index
    %c0_51 = arith.constant 0 : index
    %21 = vector.load %arg18[%c0_48, %c0_49, %c0_50, %c0_51] : memref<5x5x8x16xf32, #tpu.memory_space<vmem>>, vector<1x5x8x16xf32>
    tpu.vector_store %arg18[%c0_48, %c0_49, %c0_50, %c0_51], %20 {strides = array<i32>} : memref<5x5x8x16xf32, #tpu.memory_space<vmem>>, vector<1x5x8x16xf32>,
    %cst_52 = arith.constant 0.000000e+00 : f32
    %22 = vector.broadcast %cst_52 : f32 to vector<5x1x8x16xf32>
    %c0_53 = arith.constant 0 : index
    %c4 = arith.constant 4 : index
    %c0_54 = arith.constant 0 : index
    %c0_55 = arith.constant 0 : index
    %23 = vector.load %arg18[%c0_53, %c4, %c0_54, %c0_55] : memref<5x5x8x16xf32, #tpu.memory_space<vmem>>, vector<5x1x8x16xf32>
    tpu.vector_store %arg18[%c0_53, %c4, %c0_54, %c0_55], %22 {strides = array<i32>} : memref<5x5x8x16xf32, #tpu.memory_space<vmem>>, vector<5x1x8x16xf32>,
    %cst_56 = arith.constant 0.000000e+00 : f32
    %24 = vector.broadcast %cst_56 : f32 to vector<1x5x8x16xf32>
    %c4_57 = arith.constant 4 : index
    %c0_58 = arith.constant 0 : index
    %c0_59 = arith.constant 0 : index
    %c0_60 = arith.constant 0 : index
    %25 = vector.load %arg19[%c4_57, %c0_58, %c0_59, %c0_60] : memref<5x5x8x16xf32, #tpu.memory_space<vmem>>, vector<1x5x8x16xf32>
    tpu.vector_store %arg19[%c4_57, %c0_58, %c0_59, %c0_60], %24 {strides = array<i32>} : memref<5x5x8x16xf32, #tpu.memory_space<vmem>>, vector<1x5x8x16xf32>,
    %cst_61 = arith.constant 0.000000e+00 : f32
    %26 = vector.broadcast %cst_61 : f32 to vector<5x1x8x16xf32>
    %c0_62 = arith.constant 0 : index
    %c0_63 = arith.constant 0 : index
    %c0_64 = arith.constant 0 : index
    %c0_65 = arith.constant 0 : index
    %27 = vector.load %arg19[%c0_62, %c0_63, %c0_64, %c0_65] : memref<5x5x8x16xf32, #tpu.memory_space<vmem>>, vector<5x1x8x16xf32>
    tpu.vector_store %arg19[%c0_62, %c0_63, %c0_64, %c0_65], %26 {strides = array<i32>} : memref<5x5x8x16xf32, #tpu.memory_space<vmem>>, vector<5x1x8x16xf32>,
    %cst_66 = arith.constant 0.000000e+00 : f32
    %28 = vector.broadcast %cst_66 : f32 to vector<1x5x8x16xf32>
    %c4_67 = arith.constant 4 : index
    %c0_68 = arith.constant 0 : index
    %c0_69 = arith.constant 0 : index
    %c0_70 = arith.constant 0 : index
    %29 = vector.load %arg20[%c4_67, %c0_68, %c0_69, %c0_70] : memref<5x5x8x16xf32, #tpu.memory_space<vmem>>, vector<1x5x8x16xf32>
    tpu.vector_store %arg20[%c4_67, %c0_68, %c0_69, %c0_70], %28 {strides = array<i32>} : memref<5x5x8x16xf32, #tpu.memory_space<vmem>>, vector<1x5x8x16xf32>,
    %cst_71 = arith.constant 0.000000e+00 : f32
    %30 = vector.broadcast %cst_71 : f32 to vector<5x1x8x16xf32>
    %c0_72 = arith.constant 0 : index
    %c4_73 = arith.constant 4 : index
    %c0_74 = arith.constant 0 : index
    %c0_75 = arith.constant 0 : index
    %31 = vector.load %arg20[%c0_72, %c4_73, %c0_74, %c0_75] : memref<5x5x8x16xf32, #tpu.memory_space<vmem>>, vector<5x1x8x16xf32>
    tpu.vector_store %arg20[%c0_72, %c4_73, %c0_74, %c0_75], %30 {strides = array<i32>} : memref<5x5x8x16xf32, #tpu.memory_space<vmem>>, vector<5x1x8x16xf32>,
    %cst_76 = arith.constant 0.000000e+00 : f32
    %32 = vector.broadcast %cst_76 : f32 to vector<1x3x8x32xf32>
    %c0_77 = arith.constant 0 : index
    %c0_78 = arith.constant 0 : index
    %c0_79 = arith.constant 0 : index
    %c0_80 = arith.constant 0 : index
    %33 = vector.load %arg21[%c0_77, %c0_78, %c0_79, %c0_80] : memref<3x3x8x32xf32, #tpu.memory_space<vmem>>, vector<1x3x8x32xf32>
    tpu.vector_store %arg21[%c0_77, %c0_78, %c0_79, %c0_80], %32 {strides = array<i32>} : memref<3x3x8x32xf32, #tpu.memory_space<vmem>>, vector<1x3x8x32xf32>,
    %cst_81 = arith.constant 0.000000e+00 : f32
    %34 = vector.broadcast %cst_81 : f32 to vector<3x1x8x32xf32>
    %c0_82 = arith.constant 0 : index
    %c0_83 = arith.constant 0 : index
    %c0_84 = arith.constant 0 : index
    %c0_85 = arith.constant 0 : index
    %35 = vector.load %arg21[%c0_82, %c0_83, %c0_84, %c0_85] : memref<3x3x8x32xf32, #tpu.memory_space<vmem>>, vector<3x1x8x32xf32>
    tpu.vector_store %arg21[%c0_82, %c0_83, %c0_84, %c0_85], %34 {strides = array<i32>} : memref<3x3x8x32xf32, #tpu.memory_space<vmem>>, vector<3x1x8x32xf32>,
    %cst_86 = arith.constant 0.000000e+00 : f32
    %36 = vector.broadcast %cst_86 : f32 to vector<1x3x8x32xf32>
    %c0_87 = arith.constant 0 : index
    %c0_88 = arith.constant 0 : index
    %c0_89 = arith.constant 0 : index
    %c0_90 = arith.constant 0 : index
    %37 = vector.load %arg22[%c0_87, %c0_88, %c0_89, %c0_90] : memref<3x3x8x32xf32, #tpu.memory_space<vmem>>, vector<1x3x8x32xf32>
    tpu.vector_store %arg22[%c0_87, %c0_88, %c0_89, %c0_90], %36 {strides = array<i32>} : memref<3x3x8x32xf32, #tpu.memory_space<vmem>>, vector<1x3x8x32xf32>,
    %cst_91 = arith.constant 0.000000e+00 : f32
    %38 = vector.broadcast %cst_91 : f32 to vector<3x1x8x32xf32>
    %c0_92 = arith.constant 0 : index
    %c2 = arith.constant 2 : index
    %c0_93 = arith.constant 0 : index
    %c0_94 = arith.constant 0 : index
    %39 = vector.load %arg22[%c0_92, %c2, %c0_93, %c0_94] : memref<3x3x8x32xf32, #tpu.memory_space<vmem>>, vector<3x1x8x32xf32>
    tpu.vector_store %arg22[%c0_92, %c2, %c0_93, %c0_94], %38 {strides = array<i32>} : memref<3x3x8x32xf32, #tpu.memory_space<vmem>>, vector<3x1x8x32xf32>,
    %cst_95 = arith.constant 0.000000e+00 : f32
    %40 = vector.broadcast %cst_95 : f32 to vector<1x3x8x32xf32>
    %c2_96 = arith.constant 2 : index
    %c0_97 = arith.constant 0 : index
    %c0_98 = arith.constant 0 : index
    %c0_99 = arith.constant 0 : index
    %41 = vector.load %arg23[%c2_96, %c0_97, %c0_98, %c0_99] : memref<3x3x8x32xf32, #tpu.memory_space<vmem>>, vector<1x3x8x32xf32>
    tpu.vector_store %arg23[%c2_96, %c0_97, %c0_98, %c0_99], %40 {strides = array<i32>} : memref<3x3x8x32xf32, #tpu.memory_space<vmem>>, vector<1x3x8x32xf32>,
    %cst_100 = arith.constant 0.000000e+00 : f32
    %42 = vector.broadcast %cst_100 : f32 to vector<3x1x8x32xf32>
    %c0_101 = arith.constant 0 : index
    %c0_102 = arith.constant 0 : index
    %c0_103 = arith.constant 0 : index
    %c0_104 = arith.constant 0 : index
    %43 = vector.load %arg23[%c0_101, %c0_102, %c0_103, %c0_104] : memref<3x3x8x32xf32, #tpu.memory_space<vmem>>, vector<3x1x8x32xf32>
    tpu.vector_store %arg23[%c0_101, %c0_102, %c0_103, %c0_104], %42 {strides = array<i32>} : memref<3x3x8x32xf32, #tpu.memory_space<vmem>>, vector<3x1x8x32xf32>,
    %cst_105 = arith.constant 0.000000e+00 : f32
    %44 = vector.broadcast %cst_105 : f32 to vector<1x3x8x32xf32>
    %c2_106 = arith.constant 2 : index
    %c0_107 = arith.constant 0 : index
    %c0_108 = arith.constant 0 : index
    %c0_109 = arith.constant 0 : index
    %45 = vector.load %arg24[%c2_106, %c0_107, %c0_108, %c0_109] : memref<3x3x8x32xf32, #tpu.memory_space<vmem>>, vector<1x3x8x32xf32>
    tpu.vector_store %arg24[%c2_106, %c0_107, %c0_108, %c0_109], %44 {strides = array<i32>} : memref<3x3x8x32xf32, #tpu.memory_space<vmem>>, vector<1x3x8x32xf32>,
    %cst_110 = arith.constant 0.000000e+00 : f32
    %46 = vector.broadcast %cst_110 : f32 to vector<3x1x8x32xf32>
    %c0_111 = arith.constant 0 : index
    %c2_112 = arith.constant 2 : index
    %c0_113 = arith.constant 0 : index
    %c0_114 = arith.constant 0 : index
    %47 = vector.load %arg24[%c0_111, %c2_112, %c0_113, %c0_114] : memref<3x3x8x32xf32, #tpu.memory_space<vmem>>, vector<3x1x8x32xf32>
    tpu.vector_store %arg24[%c0_111, %c2_112, %c0_113, %c0_114], %46 {strides = array<i32>} : memref<3x3x8x32xf32, #tpu.memory_space<vmem>>, vector<3x1x8x32xf32>,
    %cst_115 = arith.constant 0.000000e+00 : f32
    %48 = vector.broadcast %cst_115 : f32 to vector<1x2x8x64xf32>
    %c0_116 = arith.constant 0 : index
    %c0_117 = arith.constant 0 : index
    %c0_118 = arith.constant 0 : index
    %c0_119 = arith.constant 0 : index
    %49 = vector.load %arg25[%c0_116, %c0_117, %c0_118, %c0_119] : memref<2x2x8x64xf32, #tpu.memory_space<vmem>>, vector<1x2x8x64xf32>
    tpu.vector_store %arg25[%c0_116, %c0_117, %c0_118, %c0_119], %48 {strides = array<i32>} : memref<2x2x8x64xf32, #tpu.memory_space<vmem>>, vector<1x2x8x64xf32>,
    %cst_120 = arith.constant 0.000000e+00 : f32
    %50 = vector.broadcast %cst_120 : f32 to vector<2x1x8x64xf32>
    %c0_121 = arith.constant 0 : index
    %c0_122 = arith.constant 0 : index
    %c0_123 = arith.constant 0 : index
    %c0_124 = arith.constant 0 : index
    %51 = vector.load %arg25[%c0_121, %c0_122, %c0_123, %c0_124] : memref<2x2x8x64xf32, #tpu.memory_space<vmem>>, vector<2x1x8x64xf32>
    tpu.vector_store %arg25[%c0_121, %c0_122, %c0_123, %c0_124], %50 {strides = array<i32>} : memref<2x2x8x64xf32, #tpu.memory_space<vmem>>, vector<2x1x8x64xf32>,
    %cst_125 = arith.constant 0.000000e+00 : f32
    %52 = vector.broadcast %cst_125 : f32 to vector<1x2x8x64xf32>
    %c0_126 = arith.constant 0 : index
    %c0_127 = arith.constant 0 : index
    %c0_128 = arith.constant 0 : index
    %c0_129 = arith.constant 0 : index
    %53 = vector.load %arg26[%c0_126, %c0_127, %c0_128, %c0_129] : memref<2x2x8x64xf32, #tpu.memory_space<vmem>>, vector<1x2x8x64xf32>
    tpu.vector_store %arg26[%c0_126, %c0_127, %c0_128, %c0_129], %52 {strides = array<i32>} : memref<2x2x8x64xf32, #tpu.memory_space<vmem>>, vector<1x2x8x64xf32>,
    %cst_130 = arith.constant 0.000000e+00 : f32
    %54 = vector.broadcast %cst_130 : f32 to vector<2x1x8x64xf32>
    %c0_131 = arith.constant 0 : index
    %c1 = arith.constant 1 : index
    %c0_132 = arith.constant 0 : index
    %c0_133 = arith.constant 0 : index
    %55 = vector.load %arg26[%c0_131, %c1, %c0_132, %c0_133] : memref<2x2x8x64xf32, #tpu.memory_space<vmem>>, vector<2x1x8x64xf32>
    tpu.vector_store %arg26[%c0_131, %c1, %c0_132, %c0_133], %54 {strides = array<i32>} : memref<2x2x8x64xf32, #tpu.memory_space<vmem>>, vector<2x1x8x64xf32>,
    %cst_134 = arith.constant 0.000000e+00 : f32
    %56 = vector.broadcast %cst_134 : f32 to vector<1x2x8x64xf32>
    %c1_135 = arith.constant 1 : index
    %c0_136 = arith.constant 0 : index
    %c0_137 = arith.constant 0 : index
    %c0_138 = arith.constant 0 : index
    %57 = vector.load %arg27[%c1_135, %c0_136, %c0_137, %c0_138] : memref<2x2x8x64xf32, #tpu.memory_space<vmem>>, vector<1x2x8x64xf32>
    tpu.vector_store %arg27[%c1_135, %c0_136, %c0_137, %c0_138], %56 {strides = array<i32>} : memref<2x2x8x64xf32, #tpu.memory_space<vmem>>, vector<1x2x8x64xf32>,
    %cst_139 = arith.constant 0.000000e+00 : f32
    %58 = vector.broadcast %cst_139 : f32 to vector<2x1x8x64xf32>
    %c0_140 = arith.constant 0 : index
    %c0_141 = arith.constant 0 : index
    %c0_142 = arith.constant 0 : index
    %c0_143 = arith.constant 0 : index
    %59 = vector.load %arg27[%c0_140, %c0_141, %c0_142, %c0_143] : memref<2x2x8x64xf32, #tpu.memory_space<vmem>>, vector<2x1x8x64xf32>
    tpu.vector_store %arg27[%c0_140, %c0_141, %c0_142, %c0_143], %58 {strides = array<i32>} : memref<2x2x8x64xf32, #tpu.memory_space<vmem>>, vector<2x1x8x64xf32>,
    %cst_144 = arith.constant 0.000000e+00 : f32
    %60 = vector.broadcast %cst_144 : f32 to vector<1x2x8x64xf32>
    %c1_145 = arith.constant 1 : index
    %c0_146 = arith.constant 0 : index
    %c0_147 = arith.constant 0 : index
    %c0_148 = arith.constant 0 : index
    %61 = vector.load %arg28[%c1_145, %c0_146, %c0_147, %c0_148] : memref<2x2x8x64xf32, #tpu.memory_space<vmem>>, vector<1x2x8x64xf32>
    tpu.vector_store %arg28[%c1_145, %c0_146, %c0_147, %c0_148], %60 {strides = array<i32>} : memref<2x2x8x64xf32, #tpu.memory_space<vmem>>, vector<1x2x8x64xf32>,
    %cst_149 = arith.constant 0.000000e+00 : f32
    %62 = vector.broadcast %cst_149 : f32 to vector<2x1x8x64xf32>
    %c0_150 = arith.constant 0 : index
    %c1_151 = arith.constant 1 : index
    %c0_152 = arith.constant 0 : index
    %c0_153 = arith.constant 0 : index
    %63 = vector.load %arg28[%c0_150, %c1_151, %c0_152, %c0_153] : memref<2x2x8x64xf32, #tpu.memory_space<vmem>>, vector<2x1x8x64xf32>
    tpu.vector_store %arg28[%c0_150, %c1_151, %c0_152, %c0_153], %62 {strides = array<i32>} : memref<2x2x8x64xf32, #tpu.memory_space<vmem>>, vector<2x1x8x64xf32>,
    %c0_154 = arith.constant 0 : index
    %c0_155 = arith.constant 0 : index
    %c0_156 = arith.constant 0 : index
    %c0_157 = arith.constant 0 : index
    %64 = vector.load %arg1[%c0_154, %c0_155, %c0_156, %c0_157] : memref<16x16x8x4xf32, #tpu.memory_space<vmem>>, vector<16x16x8x4xf32>
    %65 = vector.shape_cast %64 : vector<16x16x8x4xf32> to vector<8x2x8x2x8x4xf32>
    %66 = vector.extract_strided_slice %65 {offsets = [0, 0, 0, 0, 0, 0], sizes = [8, 1, 8, 1, 8, 4], strides = [1, 1, 1, 1, 1, 1]} : vector<8x2x8x2x8x4xf32> to vector<8x1x8x1x8x4xf32>
    %67 = vector.shape_cast %66 : vector<8x1x8x1x8x4xf32> to vector<8x8x8x4xf32>
    %c0_158 = arith.constant 0 : index
    %c0_159 = arith.constant 0 : index
    %c0_160 = arith.constant 0 : index
    %c0_161 = arith.constant 0 : index
    %68 = vector.load %arg16[%c0_158, %c0_159, %c0_160, %c0_161] : memref<9x9x8x4xf32, #tpu.memory_space<vmem>>, vector<8x8x8x4xf32>
    tpu.vector_store %arg16[%c0_158, %c0_159, %c0_160, %c0_161], %67 {strides = array<i32>} : memref<9x9x8x4xf32, #tpu.memory_space<vmem>>, vector<8x8x8x4xf32>,
    %69 = vector.extract_strided_slice %65 {offsets = [0, 0, 0, 1, 0, 0], sizes = [8, 1, 8, 1, 8, 4], strides = [1, 1, 1, 1, 1, 1]} : vector<8x2x8x2x8x4xf32> to vector<8x1x8x1x8x4xf32>
    %70 = vector.shape_cast %69 : vector<8x1x8x1x8x4xf32> to vector<8x8x8x4xf32>
    %c0_162 = arith.constant 0 : index
    %c1_163 = arith.constant 1 : index
    %c0_164 = arith.constant 0 : index
    %c0_165 = arith.constant 0 : index
    %71 = vector.load %arg15[%c0_162, %c1_163, %c0_164, %c0_165] : memref<9x9x8x4xf32, #tpu.memory_space<vmem>>, vector<8x8x8x4xf32>
    tpu.vector_store %arg15[%c0_162, %c1_163, %c0_164, %c0_165], %70 {strides = array<i32>} : memref<9x9x8x4xf32, #tpu.memory_space<vmem>>, vector<8x8x8x4xf32>,
    %72 = vector.extract_strided_slice %65 {offsets = [0, 1, 0, 0, 0, 0], sizes = [8, 1, 8, 1, 8, 4], strides = [1, 1, 1, 1, 1, 1]} : vector<8x2x8x2x8x4xf32> to vector<8x1x8x1x8x4xf32>
    %73 = vector.shape_cast %72 : vector<8x1x8x1x8x4xf32> to vector<8x8x8x4xf32>
    %c1_166 = arith.constant 1 : index
    %c0_167 = arith.constant 0 : index
    %c0_168 = arith.constant 0 : index
    %c0_169 = arith.constant 0 : index
    %74 = vector.load %arg14[%c1_166, %c0_167, %c0_168, %c0_169] : memref<9x9x8x4xf32, #tpu.memory_space<vmem>>, vector<8x8x8x4xf32>
    tpu.vector_store %arg14[%c1_166, %c0_167, %c0_168, %c0_169], %73 {strides = array<i32>} : memref<9x9x8x4xf32, #tpu.memory_space<vmem>>, vector<8x8x8x4xf32>,
    %75 = vector.extract_strided_slice %65 {offsets = [0, 1, 0, 1, 0, 0], sizes = [8, 1, 8, 1, 8, 4], strides = [1, 1, 1, 1, 1, 1]} : vector<8x2x8x2x8x4xf32> to vector<8x1x8x1x8x4xf32>
    %76 = vector.shape_cast %75 : vector<8x1x8x1x8x4xf32> to vector<8x8x8x4xf32>
    %c1_170 = arith.constant 1 : index
    %c1_171 = arith.constant 1 : index
    %c0_172 = arith.constant 0 : index
    %c0_173 = arith.constant 0 : index
    %77 = vector.load %arg13[%c1_170, %c1_171, %c0_172, %c0_173] : memref<9x9x8x4xf32, #tpu.memory_space<vmem>>, vector<8x8x8x4xf32>
    tpu.vector_store %arg13[%c1_170, %c1_171, %c0_172, %c0_173], %76 {strides = array<i32>} : memref<9x9x8x4xf32, #tpu.memory_space<vmem>>, vector<8x8x8x4xf32>,
    %cst_174 = arith.constant 0.000000e+00 : f32
    %78 = vector.broadcast %cst_174 : f32 to vector<512x16xf32>
    %c0_175 = arith.constant 0 : index
    %c0_176 = arith.constant 0 : index
    %c0_177 = arith.constant 0 : index
    %c0_178 = arith.constant 0 : index
    %79 = vector.load %arg13[%c0_175, %c0_176, %c0_177, %c0_178] : memref<9x9x8x4xf32, #tpu.memory_space<vmem>>, vector<8x8x8x4xf32>
    %80 = vector.shape_cast %79 : vector<8x8x8x4xf32> to vector<512x4xf32>
    %81 = arith.truncf %80 : vector<512x4xf32> to vector<512x4xbf16>
    %c0_179 = arith.constant 0 : index
    %c0_180 = arith.constant 0 : index
    %c0_181 = arith.constant 0 : index
    %82 = vector.load %arg2[%c0_179, %c0_180, %c0_181] : memref<9x4x16xbf16, #tpu.memory_space<vmem>>, vector<1x4x16xbf16>
    %83 = vector.shape_cast %82 : vector<1x4x16xbf16> to vector<4x16xbf16>
    %cst_182 = arith.constant dense<0.000000e+00> : vector<512x16xf32>
    %84 = tpu.matmul %81, %83, %cst_182 {dimension_numbers = #tpu.dot_dimension_numbers<[1], [0], [0], [1], [0, 0, 1, 1], [], []>} : vector<512x4xbf16>, vector<4x16xbf16>, vector<512x16xf32> -> vector<512x16xf32>
    %85 = arith.addf %78, %84 : vector<512x16xf32>
    %c0_183 = arith.constant 0 : index
    %c0_184 = arith.constant 0 : index
    %c0_185 = arith.constant 0 : index
    %c0_186 = arith.constant 0 : index
    %86 = vector.load %arg14[%c0_183, %c0_184, %c0_185, %c0_186] : memref<9x9x8x4xf32, #tpu.memory_space<vmem>>, vector<8x8x8x4xf32>
    %87 = vector.shape_cast %86 : vector<8x8x8x4xf32> to vector<512x4xf32>
    %88 = arith.truncf %87 : vector<512x4xf32> to vector<512x4xbf16>
    %c1_187 = arith.constant 1 : index
    %c0_188 = arith.constant 0 : index
    %c0_189 = arith.constant 0 : index
    %89 = vector.load %arg2[%c1_187, %c0_188, %c0_189] : memref<9x4x16xbf16, #tpu.memory_space<vmem>>, vector<1x4x16xbf16>
    %90 = vector.shape_cast %89 : vector<1x4x16xbf16> to vector<4x16xbf16>
    %cst_190 = arith.constant dense<0.000000e+00> : vector<512x16xf32>
    %91 = tpu.matmul %88, %90, %cst_190 {dimension_numbers = #tpu.dot_dimension_numbers<[1], [0], [0], [1], [0, 0, 1, 1], [], []>} : vector<512x4xbf16>, vector<4x16xbf16>, vector<512x16xf32> -> vector<512x16xf32>
    %92 = arith.addf %85, %91 : vector<512x16xf32>
    %c0_191 = arith.constant 0 : index
    %c1_192 = arith.constant 1 : index
    %c0_193 = arith.constant 0 : index
    %c0_194 = arith.constant 0 : index
    %93 = vector.load %arg13[%c0_191, %c1_192, %c0_193, %c0_194] : memref<9x9x8x4xf32, #tpu.memory_space<vmem>>, vector<8x8x8x4xf32>
    %94 = vector.shape_cast %93 : vector<8x8x8x4xf32> to vector<512x4xf32>
    %95 = arith.truncf %94 : vector<512x4xf32> to vector<512x4xbf16>
    %c2_195 = arith.constant 2 : index
    %c0_196 = arith.constant 0 : index
    %c0_197 = arith.constant 0 : index
    %96 = vector.load %arg2[%c2_195, %c0_196, %c0_197] : memref<9x4x16xbf16, #tpu.memory_space<vmem>>, vector<1x4x16xbf16>
    %97 = vector.shape_cast %96 : vector<1x4x16xbf16> to vector<4x16xbf16>
    %cst_198 = arith.constant dense<0.000000e+00> : vector<512x16xf32>
    %98 = tpu.matmul %95, %97, %cst_198 {dimension_numbers = #tpu.dot_dimension_numbers<[1], [0], [0], [1], [0, 0, 1, 1], [], []>} : vector<512x4xbf16>, vector<4x16xbf16>, vector<512x16xf32> -> vector<512x16xf32>
    %99 = arith.addf %92, %98 : vector<512x16xf32>
    %c0_199 = arith.constant 0 : index
    %c0_200 = arith.constant 0 : index
    %c0_201 = arith.constant 0 : index
    %c0_202 = arith.constant 0 : index
    %100 = vector.load %arg15[%c0_199, %c0_200, %c0_201, %c0_202] : memref<9x9x8x4xf32, #tpu.memory_space<vmem>>, vector<8x8x8x4xf32>
    %101 = vector.shape_cast %100 : vector<8x8x8x4xf32> to vector<512x4xf32>
    %102 = arith.truncf %101 : vector<512x4xf32> to vector<512x4xbf16>
    %c3 = arith.constant 3 : index
    %c0_203 = arith.constant 0 : index
    %c0_204 = arith.constant 0 : index
    %103 = vector.load %arg2[%c3, %c0_203, %c0_204] : memref<9x4x16xbf16, #tpu.memory_space<vmem>>, vector<1x4x16xbf16>
    %104 = vector.shape_cast %103 : vector<1x4x16xbf16> to vector<4x16xbf16>
    %cst_205 = arith.constant dense<0.000000e+00> : vector<512x16xf32>
    %105 = tpu.matmul %102, %104, %cst_205 {dimension_numbers = #tpu.dot_dimension_numbers<[1], [0], [0], [1], [0, 0, 1, 1], [], []>} : vector<512x4xbf16>, vector<4x16xbf16>, vector<512x16xf32> -> vector<512x16xf32>
    %106 = arith.addf %99, %105 : vector<512x16xf32>
    %c0_206 = arith.constant 0 : index
    %c0_207 = arith.constant 0 : index
    %c0_208 = arith.constant 0 : index
    %c0_209 = arith.constant 0 : index
    %107 = vector.load %arg16[%c0_206, %c0_207, %c0_208, %c0_209] : memref<9x9x8x4xf32, #tpu.memory_space<vmem>>, vector<8x8x8x4xf32>
    %108 = vector.shape_cast %107 : vector<8x8x8x4xf32> to vector<512x4xf32>
    %109 = arith.truncf %108 : vector<512x4xf32> to vector<512x4xbf16>
    %c4_210 = arith.constant 4 : index
    %c0_211 = arith.constant 0 : index
    %c0_212 = arith.constant 0 : index
    %110 = vector.load %arg2[%c4_210, %c0_211, %c0_212] : memref<9x4x16xbf16, #tpu.memory_space<vmem>>, vector<1x4x16xbf16>
    %111 = vector.shape_cast %110 : vector<1x4x16xbf16> to vector<4x16xbf16>
    %cst_213 = arith.constant dense<0.000000e+00> : vector<512x16xf32>
    %112 = tpu.matmul %109, %111, %cst_213 {dimension_numbers = #tpu.dot_dimension_numbers<[1], [0], [0], [1], [0, 0, 1, 1], [], []>} : vector<512x4xbf16>, vector<4x16xbf16>, vector<512x16xf32> -> vector<512x16xf32>
    %113 = arith.addf %106, %112 : vector<512x16xf32>
    %c0_214 = arith.constant 0 : index
    %c1_215 = arith.constant 1 : index
    %c0_216 = arith.constant 0 : index
    %c0_217 = arith.constant 0 : index
    %114 = vector.load %arg15[%c0_214, %c1_215, %c0_216, %c0_217] : memref<9x9x8x4xf32, #tpu.memory_space<vmem>>, vector<8x8x8x4xf32>
    %115 = vector.shape_cast %114 : vector<8x8x8x4xf32> to vector<512x4xf32>
    %116 = arith.truncf %115 : vector<512x4xf32> to vector<512x4xbf16>
    %c5 = arith.constant 5 : index
    %c0_218 = arith.constant 0 : index
    %c0_219 = arith.constant 0 : index
    %117 = vector.load %arg2[%c5, %c0_218, %c0_219] : memref<9x4x16xbf16, #tpu.memory_space<vmem>>, vector<1x4x16xbf16>
    %118 = vector.shape_cast %117 : vector<1x4x16xbf16> to vector<4x16xbf16>
    %cst_220 = arith.constant dense<0.000000e+00> : vector<512x16xf32>
    %119 = tpu.matmul %116, %118, %cst_220 {dimension_numbers = #tpu.dot_dimension_numbers<[1], [0], [0], [1], [0, 0, 1, 1], [], []>} : vector<512x4xbf16>, vector<4x16xbf16>, vector<512x16xf32> -> vector<512x16xf32>
    %120 = arith.addf %113, %119 : vector<512x16xf32>
    %c1_221 = arith.constant 1 : index
    %c0_222 = arith.constant 0 : index
    %c0_223 = arith.constant 0 : index
    %c0_224 = arith.constant 0 : index
    %121 = vector.load %arg13[%c1_221, %c0_222, %c0_223, %c0_224] : memref<9x9x8x4xf32, #tpu.memory_space<vmem>>, vector<8x8x8x4xf32>
    %122 = vector.shape_cast %121 : vector<8x8x8x4xf32> to vector<512x4xf32>
    %123 = arith.truncf %122 : vector<512x4xf32> to vector<512x4xbf16>
    %c6 = arith.constant 6 : index
    %c0_225 = arith.constant 0 : index
    %c0_226 = arith.constant 0 : index
    %124 = vector.load %arg2[%c6, %c0_225, %c0_226] : memref<9x4x16xbf16, #tpu.memory_space<vmem>>, vector<1x4x16xbf16>
    %125 = vector.shape_cast %124 : vector<1x4x16xbf16> to vector<4x16xbf16>
    %cst_227 = arith.constant dense<0.000000e+00> : vector<512x16xf32>
    %126 = tpu.matmul %123, %125, %cst_227 {dimension_numbers = #tpu.dot_dimension_numbers<[1], [0], [0], [1], [0, 0, 1, 1], [], []>} : vector<512x4xbf16>, vector<4x16xbf16>, vector<512x16xf32> -> vector<512x16xf32>
    %127 = arith.addf %120, %126 : vector<512x16xf32>
    %c1_228 = arith.constant 1 : index
    %c0_229 = arith.constant 0 : index
    %c0_230 = arith.constant 0 : index
    %c0_231 = arith.constant 0 : index
    %128 = vector.load %arg14[%c1_228, %c0_229, %c0_230, %c0_231] : memref<9x9x8x4xf32, #tpu.memory_space<vmem>>, vector<8x8x8x4xf32>
    %129 = vector.shape_cast %128 : vector<8x8x8x4xf32> to vector<512x4xf32>
    %130 = arith.truncf %129 : vector<512x4xf32> to vector<512x4xbf16>
    %c7 = arith.constant 7 : index
    %c0_232 = arith.constant 0 : index
    %c0_233 = arith.constant 0 : index
    %131 = vector.load %arg2[%c7, %c0_232, %c0_233] : memref<9x4x16xbf16, #tpu.memory_space<vmem>>, vector<1x4x16xbf16>
    %132 = vector.shape_cast %131 : vector<1x4x16xbf16> to vector<4x16xbf16>
    %cst_234 = arith.constant dense<0.000000e+00> : vector<512x16xf32>
    %133 = tpu.matmul %130, %132, %cst_234 {dimension_numbers = #tpu.dot_dimension_numbers<[1], [0], [0], [1], [0, 0, 1, 1], [], []>} : vector<512x4xbf16>, vector<4x16xbf16>, vector<512x16xf32> -> vector<512x16xf32>
    %134 = arith.addf %127, %133 : vector<512x16xf32>
    %c1_235 = arith.constant 1 : index
    %c1_236 = arith.constant 1 : index
    %c0_237 = arith.constant 0 : index
    %c0_238 = arith.constant 0 : index
    %135 = vector.load %arg13[%c1_235, %c1_236, %c0_237, %c0_238] : memref<9x9x8x4xf32, #tpu.memory_space<vmem>>, vector<8x8x8x4xf32>
    %136 = vector.shape_cast %135 : vector<8x8x8x4xf32> to vector<512x4xf32>
    %137 = arith.truncf %136 : vector<512x4xf32> to vector<512x4xbf16>
    %c8_239 = arith.constant 8 : index
    %c0_240 = arith.constant 0 : index
    %c0_241 = arith.constant 0 : index
    %138 = vector.load %arg2[%c8_239, %c0_240, %c0_241] : memref<9x4x16xbf16, #tpu.memory_space<vmem>>, vector<1x4x16xbf16>
    %139 = vector.shape_cast %138 : vector<1x4x16xbf16> to vector<4x16xbf16>
    %cst_242 = arith.constant dense<0.000000e+00> : vector<512x16xf32>
    %140 = tpu.matmul %137, %139, %cst_242 {dimension_numbers = #tpu.dot_dimension_numbers<[1], [0], [0], [1], [0, 0, 1, 1], [], []>} : vector<512x4xbf16>, vector<4x16xbf16>, vector<512x16xf32> -> vector<512x16xf32>
    %141 = arith.addf %134, %140 : vector<512x16xf32>
    %c0_243 = arith.constant 0 : index
    %c0_244 = arith.constant 0 : index
    %c0_245 = arith.constant 0 : index
    %142 = vector.load %arg3[%c0_243, %c0_244, %c0_245] : memref<3x1x16xf32, #tpu.memory_space<vmem>>, vector<1x1x16xf32>
    %143 = vector.shape_cast %142 : vector<1x1x16xf32> to vector<1x16xf32>
    %144 = vector.broadcast %143 : vector<1x16xf32> to vector<512x16xf32>
    %145 = arith.addf %141, %144 : vector<512x16xf32>
    %cst_246 = arith.constant 0.000000e+00 : f32
    %146 = vector.broadcast %cst_246 : f32 to vector<512x16xf32>
    %147 = arith.cmpf ogt, %145, %146 : vector<512x16xf32>
    %cst_247 = arith.constant 2.000000e-01 : f32
    %148 = vector.broadcast %cst_247 : f32 to vector<512x16xf32>
    %149 = arith.mulf %148, %145 : vector<512x16xf32>
    %150 = arith.select %147, %145, %149 : vector<512x16xi1>, vector<512x16xf32>
    %c1_248 = arith.constant 1 : index
    %c0_249 = arith.constant 0 : index
    %c0_250 = arith.constant 0 : index
    %151 = vector.load %arg3[%c1_248, %c0_249, %c0_250] : memref<3x1x16xf32, #tpu.memory_space<vmem>>, vector<1x1x16xf32>
    %152 = vector.shape_cast %151 : vector<1x1x16xf32> to vector<1x16xf32>
    %153 = vector.broadcast %152 : vector<1x16xf32> to vector<512x16xf32>
    %154 = arith.mulf %150, %153 : vector<512x16xf32>
    %c2_251 = arith.constant 2 : index
    %c0_252 = arith.constant 0 : index
    %c0_253 = arith.constant 0 : index
    %155 = vector.load %arg3[%c2_251, %c0_252, %c0_253] : memref<3x1x16xf32, #tpu.memory_space<vmem>>, vector<1x1x16xf32>
    %156 = vector.shape_cast %155 : vector<1x1x16xf32> to vector<1x16xf32>
    %157 = vector.broadcast %156 : vector<1x16xf32> to vector<512x16xf32>
    %158 = arith.addf %154, %157 : vector<512x16xf32>
    %159 = vector.shape_cast %158 : vector<512x16xf32> to vector<8x8x8x16xf32>
    %160 = vector.shape_cast %159 : vector<8x8x8x16xf32> to vector<4x2x4x2x8x16xf32>
    %161 = vector.extract_strided_slice %160 {offsets = [0, 0, 0, 0, 0, 0], sizes = [4, 1, 4, 1, 8, 16], strides = [1, 1, 1, 1, 1, 1]} : vector<4x2x4x2x8x16xf32> to vector<4x1x4x1x8x16xf32>
    %162 = vector.shape_cast %161 : vector<4x1x4x1x8x16xf32> to vector<4x4x8x16xf32>
    %c0_254 = arith.constant 0 : index
    %c0_255 = arith.constant 0 : index
    %c0_256 = arith.constant 0 : index
    %c0_257 = arith.constant 0 : index
    %163 = vector.load %arg20[%c0_254, %c0_255, %c0_256, %c0_257] : memref<5x5x8x16xf32, #tpu.memory_space<vmem>>, vector<4x4x8x16xf32>
    tpu.vector_store %arg20[%c0_254, %c0_255, %c0_256, %c0_257], %162 {strides = array<i32>} : memref<5x5x8x16xf32, #tpu.memory_space<vmem>>, vector<4x4x8x16xf32>,
    %164 = vector.extract_strided_slice %160 {offsets = [0, 0, 0, 1, 0, 0], sizes = [4, 1, 4, 1, 8, 16], strides = [1, 1, 1, 1, 1, 1]} : vector<4x2x4x2x8x16xf32> to vector<4x1x4x1x8x16xf32>
    %165 = vector.shape_cast %164 : vector<4x1x4x1x8x16xf32> to vector<4x4x8x16xf32>
    %c0_258 = arith.constant 0 : index
    %c1_259 = arith.constant 1 : index
    %c0_260 = arith.constant 0 : index
    %c0_261 = arith.constant 0 : index
    %166 = vector.load %arg19[%c0_258, %c1_259, %c0_260, %c0_261] : memref<5x5x8x16xf32, #tpu.memory_space<vmem>>, vector<4x4x8x16xf32>
    tpu.vector_store %arg19[%c0_258, %c1_259, %c0_260, %c0_261], %165 {strides = array<i32>} : memref<5x5x8x16xf32, #tpu.memory_space<vmem>>, vector<4x4x8x16xf32>,
    %167 = vector.extract_strided_slice %160 {offsets = [0, 1, 0, 0, 0, 0], sizes = [4, 1, 4, 1, 8, 16], strides = [1, 1, 1, 1, 1, 1]} : vector<4x2x4x2x8x16xf32> to vector<4x1x4x1x8x16xf32>
    %168 = vector.shape_cast %167 : vector<4x1x4x1x8x16xf32> to vector<4x4x8x16xf32>
    %c1_262 = arith.constant 1 : index
    %c0_263 = arith.constant 0 : index
    %c0_264 = arith.constant 0 : index
    %c0_265 = arith.constant 0 : index
    %169 = vector.load %arg18[%c1_262, %c0_263, %c0_264, %c0_265] : memref<5x5x8x16xf32, #tpu.memory_space<vmem>>, vector<4x4x8x16xf32>
    tpu.vector_store %arg18[%c1_262, %c0_263, %c0_264, %c0_265], %168 {strides = array<i32>} : memref<5x5x8x16xf32, #tpu.memory_space<vmem>>, vector<4x4x8x16xf32>,
    %170 = vector.extract_strided_slice %160 {offsets = [0, 1, 0, 1, 0, 0], sizes = [4, 1, 4, 1, 8, 16], strides = [1, 1, 1, 1, 1, 1]} : vector<4x2x4x2x8x16xf32> to vector<4x1x4x1x8x16xf32>
    %171 = vector.shape_cast %170 : vector<4x1x4x1x8x16xf32> to vector<4x4x8x16xf32>
    %c1_266 = arith.constant 1 : index
    %c1_267 = arith.constant 1 : index
    %c0_268 = arith.constant 0 : index
    %c0_269 = arith.constant 0 : index
    %172 = vector.load %arg17[%c1_266, %c1_267, %c0_268, %c0_269] : memref<5x5x8x16xf32, #tpu.memory_space<vmem>>, vector<4x4x8x16xf32>
    tpu.vector_store %arg17[%c1_266, %c1_267, %c0_268, %c0_269], %171 {strides = array<i32>} : memref<5x5x8x16xf32, #tpu.memory_space<vmem>>, vector<4x4x8x16xf32>,
    %cst_270 = arith.constant 0.000000e+00 : f32
    %173 = vector.broadcast %cst_270 : f32 to vector<128x32xf32>
    %c0_271 = arith.constant 0 : index
    %c0_272 = arith.constant 0 : index
    %c0_273 = arith.constant 0 : index
    %c0_274 = arith.constant 0 : index
    %174 = vector.load %arg17[%c0_271, %c0_272, %c0_273, %c0_274] : memref<5x5x8x16xf32, #tpu.memory_space<vmem>>, vector<4x4x8x16xf32>
    %175 = vector.shape_cast %174 : vector<4x4x8x16xf32> to vector<128x16xf32>
    %176 = arith.truncf %175 : vector<128x16xf32> to vector<128x16xbf16>
    %c0_275 = arith.constant 0 : index
    %c0_276 = arith.constant 0 : index
    %c0_277 = arith.constant 0 : index
    %177 = vector.load %arg4[%c0_275, %c0_276, %c0_277] : memref<9x16x32xbf16, #tpu.memory_space<vmem>>, vector<1x16x32xbf16>
    %178 = vector.shape_cast %177 : vector<1x16x32xbf16> to vector<16x32xbf16>
    %cst_278 = arith.constant dense<0.000000e+00> : vector<128x32xf32>
    %179 = tpu.matmul %176, %178, %cst_278 {dimension_numbers = #tpu.dot_dimension_numbers<[1], [0], [0], [1], [0, 0, 1, 1], [], []>} : vector<128x16xbf16>, vector<16x32xbf16>, vector<128x32xf32> -> vector<128x32xf32>
    %180 = arith.addf %173, %179 : vector<128x32xf32>
    %c0_279 = arith.constant 0 : index
    %c0_280 = arith.constant 0 : index
    %c0_281 = arith.constant 0 : index
    %c0_282 = arith.constant 0 : index
    %181 = vector.load %arg18[%c0_279, %c0_280, %c0_281, %c0_282] : memref<5x5x8x16xf32, #tpu.memory_space<vmem>>, vector<4x4x8x16xf32>
    %182 = vector.shape_cast %181 : vector<4x4x8x16xf32> to vector<128x16xf32>
    %183 = arith.truncf %182 : vector<128x16xf32> to vector<128x16xbf16>
    %c1_283 = arith.constant 1 : index
    %c0_284 = arith.constant 0 : index
    %c0_285 = arith.constant 0 : index
    %184 = vector.load %arg4[%c1_283, %c0_284, %c0_285] : memref<9x16x32xbf16, #tpu.memory_space<vmem>>, vector<1x16x32xbf16>
    %185 = vector.shape_cast %184 : vector<1x16x32xbf16> to vector<16x32xbf16>
    %cst_286 = arith.constant dense<0.000000e+00> : vector<128x32xf32>
    %186 = tpu.matmul %183, %185, %cst_286 {dimension_numbers = #tpu.dot_dimension_numbers<[1], [0], [0], [1], [0, 0, 1, 1], [], []>} : vector<128x16xbf16>, vector<16x32xbf16>, vector<128x32xf32> -> vector<128x32xf32>
    %187 = arith.addf %180, %186 : vector<128x32xf32>
    %c0_287 = arith.constant 0 : index
    %c1_288 = arith.constant 1 : index
    %c0_289 = arith.constant 0 : index
    %c0_290 = arith.constant 0 : index
    %188 = vector.load %arg17[%c0_287, %c1_288, %c0_289, %c0_290] : memref<5x5x8x16xf32, #tpu.memory_space<vmem>>, vector<4x4x8x16xf32>
    %189 = vector.shape_cast %188 : vector<4x4x8x16xf32> to vector<128x16xf32>
    %190 = arith.truncf %189 : vector<128x16xf32> to vector<128x16xbf16>
    %c2_291 = arith.constant 2 : index
    %c0_292 = arith.constant 0 : index
    %c0_293 = arith.constant 0 : index
    %191 = vector.load %arg4[%c2_291, %c0_292, %c0_293] : memref<9x16x32xbf16, #tpu.memory_space<vmem>>, vector<1x16x32xbf16>
    %192 = vector.shape_cast %191 : vector<1x16x32xbf16> to vector<16x32xbf16>
    %cst_294 = arith.constant dense<0.000000e+00> : vector<128x32xf32>
    %193 = tpu.matmul %190, %192, %cst_294 {dimension_numbers = #tpu.dot_dimension_numbers<[1], [0], [0], [1], [0, 0, 1, 1], [], []>} : vector<128x16xbf16>, vector<16x32xbf16>, vector<128x32xf32> -> vector<128x32xf32>
    %194 = arith.addf %187, %193 : vector<128x32xf32>
    %c0_295 = arith.constant 0 : index
    %c0_296 = arith.constant 0 : index
    %c0_297 = arith.constant 0 : index
    %c0_298 = arith.constant 0 : index
    %195 = vector.load %arg19[%c0_295, %c0_296, %c0_297, %c0_298] : memref<5x5x8x16xf32, #tpu.memory_space<vmem>>, vector<4x4x8x16xf32>
    %196 = vector.shape_cast %195 : vector<4x4x8x16xf32> to vector<128x16xf32>
    %197 = arith.truncf %196 : vector<128x16xf32> to vector<128x16xbf16>
    %c3_299 = arith.constant 3 : index
    %c0_300 = arith.constant 0 : index
    %c0_301 = arith.constant 0 : index
    %198 = vector.load %arg4[%c3_299, %c0_300, %c0_301] : memref<9x16x32xbf16, #tpu.memory_space<vmem>>, vector<1x16x32xbf16>
    %199 = vector.shape_cast %198 : vector<1x16x32xbf16> to vector<16x32xbf16>
    %cst_302 = arith.constant dense<0.000000e+00> : vector<128x32xf32>
    %200 = tpu.matmul %197, %199, %cst_302 {dimension_numbers = #tpu.dot_dimension_numbers<[1], [0], [0], [1], [0, 0, 1, 1], [], []>} : vector<128x16xbf16>, vector<16x32xbf16>, vector<128x32xf32> -> vector<128x32xf32>
    %201 = arith.addf %194, %200 : vector<128x32xf32>
    %c0_303 = arith.constant 0 : index
    %c0_304 = arith.constant 0 : index
    %c0_305 = arith.constant 0 : index
    %c0_306 = arith.constant 0 : index
    %202 = vector.load %arg20[%c0_303, %c0_304, %c0_305, %c0_306] : memref<5x5x8x16xf32, #tpu.memory_space<vmem>>, vector<4x4x8x16xf32>
    %203 = vector.shape_cast %202 : vector<4x4x8x16xf32> to vector<128x16xf32>
    %204 = arith.truncf %203 : vector<128x16xf32> to vector<128x16xbf16>
    %c4_307 = arith.constant 4 : index
    %c0_308 = arith.constant 0 : index
    %c0_309 = arith.constant 0 : index
    %205 = vector.load %arg4[%c4_307, %c0_308, %c0_309] : memref<9x16x32xbf16, #tpu.memory_space<vmem>>, vector<1x16x32xbf16>
    %206 = vector.shape_cast %205 : vector<1x16x32xbf16> to vector<16x32xbf16>
    %cst_310 = arith.constant dense<0.000000e+00> : vector<128x32xf32>
    %207 = tpu.matmul %204, %206, %cst_310 {dimension_numbers = #tpu.dot_dimension_numbers<[1], [0], [0], [1], [0, 0, 1, 1], [], []>} : vector<128x16xbf16>, vector<16x32xbf16>, vector<128x32xf32> -> vector<128x32xf32>
    %208 = arith.addf %201, %207 : vector<128x32xf32>
    %c0_311 = arith.constant 0 : index
    %c1_312 = arith.constant 1 : index
    %c0_313 = arith.constant 0 : index
    %c0_314 = arith.constant 0 : index
    %209 = vector.load %arg19[%c0_311, %c1_312, %c0_313, %c0_314] : memref<5x5x8x16xf32, #tpu.memory_space<vmem>>, vector<4x4x8x16xf32>
    %210 = vector.shape_cast %209 : vector<4x4x8x16xf32> to vector<128x16xf32>
    %211 = arith.truncf %210 : vector<128x16xf32> to vector<128x16xbf16>
    %c5_315 = arith.constant 5 : index
    %c0_316 = arith.constant 0 : index
    %c0_317 = arith.constant 0 : index
    %212 = vector.load %arg4[%c5_315, %c0_316, %c0_317] : memref<9x16x32xbf16, #tpu.memory_space<vmem>>, vector<1x16x32xbf16>
    %213 = vector.shape_cast %212 : vector<1x16x32xbf16> to vector<16x32xbf16>
    %cst_318 = arith.constant dense<0.000000e+00> : vector<128x32xf32>
    %214 = tpu.matmul %211, %213, %cst_318 {dimension_numbers = #tpu.dot_dimension_numbers<[1], [0], [0], [1], [0, 0, 1, 1], [], []>} : vector<128x16xbf16>, vector<16x32xbf16>, vector<128x32xf32> -> vector<128x32xf32>
    %215 = arith.addf %208, %214 : vector<128x32xf32>
    %c1_319 = arith.constant 1 : index
    %c0_320 = arith.constant 0 : index
    %c0_321 = arith.constant 0 : index
    %c0_322 = arith.constant 0 : index
    %216 = vector.load %arg17[%c1_319, %c0_320, %c0_321, %c0_322] : memref<5x5x8x16xf32, #tpu.memory_space<vmem>>, vector<4x4x8x16xf32>
    %217 = vector.shape_cast %216 : vector<4x4x8x16xf32> to vector<128x16xf32>
    %218 = arith.truncf %217 : vector<128x16xf32> to vector<128x16xbf16>
    %c6_323 = arith.constant 6 : index
    %c0_324 = arith.constant 0 : index
    %c0_325 = arith.constant 0 : index
    %219 = vector.load %arg4[%c6_323, %c0_324, %c0_325] : memref<9x16x32xbf16, #tpu.memory_space<vmem>>, vector<1x16x32xbf16>
    %220 = vector.shape_cast %219 : vector<1x16x32xbf16> to vector<16x32xbf16>
    %cst_326 = arith.constant dense<0.000000e+00> : vector<128x32xf32>
    %221 = tpu.matmul %218, %220, %cst_326 {dimension_numbers = #tpu.dot_dimension_numbers<[1], [0], [0], [1], [0, 0, 1, 1], [], []>} : vector<128x16xbf16>, vector<16x32xbf16>, vector<128x32xf32> -> vector<128x32xf32>
    %222 = arith.addf %215, %221 : vector<128x32xf32>
    %c1_327 = arith.constant 1 : index
    %c0_328 = arith.constant 0 : index
    %c0_329 = arith.constant 0 : index
    %c0_330 = arith.constant 0 : index
    %223 = vector.load %arg18[%c1_327, %c0_328, %c0_329, %c0_330] : memref<5x5x8x16xf32, #tpu.memory_space<vmem>>, vector<4x4x8x16xf32>
    %224 = vector.shape_cast %223 : vector<4x4x8x16xf32> to vector<128x16xf32>
    %225 = arith.truncf %224 : vector<128x16xf32> to vector<128x16xbf16>
    %c7_331 = arith.constant 7 : index
    %c0_332 = arith.constant 0 : index
    %c0_333 = arith.constant 0 : index
    %226 = vector.load %arg4[%c7_331, %c0_332, %c0_333] : memref<9x16x32xbf16, #tpu.memory_space<vmem>>, vector<1x16x32xbf16>
    %227 = vector.shape_cast %226 : vector<1x16x32xbf16> to vector<16x32xbf16>
    %cst_334 = arith.constant dense<0.000000e+00> : vector<128x32xf32>
    %228 = tpu.matmul %225, %227, %cst_334 {dimension_numbers = #tpu.dot_dimension_numbers<[1], [0], [0], [1], [0, 0, 1, 1], [], []>} : vector<128x16xbf16>, vector<16x32xbf16>, vector<128x32xf32> -> vector<128x32xf32>
    %229 = arith.addf %222, %228 : vector<128x32xf32>
    %c1_335 = arith.constant 1 : index
    %c1_336 = arith.constant 1 : index
    %c0_337 = arith.constant 0 : index
    %c0_338 = arith.constant 0 : index
    %230 = vector.load %arg17[%c1_335, %c1_336, %c0_337, %c0_338] : memref<5x5x8x16xf32, #tpu.memory_space<vmem>>, vector<4x4x8x16xf32>
    %231 = vector.shape_cast %230 : vector<4x4x8x16xf32> to vector<128x16xf32>
    %232 = arith.truncf %231 : vector<128x16xf32> to vector<128x16xbf16>
    %c8_339 = arith.constant 8 : index
    %c0_340 = arith.constant 0 : index
    %c0_341 = arith.constant 0 : index
    %233 = vector.load %arg4[%c8_339, %c0_340, %c0_341] : memref<9x16x32xbf16, #tpu.memory_space<vmem>>, vector<1x16x32xbf16>
    %234 = vector.shape_cast %233 : vector<1x16x32xbf16> to vector<16x32xbf16>
    %cst_342 = arith.constant dense<0.000000e+00> : vector<128x32xf32>
    %235 = tpu.matmul %232, %234, %cst_342 {dimension_numbers = #tpu.dot_dimension_numbers<[1], [0], [0], [1], [0, 0, 1, 1], [], []>} : vector<128x16xbf16>, vector<16x32xbf16>, vector<128x32xf32> -> vector<128x32xf32>
    %236 = arith.addf %229, %235 : vector<128x32xf32>
    %c0_343 = arith.constant 0 : index
    %c0_344 = arith.constant 0 : index
    %c0_345 = arith.constant 0 : index
    %237 = vector.load %arg5[%c0_343, %c0_344, %c0_345] : memref<3x1x32xf32, #tpu.memory_space<vmem>>, vector<1x1x32xf32>
    %238 = vector.shape_cast %237 : vector<1x1x32xf32> to vector<1x32xf32>
    %239 = vector.broadcast %238 : vector<1x32xf32> to vector<128x32xf32>
    %240 = arith.addf %236, %239 : vector<128x32xf32>
    %cst_346 = arith.constant 0.000000e+00 : f32
    %241 = vector.broadcast %cst_346 : f32 to vector<128x32xf32>
    %242 = arith.cmpf ogt, %240, %241 : vector<128x32xf32>
    %cst_347 = arith.constant 2.000000e-01 : f32
    %243 = vector.broadcast %cst_347 : f32 to vector<128x32xf32>
    %244 = arith.mulf %243, %240 : vector<128x32xf32>
    %245 = arith.select %242, %240, %244 : vector<128x32xi1>, vector<128x32xf32>
    %c1_348 = arith.constant 1 : index
    %c0_349 = arith.constant 0 : index
    %c0_350 = arith.constant 0 : index
    %246 = vector.load %arg5[%c1_348, %c0_349, %c0_350] : memref<3x1x32xf32, #tpu.memory_space<vmem>>, vector<1x1x32xf32>
    %247 = vector.shape_cast %246 : vector<1x1x32xf32> to vector<1x32xf32>
    %248 = vector.broadcast %247 : vector<1x32xf32> to vector<128x32xf32>
    %249 = arith.mulf %245, %248 : vector<128x32xf32>
    %c2_351 = arith.constant 2 : index
    %c0_352 = arith.constant 0 : index
    %c0_353 = arith.constant 0 : index
    %250 = vector.load %arg5[%c2_351, %c0_352, %c0_353] : memref<3x1x32xf32, #tpu.memory_space<vmem>>, vector<1x1x32xf32>
    %251 = vector.shape_cast %250 : vector<1x1x32xf32> to vector<1x32xf32>
    %252 = vector.broadcast %251 : vector<1x32xf32> to vector<128x32xf32>
    %253 = arith.addf %249, %252 : vector<128x32xf32>
    %254 = vector.shape_cast %253 : vector<128x32xf32> to vector<4x4x8x32xf32>
    %255 = vector.shape_cast %254 : vector<4x4x8x32xf32> to vector<2x2x2x2x8x32xf32>
    %256 = vector.extract_strided_slice %255 {offsets = [0, 0, 0, 0, 0, 0], sizes = [2, 1, 2, 1, 8, 32], strides = [1, 1, 1, 1, 1, 1]} : vector<2x2x2x2x8x32xf32> to vector<2x1x2x1x8x32xf32>
    %257 = vector.shape_cast %256 : vector<2x1x2x1x8x32xf32> to vector<2x2x8x32xf32>
    %c0_354 = arith.constant 0 : index
    %c0_355 = arith.constant 0 : index
    %c0_356 = arith.constant 0 : index
    %c0_357 = arith.constant 0 : index
    %258 = vector.load %arg24[%c0_354, %c0_355, %c0_356, %c0_357] : memref<3x3x8x32xf32, #tpu.memory_space<vmem>>, vector<2x2x8x32xf32>
    tpu.vector_store %arg24[%c0_354, %c0_355, %c0_356, %c0_357], %257 {strides = array<i32>} : memref<3x3x8x32xf32, #tpu.memory_space<vmem>>, vector<2x2x8x32xf32>,
    %259 = vector.extract_strided_slice %255 {offsets = [0, 0, 0, 1, 0, 0], sizes = [2, 1, 2, 1, 8, 32], strides = [1, 1, 1, 1, 1, 1]} : vector<2x2x2x2x8x32xf32> to vector<2x1x2x1x8x32xf32>
    %260 = vector.shape_cast %259 : vector<2x1x2x1x8x32xf32> to vector<2x2x8x32xf32>
    %c0_358 = arith.constant 0 : index
    %c1_359 = arith.constant 1 : index
    %c0_360 = arith.constant 0 : index
    %c0_361 = arith.constant 0 : index
    %261 = vector.load %arg23[%c0_358, %c1_359, %c0_360, %c0_361] : memref<3x3x8x32xf32, #tpu.memory_space<vmem>>, vector<2x2x8x32xf32>
    tpu.vector_store %arg23[%c0_358, %c1_359, %c0_360, %c0_361], %260 {strides = array<i32>} : memref<3x3x8x32xf32, #tpu.memory_space<vmem>>, vector<2x2x8x32xf32>,
    %262 = vector.extract_strided_slice %255 {offsets = [0, 1, 0, 0, 0, 0], sizes = [2, 1, 2, 1, 8, 32], strides = [1, 1, 1, 1, 1, 1]} : vector<2x2x2x2x8x32xf32> to vector<2x1x2x1x8x32xf32>
    %263 = vector.shape_cast %262 : vector<2x1x2x1x8x32xf32> to vector<2x2x8x32xf32>
    %c1_362 = arith.constant 1 : index
    %c0_363 = arith.constant 0 : index
    %c0_364 = arith.constant 0 : index
    %c0_365 = arith.constant 0 : index
    %264 = vector.load %arg22[%c1_362, %c0_363, %c0_364, %c0_365] : memref<3x3x8x32xf32, #tpu.memory_space<vmem>>, vector<2x2x8x32xf32>
    tpu.vector_store %arg22[%c1_362, %c0_363, %c0_364, %c0_365], %263 {strides = array<i32>} : memref<3x3x8x32xf32, #tpu.memory_space<vmem>>, vector<2x2x8x32xf32>,
    %265 = vector.extract_strided_slice %255 {offsets = [0, 1, 0, 1, 0, 0], sizes = [2, 1, 2, 1, 8, 32], strides = [1, 1, 1, 1, 1, 1]} : vector<2x2x2x2x8x32xf32> to vector<2x1x2x1x8x32xf32>
    %266 = vector.shape_cast %265 : vector<2x1x2x1x8x32xf32> to vector<2x2x8x32xf32>
    %c1_366 = arith.constant 1 : index
    %c1_367 = arith.constant 1 : index
    %c0_368 = arith.constant 0 : index
    %c0_369 = arith.constant 0 : index
    %267 = vector.load %arg21[%c1_366, %c1_367, %c0_368, %c0_369] : memref<3x3x8x32xf32, #tpu.memory_space<vmem>>, vector<2x2x8x32xf32>
    tpu.vector_store %arg21[%c1_366, %c1_367, %c0_368, %c0_369], %266 {strides = array<i32>} : memref<3x3x8x32xf32, #tpu.memory_space<vmem>>, vector<2x2x8x32xf32>,
    %cst_370 = arith.constant 0.000000e+00 : f32
    %268 = vector.broadcast %cst_370 : f32 to vector<32x64xf32>
    %c0_371 = arith.constant 0 : index
    %c0_372 = arith.constant 0 : index
    %c0_373 = arith.constant 0 : index
    %c0_374 = arith.constant 0 : index
    %269 = vector.load %arg21[%c0_371, %c0_372, %c0_373, %c0_374] : memref<3x3x8x32xf32, #tpu.memory_space<vmem>>, vector<2x2x8x32xf32>
    %270 = vector.shape_cast %269 : vector<2x2x8x32xf32> to vector<32x32xf32>
    %271 = arith.truncf %270 : vector<32x32xf32> to vector<32x32xbf16>
    %c0_375 = arith.constant 0 : index
    %c0_376 = arith.constant 0 : index
    %c0_377 = arith.constant 0 : index
    %272 = vector.load %arg6[%c0_375, %c0_376, %c0_377] : memref<9x32x64xbf16, #tpu.memory_space<vmem>>, vector<1x32x64xbf16>
    %273 = vector.shape_cast %272 : vector<1x32x64xbf16> to vector<32x64xbf16>
    %cst_378 = arith.constant dense<0.000000e+00> : vector<32x64xf32>
    %274 = tpu.matmul %271, %273, %cst_378 {dimension_numbers = #tpu.dot_dimension_numbers<[1], [0], [0], [1], [0, 0, 1, 1], [], []>} : vector<32x32xbf16>, vector<32x64xbf16>, vector<32x64xf32> -> vector<32x64xf32>
    %275 = arith.addf %268, %274 : vector<32x64xf32>
    %c0_379 = arith.constant 0 : index
    %c0_380 = arith.constant 0 : index
    %c0_381 = arith.constant 0 : index
    %c0_382 = arith.constant 0 : index
    %276 = vector.load %arg22[%c0_379, %c0_380, %c0_381, %c0_382] : memref<3x3x8x32xf32, #tpu.memory_space<vmem>>, vector<2x2x8x32xf32>
    %277 = vector.shape_cast %276 : vector<2x2x8x32xf32> to vector<32x32xf32>
    %278 = arith.truncf %277 : vector<32x32xf32> to vector<32x32xbf16>
    %c1_383 = arith.constant 1 : index
    %c0_384 = arith.constant 0 : index
    %c0_385 = arith.constant 0 : index
    %279 = vector.load %arg6[%c1_383, %c0_384, %c0_385] : memref<9x32x64xbf16, #tpu.memory_space<vmem>>, vector<1x32x64xbf16>
    %280 = vector.shape_cast %279 : vector<1x32x64xbf16> to vector<32x64xbf16>
    %cst_386 = arith.constant dense<0.000000e+00> : vector<32x64xf32>
    %281 = tpu.matmul %278, %280, %cst_386 {dimension_numbers = #tpu.dot_dimension_numbers<[1], [0], [0], [1], [0, 0, 1, 1], [], []>} : vector<32x32xbf16>, vector<32x64xbf16>, vector<32x64xf32> -> vector<32x64xf32>
    %282 = arith.addf %275, %281 : vector<32x64xf32>
    %c0_387 = arith.constant 0 : index
    %c1_388 = arith.constant 1 : index
    %c0_389 = arith.constant 0 : index
    %c0_390 = arith.constant 0 : index
    %283 = vector.load %arg21[%c0_387, %c1_388, %c0_389, %c0_390] : memref<3x3x8x32xf32, #tpu.memory_space<vmem>>, vector<2x2x8x32xf32>
    %284 = vector.shape_cast %283 : vector<2x2x8x32xf32> to vector<32x32xf32>
    %285 = arith.truncf %284 : vector<32x32xf32> to vector<32x32xbf16>
    %c2_391 = arith.constant 2 : index
    %c0_392 = arith.constant 0 : index
    %c0_393 = arith.constant 0 : index
    %286 = vector.load %arg6[%c2_391, %c0_392, %c0_393] : memref<9x32x64xbf16, #tpu.memory_space<vmem>>, vector<1x32x64xbf16>
    %287 = vector.shape_cast %286 : vector<1x32x64xbf16> to vector<32x64xbf16>
    %cst_394 = arith.constant dense<0.000000e+00> : vector<32x64xf32>
    %288 = tpu.matmul %285, %287, %cst_394 {dimension_numbers = #tpu.dot_dimension_numbers<[1], [0], [0], [1], [0, 0, 1, 1], [], []>} : vector<32x32xbf16>, vector<32x64xbf16>, vector<32x64xf32> -> vector<32x64xf32>
    %289 = arith.addf %282, %288 : vector<32x64xf32>
    %c0_395 = arith.constant 0 : index
    %c0_396 = arith.constant 0 : index
    %c0_397 = arith.constant 0 : index
    %c0_398 = arith.constant 0 : index
    %290 = vector.load %arg23[%c0_395, %c0_396, %c0_397, %c0_398] : memref<3x3x8x32xf32, #tpu.memory_space<vmem>>, vector<2x2x8x32xf32>
    %291 = vector.shape_cast %290 : vector<2x2x8x32xf32> to vector<32x32xf32>
    %292 = arith.truncf %291 : vector<32x32xf32> to vector<32x32xbf16>
    %c3_399 = arith.constant 3 : index
    %c0_400 = arith.constant 0 : index
    %c0_401 = arith.constant 0 : index
    %293 = vector.load %arg6[%c3_399, %c0_400, %c0_401] : memref<9x32x64xbf16, #tpu.memory_space<vmem>>, vector<1x32x64xbf16>
    %294 = vector.shape_cast %293 : vector<1x32x64xbf16> to vector<32x64xbf16>
    %cst_402 = arith.constant dense<0.000000e+00> : vector<32x64xf32>
    %295 = tpu.matmul %292, %294, %cst_402 {dimension_numbers = #tpu.dot_dimension_numbers<[1], [0], [0], [1], [0, 0, 1, 1], [], []>} : vector<32x32xbf16>, vector<32x64xbf16>, vector<32x64xf32> -> vector<32x64xf32>
    %296 = arith.addf %289, %295 : vector<32x64xf32>
    %c0_403 = arith.constant 0 : index
    %c0_404 = arith.constant 0 : index
    %c0_405 = arith.constant 0 : index
    %c0_406 = arith.constant 0 : index
    %297 = vector.load %arg24[%c0_403, %c0_404, %c0_405, %c0_406] : memref<3x3x8x32xf32, #tpu.memory_space<vmem>>, vector<2x2x8x32xf32>
    %298 = vector.shape_cast %297 : vector<2x2x8x32xf32> to vector<32x32xf32>
    %299 = arith.truncf %298 : vector<32x32xf32> to vector<32x32xbf16>
    %c4_407 = arith.constant 4 : index
    %c0_408 = arith.constant 0 : index
    %c0_409 = arith.constant 0 : index
    %300 = vector.load %arg6[%c4_407, %c0_408, %c0_409] : memref<9x32x64xbf16, #tpu.memory_space<vmem>>, vector<1x32x64xbf16>
    %301 = vector.shape_cast %300 : vector<1x32x64xbf16> to vector<32x64xbf16>
    %cst_410 = arith.constant dense<0.000000e+00> : vector<32x64xf32>
    %302 = tpu.matmul %299, %301, %cst_410 {dimension_numbers = #tpu.dot_dimension_numbers<[1], [0], [0], [1], [0, 0, 1, 1], [], []>} : vector<32x32xbf16>, vector<32x64xbf16>, vector<32x64xf32> -> vector<32x64xf32>
    %303 = arith.addf %296, %302 : vector<32x64xf32>
    %c0_411 = arith.constant 0 : index
    %c1_412 = arith.constant 1 : index
    %c0_413 = arith.constant 0 : index
    %c0_414 = arith.constant 0 : index
    %304 = vector.load %arg23[%c0_411, %c1_412, %c0_413, %c0_414] : memref<3x3x8x32xf32, #tpu.memory_space<vmem>>, vector<2x2x8x32xf32>
    %305 = vector.shape_cast %304 : vector<2x2x8x32xf32> to vector<32x32xf32>
    %306 = arith.truncf %305 : vector<32x32xf32> to vector<32x32xbf16>
    %c5_415 = arith.constant 5 : index
    %c0_416 = arith.constant 0 : index
    %c0_417 = arith.constant 0 : index
    %307 = vector.load %arg6[%c5_415, %c0_416, %c0_417] : memref<9x32x64xbf16, #tpu.memory_space<vmem>>, vector<1x32x64xbf16>
    %308 = vector.shape_cast %307 : vector<1x32x64xbf16> to vector<32x64xbf16>
    %cst_418 = arith.constant dense<0.000000e+00> : vector<32x64xf32>
    %309 = tpu.matmul %306, %308, %cst_418 {dimension_numbers = #tpu.dot_dimension_numbers<[1], [0], [0], [1], [0, 0, 1, 1], [], []>} : vector<32x32xbf16>, vector<32x64xbf16>, vector<32x64xf32> -> vector<32x64xf32>
    %310 = arith.addf %303, %309 : vector<32x64xf32>
    %c1_419 = arith.constant 1 : index
    %c0_420 = arith.constant 0 : index
    %c0_421 = arith.constant 0 : index
    %c0_422 = arith.constant 0 : index
    %311 = vector.load %arg21[%c1_419, %c0_420, %c0_421, %c0_422] : memref<3x3x8x32xf32, #tpu.memory_space<vmem>>, vector<2x2x8x32xf32>
    %312 = vector.shape_cast %311 : vector<2x2x8x32xf32> to vector<32x32xf32>
    %313 = arith.truncf %312 : vector<32x32xf32> to vector<32x32xbf16>
    %c6_423 = arith.constant 6 : index
    %c0_424 = arith.constant 0 : index
    %c0_425 = arith.constant 0 : index
    %314 = vector.load %arg6[%c6_423, %c0_424, %c0_425] : memref<9x32x64xbf16, #tpu.memory_space<vmem>>, vector<1x32x64xbf16>
    %315 = vector.shape_cast %314 : vector<1x32x64xbf16> to vector<32x64xbf16>
    %cst_426 = arith.constant dense<0.000000e+00> : vector<32x64xf32>
    %316 = tpu.matmul %313, %315, %cst_426 {dimension_numbers = #tpu.dot_dimension_numbers<[1], [0], [0], [1], [0, 0, 1, 1], [], []>} : vector<32x32xbf16>, vector<32x64xbf16>, vector<32x64xf32> -> vector<32x64xf32>
    %317 = arith.addf %310, %316 : vector<32x64xf32>
    %c1_427 = arith.constant 1 : index
    %c0_428 = arith.constant 0 : index
    %c0_429 = arith.constant 0 : index
    %c0_430 = arith.constant 0 : index
    %318 = vector.load %arg22[%c1_427, %c0_428, %c0_429, %c0_430] : memref<3x3x8x32xf32, #tpu.memory_space<vmem>>, vector<2x2x8x32xf32>
    %319 = vector.shape_cast %318 : vector<2x2x8x32xf32> to vector<32x32xf32>
    %320 = arith.truncf %319 : vector<32x32xf32> to vector<32x32xbf16>
    %c7_431 = arith.constant 7 : index
    %c0_432 = arith.constant 0 : index
    %c0_433 = arith.constant 0 : index
    %321 = vector.load %arg6[%c7_431, %c0_432, %c0_433] : memref<9x32x64xbf16, #tpu.memory_space<vmem>>, vector<1x32x64xbf16>
    %322 = vector.shape_cast %321 : vector<1x32x64xbf16> to vector<32x64xbf16>
    %cst_434 = arith.constant dense<0.000000e+00> : vector<32x64xf32>
    %323 = tpu.matmul %320, %322, %cst_434 {dimension_numbers = #tpu.dot_dimension_numbers<[1], [0], [0], [1], [0, 0, 1, 1], [], []>} : vector<32x32xbf16>, vector<32x64xbf16>, vector<32x64xf32> -> vector<32x64xf32>
    %324 = arith.addf %317, %323 : vector<32x64xf32>
    %c1_435 = arith.constant 1 : index
    %c1_436 = arith.constant 1 : index
    %c0_437 = arith.constant 0 : index
    %c0_438 = arith.constant 0 : index
    %325 = vector.load %arg21[%c1_435, %c1_436, %c0_437, %c0_438] : memref<3x3x8x32xf32, #tpu.memory_space<vmem>>, vector<2x2x8x32xf32>
    %326 = vector.shape_cast %325 : vector<2x2x8x32xf32> to vector<32x32xf32>
    %327 = arith.truncf %326 : vector<32x32xf32> to vector<32x32xbf16>
    %c8_439 = arith.constant 8 : index
    %c0_440 = arith.constant 0 : index
    %c0_441 = arith.constant 0 : index
    %328 = vector.load %arg6[%c8_439, %c0_440, %c0_441] : memref<9x32x64xbf16, #tpu.memory_space<vmem>>, vector<1x32x64xbf16>
    %329 = vector.shape_cast %328 : vector<1x32x64xbf16> to vector<32x64xbf16>
    %cst_442 = arith.constant dense<0.000000e+00> : vector<32x64xf32>
    %330 = tpu.matmul %327, %329, %cst_442 {dimension_numbers = #tpu.dot_dimension_numbers<[1], [0], [0], [1], [0, 0, 1, 1], [], []>} : vector<32x32xbf16>, vector<32x64xbf16>, vector<32x64xf32> -> vector<32x64xf32>
    %331 = arith.addf %324, %330 : vector<32x64xf32>
    %c0_443 = arith.constant 0 : index
    %c0_444 = arith.constant 0 : index
    %c0_445 = arith.constant 0 : index
    %332 = vector.load %arg7[%c0_443, %c0_444, %c0_445] : memref<3x1x64xf32, #tpu.memory_space<vmem>>, vector<1x1x64xf32>
    %333 = vector.shape_cast %332 : vector<1x1x64xf32> to vector<1x64xf32>
    %334 = vector.broadcast %333 : vector<1x64xf32> to vector<32x64xf32>
    %335 = arith.addf %331, %334 : vector<32x64xf32>
    %cst_446 = arith.constant 0.000000e+00 : f32
    %336 = vector.broadcast %cst_446 : f32 to vector<32x64xf32>
    %337 = arith.cmpf ogt, %335, %336 : vector<32x64xf32>
    %cst_447 = arith.constant 2.000000e-01 : f32
    %338 = vector.broadcast %cst_447 : f32 to vector<32x64xf32>
    %339 = arith.mulf %338, %335 : vector<32x64xf32>
    %340 = arith.select %337, %335, %339 : vector<32x64xi1>, vector<32x64xf32>
    %c1_448 = arith.constant 1 : index
    %c0_449 = arith.constant 0 : index
    %c0_450 = arith.constant 0 : index
    %341 = vector.load %arg7[%c1_448, %c0_449, %c0_450] : memref<3x1x64xf32, #tpu.memory_space<vmem>>, vector<1x1x64xf32>
    %342 = vector.shape_cast %341 : vector<1x1x64xf32> to vector<1x64xf32>
    %343 = vector.broadcast %342 : vector<1x64xf32> to vector<32x64xf32>
    %344 = arith.mulf %340, %343 : vector<32x64xf32>
    %c2_451 = arith.constant 2 : index
    %c0_452 = arith.constant 0 : index
    %c0_453 = arith.constant 0 : index
    %345 = vector.load %arg7[%c2_451, %c0_452, %c0_453] : memref<3x1x64xf32, #tpu.memory_space<vmem>>, vector<1x1x64xf32>
    %346 = vector.shape_cast %345 : vector<1x1x64xf32> to vector<1x64xf32>
    %347 = vector.broadcast %346 : vector<1x64xf32> to vector<32x64xf32>
    %348 = arith.addf %344, %347 : vector<32x64xf32>
    %349 = vector.shape_cast %348 : vector<32x64xf32> to vector<2x2x8x64xf32>
    %350 = vector.shape_cast %349 : vector<2x2x8x64xf32> to vector<1x2x1x2x8x64xf32>
    %351 = vector.extract_strided_slice %350 {offsets = [0, 0, 0, 0, 0, 0], sizes = [1, 1, 1, 1, 8, 64], strides = [1, 1, 1, 1, 1, 1]} : vector<1x2x1x2x8x64xf32> to vector<1x1x1x1x8x64xf32>
    %352 = vector.shape_cast %351 : vector<1x1x1x1x8x64xf32> to vector<1x1x8x64xf32>
    %c0_454 = arith.constant 0 : index
    %c0_455 = arith.constant 0 : index
    %c0_456 = arith.constant 0 : index
    %c0_457 = arith.constant 0 : index
    %353 = vector.load %arg28[%c0_454, %c0_455, %c0_456, %c0_457] : memref<2x2x8x64xf32, #tpu.memory_space<vmem>>, vector<1x1x8x64xf32>
    tpu.vector_store %arg28[%c0_454, %c0_455, %c0_456, %c0_457], %352 {strides = array<i32>} : memref<2x2x8x64xf32, #tpu.memory_space<vmem>>, vector<1x1x8x64xf32>,
    %354 = vector.extract_strided_slice %350 {offsets = [0, 0, 0, 1, 0, 0], sizes = [1, 1, 1, 1, 8, 64], strides = [1, 1, 1, 1, 1, 1]} : vector<1x2x1x2x8x64xf32> to vector<1x1x1x1x8x64xf32>
    %355 = vector.shape_cast %354 : vector<1x1x1x1x8x64xf32> to vector<1x1x8x64xf32>
    %c0_458 = arith.constant 0 : index
    %c1_459 = arith.constant 1 : index
    %c0_460 = arith.constant 0 : index
    %c0_461 = arith.constant 0 : index
    %356 = vector.load %arg27[%c0_458, %c1_459, %c0_460, %c0_461] : memref<2x2x8x64xf32, #tpu.memory_space<vmem>>, vector<1x1x8x64xf32>
    tpu.vector_store %arg27[%c0_458, %c1_459, %c0_460, %c0_461], %355 {strides = array<i32>} : memref<2x2x8x64xf32, #tpu.memory_space<vmem>>, vector<1x1x8x64xf32>,
    %357 = vector.extract_strided_slice %350 {offsets = [0, 1, 0, 0, 0, 0], sizes = [1, 1, 1, 1, 8, 64], strides = [1, 1, 1, 1, 1, 1]} : vector<1x2x1x2x8x64xf32> to vector<1x1x1x1x8x64xf32>
    %358 = vector.shape_cast %357 : vector<1x1x1x1x8x64xf32> to vector<1x1x8x64xf32>
    %c1_462 = arith.constant 1 : index
    %c0_463 = arith.constant 0 : index
    %c0_464 = arith.constant 0 : index
    %c0_465 = arith.constant 0 : index
    %359 = vector.load %arg26[%c1_462, %c0_463, %c0_464, %c0_465] : memref<2x2x8x64xf32, #tpu.memory_space<vmem>>, vector<1x1x8x64xf32>
    tpu.vector_store %arg26[%c1_462, %c0_463, %c0_464, %c0_465], %358 {strides = array<i32>} : memref<2x2x8x64xf32, #tpu.memory_space<vmem>>, vector<1x1x8x64xf32>,
    %360 = vector.extract_strided_slice %350 {offsets = [0, 1, 0, 1, 0, 0], sizes = [1, 1, 1, 1, 8, 64], strides = [1, 1, 1, 1, 1, 1]} : vector<1x2x1x2x8x64xf32> to vector<1x1x1x1x8x64xf32>
    %361 = vector.shape_cast %360 : vector<1x1x1x1x8x64xf32> to vector<1x1x8x64xf32>
    %c1_466 = arith.constant 1 : index
    %c1_467 = arith.constant 1 : index
    %c0_468 = arith.constant 0 : index
    %c0_469 = arith.constant 0 : index
    %362 = vector.load %arg25[%c1_466, %c1_467, %c0_468, %c0_469] : memref<2x2x8x64xf32, #tpu.memory_space<vmem>>, vector<1x1x8x64xf32>
    tpu.vector_store %arg25[%c1_466, %c1_467, %c0_468, %c0_469], %361 {strides = array<i32>} : memref<2x2x8x64xf32, #tpu.memory_space<vmem>>, vector<1x1x8x64xf32>,
    %cst_470 = arith.constant 0.000000e+00 : f32
    %363 = vector.broadcast %cst_470 : f32 to vector<8x128xf32>
    %c0_471 = arith.constant 0 : index
    %c0_472 = arith.constant 0 : index
    %c0_473 = arith.constant 0 : index
    %c0_474 = arith.constant 0 : index
    %364 = vector.load %arg25[%c0_471, %c0_472, %c0_473, %c0_474] : memref<2x2x8x64xf32, #tpu.memory_space<vmem>>, vector<1x1x8x64xf32>
    %365 = vector.shape_cast %364 : vector<1x1x8x64xf32> to vector<8x64xf32>
    %366 = arith.truncf %365 : vector<8x64xf32> to vector<8x64xbf16>
    %c0_475 = arith.constant 0 : index
    %c0_476 = arith.constant 0 : index
    %c0_477 = arith.constant 0 : index
    %367 = vector.load %arg8[%c0_475, %c0_476, %c0_477] : memref<9x64x128xbf16, #tpu.memory_space<vmem>>, vector<1x64x128xbf16>
    %368 = vector.shape_cast %367 : vector<1x64x128xbf16> to vector<64x128xbf16>
    %cst_478 = arith.constant dense<0.000000e+00> : vector<8x128xf32>
    %369 = tpu.matmul %366, %368, %cst_478 {dimension_numbers = #tpu.dot_dimension_numbers<[1], [0], [0], [1], [0, 0, 1, 1], [], []>} : vector<8x64xbf16>, vector<64x128xbf16>, vector<8x128xf32> -> vector<8x128xf32>
    %370 = arith.addf %363, %369 : vector<8x128xf32>
    %c0_479 = arith.constant 0 : index
    %c0_480 = arith.constant 0 : index
    %c0_481 = arith.constant 0 : index
    %c0_482 = arith.constant 0 : index
    %371 = vector.load %arg26[%c0_479, %c0_480, %c0_481, %c0_482] : memref<2x2x8x64xf32, #tpu.memory_space<vmem>>, vector<1x1x8x64xf32>
    %372 = vector.shape_cast %371 : vector<1x1x8x64xf32> to vector<8x64xf32>
    %373 = arith.truncf %372 : vector<8x64xf32> to vector<8x64xbf16>
    %c1_483 = arith.constant 1 : index
    %c0_484 = arith.constant 0 : index
    %c0_485 = arith.constant 0 : index
    %374 = vector.load %arg8[%c1_483, %c0_484, %c0_485] : memref<9x64x128xbf16, #tpu.memory_space<vmem>>, vector<1x64x128xbf16>
    %375 = vector.shape_cast %374 : vector<1x64x128xbf16> to vector<64x128xbf16>
    %cst_486 = arith.constant dense<0.000000e+00> : vector<8x128xf32>
    %376 = tpu.matmul %373, %375, %cst_486 {dimension_numbers = #tpu.dot_dimension_numbers<[1], [0], [0], [1], [0, 0, 1, 1], [], []>} : vector<8x64xbf16>, vector<64x128xbf16>, vector<8x128xf32> -> vector<8x128xf32>
    %377 = arith.addf %370, %376 : vector<8x128xf32>
    %c0_487 = arith.constant 0 : index
    %c1_488 = arith.constant 1 : index
    %c0_489 = arith.constant 0 : index
    %c0_490 = arith.constant 0 : index
    %378 = vector.load %arg25[%c0_487, %c1_488, %c0_489, %c0_490] : memref<2x2x8x64xf32, #tpu.memory_space<vmem>>, vector<1x1x8x64xf32>
    %379 = vector.shape_cast %378 : vector<1x1x8x64xf32> to vector<8x64xf32>
    %380 = arith.truncf %379 : vector<8x64xf32> to vector<8x64xbf16>
    %c2_491 = arith.constant 2 : index
    %c0_492 = arith.constant 0 : index
    %c0_493 = arith.constant 0 : index
    %381 = vector.load %arg8[%c2_491, %c0_492, %c0_493] : memref<9x64x128xbf16, #tpu.memory_space<vmem>>, vector<1x64x128xbf16>
    %382 = vector.shape_cast %381 : vector<1x64x128xbf16> to vector<64x128xbf16>
    %cst_494 = arith.constant dense<0.000000e+00> : vector<8x128xf32>
    %383 = tpu.matmul %380, %382, %cst_494 {dimension_numbers = #tpu.dot_dimension_numbers<[1], [0], [0], [1], [0, 0, 1, 1], [], []>} : vector<8x64xbf16>, vector<64x128xbf16>, vector<8x128xf32> -> vector<8x128xf32>
    %384 = arith.addf %377, %383 : vector<8x128xf32>
    %c0_495 = arith.constant 0 : index
    %c0_496 = arith.constant 0 : index
    %c0_497 = arith.constant 0 : index
    %c0_498 = arith.constant 0 : index
    %385 = vector.load %arg27[%c0_495, %c0_496, %c0_497, %c0_498] : memref<2x2x8x64xf32, #tpu.memory_space<vmem>>, vector<1x1x8x64xf32>
    %386 = vector.shape_cast %385 : vector<1x1x8x64xf32> to vector<8x64xf32>
    %387 = arith.truncf %386 : vector<8x64xf32> to vector<8x64xbf16>
    %c3_499 = arith.constant 3 : index
    %c0_500 = arith.constant 0 : index
    %c0_501 = arith.constant 0 : index
    %388 = vector.load %arg8[%c3_499, %c0_500, %c0_501] : memref<9x64x128xbf16, #tpu.memory_space<vmem>>, vector<1x64x128xbf16>
    %389 = vector.shape_cast %388 : vector<1x64x128xbf16> to vector<64x128xbf16>
    %cst_502 = arith.constant dense<0.000000e+00> : vector<8x128xf32>
    %390 = tpu.matmul %387, %389, %cst_502 {dimension_numbers = #tpu.dot_dimension_numbers<[1], [0], [0], [1], [0, 0, 1, 1], [], []>} : vector<8x64xbf16>, vector<64x128xbf16>, vector<8x128xf32> -> vector<8x128xf32>
    %391 = arith.addf %384, %390 : vector<8x128xf32>
    %c0_503 = arith.constant 0 : index
    %c0_504 = arith.constant 0 : index
    %c0_505 = arith.constant 0 : index
    %c0_506 = arith.constant 0 : index
    %392 = vector.load %arg28[%c0_503, %c0_504, %c0_505, %c0_506] : memref<2x2x8x64xf32, #tpu.memory_space<vmem>>, vector<1x1x8x64xf32>
    %393 = vector.shape_cast %392 : vector<1x1x8x64xf32> to vector<8x64xf32>
    %394 = arith.truncf %393 : vector<8x64xf32> to vector<8x64xbf16>
    %c4_507 = arith.constant 4 : index
    %c0_508 = arith.constant 0 : index
    %c0_509 = arith.constant 0 : index
    %395 = vector.load %arg8[%c4_507, %c0_508, %c0_509] : memref<9x64x128xbf16, #tpu.memory_space<vmem>>, vector<1x64x128xbf16>
    %396 = vector.shape_cast %395 : vector<1x64x128xbf16> to vector<64x128xbf16>
    %cst_510 = arith.constant dense<0.000000e+00> : vector<8x128xf32>
    %397 = tpu.matmul %394, %396, %cst_510 {dimension_numbers = #tpu.dot_dimension_numbers<[1], [0], [0], [1], [0, 0, 1, 1], [], []>} : vector<8x64xbf16>, vector<64x128xbf16>, vector<8x128xf32> -> vector<8x128xf32>
    %398 = arith.addf %391, %397 : vector<8x128xf32>
    %c0_511 = arith.constant 0 : index
    %c1_512 = arith.constant 1 : index
    %c0_513 = arith.constant 0 : index
    %c0_514 = arith.constant 0 : index
    %399 = vector.load %arg27[%c0_511, %c1_512, %c0_513, %c0_514] : memref<2x2x8x64xf32, #tpu.memory_space<vmem>>, vector<1x1x8x64xf32>
    %400 = vector.shape_cast %399 : vector<1x1x8x64xf32> to vector<8x64xf32>
    %401 = arith.truncf %400 : vector<8x64xf32> to vector<8x64xbf16>
    %c5_515 = arith.constant 5 : index
    %c0_516 = arith.constant 0 : index
    %c0_517 = arith.constant 0 : index
    %402 = vector.load %arg8[%c5_515, %c0_516, %c0_517] : memref<9x64x128xbf16, #tpu.memory_space<vmem>>, vector<1x64x128xbf16>
    %403 = vector.shape_cast %402 : vector<1x64x128xbf16> to vector<64x128xbf16>
    %cst_518 = arith.constant dense<0.000000e+00> : vector<8x128xf32>
    %404 = tpu.matmul %401, %403, %cst_518 {dimension_numbers = #tpu.dot_dimension_numbers<[1], [0], [0], [1], [0, 0, 1, 1], [], []>} : vector<8x64xbf16>, vector<64x128xbf16>, vector<8x128xf32> -> vector<8x128xf32>
    %405 = arith.addf %398, %404 : vector<8x128xf32>
    %c1_519 = arith.constant 1 : index
    %c0_520 = arith.constant 0 : index
    %c0_521 = arith.constant 0 : index
    %c0_522 = arith.constant 0 : index
    %406 = vector.load %arg25[%c1_519, %c0_520, %c0_521, %c0_522] : memref<2x2x8x64xf32, #tpu.memory_space<vmem>>, vector<1x1x8x64xf32>
    %407 = vector.shape_cast %406 : vector<1x1x8x64xf32> to vector<8x64xf32>
    %408 = arith.truncf %407 : vector<8x64xf32> to vector<8x64xbf16>
    %c6_523 = arith.constant 6 : index
    %c0_524 = arith.constant 0 : index
    %c0_525 = arith.constant 0 : index
    %409 = vector.load %arg8[%c6_523, %c0_524, %c0_525] : memref<9x64x128xbf16, #tpu.memory_space<vmem>>, vector<1x64x128xbf16>
    %410 = vector.shape_cast %409 : vector<1x64x128xbf16> to vector<64x128xbf16>
    %cst_526 = arith.constant dense<0.000000e+00> : vector<8x128xf32>
    %411 = tpu.matmul %408, %410, %cst_526 {dimension_numbers = #tpu.dot_dimension_numbers<[1], [0], [0], [1], [0, 0, 1, 1], [], []>} : vector<8x64xbf16>, vector<64x128xbf16>, vector<8x128xf32> -> vector<8x128xf32>
    %412 = arith.addf %405, %411 : vector<8x128xf32>
    %c1_527 = arith.constant 1 : index
    %c0_528 = arith.constant 0 : index
    %c0_529 = arith.constant 0 : index
    %c0_530 = arith.constant 0 : index
    %413 = vector.load %arg26[%c1_527, %c0_528, %c0_529, %c0_530] : memref<2x2x8x64xf32, #tpu.memory_space<vmem>>, vector<1x1x8x64xf32>
    %414 = vector.shape_cast %413 : vector<1x1x8x64xf32> to vector<8x64xf32>
    %415 = arith.truncf %414 : vector<8x64xf32> to vector<8x64xbf16>
    %c7_531 = arith.constant 7 : index
    %c0_532 = arith.constant 0 : index
    %c0_533 = arith.constant 0 : index
    %416 = vector.load %arg8[%c7_531, %c0_532, %c0_533] : memref<9x64x128xbf16, #tpu.memory_space<vmem>>, vector<1x64x128xbf16>
    %417 = vector.shape_cast %416 : vector<1x64x128xbf16> to vector<64x128xbf16>
    %cst_534 = arith.constant dense<0.000000e+00> : vector<8x128xf32>
    %418 = tpu.matmul %415, %417, %cst_534 {dimension_numbers = #tpu.dot_dimension_numbers<[1], [0], [0], [1], [0, 0, 1, 1], [], []>} : vector<8x64xbf16>, vector<64x128xbf16>, vector<8x128xf32> -> vector<8x128xf32>
    %419 = arith.addf %412, %418 : vector<8x128xf32>
    %c1_535 = arith.constant 1 : index
    %c1_536 = arith.constant 1 : index
    %c0_537 = arith.constant 0 : index
    %c0_538 = arith.constant 0 : index
    %420 = vector.load %arg25[%c1_535, %c1_536, %c0_537, %c0_538] : memref<2x2x8x64xf32, #tpu.memory_space<vmem>>, vector<1x1x8x64xf32>
    %421 = vector.shape_cast %420 : vector<1x1x8x64xf32> to vector<8x64xf32>
    %422 = arith.truncf %421 : vector<8x64xf32> to vector<8x64xbf16>
    %c8_539 = arith.constant 8 : index
    %c0_540 = arith.constant 0 : index
    %c0_541 = arith.constant 0 : index
    %423 = vector.load %arg8[%c8_539, %c0_540, %c0_541] : memref<9x64x128xbf16, #tpu.memory_space<vmem>>, vector<1x64x128xbf16>
    %424 = vector.shape_cast %423 : vector<1x64x128xbf16> to vector<64x128xbf16>
    %cst_542 = arith.constant dense<0.000000e+00> : vector<8x128xf32>
    %425 = tpu.matmul %422, %424, %cst_542 {dimension_numbers = #tpu.dot_dimension_numbers<[1], [0], [0], [1], [0, 0, 1, 1], [], []>} : vector<8x64xbf16>, vector<64x128xbf16>, vector<8x128xf32> -> vector<8x128xf32>
    %426 = arith.addf %419, %425 : vector<8x128xf32>
    %c0_543 = arith.constant 0 : index
    %c0_544 = arith.constant 0 : index
    %c0_545 = arith.constant 0 : index
    %427 = vector.load %arg9[%c0_543, %c0_544, %c0_545] : memref<3x1x128xf32, #tpu.memory_space<vmem>>, vector<1x1x128xf32>
    %428 = vector.shape_cast %427 : vector<1x1x128xf32> to vector<1x128xf32>
    %429 = vector.broadcast %428 : vector<1x128xf32> to vector<8x128xf32>
    %430 = arith.addf %426, %429 : vector<8x128xf32>
    %cst_546 = arith.constant 0.000000e+00 : f32
    %431 = vector.broadcast %cst_546 : f32 to vector<8x128xf32>
    %432 = arith.cmpf ogt, %430, %431 : vector<8x128xf32>
    %cst_547 = arith.constant 2.000000e-01 : f32
    %433 = vector.broadcast %cst_547 : f32 to vector<8x128xf32>
    %434 = arith.mulf %433, %430 : vector<8x128xf32>
    %435 = arith.select %432, %430, %434 : vector<8x128xi1>, vector<8x128xf32>
    %c1_548 = arith.constant 1 : index
    %c0_549 = arith.constant 0 : index
    %c0_550 = arith.constant 0 : index
    %436 = vector.load %arg9[%c1_548, %c0_549, %c0_550] : memref<3x1x128xf32, #tpu.memory_space<vmem>>, vector<1x1x128xf32>
    %437 = vector.shape_cast %436 : vector<1x1x128xf32> to vector<1x128xf32>
    %438 = vector.broadcast %437 : vector<1x128xf32> to vector<8x128xf32>
    %439 = arith.mulf %435, %438 : vector<8x128xf32>
    %c2_551 = arith.constant 2 : index
    %c0_552 = arith.constant 0 : index
    %c0_553 = arith.constant 0 : index
    %440 = vector.load %arg9[%c2_551, %c0_552, %c0_553] : memref<3x1x128xf32, #tpu.memory_space<vmem>>, vector<1x1x128xf32>
    %441 = vector.shape_cast %440 : vector<1x1x128xf32> to vector<1x128xf32>
    %442 = vector.broadcast %441 : vector<1x128xf32> to vector<8x128xf32>
    %443 = arith.addf %439, %442 : vector<8x128xf32>
    %444 = vector.shape_cast %443 : vector<8x128xf32> to vector<1x1x8x128xf32>
    %c0_554 = arith.constant 0 : index
    %c0_555 = arith.constant 0 : index
    %c0_556 = arith.constant 0 : index
    %c0_557 = arith.constant 0 : index
    %445 = vector.load %arg10[%c0_554, %c0_555, %c0_556, %c0_557] : memref<1x1x1x128xf32, #tpu.memory_space<vmem>>, vector<1x1x1x128xf32>
    %446 = vector.broadcast %445 : vector<1x1x1x128xf32> to vector<1x1x8x128xf32>
    %447 = arith.mulf %444, %446 : vector<1x1x8x128xf32>
    %cst_558 = arith.constant dense<0.000000e+00> : vector<1x1x8xf32>
    %448 = vector.multi_reduction <add>, %447, %cst_558 [3] : vector<1x1x8x128xf32> to vector<1x1x8xf32>
    %449 = vector.shape_cast %448 : vector<1x1x8xf32> to vector<1x1x8x1xf32>
    %cst_559 = arith.constant dense<0.000000e+00> : vector<8x1xf32>
    %450 = vector.multi_reduction <add>, %449, %cst_559 [0, 1] : vector<1x1x8x1xf32> to vector<8x1xf32>
    %c0_560 = arith.constant 0 : index
    %c0_561 = arith.constant 0 : index
    %451 = vector.load %arg11[%c0_560, %c0_561] : memref<1x1xf32, #tpu.memory_space<vmem>>, vector<1x1xf32>
    %452 = vector.broadcast %451 : vector<1x1xf32> to vector<8x1xf32>
    %453 = arith.addf %450, %452 : vector<8x1xf32>
    %cst_562 = arith.constant 0.000000e+00 : f32
    %454 = vector.broadcast %cst_562 : f32 to vector<8x1xf32>
    %455 = arith.subf %454, %453 : vector<8x1xf32>
    %456 = math.exp %455 : vector<8x1xf32>
    %cst_563 = arith.constant 1.000000e+00 : f32
    %457 = vector.broadcast %cst_563 : f32 to vector<8x1xf32>
    %458 = arith.addf %457, %456 : vector<8x1xf32>
    %cst_564 = arith.constant 1.000000e+00 : f32
    %459 = vector.broadcast %cst_564 : f32 to vector<8x1xf32>
    %460 = arith.divf %459, %458 : vector<8x1xf32>
    %c0_565 = arith.constant 0 : index
    %c0_566 = arith.constant 0 : index
    %461 = vector.load %arg12[%c0_565, %c0_566] : memref<8x1xf32, #tpu.memory_space<vmem>>, vector<8x1xf32>
    tpu.vector_store %arg12[%c0_565, %c0_566], %460 {strides = array<i32>} : memref<8x1xf32, #tpu.memory_space<vmem>>, vector<8x1xf32>,
    return
  }
  func.func @transform_0(%arg0: i32) -> (i32, i32, i32, i32) {
    %c0_i32 = arith.constant 0 : i32
    %c0_i32_0 = arith.constant 0 : i32
    %c0_i32_1 = arith.constant 0 : i32
    %c0_i32_2 = arith.constant 0 : i32
    return %c0_i32, %c0_i32_0, %arg0, %c0_i32_1 : i32, i32, i32, i32
  }
  func.func @transform_1(%arg0: i32) -> (i32, i32, i32) {
    %c0_i32 = arith.constant 0 : i32
    %c0_i32_0 = arith.constant 0 : i32
    %c0_i32_1 = arith.constant 0 : i32
    %c0_i32_2 = arith.constant 0 : i32
    return %c0_i32, %c0_i32_0, %c0_i32_1 : i32, i32, i32
  }
  func.func @transform_2(%arg0: i32) -> (i32, i32, i32) {
    %c0_i32 = arith.constant 0 : i32
    %c0_i32_0 = arith.constant 0 : i32
    %c0_i32_1 = arith.constant 0 : i32
    %c0_i32_2 = arith.constant 0 : i32
    return %c0_i32, %c0_i32_0, %c0_i32_1 : i32, i32, i32
  }
  func.func @transform_3(%arg0: i32) -> (i32, i32, i32) {
    %c0_i32 = arith.constant 0 : i32
    %c0_i32_0 = arith.constant 0 : i32
    %c0_i32_1 = arith.constant 0 : i32
    %c0_i32_2 = arith.constant 0 : i32
    return %c0_i32, %c0_i32_0, %c0_i32_1 : i32, i32, i32
  }
  func.func @transform_4(%arg0: i32) -> (i32, i32, i32) {
    %c0_i32 = arith.constant 0 : i32
    %c0_i32_0 = arith.constant 0 : i32
    %c0_i32_1 = arith.constant 0 : i32
    %c0_i32_2 = arith.constant 0 : i32
    return %c0_i32, %c0_i32_0, %c0_i32_1 : i32, i32, i32
  }
  func.func @transform_5(%arg0: i32) -> (i32, i32, i32) {
    %c0_i32 = arith.constant 0 : i32
    %c0_i32_0 = arith.constant 0 : i32
    %c0_i32_1 = arith.constant 0 : i32
    %c0_i32_2 = arith.constant 0 : i32
    return %c0_i32, %c0_i32_0, %c0_i32_1 : i32, i32, i32
  }
  func.func @transform_6(%arg0: i32) -> (i32, i32, i32) {
    %c0_i32 = arith.constant 0 : i32
    %c0_i32_0 = arith.constant 0 : i32
    %c0_i32_1 = arith.constant 0 : i32
    %c0_i32_2 = arith.constant 0 : i32
    return %c0_i32, %c0_i32_0, %c0_i32_1 : i32, i32, i32
  }
  func.func @transform_7(%arg0: i32) -> (i32, i32, i32) {
    %c0_i32 = arith.constant 0 : i32
    %c0_i32_0 = arith.constant 0 : i32
    %c0_i32_1 = arith.constant 0 : i32
    %c0_i32_2 = arith.constant 0 : i32
    return %c0_i32, %c0_i32_0, %c0_i32_1 : i32, i32, i32
  }
  func.func @transform_8(%arg0: i32) -> (i32, i32, i32) {
    %c0_i32 = arith.constant 0 : i32
    %c0_i32_0 = arith.constant 0 : i32
    %c0_i32_1 = arith.constant 0 : i32
    %c0_i32_2 = arith.constant 0 : i32
    return %c0_i32, %c0_i32_0, %c0_i32_1 : i32, i32, i32
  }
  func.func @transform_9(%arg0: i32) -> (i32, i32, i32, i32) {
    %c0_i32 = arith.constant 0 : i32
    %c0_i32_0 = arith.constant 0 : i32
    %c0_i32_1 = arith.constant 0 : i32
    %c0_i32_2 = arith.constant 0 : i32
    %c0_i32_3 = arith.constant 0 : i32
    return %c0_i32, %c0_i32_0, %c0_i32_1, %c0_i32_2 : i32, i32, i32, i32
  }
  func.func @transform_10(%arg0: i32) -> (i32, i32) {
    %c0_i32 = arith.constant 0 : i32
    %c0_i32_0 = arith.constant 0 : i32
    %c0_i32_1 = arith.constant 0 : i32
    return %c0_i32, %c0_i32_0 : i32, i32
  }
  func.func @transform_11(%arg0: i32) -> (i32, i32) {
    %c0_i32 = arith.constant 0 : i32
    %c0_i32_0 = arith.constant 0 : i32
    return %arg0, %c0_i32 : i32, i32
  }
}

</mosaic_0001>

<llo_original>
// kernel: discriminator_forward.1
$region0: #{discriminator_forward.1}
  #allocation0 [shape = 'u32[]', space=smem, size = 0x4, offset = 0x4, fixed_abs, tag = 'smem constant byte address 0x4 - core index']
  #allocation1 [shape = 'u32[144,128]{1,0:T(1,128)}', space=vmem, size = 0x12000, scoped, tag = 'internal scratch']
  #allocation2 [shape = 'f32[9,9,8,4]{3,2,1,0:T(8,128)}', space=vmem, size = 0x51000, scoped, tag = 'scratch operand']
  #allocation3 [shape = 'f32[9,9,8,4]{3,2,1,0:T(8,128)}', space=vmem, size = 0x51000, scoped, tag = 'scratch operand']
  #allocation4 [shape = 'f32[9,9,8,4]{3,2,1,0:T(8,128)}', space=vmem, size = 0x51000, scoped, tag = 'scratch operand']
  #allocation5 [shape = 'f32[9,9,8,4]{3,2,1,0:T(8,128)}', space=vmem, size = 0x51000, scoped, tag = 'scratch operand']
  #allocation6 [shape = 'f32[5,5,8,16]{3,2,1,0:T(8,128)}', space=vmem, size = 0x19000, scoped, tag = 'scratch operand']
  #allocation7 [shape = 'f32[5,5,8,16]{3,2,1,0:T(8,128)}', space=vmem, size = 0x19000, scoped, tag = 'scratch operand']
  #allocation8 [shape = 'f32[5,5,8,16]{3,2,1,0:T(8,128)}', space=vmem, size = 0x19000, scoped, tag = 'scratch operand']
  #allocation9 [shape = 'f32[5,5,8,16]{3,2,1,0:T(8,128)}', space=vmem, size = 0x19000, scoped, tag = 'scratch operand']
  #allocation10 [shape = 'f32[3,3,8,32]{3,2,1,0:T(8,128)}', space=vmem, size = 0x9000, scoped, tag = 'scratch operand']
  #allocation11 [shape = 'f32[3,3,8,32]{3,2,1,0:T(8,128)}', space=vmem, size = 0x9000, scoped, tag = 'scratch operand']
  #allocation12 [shape = 'f32[3,3,8,32]{3,2,1,0:T(8,128)}', space=vmem, size = 0x9000, scoped, tag = 'scratch operand']
  #allocation13 [shape = 'f32[3,3,8,32]{3,2,1,0:T(8,128)}', space=vmem, size = 0x9000, scoped, tag = 'scratch operand']
  #allocation14 [shape = 'f32[2,2,8,64]{3,2,1,0:T(8,128)}', space=vmem, size = 0x4000, scoped, tag = 'scratch operand']
  #allocation15 [shape = 'f32[2,2,8,64]{3,2,1,0:T(8,128)}', space=vmem, size = 0x4000, scoped, tag = 'scratch operand']
  #allocation16 [shape = 'f32[2,2,8,64]{3,2,1,0:T(8,128)}', space=vmem, size = 0x4000, scoped, tag = 'scratch operand']
  #allocation17 [shape = 'f32[2,2,8,64]{3,2,1,0:T(8,128)}', space=vmem, size = 0x4000, scoped, tag = 'scratch operand']
  #allocation18 [shape = 'f32[1,1]{1,0:T(1,128)S(1)}', space=vmem, size = 0x200, scoped, tag = 'scoped memory for discriminator_forward.1']
  %s0 = inlined_call_operand.vmem [shape: f32[16,16,8,4], index: 0, kind: input, shape index: {}]
  %s1 = inlined_call_operand.vmem [shape: bf16[9,4,16], index: 1, kind: input, shape index: {}]
  %s2 = inlined_call_operand.vmem [shape: f32[3,1,16], index: 2, kind: input, shape index: {}]
  %s3 = inlined_call_operand.vmem [shape: bf16[9,16,32], index: 3, kind: input, shape index: {}]
  %s4 = inlined_call_operand.vmem [shape: f32[3,1,32], index: 4, kind: input, shape index: {}]
  %s5 = inlined_call_operand.vmem [shape: bf16[9,32,64], index: 5, kind: input, shape index: {}]
  %s6 = inlined_call_operand.vmem [shape: f32[3,1,64], index: 6, kind: input, shape index: {}]
  %s7 = inlined_call_operand.vmem [shape: bf16[9,64,128], index: 7, kind: input, shape index: {}]
  %s8 = inlined_call_operand.vmem [shape: f32[3,1,128], index: 8, kind: input, shape index: {}]
  %s9 = inlined_call_operand.vmem [shape: f32[1,1,1,128], index: 9, kind: input, shape index: {}]
  %s10 = inlined_call_operand.<no memory space> [shape: f32[1,1], index: 10, kind: input, shape index: {}]
  %s11 = inlined_call_operand.vmem [shape: f32[8,1], index: 11, kind: output, shape index: {}]
  %s12 = sld [smem:[#allocation0]]
  $region54: #{discriminator_forward.1} parent=0
    _
  %s14 = ssub.s32 1, %s12
  %s15 = scalar_select 0, %s14, %s12
  %v16 = vstv %s10
  %17 = vst [vmem:[#allocation18] sm:$0x1] %v16
  // Predicated region
  $region2: #{discriminator_forward.1} parent=0 // pred_check
    _
  $region3: #{discriminator_forward.1} parent=0 // pred_check_branch
    %19 = sbr.rel (0) target = $region5
  $region4: #{discriminator_forward.1} parent=0 // pred_region
    _
  $region5: #{discriminator_forward.1} parent=0 // pred_fallthru
    _
  // Predicated region
  $region6: #{discriminator_forward.1} parent=0 // pred_check
    _
  $region7: #{discriminator_forward.1} parent=0 // pred_check_branch
    %21 = sbr.rel (0) target = $region9
  $region8: #{discriminator_forward.1} parent=0 // pred_region
    _
  $region9: #{discriminator_forward.1} parent=0 // pred_fallthru
    _
  // Predicated region
  $region10: #{discriminator_forward.1} parent=0 // pred_check
    _
  $region11: #{discriminator_forward.1} parent=0 // pred_check_branch
    %23 = sbr.rel (0) target = $region13
  $region12: #{discriminator_forward.1} parent=0 // pred_region
    _
  $region13: #{discriminator_forward.1} parent=0 // pred_fallthru
    _
  // Predicated region
  $region14: #{discriminator_forward.1} parent=0 // pred_check
    _
  $region15: #{discriminator_forward.1} parent=0 // pred_check_branch
    %25 = sbr.rel (0) target = $region17
  $region16: #{discriminator_forward.1} parent=0 // pred_region
    _
  $region17: #{discriminator_forward.1} parent=0 // pred_fallthru
    _
  // Predicated region
  $region18: #{discriminator_forward.1} parent=0 // pred_check
    _
  $region19: #{discriminator_forward.1} parent=0 // pred_check_branch
    %27 = sbr.rel (0) target = $region21
  $region20: #{discriminator_forward.1} parent=0 // pred_region
    _
  $region21: #{discriminator_forward.1} parent=0 // pred_fallthru
    _
  // Predicated region
  $region22: #{discriminator_forward.1} parent=0 // pred_check
    _
  $region23: #{discriminator_forward.1} parent=0 // pred_check_branch
    %29 = sbr.rel (0) target = $region25
  $region24: #{discriminator_forward.1} parent=0 // pred_region
    _
  $region25: #{discriminator_forward.1} parent=0 // pred_fallthru
    _
  // Predicated region
  $region26: #{discriminator_forward.1} parent=0 // pred_check
    _
  $region27: #{discriminator_forward.1} parent=0 // pred_check_branch
    %31 = sbr.rel (0) target = $region29
  $region28: #{discriminator_forward.1} parent=0 // pred_region
    _
  $region29: #{discriminator_forward.1} parent=0 // pred_fallthru
    _
  // Predicated region
  $region30: #{discriminator_forward.1} parent=0 // pred_check
    _
  $region31: #{discriminator_forward.1} parent=0 // pred_check_branch
    %33 = sbr.rel (0) target = $region33
  $region32: #{discriminator_forward.1} parent=0 // pred_region
    _
  $region33: #{discriminator_forward.1} parent=0 // pred_fallthru
    _
  // Predicated region
  $region34: #{discriminator_forward.1} parent=0 // pred_check
    _
  $region35: #{discriminator_forward.1} parent=0 // pred_check_branch
    %35 = sbr.rel (0) target = $region37
  $region36: #{discriminator_forward.1} parent=0 // pred_region
    _
  $region37: #{discriminator_forward.1} parent=0 // pred_fallthru
    _
  // Predicated region
  $region38: #{discriminator_forward.1} parent=0 // pred_check
    _
  $region39: #{discriminator_forward.1} parent=0 // pred_check_branch
    %37 = sbr.rel (0) target = $region41
  $region40: #{discriminator_forward.1} parent=0 // pred_region
    _
  $region41: #{discriminator_forward.1} parent=0 // pred_fallthru
    _
  // Predicated region
  $region42: #{discriminator_forward.1} parent=0 // pred_check
    _
  $region43: #{discriminator_forward.1} parent=0 // pred_check_branch
    %39 = sbr.rel (0) target = $region45
  $region44: #{discriminator_forward.1} parent=0 // pred_region
    _
  $region45: #{discriminator_forward.1} parent=0 // pred_fallthru
    _
  %vm41 = vcmask 31744
  %42 = vst.msk [vmem:[#allocation2] sm:$0xff] %vm41, 0.0
  %43 = vst.msk [vmem:[#allocation2 + $0x8] sm:$0xff] %vm41, 0.0
  %44 = vst.msk [vmem:[#allocation2 + $0x10] sm:$0xff] %vm41, 0.0
  %45 = vst.msk [vmem:[#allocation2 + $0x18] sm:$0xff] %vm41, 0.0
  %46 = vst.msk [vmem:[#allocation2 + $0x20] sm:$0xff] %vm41, 0.0
  %47 = vst.msk [vmem:[#allocation2 + $0x28] sm:$0xff] %vm41, 0.0
  %48 = vst.msk [vmem:[#allocation2 + $0x30] sm:$0xff] %vm41, 0.0
  %49 = vst.msk [vmem:[#allocation2 + $0x38] sm:$0xff] %vm41, 0.0
  %50 = vst.msk [vmem:[#allocation2 + $0x40] sm:$0xff] %vm41, 0.0
  %51 = vst.msk [vmem:[#allocation2] sm:$0xff] %vm41, 0.0
  %52 = vst.msk [vmem:[#allocation2 + $0x48] sm:$0xff] %vm41, 0.0
  %53 = vst.msk [vmem:[#allocation2 + $0x90] sm:$0xff] %vm41, 0.0
  %54 = vst.msk [vmem:[#allocation2 + $0xd8] sm:$0xff] %vm41, 0.0
  %55 = vst.msk [vmem:[#allocation2 + $0x120] sm:$0xff] %vm41, 0.0
  %56 = vst.msk [vmem:[#allocation2 + $0x168] sm:$0xff] %vm41, 0.0
  %57 = vst.msk [vmem:[#allocation2 + $0x1b0] sm:$0xff] %vm41, 0.0
  %58 = vst.msk [vmem:[#allocation2 + $0x1f8] sm:$0xff] %vm41, 0.0
  %59 = vst.msk [vmem:[#allocation2 + $0x240] sm:$0xff] %vm41, 0.0
  %60 = vst.msk [vmem:[#allocation3] sm:$0xff] %vm41, 0.0
  %61 = vst.msk [vmem:[#allocation3 + $0x8] sm:$0xff] %vm41, 0.0
  %62 = vst.msk [vmem:[#allocation3 + $0x10] sm:$0xff] %vm41, 0.0
  %63 = vst.msk [vmem:[#allocation3 + $0x18] sm:$0xff] %vm41, 0.0
  %64 = vst.msk [vmem:[#allocation3 + $0x20] sm:$0xff] %vm41, 0.0
  %65 = vst.msk [vmem:[#allocation3 + $0x28] sm:$0xff] %vm41, 0.0
  %66 = vst.msk [vmem:[#allocation3 + $0x30] sm:$0xff] %vm41, 0.0
  %67 = vst.msk [vmem:[#allocation3 + $0x38] sm:$0xff] %vm41, 0.0
  %68 = vst.msk [vmem:[#allocation3 + $0x40] sm:$0xff] %vm41, 0.0
  %s69 = scalar_lea.vmem [#allocation3], 64
  %70 = vst.msk [vmem:[%s69] sm:$0xff] %vm41, 0.0
  %71 = vst.msk [vmem:[%s69 + $0x48] sm:$0xff] %vm41, 0.0
  %72 = vst.msk [vmem:[%s69 + $0x90] sm:$0xff] %vm41, 0.0
  %73 = vst.msk [vmem:[%s69 + $0xd8] sm:$0xff] %vm41, 0.0
  %74 = vst.msk [vmem:[%s69 + $0x120] sm:$0xff] %vm41, 0.0
  %75 = vst.msk [vmem:[%s69 + $0x168] sm:$0xff] %vm41, 0.0
  %76 = vst.msk [vmem:[%s69 + $0x1b0] sm:$0xff] %vm41, 0.0
  %77 = vst.msk [vmem:[%s69 + $0x1f8] sm:$0xff] %vm41, 0.0
  %78 = vst.msk [vmem:[%s69 + $0x240] sm:$0xff] %vm41, 0.0
  %s79 = scalar_lea.vmem [#allocation4], 576
  %80 = vst.msk [vmem:[%s79] sm:$0xff] %vm41, 0.0
  %81 = vst.msk [vmem:[%s79 + $0x8] sm:$0xff] %vm41, 0.0
  %82 = vst.msk [vmem:[%s79 + $0x10] sm:$0xff] %vm41, 0.0
  %83 = vst.msk [vmem:[%s79 + $0x18] sm:$0xff] %vm41, 0.0
  %84 = vst.msk [vmem:[%s79 + $0x20] sm:$0xff] %vm41, 0.0
  %85 = vst.msk [vmem:[%s79 + $0x28] sm:$0xff] %vm41, 0.0
  %86 = vst.msk [vmem:[%s79 + $0x30] sm:$0xff] %vm41, 0.0
  %87 = vst.msk [vmem:[%s79 + $0x38] sm:$0xff] %vm41, 0.0
  %88 = vst.msk [vmem:[%s79 + $0x40] sm:$0xff] %vm41, 0.0
  %89 = vst.msk [vmem:[#allocation4] sm:$0xff] %vm41, 0.0
  %90 = vst.msk [vmem:[#allocation4 + $0x48] sm:$0xff] %vm41, 0.0
  %91 = vst.msk [vmem:[#allocation4 + $0x90] sm:$0xff] %vm41, 0.0
  %92 = vst.msk [vmem:[#allocation4 + $0xd8] sm:$0xff] %vm41, 0.0
  %93 = vst.msk [vmem:[#allocation4 + $0x120] sm:$0xff] %vm41, 0.0
  %94 = vst.msk [vmem:[#allocation4 + $0x168] sm:$0xff] %vm41, 0.0
  %95 = vst.msk [vmem:[#allocation4 + $0x1b0] sm:$0xff] %vm41, 0.0
  %96 = vst.msk [vmem:[#allocation4 + $0x1f8] sm:$0xff] %vm41, 0.0
  %97 = vst.msk [vmem:[#allocation4 + $0x240] sm:$0xff] %vm41, 0.0
  %s98 = scalar_lea.vmem [#allocation5], 576
  %99 = vst.msk [vmem:[%s98] sm:$0xff] %vm41, 0.0
  %100 = vst.msk [vmem:[%s98 + $0x8] sm:$0xff] %vm41, 0.0
  %101 = vst.msk [vmem:[%s98 + $0x10] sm:$0xff] %vm41, 0.0
  %102 = vst.msk [vmem:[%s98 + $0x18] sm:$0xff] %vm41, 0.0
  %103 = vst.msk [vmem:[%s98 + $0x20] sm:$0xff] %vm41, 0.0
  %104 = vst.msk [vmem:[%s98 + $0x28] sm:$0xff] %vm41, 0.0
  %105 = vst.msk [vmem:[%s98 + $0x30] sm:$0xff] %vm41, 0.0
  %106 = vst.msk [vmem:[%s98 + $0x38] sm:$0xff] %vm41, 0.0
  %107 = vst.msk [vmem:[%s98 + $0x40] sm:$0xff] %vm41, 0.0
  %s108 = scalar_lea.vmem [#allocation5], 64
  %109 = vst.msk [vmem:[%s108] sm:$0xff] %vm41, 0.0
  %110 = vst.msk [vmem:[%s108 + $0x48] sm:$0xff] %vm41, 0.0
  %111 = vst.msk [vmem:[%s108 + $0x90] sm:$0xff] %vm41, 0.0
  %112 = vst.msk [vmem:[%s108 + $0xd8] sm:$0xff] %vm41, 0.0
  %113 = vst.msk [vmem:[%s108 + $0x120] sm:$0xff] %vm41, 0.0
  %114 = vst.msk [vmem:[%s108 + $0x168] sm:$0xff] %vm41, 0.0
  %115 = vst.msk [vmem:[%s108 + $0x1b0] sm:$0xff] %vm41, 0.0
  %116 = vst.msk [vmem:[%s108 + $0x1f8] sm:$0xff] %vm41, 0.0
  %117 = vst.msk [vmem:[%s108 + $0x240] sm:$0xff] %vm41, 0.0
  %vm118 = vcmask 130048
  %119 = vst.msk [vmem:[#allocation6] sm:$0xff] %vm118, 0.0
  %120 = vst.msk [vmem:[#allocation6 + $0x8] sm:$0xff] %vm118, 0.0
  %121 = vst.msk [vmem:[#allocation6 + $0x10] sm:$0xff] %vm118, 0.0
  %122 = vst.msk [vmem:[#allocation6 + $0x18] sm:$0xff] %vm118, 0.0
  %123 = vst.msk [vmem:[#allocation6 + $0x20] sm:$0xff] %vm118, 0.0
  %124 = vst.msk [vmem:[#allocation6] sm:$0xff] %vm118, 0.0
  %125 = vst.msk [vmem:[#allocation6 + $0x28] sm:$0xff] %vm118, 0.0
  %126 = vst.msk [vmem:[#allocation6 + $0x50] sm:$0xff] %vm118, 0.0
  %127 = vst.msk [vmem:[#allocation6 + $0x78] sm:$0xff] %vm118, 0.0
  %128 = vst.msk [vmem:[#allocation6 + $0xa0] sm:$0xff] %vm118, 0.0
  %129 = vst.msk [vmem:[#allocation7] sm:$0xff] %vm118, 0.0
  %130 = vst.msk [vmem:[#allocation7 + $0x8] sm:$0xff] %vm118, 0.0
  %131 = vst.msk [vmem:[#allocation7 + $0x10] sm:$0xff] %vm118, 0.0
  %132 = vst.msk [vmem:[#allocation7 + $0x18] sm:$0xff] %vm118, 0.0
  %133 = vst.msk [vmem:[#allocation7 + $0x20] sm:$0xff] %vm118, 0.0
  %s134 = scalar_lea.vmem [#allocation7], 32
  %135 = vst.msk [vmem:[%s134] sm:$0xff] %vm118, 0.0
  %136 = vst.msk [vmem:[%s134 + $0x28] sm:$0xff] %vm118, 0.0
  %137 = vst.msk [vmem:[%s134 + $0x50] sm:$0xff] %vm118, 0.0
  %138 = vst.msk [vmem:[%s134 + $0x78] sm:$0xff] %vm118, 0.0
  %139 = vst.msk [vmem:[%s134 + $0xa0] sm:$0xff] %vm118, 0.0
  %s140 = scalar_lea.vmem [#allocation8], 160
  %141 = vst.msk [vmem:[%s140] sm:$0xff] %vm118, 0.0
  %142 = vst.msk [vmem:[%s140 + $0x8] sm:$0xff] %vm118, 0.0
  %143 = vst.msk [vmem:[%s140 + $0x10] sm:$0xff] %vm118, 0.0
  %144 = vst.msk [vmem:[%s140 + $0x18] sm:$0xff] %vm118, 0.0
  %145 = vst.msk [vmem:[%s140 + $0x20] sm:$0xff] %vm118, 0.0
  %146 = vst.msk [vmem:[#allocation8] sm:$0xff] %vm118, 0.0
  %147 = vst.msk [vmem:[#allocation8 + $0x28] sm:$0xff] %vm118, 0.0
  %148 = vst.msk [vmem:[#allocation8 + $0x50] sm:$0xff] %vm118, 0.0
  %149 = vst.msk [vmem:[#allocation8 + $0x78] sm:$0xff] %vm118, 0.0
  %150 = vst.msk [vmem:[#allocation8 + $0xa0] sm:$0xff] %vm118, 0.0
  %s151 = scalar_lea.vmem [#allocation9], 160
  %152 = vst.msk [vmem:[%s151] sm:$0xff] %vm118, 0.0
  %153 = vst.msk [vmem:[%s151 + $0x8] sm:$0xff] %vm118, 0.0
  %154 = vst.msk [vmem:[%s151 + $0x10] sm:$0xff] %vm118, 0.0
  %155 = vst.msk [vmem:[%s151 + $0x18] sm:$0xff] %vm118, 0.0
  %156 = vst.msk [vmem:[%s151 + $0x20] sm:$0xff] %vm118, 0.0
  %s157 = scalar_lea.vmem [#allocation9], 32
  %158 = vst.msk [vmem:[%s157] sm:$0xff] %vm118, 0.0
  %159 = vst.msk [vmem:[%s157 + $0x28] sm:$0xff] %vm118, 0.0
  %160 = vst.msk [vmem:[%s157 + $0x50] sm:$0xff] %vm118, 0.0
  %161 = vst.msk [vmem:[%s157 + $0x78] sm:$0xff] %vm118, 0.0
  %162 = vst.msk [vmem:[%s157 + $0xa0] sm:$0xff] %vm118, 0.0
  %vm163 = vcmask 261120
  %164 = vst.msk [vmem:[#allocation10] sm:$0xff] %vm163, 0.0
  %165 = vst.msk [vmem:[#allocation10 + $0x8] sm:$0xff] %vm163, 0.0
  %166 = vst.msk [vmem:[#allocation10 + $0x10] sm:$0xff] %vm163, 0.0
  %167 = vst.msk [vmem:[#allocation10] sm:$0xff] %vm163, 0.0
  %168 = vst.msk [vmem:[#allocation10 + $0x18] sm:$0xff] %vm163, 0.0
  %169 = vst.msk [vmem:[#allocation10 + $0x30] sm:$0xff] %vm163, 0.0
  %170 = vst.msk [vmem:[#allocation11] sm:$0xff] %vm163, 0.0
  %171 = vst.msk [vmem:[#allocation11 + $0x8] sm:$0xff] %vm163, 0.0
  %172 = vst.msk [vmem:[#allocation11 + $0x10] sm:$0xff] %vm163, 0.0
  %s173 = scalar_lea.vmem [#allocation11], 16
  %174 = vst.msk [vmem:[%s173] sm:$0xff] %vm163, 0.0
  %175 = vst.msk [vmem:[%s173 + $0x18] sm:$0xff] %vm163, 0.0
  %176 = vst.msk [vmem:[%s173 + $0x30] sm:$0xff] %vm163, 0.0
  %s177 = scalar_lea.vmem [#allocation12], 48
  %178 = vst.msk [vmem:[%s177] sm:$0xff] %vm163, 0.0
  %179 = vst.msk [vmem:[%s177 + $0x8] sm:$0xff] %vm163, 0.0
  %180 = vst.msk [vmem:[%s177 + $0x10] sm:$0xff] %vm163, 0.0
  %181 = vst.msk [vmem:[#allocation12] sm:$0xff] %vm163, 0.0
  %182 = vst.msk [vmem:[#allocation12 + $0x18] sm:$0xff] %vm163, 0.0
  %183 = vst.msk [vmem:[#allocation12 + $0x30] sm:$0xff] %vm163, 0.0
  %s184 = scalar_lea.vmem [#allocation13], 48
  %185 = vst.msk [vmem:[%s184] sm:$0xff] %vm163, 0.0
  %186 = vst.msk [vmem:[%s184 + $0x8] sm:$0xff] %vm163, 0.0
  %187 = vst.msk [vmem:[%s184 + $0x10] sm:$0xff] %vm163, 0.0
  %s188 = scalar_lea.vmem [#allocation13], 16
  %189 = vst.msk [vmem:[%s188] sm:$0xff] %vm163, 0.0
  %190 = vst.msk [vmem:[%s188 + $0x18] sm:$0xff] %vm163, 0.0
  %191 = vst.msk [vmem:[%s188 + $0x30] sm:$0xff] %vm163, 0.0
  %vm192 = vcmask 523264
  %193 = vst.msk [vmem:[#allocation14] sm:$0xff] %vm192, 0.0
  %194 = vst.msk [vmem:[#allocation14 + $0x8] sm:$0xff] %vm192, 0.0
  %195 = vst.msk [vmem:[#allocation14] sm:$0xff] %vm192, 0.0
  %196 = vst.msk [vmem:[#allocation14 + $0x10] sm:$0xff] %vm192, 0.0
  %197 = vst.msk [vmem:[#allocation15] sm:$0xff] %vm192, 0.0
  %198 = vst.msk [vmem:[#allocation15 + $0x8] sm:$0xff] %vm192, 0.0
  %s199 = scalar_lea.vmem [#allocation15], 8
  %200 = vst.msk [vmem:[%s199] sm:$0xff] %vm192, 0.0
  %201 = vst.msk [vmem:[%s199 + $0x10] sm:$0xff] %vm192, 0.0
  %s202 = scalar_lea.vmem [#allocation16], 16
  %203 = vst.msk [vmem:[%s202] sm:$0xff] %vm192, 0.0
  %204 = vst.msk [vmem:[%s202 + $0x8] sm:$0xff] %vm192, 0.0
  %205 = vst.msk [vmem:[#allocation16] sm:$0xff] %vm192, 0.0
  %206 = vst.msk [vmem:[#allocation16 + $0x10] sm:$0xff] %vm192, 0.0
  %s207 = scalar_lea.vmem [#allocation17], 16
  %208 = vst.msk [vmem:[%s207] sm:$0xff] %vm192, 0.0
  %209 = vst.msk [vmem:[%s207 + $0x8] sm:$0xff] %vm192, 0.0
  %s210 = scalar_lea.vmem [#allocation17], 8
  %211 = vst.msk [vmem:[%s210] sm:$0xff] %vm192, 0.0
  %212 = vst.msk [vmem:[%s210 + $0x10] sm:$0xff] %vm192, 0.0
  %v213 = vld [vmem:[%s0] sm:$0xff]
  %v214 = vld [vmem:[%s0 + $0x8] sm:$0xff]
  %v215 = vld [vmem:[%s0 + $0x10] sm:$0xff]
  %v216 = vld [vmem:[%s0 + $0x18] sm:$0xff]
  %v217 = vld [vmem:[%s0 + $0x20] sm:$0xff]
  %v218 = vld [vmem:[%s0 + $0x28] sm:$0xff]
  %v219 = vld [vmem:[%s0 + $0x30] sm:$0xff]
  %v220 = vld [vmem:[%s0 + $0x38] sm:$0xff]
  %v221 = vld [vmem:[%s0 + $0x40] sm:$0xff]
  %v222 = vld [vmem:[%s0 + $0x48] sm:$0xff]
  %v223 = vld [vmem:[%s0 + $0x50] sm:$0xff]
  %v224 = vld [vmem:[%s0 + $0x58] sm:$0xff]
  %v225 = vld [vmem:[%s0 + $0x60] sm:$0xff]
  %v226 = vld [vmem:[%s0 + $0x68] sm:$0xff]
  %v227 = vld [vmem:[%s0 + $0x70] sm:$0xff]
  %v228 = vld [vmem:[%s0 + $0x78] sm:$0xff]
  %v229 = vld [vmem:[%s0 + $0x80] sm:$0xff]
  %v230 = vld [vmem:[%s0 + $0x88] sm:$0xff]
  %v231 = vld [vmem:[%s0 + $0x90] sm:$0xff]
  %v232 = vld [vmem:[%s0 + $0x98] sm:$0xff]
  %v233 = vld [vmem:[%s0 + $0xa0] sm:$0xff]
  %v234 = vld [vmem:[%s0 + $0xa8] sm:$0xff]
  %v235 = vld [vmem:[%s0 + $0xb0] sm:$0xff]
  %v236 = vld [vmem:[%s0 + $0xb8] sm:$0xff]
  %v237 = vld [vmem:[%s0 + $0xc0] sm:$0xff]
  %v238 = vld [vmem:[%s0 + $0xc8] sm:$0xff]
  %v239 = vld [vmem:[%s0 + $0xd0] sm:$0xff]
  %v240 = vld [vmem:[%s0 + $0xd8] sm:$0xff]
  %v241 = vld [vmem:[%s0 + $0xe0] sm:$0xff]
  %v242 = vld [vmem:[%s0 + $0xe8] sm:$0xff]
  %v243 = vld [vmem:[%s0 + $0xf0] sm:$0xff]
  %v244 = vld [vmem:[%s0 + $0xf8] sm:$0xff]
  %v245 = vld [vmem:[%s0 + $0x100] sm:$0xff]
  %v246 = vld [vmem:[%s0 + $0x108] sm:$0xff]
  %v247 = vld [vmem:[%s0 + $0x110] sm:$0xff]
  %v248 = vld [vmem:[%s0 + $0x118] sm:$0xff]
  %v249 = vld [vmem:[%s0 + $0x120] sm:$0xff]
  %v250 = vld [vmem:[%s0 + $0x128] sm:$0xff]
  %v251 = vld [vmem:[%s0 + $0x130] sm:$0xff]
  %v252 = vld [vmem:[%s0 + $0x138] sm:$0xff]
  %v253 = vld [vmem:[%s0 + $0x140] sm:$0xff]
  %v254 = vld [vmem:[%s0 + $0x148] sm:$0xff]
  %v255 = vld [vmem:[%s0 + $0x150] sm:$0xff]
  %v256 = vld [vmem:[%s0 + $0x158] sm:$0xff]
  %v257 = vld [vmem:[%s0 + $0x160] sm:$0xff]
  %v258 = vld [vmem:[%s0 + $0x168] sm:$0xff]
  %v259 = vld [vmem:[%s0 + $0x170] sm:$0xff]
  %v260 = vld [vmem:[%s0 + $0x178] sm:$0xff]
  %v261 = vld [vmem:[%s0 + $0x180] sm:$0xff]
  %v262 = vld [vmem:[%s0 + $0x188] sm:$0xff]
  %v263 = vld [vmem:[%s0 + $0x190] sm:$0xff]
  %v264 = vld [vmem:[%s0 + $0x198] sm:$0xff]
  %v265 = vld [vmem:[%s0 + $0x1a0] sm:$0xff]
  %v266 = vld [vmem:[%s0 + $0x1a8] sm:$0xff]
  %v267 = vld [vmem:[%s0 + $0x1b0] sm:$0xff]
  %v268 = vld [vmem:[%s0 + $0x1b8] sm:$0xff]
  %v269 = vld [vmem:[%s0 + $0x1c0] sm:$0xff]
  %v270 = vld [vmem:[%s0 + $0x1c8] sm:$0xff]
  %v271 = vld [vmem:[%s0 + $0x1d0] sm:$0xff]
  %v272 = vld [vmem:[%s0 + $0x1d8] sm:$0xff]
  %v273 = vld [vmem:[%s0 + $0x1e0] sm:$0xff]
  %v274 = vld [vmem:[%s0 + $0x1e8] sm:$0xff]
  %v275 = vld [vmem:[%s0 + $0x1f0] sm:$0xff]
  %v276 = vld [vmem:[%s0 + $0x1f8] sm:$0xff]
  %v277 = vld [vmem:[%s0 + $0x200] sm:$0xff]
  %v278 = vld [vmem:[%s0 + $0x208] sm:$0xff]
  %v279 = vld [vmem:[%s0 + $0x210] sm:$0xff]
  %v280 = vld [vmem:[%s0 + $0x218] sm:$0xff]
  %v281 = vld [vmem:[%s0 + $0x220] sm:$0xff]
  %v282 = vld [vmem:[%s0 + $0x228] sm:$0xff]
  %v283 = vld [vmem:[%s0 + $0x230] sm:$0xff]
  %v284 = vld [vmem:[%s0 + $0x238] sm:$0xff]
  %v285 = vld [vmem:[%s0 + $0x240] sm:$0xff]
  %v286 = vld [vmem:[%s0 + $0x248] sm:$0xff]
  %v287 = vld [vmem:[%s0 + $0x250] sm:$0xff]
  %v288 = vld [vmem:[%s0 + $0x258] sm:$0xff]
  %v289 = vld [vmem:[%s0 + $0x260] sm:$0xff]
  %v290 = vld [vmem:[%s0 + $0x268] sm:$0xff]
  %v291 = vld [vmem:[%s0 + $0x270] sm:$0xff]
  %v292 = vld [vmem:[%s0 + $0x278] sm:$0xff]
  %v293 = vld [vmem:[%s0 + $0x280] sm:$0xff]
  %v294 = vld [vmem:[%s0 + $0x288] sm:$0xff]
  %v295 = vld [vmem:[%s0 + $0x290] sm:$0xff]
  %v296 = vld [vmem:[%s0 + $0x298] sm:$0xff]
  %v297 = vld [vmem:[%s0 + $0x2a0] sm:$0xff]
  %v298 = vld [vmem:[%s0 + $0x2a8] sm:$0xff]
  %v299 = vld [vmem:[%s0 + $0x2b0] sm:$0xff]
  %v300 = vld [vmem:[%s0 + $0x2b8] sm:$0xff]
  %v301 = vld [vmem:[%s0 + $0x2c0] sm:$0xff]
  %v302 = vld [vmem:[%s0 + $0x2c8] sm:$0xff]
  %v303 = vld [vmem:[%s0 + $0x2d0] sm:$0xff]
  %v304 = vld [vmem:[%s0 + $0x2d8] sm:$0xff]
  %v305 = vld [vmem:[%s0 + $0x2e0] sm:$0xff]
  %v306 = vld [vmem:[%s0 + $0x2e8] sm:$0xff]
  %v307 = vld [vmem:[%s0 + $0x2f0] sm:$0xff]
  %v308 = vld [vmem:[%s0 + $0x2f8] sm:$0xff]
  %v309 = vld [vmem:[%s0 + $0x300] sm:$0xff]
  %v310 = vld [vmem:[%s0 + $0x308] sm:$0xff]
  %v311 = vld [vmem:[%s0 + $0x310] sm:$0xff]
  %v312 = vld [vmem:[%s0 + $0x318] sm:$0xff]
  %v313 = vld [vmem:[%s0 + $0x320] sm:$0xff]
  %v314 = vld [vmem:[%s0 + $0x328] sm:$0xff]
  %v315 = vld [vmem:[%s0 + $0x330] sm:$0xff]
  %v316 = vld [vmem:[%s0 + $0x338] sm:$0xff]
  %v317 = vld [vmem:[%s0 + $0x340] sm:$0xff]
  %v318 = vld [vmem:[%s0 + $0x348] sm:$0xff]
  %v319 = vld [vmem:[%s0 + $0x350] sm:$0xff]
  %v320 = vld [vmem:[%s0 + $0x358] sm:$0xff]
  %v321 = vld [vmem:[%s0 + $0x360] sm:$0xff]
  %v322 = vld [vmem:[%s0 + $0x368] sm:$0xff]
  %v323 = vld [vmem:[%s0 + $0x370] sm:$0xff]
  %v324 = vld [vmem:[%s0 + $0x378] sm:$0xff]
  %v325 = vld [vmem:[%s0 + $0x380] sm:$0xff]
  %v326 = vld [vmem:[%s0 + $0x388] sm:$0xff]
  %v327 = vld [vmem:[%s0 + $0x390] sm:$0xff]
  %v328 = vld [vmem:[%s0 + $0x398] sm:$0xff]
  %v329 = vld [vmem:[%s0 + $0x3a0] sm:$0xff]
  %v330 = vld [vmem:[%s0 + $0x3a8] sm:$0xff]
  %v331 = vld [vmem:[%s0 + $0x3b0] sm:$0xff]
  %v332 = vld [vmem:[%s0 + $0x3b8] sm:$0xff]
  %v333 = vld [vmem:[%s0 + $0x3c0] sm:$0xff]
  %v334 = vld [vmem:[%s0 + $0x3c8] sm:$0xff]
  %v335 = vld [vmem:[%s0 + $0x3d0] sm:$0xff]
  %v336 = vld [vmem:[%s0 + $0x3d8] sm:$0xff]
  %v337 = vld [vmem:[%s0 + $0x3e0] sm:$0xff]
  %v338 = vld [vmem:[%s0 + $0x3e8] sm:$0xff]
  %v339 = vld [vmem:[%s0 + $0x3f0] sm:$0xff]
  %v340 = vld [vmem:[%s0 + $0x3f8] sm:$0xff]
  %v341 = vld [vmem:[%s0 + $0x400] sm:$0xff]
  %v342 = vld [vmem:[%s0 + $0x408] sm:$0xff]
  %v343 = vld [vmem:[%s0 + $0x410] sm:$0xff]
  %v344 = vld [vmem:[%s0 + $0x418] sm:$0xff]
  %v345 = vld [vmem:[%s0 + $0x420] sm:$0xff]
  %v346 = vld [vmem:[%s0 + $0x428] sm:$0xff]
  %v347 = vld [vmem:[%s0 + $0x430] sm:$0xff]
  %v348 = vld [vmem:[%s0 + $0x438] sm:$0xff]
  %v349 = vld [vmem:[%s0 + $0x440] sm:$0xff]
  %v350 = vld [vmem:[%s0 + $0x448] sm:$0xff]
  %v351 = vld [vmem:[%s0 + $0x450] sm:$0xff]
  %v352 = vld [vmem:[%s0 + $0x458] sm:$0xff]
  %v353 = vld [vmem:[%s0 + $0x460] sm:$0xff]
  %v354 = vld [vmem:[%s0 + $0x468] sm:$0xff]
  %v355 = vld [vmem:[%s0 + $0x470] sm:$0xff]
  %v356 = vld [vmem:[%s0 + $0x478] sm:$0xff]
  %v357 = vld [vmem:[%s0 + $0x480] sm:$0xff]
  %v358 = vld [vmem:[%s0 + $0x488] sm:$0xff]
  %v359 = vld [vmem:[%s0 + $0x490] sm:$0xff]
  %v360 = vld [vmem:[%s0 + $0x498] sm:$0xff]
  %v361 = vld [vmem:[%s0 + $0x4a0] sm:$0xff]
  %v362 = vld [vmem:[%s0 + $0x4a8] sm:$0xff]
  %v363 = vld [vmem:[%s0 + $0x4b0] sm:$0xff]
  %v364 = vld [vmem:[%s0 + $0x4b8] sm:$0xff]
  %v365 = vld [vmem:[%s0 + $0x4c0] sm:$0xff]
  %v366 = vld [vmem:[%s0 + $0x4c8] sm:$0xff]
  %v367 = vld [vmem:[%s0 + $0x4d0] sm:$0xff]
  %v368 = vld [vmem:[%s0 + $0x4d8] sm:$0xff]
  %v369 = vld [vmem:[%s0 + $0x4e0] sm:$0xff]
  %v370 = vld [vmem:[%s0 + $0x4e8] sm:$0xff]
  %v371 = vld [vmem:[%s0 + $0x4f0] sm:$0xff]
  %v372 = vld [vmem:[%s0 + $0x4f8] sm:$0xff]
  %v373 = vld [vmem:[%s0 + $0x500] sm:$0xff]
  %v374 = vld [vmem:[%s0 + $0x508] sm:$0xff]
  %v375 = vld [vmem:[%s0 + $0x510] sm:$0xff]
  %v376 = vld [vmem:[%s0 + $0x518] sm:$0xff]
  %v377 = vld [vmem:[%s0 + $0x520] sm:$0xff]
  %v378 = vld [vmem:[%s0 + $0x528] sm:$0xff]
  %v379 = vld [vmem:[%s0 + $0x530] sm:$0xff]
  %v380 = vld [vmem:[%s0 + $0x538] sm:$0xff]
  %v381 = vld [vmem:[%s0 + $0x540] sm:$0xff]
  %v382 = vld [vmem:[%s0 + $0x548] sm:$0xff]
  %v383 = vld [vmem:[%s0 + $0x550] sm:$0xff]
  %v384 = vld [vmem:[%s0 + $0x558] sm:$0xff]
  %v385 = vld [vmem:[%s0 + $0x560] sm:$0xff]
  %v386 = vld [vmem:[%s0 + $0x568] sm:$0xff]
  %v387 = vld [vmem:[%s0 + $0x570] sm:$0xff]
  %v388 = vld [vmem:[%s0 + $0x578] sm:$0xff]
  %v389 = vld [vmem:[%s0 + $0x580] sm:$0xff]
  %v390 = vld [vmem:[%s0 + $0x588] sm:$0xff]
  %v391 = vld [vmem:[%s0 + $0x590] sm:$0xff]
  %v392 = vld [vmem:[%s0 + $0x598] sm:$0xff]
  %v393 = vld [vmem:[%s0 + $0x5a0] sm:$0xff]
  %v394 = vld [vmem:[%s0 + $0x5a8] sm:$0xff]
  %v395 = vld [vmem:[%s0 + $0x5b0] sm:$0xff]
  %v396 = vld [vmem:[%s0 + $0x5b8] sm:$0xff]
  %v397 = vld [vmem:[%s0 + $0x5c0] sm:$0xff]
  %v398 = vld [vmem:[%s0 + $0x5c8] sm:$0xff]
  %v399 = vld [vmem:[%s0 + $0x5d0] sm:$0xff]
  %v400 = vld [vmem:[%s0 + $0x5d8] sm:$0xff]
  %v401 = vld [vmem:[%s0 + $0x5e0] sm:$0xff]
  %v402 = vld [vmem:[%s0 + $0x5e8] sm:$0xff]
  %v403 = vld [vmem:[%s0 + $0x5f0] sm:$0xff]
  %v404 = vld [vmem:[%s0 + $0x5f8] sm:$0xff]
  %v405 = vld [vmem:[%s0 + $0x600] sm:$0xff]
  %v406 = vld [vmem:[%s0 + $0x608] sm:$0xff]
  %v407 = vld [vmem:[%s0 + $0x610] sm:$0xff]
  %v408 = vld [vmem:[%s0 + $0x618] sm:$0xff]
  %v409 = vld [vmem:[%s0 + $0x620] sm:$0xff]
  %v410 = vld [vmem:[%s0 + $0x628] sm:$0xff]
  %v411 = vld [vmem:[%s0 + $0x630] sm:$0xff]
  %v412 = vld [vmem:[%s0 + $0x638] sm:$0xff]
  %v413 = vld [vmem:[%s0 + $0x640] sm:$0xff]
  %v414 = vld [vmem:[%s0 + $0x648] sm:$0xff]
  %v415 = vld [vmem:[%s0 + $0x650] sm:$0xff]
  %v416 = vld [vmem:[%s0 + $0x658] sm:$0xff]
  %v417 = vld [vmem:[%s0 + $0x660] sm:$0xff]
  %v418 = vld [vmem:[%s0 + $0x668] sm:$0xff]
  %v419 = vld [vmem:[%s0 + $0x670] sm:$0xff]
  %v420 = vld [vmem:[%s0 + $0x678] sm:$0xff]
  %v421 = vld [vmem:[%s0 + $0x680] sm:$0xff]
  %v422 = vld [vmem:[%s0 + $0x688] sm:$0xff]
  %v423 = vld [vmem:[%s0 + $0x690] sm:$0xff]
  %v424 = vld [vmem:[%s0 + $0x698] sm:$0xff]
  %v425 = vld [vmem:[%s0 + $0x6a0] sm:$0xff]
  %v426 = vld [vmem:[%s0 + $0x6a8] sm:$0xff]
  %v427 = vld [vmem:[%s0 + $0x6b0] sm:$0xff]
  %v428 = vld [vmem:[%s0 + $0x6b8] sm:$0xff]
  %v429 = vld [vmem:[%s0 + $0x6c0] sm:$0xff]
  %v430 = vld [vmem:[%s0 + $0x6c8] sm:$0xff]
  %v431 = vld [vmem:[%s0 + $0x6d0] sm:$0xff]
  %v432 = vld [vmem:[%s0 + $0x6d8] sm:$0xff]
  %v433 = vld [vmem:[%s0 + $0x6e0] sm:$0xff]
  %v434 = vld [vmem:[%s0 + $0x6e8] sm:$0xff]
  %v435 = vld [vmem:[%s0 + $0x6f0] sm:$0xff]
  %v436 = vld [vmem:[%s0 + $0x6f8] sm:$0xff]
  %v437 = vld [vmem:[%s0 + $0x700] sm:$0xff]
  %v438 = vld [vmem:[%s0 + $0x708] sm:$0xff]
  %v439 = vld [vmem:[%s0 + $0x710] sm:$0xff]
  %v440 = vld [vmem:[%s0 + $0x718] sm:$0xff]
  %v441 = vld [vmem:[%s0 + $0x720] sm:$0xff]
  %v442 = vld [vmem:[%s0 + $0x728] sm:$0xff]
  %v443 = vld [vmem:[%s0 + $0x730] sm:$0xff]
  %v444 = vld [vmem:[%s0 + $0x738] sm:$0xff]
  %v445 = vld [vmem:[%s0 + $0x740] sm:$0xff]
  %v446 = vld [vmem:[%s0 + $0x748] sm:$0xff]
  %v447 = vld [vmem:[%s0 + $0x750] sm:$0xff]
  %v448 = vld [vmem:[%s0 + $0x758] sm:$0xff]
  %v449 = vld [vmem:[%s0 + $0x760] sm:$0xff]
  %v450 = vld [vmem:[%s0 + $0x768] sm:$0xff]
  %v451 = vld [vmem:[%s0 + $0x770] sm:$0xff]
  %v452 = vld [vmem:[%s0 + $0x778] sm:$0xff]
  %v453 = vld [vmem:[%s0 + $0x780] sm:$0xff]
  %v454 = vld [vmem:[%s0 + $0x788] sm:$0xff]
  %v455 = vld [vmem:[%s0 + $0x790] sm:$0xff]
  %v456 = vld [vmem:[%s0 + $0x798] sm:$0xff]
  %v457 = vld [vmem:[%s0 + $0x7a0] sm:$0xff]
  %v458 = vld [vmem:[%s0 + $0x7a8] sm:$0xff]
  %v459 = vld [vmem:[%s0 + $0x7b0] sm:$0xff]
  %v460 = vld [vmem:[%s0 + $0x7b8] sm:$0xff]
  %v461 = vld [vmem:[%s0 + $0x7c0] sm:$0xff]
  %v462 = vld [vmem:[%s0 + $0x7c8] sm:$0xff]
  %v463 = vld [vmem:[%s0 + $0x7d0] sm:$0xff]
  %v464 = vld [vmem:[%s0 + $0x7d8] sm:$0xff]
  %v465 = vld [vmem:[%s0 + $0x7e0] sm:$0xff]
  %v466 = vld [vmem:[%s0 + $0x7e8] sm:$0xff]
  %v467 = vld [vmem:[%s0 + $0x7f0] sm:$0xff]
  %v468 = vld [vmem:[%s0 + $0x7f8] sm:$0xff]
  %469 = vst.msk [vmem:[#allocation5] sm:$0xff] %vm41, %v213
  %470 = vst.msk [vmem:[#allocation5 + $0x8] sm:$0xff] %vm41, %v215
  %471 = vst.msk [vmem:[#allocation5 + $0x10] sm:$0xff] %vm41, %v217
  %472 = vst.msk [vmem:[#allocation5 + $0x18] sm:$0xff] %vm41, %v219
  %473 = vst.msk [vmem:[#allocation5 + $0x20] sm:$0xff] %vm41, %v221
  %474 = vst.msk [vmem:[#allocation5 + $0x28] sm:$0xff] %vm41, %v223
  %475 = vst.msk [vmem:[#allocation5 + $0x30] sm:$0xff] %vm41, %v225
  %476 = vst.msk [vmem:[#allocation5 + $0x38] sm:$0xff] %vm41, %v227
  %477 = vst.msk [vmem:[#allocation5 + $0x48] sm:$0xff] %vm41, %v245
  %478 = vst.msk [vmem:[#allocation5 + $0x50] sm:$0xff] %vm41, %v247
  %479 = vst.msk [vmem:[#allocation5 + $0x58] sm:$0xff] %vm41, %v249
  %480 = vst.msk [vmem:[#allocation5 + $0x60] sm:$0xff] %vm41, %v251
  %481 = vst.msk [vmem:[#allocation5 + $0x68] sm:$0xff] %vm41, %v253
  %482 = vst.msk [vmem:[#allocation5 + $0x70] sm:$0xff] %vm41, %v255
  %483 = vst.msk [vmem:[#allocation5 + $0x78] sm:$0xff] %vm41, %v257
  %484 = vst.msk [vmem:[#allocation5 + $0x80] sm:$0xff] %vm41, %v259
  %485 = vst.msk [vmem:[#allocation5 + $0x90] sm:$0xff] %vm41, %v277
  %486 = vst.msk [vmem:[#allocation5 + $0x98] sm:$0xff] %vm41, %v279
  %487 = vst.msk [vmem:[#allocation5 + $0xa0] sm:$0xff] %vm41, %v281
  %488 = vst.msk [vmem:[#allocation5 + $0xa8] sm:$0xff] %vm41, %v283
  %489 = vst.msk [vmem:[#allocation5 + $0xb0] sm:$0xff] %vm41, %v285
  %490 = vst.msk [vmem:[#allocation5 + $0xb8] sm:$0xff] %vm41, %v287
  %491 = vst.msk [vmem:[#allocation5 + $0xc0] sm:$0xff] %vm41, %v289
  %492 = vst.msk [vmem:[#allocation5 + $0xc8] sm:$0xff] %vm41, %v291
  %493 = vst.msk [vmem:[#allocation5 + $0xd8] sm:$0xff] %vm41, %v309
  %494 = vst.msk [vmem:[#allocation5 + $0xe0] sm:$0xff] %vm41, %v311
  %495 = vst.msk [vmem:[#allocation5 + $0xe8] sm:$0xff] %vm41, %v313
  %496 = vst.msk [vmem:[#allocation5 + $0xf0] sm:$0xff] %vm41, %v315
  %497 = vst.msk [vmem:[#allocation5 + $0xf8] sm:$0xff] %vm41, %v317
  %498 = vst.msk [vmem:[#allocation5 + $0x100] sm:$0xff] %vm41, %v319
  %499 = vst.msk [vmem:[#allocation5 + $0x108] sm:$0xff] %vm41, %v321
  %500 = vst.msk [vmem:[#allocation5 + $0x110] sm:$0xff] %vm41, %v323
  %501 = vst.msk [vmem:[#allocation5 + $0x120] sm:$0xff] %vm41, %v341
  %502 = vst.msk [vmem:[#allocation5 + $0x128] sm:$0xff] %vm41, %v343
  %503 = vst.msk [vmem:[#allocation5 + $0x130] sm:$0xff] %vm41, %v345
  %504 = vst.msk [vmem:[#allocation5 + $0x138] sm:$0xff] %vm41, %v347
  %505 = vst.msk [vmem:[#allocation5 + $0x140] sm:$0xff] %vm41, %v349
  %506 = vst.msk [vmem:[#allocation5 + $0x148] sm:$0xff] %vm41, %v351
  %507 = vst.msk [vmem:[#allocation5 + $0x150] sm:$0xff] %vm41, %v353
  %508 = vst.msk [vmem:[#allocation5 + $0x158] sm:$0xff] %vm41, %v355
  %509 = vst.msk [vmem:[#allocation5 + $0x168] sm:$0xff] %vm41, %v373
  %510 = vst.msk [vmem:[#allocation5 + $0x170] sm:$0xff] %vm41, %v375
  %511 = vst.msk [vmem:[#allocation5 + $0x178] sm:$0xff] %vm41, %v377
  %512 = vst.msk [vmem:[#allocation5 + $0x180] sm:$0xff] %vm41, %v379
  %513 = vst.msk [vmem:[#allocation5 + $0x188] sm:$0xff] %vm41, %v381
  %514 = vst.msk [vmem:[#allocation5 + $0x190] sm:$0xff] %vm41, %v383
  %515 = vst.msk [vmem:[#allocation5 + $0x198] sm:$0xff] %vm41, %v385
  %516 = vst.msk [vmem:[#allocation5 + $0x1a0] sm:$0xff] %vm41, %v387
  %517 = vst.msk [vmem:[#allocation5 + $0x1b0] sm:$0xff] %vm41, %v405
  %518 = vst.msk [vmem:[#allocation5 + $0x1b8] sm:$0xff] %vm41, %v407
  %519 = vst.msk [vmem:[#allocation5 + $0x1c0] sm:$0xff] %vm41, %v409
  %520 = vst.msk [vmem:[#allocation5 + $0x1c8] sm:$0xff] %vm41, %v411
  %521 = vst.msk [vmem:[#allocation5 + $0x1d0] sm:$0xff] %vm41, %v413
  %522 = vst.msk [vmem:[#allocation5 + $0x1d8] sm:$0xff] %vm41, %v415
  %523 = vst.msk [vmem:[#allocation5 + $0x1e0] sm:$0xff] %vm41, %v417
  %524 = vst.msk [vmem:[#allocation5 + $0x1e8] sm:$0xff] %vm41, %v419
  %525 = vst.msk [vmem:[#allocation5 + $0x1f8] sm:$0xff] %vm41, %v437
  %526 = vst.msk [vmem:[#allocation5 + $0x200] sm:$0xff] %vm41, %v439
  %527 = vst.msk [vmem:[#allocation5 + $0x208] sm:$0xff] %vm41, %v441
  %528 = vst.msk [vmem:[#allocation5 + $0x210] sm:$0xff] %vm41, %v443
  %529 = vst.msk [vmem:[#allocation5 + $0x218] sm:$0xff] %vm41, %v445
  %530 = vst.msk [vmem:[#allocation5 + $0x220] sm:$0xff] %vm41, %v447
  %531 = vst.msk [vmem:[#allocation5 + $0x228] sm:$0xff] %vm41, %v449
  %532 = vst.msk [vmem:[#allocation5 + $0x230] sm:$0xff] %vm41, %v451
  %s533 = scalar_lea.vmem [#allocation4], 8
  %534 = vst.msk [vmem:[%s533] sm:$0xff] %vm41, %v214
  %535 = vst.msk [vmem:[%s533 + $0x8] sm:$0xff] %vm41, %v216
  %536 = vst.msk [vmem:[%s533 + $0x10] sm:$0xff] %vm41, %v218
  %537 = vst.msk [vmem:[%s533 + $0x18] sm:$0xff] %vm41, %v220
  %538 = vst.msk [vmem:[%s533 + $0x20] sm:$0xff] %vm41, %v222
  %539 = vst.msk [vmem:[%s533 + $0x28] sm:$0xff] %vm41, %v224
  %540 = vst.msk [vmem:[%s533 + $0x30] sm:$0xff] %vm41, %v226
  %541 = vst.msk [vmem:[%s533 + $0x38] sm:$0xff] %vm41, %v228
  %542 = vst.msk [vmem:[%s533 + $0x48] sm:$0xff] %vm41, %v246
  %543 = vst.msk [vmem:[%s533 + $0x50] sm:$0xff] %vm41, %v248
  %544 = vst.msk [vmem:[%s533 + $0x58] sm:$0xff] %vm41, %v250
  %545 = vst.msk [vmem:[%s533 + $0x60] sm:$0xff] %vm41, %v252
  %546 = vst.msk [vmem:[%s533 + $0x68] sm:$0xff] %vm41, %v254
  %547 = vst.msk [vmem:[%s533 + $0x70] sm:$0xff] %vm41, %v256
  %548 = vst.msk [vmem:[%s533 + $0x78] sm:$0xff] %vm41, %v258
  %549 = vst.msk [vmem:[%s533 + $0x80] sm:$0xff] %vm41, %v260
  %550 = vst.msk [vmem:[%s533 + $0x90] sm:$0xff] %vm41, %v278
  %551 = vst.msk [vmem:[%s533 + $0x98] sm:$0xff] %vm41, %v280
  %552 = vst.msk [vmem:[%s533 + $0xa0] sm:$0xff] %vm41, %v282
  %553 = vst.msk [vmem:[%s533 + $0xa8] sm:$0xff] %vm41, %v284
  %554 = vst.msk [vmem:[%s533 + $0xb0] sm:$0xff] %vm41, %v286
  %555 = vst.msk [vmem:[%s533 + $0xb8] sm:$0xff] %vm41, %v288
  %556 = vst.msk [vmem:[%s533 + $0xc0] sm:$0xff] %vm41, %v290
  %557 = vst.msk [vmem:[%s533 + $0xc8] sm:$0xff] %vm41, %v292
  %558 = vst.msk [vmem:[%s533 + $0xd8] sm:$0xff] %vm41, %v310
  %559 = vst.msk [vmem:[%s533 + $0xe0] sm:$0xff] %vm41, %v312
  %560 = vst.msk [vmem:[%s533 + $0xe8] sm:$0xff] %vm41, %v314
  %561 = vst.msk [vmem:[%s533 + $0xf0] sm:$0xff] %vm41, %v316
  %562 = vst.msk [vmem:[%s533 + $0xf8] sm:$0xff] %vm41, %v318
  %563 = vst.msk [vmem:[%s533 + $0x100] sm:$0xff] %vm41, %v320
  %564 = vst.msk [vmem:[%s533 + $0x108] sm:$0xff] %vm41, %v322
  %565 = vst.msk [vmem:[%s533 + $0x110] sm:$0xff] %vm41, %v324
  %566 = vst.msk [vmem:[%s533 + $0x120] sm:$0xff] %vm41, %v342
  %567 = vst.msk [vmem:[%s533 + $0x128] sm:$0xff] %vm41, %v344
  %568 = vst.msk [vmem:[%s533 + $0x130] sm:$0xff] %vm41, %v346
  %569 = vst.msk [vmem:[%s533 + $0x138] sm:$0xff] %vm41, %v348
  %570 = vst.msk [vmem:[%s533 + $0x140] sm:$0xff] %vm41, %v350
  %571 = vst.msk [vmem:[%s533 + $0x148] sm:$0xff] %vm41, %v352
  %572 = vst.msk [vmem:[%s533 + $0x150] sm:$0xff] %vm41, %v354
  %573 = vst.msk [vmem:[%s533 + $0x158] sm:$0xff] %vm41, %v356
  %574 = vst.msk [vmem:[%s533 + $0x168] sm:$0xff] %vm41, %v374
  %575 = vst.msk [vmem:[%s533 + $0x170] sm:$0xff] %vm41, %v376
  %576 = vst.msk [vmem:[%s533 + $0x178] sm:$0xff] %vm41, %v378
  %577 = vst.msk [vmem:[%s533 + $0x180] sm:$0xff] %vm41, %v380
  %578 = vst.msk [vmem:[%s533 + $0x188] sm:$0xff] %vm41, %v382
  %579 = vst.msk [vmem:[%s533 + $0x190] sm:$0xff] %vm41, %v384
  %580 = vst.msk [vmem:[%s533 + $0x198] sm:$0xff] %vm41, %v386
  %581 = vst.msk [vmem:[%s533 + $0x1a0] sm:$0xff] %vm41, %v388
  %582 = vst.msk [vmem:[%s533 + $0x1b0] sm:$0xff] %vm41, %v406
  %583 = vst.msk [vmem:[%s533 + $0x1b8] sm:$0xff] %vm41, %v408
  %584 = vst.msk [vmem:[%s533 + $0x1c0] sm:$0xff] %vm41, %v410
  %585 = vst.msk [vmem:[%s533 + $0x1c8] sm:$0xff] %vm41, %v412
  %586 = vst.msk [vmem:[%s533 + $0x1d0] sm:$0xff] %vm41, %v414
  %587 = vst.msk [vmem:[%s533 + $0x1d8] sm:$0xff] %vm41, %v416
  %588 = vst.msk [vmem:[%s533 + $0x1e0] sm:$0xff] %vm41, %v418
  %589 = vst.msk [vmem:[%s533 + $0x1e8] sm:$0xff] %vm41, %v420
  %590 = vst.msk [vmem:[%s533 + $0x1f8] sm:$0xff] %vm41, %v438
  %591 = vst.msk [vmem:[%s533 + $0x200] sm:$0xff] %vm41, %v440
  %592 = vst.msk [vmem:[%s533 + $0x208] sm:$0xff] %vm41, %v442
  %593 = vst.msk [vmem:[%s533 + $0x210] sm:$0xff] %vm41, %v444
  %594 = vst.msk [vmem:[%s533 + $0x218] sm:$0xff] %vm41, %v446
  %595 = vst.msk [vmem:[%s533 + $0x220] sm:$0xff] %vm41, %v448
  %596 = vst.msk [vmem:[%s533 + $0x228] sm:$0xff] %vm41, %v450
  %597 = vst.msk [vmem:[%s533 + $0x230] sm:$0xff] %vm41, %v452
  %s598 = scalar_lea.vmem [#allocation3], 72
  %599 = vst.msk [vmem:[%s598] sm:$0xff] %vm41, %v229
  %600 = vst.msk [vmem:[%s598 + $0x8] sm:$0xff] %vm41, %v231
  %601 = vst.msk [vmem:[%s598 + $0x10] sm:$0xff] %vm41, %v233
  %602 = vst.msk [vmem:[%s598 + $0x18] sm:$0xff] %vm41, %v235
  %603 = vst.msk [vmem:[%s598 + $0x20] sm:$0xff] %vm41, %v237
  %604 = vst.msk [vmem:[%s598 + $0x28] sm:$0xff] %vm41, %v239
  %605 = vst.msk [vmem:[%s598 + $0x30] sm:$0xff] %vm41, %v241
  %606 = vst.msk [vmem:[%s598 + $0x38] sm:$0xff] %vm41, %v243
  %607 = vst.msk [vmem:[%s598 + $0x48] sm:$0xff] %vm41, %v261
  %608 = vst.msk [vmem:[%s598 + $0x50] sm:$0xff] %vm41, %v263
  %609 = vst.msk [vmem:[%s598 + $0x58] sm:$0xff] %vm41, %v265
  %610 = vst.msk [vmem:[%s598 + $0x60] sm:$0xff] %vm41, %v267
  %611 = vst.msk [vmem:[%s598 + $0x68] sm:$0xff] %vm41, %v269
  %612 = vst.msk [vmem:[%s598 + $0x70] sm:$0xff] %vm41, %v271
  %613 = vst.msk [vmem:[%s598 + $0x78] sm:$0xff] %vm41, %v273
  %614 = vst.msk [vmem:[%s598 + $0x80] sm:$0xff] %vm41, %v275
  %615 = vst.msk [vmem:[%s598 + $0x90] sm:$0xff] %vm41, %v293
  %616 = vst.msk [vmem:[%s598 + $0x98] sm:$0xff] %vm41, %v295
  %617 = vst.msk [vmem:[%s598 + $0xa0] sm:$0xff] %vm41, %v297
  %618 = vst.msk [vmem:[%s598 + $0xa8] sm:$0xff] %vm41, %v299
  %619 = vst.msk [vmem:[%s598 + $0xb0] sm:$0xff] %vm41, %v301
  %620 = vst.msk [vmem:[%s598 + $0xb8] sm:$0xff] %vm41, %v303
  %621 = vst.msk [vmem:[%s598 + $0xc0] sm:$0xff] %vm41, %v305
  %622 = vst.msk [vmem:[%s598 + $0xc8] sm:$0xff] %vm41, %v307
  %623 = vst.msk [vmem:[%s598 + $0xd8] sm:$0xff] %vm41, %v325
  %624 = vst.msk [vmem:[%s598 + $0xe0] sm:$0xff] %vm41, %v327
  %625 = vst.msk [vmem:[%s598 + $0xe8] sm:$0xff] %vm41, %v329
  %626 = vst.msk [vmem:[%s598 + $0xf0] sm:$0xff] %vm41, %v331
  %627 = vst.msk [vmem:[%s598 + $0xf8] sm:$0xff] %vm41, %v333
  %628 = vst.msk [vmem:[%s598 + $0x100] sm:$0xff] %vm41, %v335
  %629 = vst.msk [vmem:[%s598 + $0x108] sm:$0xff] %vm41, %v337
  %630 = vst.msk [vmem:[%s598 + $0x110] sm:$0xff] %vm41, %v339
  %631 = vst.msk [vmem:[%s598 + $0x120] sm:$0xff] %vm41, %v357
  %632 = vst.msk [vmem:[%s598 + $0x128] sm:$0xff] %vm41, %v359
  %633 = vst.msk [vmem:[%s598 + $0x130] sm:$0xff] %vm41, %v361
  %634 = vst.msk [vmem:[%s598 + $0x138] sm:$0xff] %vm41, %v363
  %635 = vst.msk [vmem:[%s598 + $0x140] sm:$0xff] %vm41, %v365
  %636 = vst.msk [vmem:[%s598 + $0x148] sm:$0xff] %vm41, %v367
  %637 = vst.msk [vmem:[%s598 + $0x150] sm:$0xff] %vm41, %v369
  %638 = vst.msk [vmem:[%s598 + $0x158] sm:$0xff] %vm41, %v371
  %639 = vst.msk [vmem:[%s598 + $0x168] sm:$0xff] %vm41, %v389
  %640 = vst.msk [vmem:[%s598 + $0x170] sm:$0xff] %vm41, %v391
  %641 = vst.msk [vmem:[%s598 + $0x178] sm:$0xff] %vm41, %v393
  %642 = vst.msk [vmem:[%s598 + $0x180] sm:$0xff] %vm41, %v395
  %643 = vst.msk [vmem:[%s598 + $0x188] sm:$0xff] %vm41, %v397
  %644 = vst.msk [vmem:[%s598 + $0x190] sm:$0xff] %vm41, %v399
  %645 = vst.msk [vmem:[%s598 + $0x198] sm:$0xff] %vm41, %v401
  %646 = vst.msk [vmem:[%s598 + $0x1a0] sm:$0xff] %vm41, %v403
  %647 = vst.msk [vmem:[%s598 + $0x1b0] sm:$0xff] %vm41, %v421
  %648 = vst.msk [vmem:[%s598 + $0x1b8] sm:$0xff] %vm41, %v423
  %649 = vst.msk [vmem:[%s598 + $0x1c0] sm:$0xff] %vm41, %v425
  %650 = vst.msk [vmem:[%s598 + $0x1c8] sm:$0xff] %vm41, %v427
  %651 = vst.msk [vmem:[%s598 + $0x1d0] sm:$0xff] %vm41, %v429
  %652 = vst.msk [vmem:[%s598 + $0x1d8] sm:$0xff] %vm41, %v431
  %653 = vst.msk [vmem:[%s598 + $0x1e0] sm:$0xff] %vm41, %v433
  %654 = vst.msk [vmem:[%s598 + $0x1e8] sm:$0xff] %vm41, %v435
  %655 = vst.msk [vmem:[%s598 + $0x1f8] sm:$0xff] %vm41, %v453
  %656 = vst.msk [vmem:[%s598 + $0x200] sm:$0xff] %vm41, %v455
  %657 = vst.msk [vmem:[%s598 + $0x208] sm:$0xff] %vm41, %v457
  %658 = vst.msk [vmem:[%s598 + $0x210] sm:$0xff] %vm41, %v459
  %659 = vst.msk [vmem:[%s598 + $0x218] sm:$0xff] %vm41, %v461
  %660 = vst.msk [vmem:[%s598 + $0x220] sm:$0xff] %vm41, %v463
  %661 = vst.msk [vmem:[%s598 + $0x228] sm:$0xff] %vm41, %v465
  %662 = vst.msk [vmem:[%s598 + $0x230] sm:$0xff] %vm41, %v467
  %s663 = scalar_lea.vmem [#allocation2], 80
  %664 = vst.msk [vmem:[%s663] sm:$0xff] %vm41, %v230
  %665 = vst.msk [vmem:[%s663 + $0x8] sm:$0xff] %vm41, %v232
  %666 = vst.msk [vmem:[%s663 + $0x10] sm:$0xff] %vm41, %v234
  %667 = vst.msk [vmem:[%s663 + $0x18] sm:$0xff] %vm41, %v236
  %668 = vst.msk [vmem:[%s663 + $0x20] sm:$0xff] %vm41, %v238
  %669 = vst.msk [vmem:[%s663 + $0x28] sm:$0xff] %vm41, %v240
  %670 = vst.msk [vmem:[%s663 + $0x30] sm:$0xff] %vm41, %v242
  %671 = vst.msk [vmem:[%s663 + $0x38] sm:$0xff] %vm41, %v244
  %672 = vst.msk [vmem:[%s663 + $0x48] sm:$0xff] %vm41, %v262
  %673 = vst.msk [vmem:[%s663 + $0x50] sm:$0xff] %vm41, %v264
  %674 = vst.msk [vmem:[%s663 + $0x58] sm:$0xff] %vm41, %v266
  %675 = vst.msk [vmem:[%s663 + $0x60] sm:$0xff] %vm41, %v268
  %676 = vst.msk [vmem:[%s663 + $0x68] sm:$0xff] %vm41, %v270
  %677 = vst.msk [vmem:[%s663 + $0x70] sm:$0xff] %vm41, %v272
  %678 = vst.msk [vmem:[%s663 + $0x78] sm:$0xff] %vm41, %v274
  %679 = vst.msk [vmem:[%s663 + $0x80] sm:$0xff] %vm41, %v276
  %680 = vst.msk [vmem:[%s663 + $0x90] sm:$0xff] %vm41, %v294
  %681 = vst.msk [vmem:[%s663 + $0x98] sm:$0xff] %vm41, %v296
  %682 = vst.msk [vmem:[%s663 + $0xa0] sm:$0xff] %vm41, %v298
  %683 = vst.msk [vmem:[%s663 + $0xa8] sm:$0xff] %vm41, %v300
  %684 = vst.msk [vmem:[%s663 + $0xb0] sm:$0xff] %vm41, %v302
  %685 = vst.msk [vmem:[%s663 + $0xb8] sm:$0xff] %vm41, %v304
  %686 = vst.msk [vmem:[%s663 + $0xc0] sm:$0xff] %vm41, %v306
  %687 = vst.msk [vmem:[%s663 + $0xc8] sm:$0xff] %vm41, %v308
  %688 = vst.msk [vmem:[%s663 + $0xd8] sm:$0xff] %vm41, %v326
  %689 = vst.msk [vmem:[%s663 + $0xe0] sm:$0xff] %vm41, %v328
  %690 = vst.msk [vmem:[%s663 + $0xe8] sm:$0xff] %vm41, %v330
  %691 = vst.msk [vmem:[%s663 + $0xf0] sm:$0xff] %vm41, %v332
  %692 = vst.msk [vmem:[%s663 + $0xf8] sm:$0xff] %vm41, %v334
  %693 = vst.msk [vmem:[%s663 + $0x100] sm:$0xff] %vm41, %v336
  %694 = vst.msk [vmem:[%s663 + $0x108] sm:$0xff] %vm41, %v338
  %695 = vst.msk [vmem:[%s663 + $0x110] sm:$0xff] %vm41, %v340
  %696 = vst.msk [vmem:[%s663 + $0x120] sm:$0xff] %vm41, %v358
  %697 = vst.msk [vmem:[%s663 + $0x128] sm:$0xff] %vm41, %v360
  %698 = vst.msk [vmem:[%s663 + $0x130] sm:$0xff] %vm41, %v362
  %699 = vst.msk [vmem:[%s663 + $0x138] sm:$0xff] %vm41, %v364
  %700 = vst.msk [vmem:[%s663 + $0x140] sm:$0xff] %vm41, %v366
  %701 = vst.msk [vmem:[%s663 + $0x148] sm:$0xff] %vm41, %v368
  %702 = vst.msk [vmem:[%s663 + $0x150] sm:$0xff] %vm41, %v370
  %703 = vst.msk [vmem:[%s663 + $0x158] sm:$0xff] %vm41, %v372
  %704 = vst.msk [vmem:[%s663 + $0x168] sm:$0xff] %vm41, %v390
  %705 = vst.msk [vmem:[%s663 + $0x170] sm:$0xff] %vm41, %v392
  %706 = vst.msk [vmem:[%s663 + $0x178] sm:$0xff] %vm41, %v394
  %707 = vst.msk [vmem:[%s663 + $0x180] sm:$0xff] %vm41, %v396
  %708 = vst.msk [vmem:[%s663 + $0x188] sm:$0xff] %vm41, %v398
  %709 = vst.msk [vmem:[%s663 + $0x190] sm:$0xff] %vm41, %v400
  %710 = vst.msk [vmem:[%s663 + $0x198] sm:$0xff] %vm41, %v402
  %711 = vst.msk [vmem:[%s663 + $0x1a0] sm:$0xff] %vm41, %v404
  %712 = vst.msk [vmem:[%s663 + $0x1b0] sm:$0xff] %vm41, %v422
  %713 = vst.msk [vmem:[%s663 + $0x1b8] sm:$0xff] %vm41, %v424
  %714 = vst.msk [vmem:[%s663 + $0x1c0] sm:$0xff] %vm41, %v426
  %715 = vst.msk [vmem:[%s663 + $0x1c8] sm:$0xff] %vm41, %v428
  %716 = vst.msk [vmem:[%s663 + $0x1d0] sm:$0xff] %vm41, %v430
  %717 = vst.msk [vmem:[%s663 + $0x1d8] sm:$0xff] %vm41, %v432
  %718 = vst.msk [vmem:[%s663 + $0x1e0] sm:$0xff] %vm41, %v434
  %719 = vst.msk [vmem:[%s663 + $0x1e8] sm:$0xff] %vm41, %v436
  %720 = vst.msk [vmem:[%s663 + $0x1f8] sm:$0xff] %vm41, %v454
  %721 = vst.msk [vmem:[%s663 + $0x200] sm:$0xff] %vm41, %v456
  %722 = vst.msk [vmem:[%s663 + $0x208] sm:$0xff] %vm41, %v458
  %723 = vst.msk [vmem:[%s663 + $0x210] sm:$0xff] %vm41, %v460
  %724 = vst.msk [vmem:[%s663 + $0x218] sm:$0xff] %vm41, %v462
  %725 = vst.msk [vmem:[%s663 + $0x220] sm:$0xff] %vm41, %v464
  %726 = vst.msk [vmem:[%s663 + $0x228] sm:$0xff] %vm41, %v466
  %727 = vst.msk [vmem:[%s663 + $0x230] sm:$0xff] %vm41, %v468
  %v728 = vld [vmem:[#allocation2] sm:$0xff]
  %v729 = vld [vmem:[#allocation2 + $0x8] sm:$0xff]
  %v730 = vld [vmem:[#allocation2 + $0x10] sm:$0xff]
  %v731 = vld [vmem:[#allocation2 + $0x18] sm:$0xff]
  %v732 = vld [vmem:[#allocation2 + $0x20] sm:$0xff]
  %v733 = vld [vmem:[#allocation2 + $0x28] sm:$0xff]
  %v734 = vld [vmem:[#allocation2 + $0x30] sm:$0xff]
  %v735 = vld [vmem:[#allocation2 + $0x38] sm:$0xff]
  %v736 = vld [vmem:[#allocation2 + $0x48] sm:$0xff]
  %v737 = vld [vmem:[#allocation2 + $0x50] sm:$0xff]
  %v738 = vld [vmem:[#allocation2 + $0x58] sm:$0xff]
  %v739 = vld [vmem:[#allocation2 + $0x60] sm:$0xff]
  %v740 = vld [vmem:[#allocation2 + $0x68] sm:$0xff]
  %v741 = vld [vmem:[#allocation2 + $0x70] sm:$0xff]
  %v742 = vld [vmem:[#allocation2 + $0x78] sm:$0xff]
  %v743 = vld [vmem:[#allocation2 + $0x80] sm:$0xff]
  %v744 = vld [vmem:[#allocation2 + $0x90] sm:$0xff]
  %v745 = vld [vmem:[#allocation2 + $0x98] sm:$0xff]
  %v746 = vld [vmem:[#allocation2 + $0xa0] sm:$0xff]
  %v747 = vld [vmem:[#allocation2 + $0xa8] sm:$0xff]
  %v748 = vld [vmem:[#allocation2 + $0xb0] sm:$0xff]
  %v749 = vld [vmem:[#allocation2 + $0xb8] sm:$0xff]
  %v750 = vld [vmem:[#allocation2 + $0xc0] sm:$0xff]
  %v751 = vld [vmem:[#allocation2 + $0xc8] sm:$0xff]
  %v752 = vld [vmem:[#allocation2 + $0xd8] sm:$0xff]
  %v753 = vld [vmem:[#allocation2 + $0xe0] sm:$0xff]
  %v754 = vld [vmem:[#allocation2 + $0xe8] sm:$0xff]
  %v755 = vld [vmem:[#allocation2 + $0xf0] sm:$0xff]
  %v756 = vld [vmem:[#allocation2 + $0xf8] sm:$0xff]
  %v757 = vld [vmem:[#allocation2 + $0x100] sm:$0xff]
  %v758 = vld [vmem:[#allocation2 + $0x108] sm:$0xff]
  %v759 = vld [vmem:[#allocation2 + $0x110] sm:$0xff]
  %v760 = vld [vmem:[#allocation2 + $0x120] sm:$0xff]
  %v761 = vld [vmem:[#allocation2 + $0x128] sm:$0xff]
  %v762 = vld [vmem:[#allocation2 + $0x130] sm:$0xff]
  %v763 = vld [vmem:[#allocation2 + $0x138] sm:$0xff]
  %v764 = vld [vmem:[#allocation2 + $0x140] sm:$0xff]
  %v765 = vld [vmem:[#allocation2 + $0x148] sm:$0xff]
  %v766 = vld [vmem:[#allocation2 + $0x150] sm:$0xff]
  %v767 = vld [vmem:[#allocation2 + $0x158] sm:$0xff]
  %v768 = vld [vmem:[#allocation2 + $0x168] sm:$0xff]
  %v769 = vld [vmem:[#allocation2 + $0x170] sm:$0xff]
  %v770 = vld [vmem:[#allocation2 + $0x178] sm:$0xff]
  %v771 = vld [vmem:[#allocation2 + $0x180] sm:$0xff]
  %v772 = vld [vmem:[#allocation2 + $0x188] sm:$0xff]
  %v773 = vld [vmem:[#allocation2 + $0x190] sm:$0xff]
  %v774 = vld [vmem:[#allocation2 + $0x198] sm:$0xff]
  %v775 = vld [vmem:[#allocation2 + $0x1a0] sm:$0xff]
  %v776 = vld [vmem:[#allocation2 + $0x1b0] sm:$0xff]
  %v777 = vld [vmem:[#allocation2 + $0x1b8] sm:$0xff]
  %v778 = vld [vmem:[#allocation2 + $0x1c0] sm:$0xff]
  %v779 = vld [vmem:[#allocation2 + $0x1c8] sm:$0xff]
  %v780 = vld [vmem:[#allocation2 + $0x1d0] sm:$0xff]
  %v781 = vld [vmem:[#allocation2 + $0x1d8] sm:$0xff]
  %v782 = vld [vmem:[#allocation2 + $0x1e0] sm:$0xff]
  %v783 = vld [vmem:[#allocation2 + $0x1e8] sm:$0xff]
  %v784 = vld [vmem:[#allocation2 + $0x1f8] sm:$0xff]
  %v785 = vld [vmem:[#allocation2 + $0x200] sm:$0xff]
  %v786 = vld [vmem:[#allocation2 + $0x208] sm:$0xff]
  %v787 = vld [vmem:[#allocation2 + $0x210] sm:$0xff]
  %v788 = vld [vmem:[#allocation2 + $0x218] sm:$0xff]
  %v789 = vld [vmem:[#allocation2 + $0x220] sm:$0xff]
  %v790 = vld [vmem:[#allocation2 + $0x228] sm:$0xff]
  %v791 = vld [vmem:[#allocation2 + $0x230] sm:$0xff]
  %v792 = vpack.c.bf16 %v729, %v728
  %v793 = vpack.c.bf16 %v731, %v730
  %v794 = vpack.c.bf16 %v733, %v732
  %v795 = vpack.c.bf16 %v735, %v734
  %v796 = vpack.c.bf16 %v737, %v736
  %v797 = vpack.c.bf16 %v739, %v738
  %v798 = vpack.c.bf16 %v741, %v740
  %v799 = vpack.c.bf16 %v743, %v742
  %v800 = vpack.c.bf16 %v745, %v744
  %v801 = vpack.c.bf16 %v747, %v746
  %v802 = vpack.c.bf16 %v749, %v748
  %v803 = vpack.c.bf16 %v751, %v750
  %v804 = vpack.c.bf16 %v753, %v752
  %v805 = vpack.c.bf16 %v755, %v754
  %v806 = vpack.c.bf16 %v757, %v756
  %v807 = vpack.c.bf16 %v759, %v758
  %v808 = vpack.c.bf16 %v761, %v760
  %v809 = vpack.c.bf16 %v763, %v762
  %v810 = vpack.c.bf16 %v765, %v764
  %v811 = vpack.c.bf16 %v767, %v766
  %v812 = vpack.c.bf16 %v769, %v768
  %v813 = vpack.c.bf16 %v771, %v770
  %v814 = vpack.c.bf16 %v773, %v772
  %v815 = vpack.c.bf16 %v775, %v774
  %v816 = vpack.c.bf16 %v777, %v776
  %v817 = vpack.c.bf16 %v779, %v778
  %v818 = vpack.c.bf16 %v781, %v780
  %v819 = vpack.c.bf16 %v783, %v782
  %v820 = vpack.c.bf16 %v785, %v784
  %v821 = vpack.c.bf16 %v787, %v786
  %v822 = vpack.c.bf16 %v789, %v788
  %v823 = vpack.c.bf16 %v791, %v790
  %v824 = vld [vmem:[%s1] sm:$0x3]
  %v825 = vld [vmem:[#allocation3] sm:$0xff]
  %v826 = vld [vmem:[#allocation3 + $0x8] sm:$0xff]
  %v827 = vld [vmem:[#allocation3 + $0x10] sm:$0xff]
  %v828 = vld [vmem:[#allocation3 + $0x18] sm:$0xff]
  %v829 = vld [vmem:[#allocation3 + $0x20] sm:$0xff]
  %v830 = vld [vmem:[#allocation3 + $0x28] sm:$0xff]
  %v831 = vld [vmem:[#allocation3 + $0x30] sm:$0xff]
  %v832 = vld [vmem:[#allocation3 + $0x38] sm:$0xff]
  %v833 = vld [vmem:[#allocation3 + $0x48] sm:$0xff]
  %v834 = vld [vmem:[#allocation3 + $0x50] sm:$0xff]
  %v835 = vld [vmem:[#allocation3 + $0x58] sm:$0xff]
  %v836 = vld [vmem:[#allocation3 + $0x60] sm:$0xff]
  %v837 = vld [vmem:[#allocation3 + $0x68] sm:$0xff]
  %v838 = vld [vmem:[#allocation3 + $0x70] sm:$0xff]
  %v839 = vld [vmem:[#allocation3 + $0x78] sm:$0xff]
  %v840 = vld [vmem:[#allocation3 + $0x80] sm:$0xff]
  %v841 = vld [vmem:[#allocation3 + $0x90] sm:$0xff]
  %v842 = vld [vmem:[#allocation3 + $0x98] sm:$0xff]
  %v843 = vld [vmem:[#allocation3 + $0xa0] sm:$0xff]
  %v844 = vld [vmem:[#allocation3 + $0xa8] sm:$0xff]
  %v845 = vld [vmem:[#allocation3 + $0xb0] sm:$0xff]
  %v846 = vld [vmem:[#allocation3 + $0xb8] sm:$0xff]
  %v847 = vld [vmem:[#allocation3 + $0xc0] sm:$0xff]
  %v848 = vld [vmem:[#allocation3 + $0xc8] sm:$0xff]
  %v849 = vld [vmem:[#allocation3 + $0xd8] sm:$0xff]
  %v850 = vld [vmem:[#allocation3 + $0xe0] sm:$0xff]
  %v851 = vld [vmem:[#allocation3 + $0xe8] sm:$0xff]
  %v852 = vld [vmem:[#allocation3 + $0xf0] sm:$0xff]
  %v853 = vld [vmem:[#allocation3 + $0xf8] sm:$0xff]
  %v854 = vld [vmem:[#allocation3 + $0x100] sm:$0xff]
  %v855 = vld [vmem:[#allocation3 + $0x108] sm:$0xff]
  %v856 = vld [vmem:[#allocation3 + $0x110] sm:$0xff]
  %v857 = vld [vmem:[#allocation3 + $0x120] sm:$0xff]
  %v858 = vld [vmem:[#allocation3 + $0x128] sm:$0xff]
  %v859 = vld [vmem:[#allocation3 + $0x130] sm:$0xff]
  %v860 = vld [vmem:[#allocation3 + $0x138] sm:$0xff]
  %v861 = vld [vmem:[#allocation3 + $0x140] sm:$0xff]
  %v862 = vld [vmem:[#allocation3 + $0x148] sm:$0xff]
  %v863 = vld [vmem:[#allocation3 + $0x150] sm:$0xff]
  %v864 = vld [vmem:[#allocation3 + $0x158] sm:$0xff]
  %v865 = vld [vmem:[#allocation3 + $0x168] sm:$0xff]
  %v866 = vld [vmem:[#allocation3 + $0x170] sm:$0xff]
  %v867 = vld [vmem:[#allocation3 + $0x178] sm:$0xff]
  %v868 = vld [vmem:[#allocation3 + $0x180] sm:$0xff]
  %v869 = vld [vmem:[#allocation3 + $0x188] sm:$0xff]
  %v870 = vld [vmem:[#allocation3 + $0x190] sm:$0xff]
  %v871 = vld [vmem:[#allocation3 + $0x198] sm:$0xff]
  %v872 = vld [vmem:[#allocation3 + $0x1a0] sm:$0xff]
  %v873 = vld [vmem:[#allocation3 + $0x1b0] sm:$0xff]
  %v874 = vld [vmem:[#allocation3 + $0x1b8] sm:$0xff]
  %v875 = vld [vmem:[#allocation3 + $0x1c0] sm:$0xff]
  %v876 = vld [vmem:[#allocation3 + $0x1c8] sm:$0xff]
  %v877 = vld [vmem:[#allocation3 + $0x1d0] sm:$0xff]
  %v878 = vld [vmem:[#allocation3 + $0x1d8] sm:$0xff]
  %v879 = vld [vmem:[#allocation3 + $0x1e0] sm:$0xff]
  %v880 = vld [vmem:[#allocation3 + $0x1e8] sm:$0xff]
  %v881 = vld [vmem:[#allocation3 + $0x1f8] sm:$0xff]
  %v882 = vld [vmem:[#allocation3 + $0x200] sm:$0xff]
  %v883 = vld [vmem:[#allocation3 + $0x208] sm:$0xff]
  %v884 = vld [vmem:[#allocation3 + $0x210] sm:$0xff]
  %v885 = vld [vmem:[#allocation3 + $0x218] sm:$0xff]
  %v886 = vld [vmem:[#allocation3 + $0x220] sm:$0xff]
  %v887 = vld [vmem:[#allocation3 + $0x228] sm:$0xff]
  %v888 = vld [vmem:[#allocation3 + $0x230] sm:$0xff]
  %v889 = vpack.c.bf16 %v826, %v825
  %v890 = vpack.c.bf16 %v828, %v827
  %v891 = vpack.c.bf16 %v830, %v829
  %v892 = vpack.c.bf16 %v832, %v831
  %v893 = vpack.c.bf16 %v834, %v833
  %v894 = vpack.c.bf16 %v836, %v835
  %v895 = vpack.c.bf16 %v838, %v837
  %v896 = vpack.c.bf16 %v840, %v839
  %v897 = vpack.c.bf16 %v842, %v841
  %v898 = vpack.c.bf16 %v844, %v843
  %v899 = vpack.c.bf16 %v846, %v845
  %v900 = vpack.c.bf16 %v848, %v847
  %v901 = vpack.c.bf16 %v850, %v849
  %v902 = vpack.c.bf16 %v852, %v851
  %v903 = vpack.c.bf16 %v854, %v853
  %v904 = vpack.c.bf16 %v856, %v855
  %v905 = vpack.c.bf16 %v858, %v857
  %v906 = vpack.c.bf16 %v860, %v859
  %v907 = vpack.c.bf16 %v862, %v861
  %v908 = vpack.c.bf16 %v864, %v863
  %v909 = vpack.c.bf16 %v866, %v865
  %v910 = vpack.c.bf16 %v868, %v867
  %v911 = vpack.c.bf16 %v870, %v869
  %v912 = vpack.c.bf16 %v872, %v871
  %v913 = vpack.c.bf16 %v874, %v873
  %v914 = vpack.c.bf16 %v876, %v875
  %v915 = vpack.c.bf16 %v878, %v877
  %v916 = vpack.c.bf16 %v880, %v879
  %v917 = vpack.c.bf16 %v882, %v881
  %v918 = vpack.c.bf16 %v884, %v883
  %v919 = vpack.c.bf16 %v886, %v885
  %v920 = vpack.c.bf16 %v888, %v887
  %s921 = scalar_lea.vmem %s1, 2
  %v922 = vld [vmem:[%s921] sm:$0x3]
  %v924 = vsel %vm41, %v889, 0
  %v927 = vsel %vm41, %v890, 0
  %v930 = vsel %vm41, %v891, 0
  %v933 = vsel %vm41, %v892, 0
  %v936 = vsel %vm41, %v893, 0
  %v939 = vsel %vm41, %v894, 0
  %v942 = vsel %vm41, %v895, 0
  %v945 = vsel %vm41, %v896, 0
  %v948 = vsel %vm41, %v897, 0
  %v951 = vsel %vm41, %v898, 0
  %v954 = vsel %vm41, %v899, 0
  %v957 = vsel %vm41, %v900, 0
  %v960 = vsel %vm41, %v901, 0
  %v963 = vsel %vm41, %v902, 0
  %v966 = vsel %vm41, %v903, 0
  %v969 = vsel %vm41, %v904, 0
  %v972 = vsel %vm41, %v905, 0
  %v975 = vsel %vm41, %v906, 0
  %v978 = vsel %vm41, %v907, 0
  %v981 = vsel %vm41, %v908, 0
  %v984 = vsel %vm41, %v909, 0
  %v987 = vsel %vm41, %v910, 0
  %v990 = vsel %vm41, %v911, 0
  %v993 = vsel %vm41, %v912, 0
  %v996 = vsel %vm41, %v913, 0
  %v999 = vsel %vm41, %v914, 0
  %v1002 = vsel %vm41, %v915, 0
  %v1005 = vsel %vm41, %v916, 0
  %v1008 = vsel %vm41, %v917, 0
  %v1011 = vsel %vm41, %v918, 0
  %v1014 = vsel %vm41, %v919, 0
  %v1017 = vsel %vm41, %v920, 0
  %vm1019 = vcmask 1041408
  %v1021 = vsel %vm1019, %v922, 0
  %1023 = vmatprep.subr.bf16.mxu0 0
  %1024 = vmatpush1.bf16.msra.mxu0 %v1021
  %1025 = vmatprep.subr.bf16.mxu0 0
  %1026 = vmatpush1.bf16.msra.mxu0 0
  %1027 = vmatprep.subr.bf16.mxu0 0
  %1028 = vmatpush1.bf16.msra.mxu0 0
  %1029 = vmatprep.subr.bf16.mxu0 0
  %1030 = vmatpush1.bf16.msra.mxu0 0
  %1031 = vmatprep.subr.bf16.mxu0 0
  %1032 = vmatpush1.bf16.msra.mxu0 0
  %1033 = vmatprep.subr.bf16.mxu0 0
  %1034 = vmatpush1.bf16.msra.mxu0 0
  %1035 = vmatprep.subr.bf16.mxu0 0
  %1036 = vmatpush1.bf16.msra.mxu0 0
  %1037 = vmatprep.subr.bf16.mxu0 0
  %1038 = vmatpush1.bf16.msra.mxu0 0
  %1039 = vmatprep.subr.bf16.mxu0 0
  %1040 = vmatpush1.bf16.msra.mxu0 0
  %1041 = vmatprep.subr.bf16.mxu0 0
  %1042 = vmatpush1.bf16.msra.mxu0 0
  %1043 = vmatprep.subr.bf16.mxu0 0
  %1044 = vmatpush1.bf16.msra.mxu0 0
  %1045 = vmatprep.subr.bf16.mxu0 0
  %1046 = vmatpush1.bf16.msra.mxu0 0
  %1047 = vmatprep.subr.bf16.mxu0 0
  %1048 = vmatpush1.bf16.msra.mxu0 0
  %1049 = vmatprep.subr.bf16.mxu0 0
  %1050 = vmatpush1.bf16.msra.mxu0 0
  %1051 = vmatprep.subr.bf16.mxu0 0
  %1052 = vmatpush1.bf16.msra.mxu0 0
  %1053 = vmatprep.subr.bf16.mxu0 0
  %1054 = vmatpush1.bf16.msra.mxu0 0
  %1055 = vmatprep.mubr.bf16.mxu0 0
  %1056 = vmatmul.mubr.bf16.gmra.mrb[0].mxu0 %v924
  %v1057 = vpop.f32.mrb[0].mxu0
  %v1058 = vadd.f32 0.0, %v1057
  %v1059 = vpop.f32.mrb[0].mxu0
  %v1060 = vpop.f32.mrb[0].mxu0
  %v1061 = vadd.f32 0.0, %v1060
  %v1062 = vpop.f32.mrb[0].mxu0
  %1063 = vmatprep.mubr.bf16.mxu0 0
  %1064 = vmatmul.mubr.bf16.gmra.mrb[0].mxu0 %v927
  %v1065 = vpop.f32.mrb[0].mxu0
  %v1066 = vadd.f32 0.0, %v1065
  %v1067 = vpop.f32.mrb[0].mxu0
  %v1068 = vpop.f32.mrb[0].mxu0
  %v1069 = vadd.f32 0.0, %v1068
  %v1070 = vpop.f32.mrb[0].mxu0
  %1071 = vmatprep.mubr.bf16.mxu0 0
  %1072 = vmatmul.mubr.bf16.gmra.mrb[0].mxu0 %v930
  %v1073 = vpop.f32.mrb[0].mxu0
  %v1074 = vadd.f32 0.0, %v1073
  %v1075 = vpop.f32.mrb[0].mxu0
  %v1076 = vpop.f32.mrb[0].mxu0
  %v1077 = vadd.f32 0.0, %v1076
  %v1078 = vpop.f32.mrb[0].mxu0
  %1079 = vmatprep.mubr.bf16.mxu0 0
  %1080 = vmatmul.mubr.bf16.gmra.mrb[0].mxu0 %v933
  %v1081 = vpop.f32.mrb[0].mxu0
  %v1082 = vadd.f32 0.0, %v1081
  %v1083 = vpop.f32.mrb[0].mxu0
  %v1084 = vpop.f32.mrb[0].mxu0
  %v1085 = vadd.f32 0.0, %v1084
  %v1086 = vpop.f32.mrb[0].mxu0
  %1087 = vmatprep.mubr.bf16.mxu0 0
  %1088 = vmatmul.mubr.bf16.gmra.mrb[0].mxu0 %v936
  %v1089 = vpop.f32.mrb[0].mxu0
  %v1090 = vadd.f32 0.0, %v1089
  %v1091 = vpop.f32.mrb[0].mxu0
  %v1092 = vpop.f32.mrb[0].mxu0
  %v1093 = vadd.f32 0.0, %v1092
  %v1094 = vpop.f32.mrb[0].mxu0
  %1095 = vmatprep.mubr.bf16.mxu0 0
  %1096 = vmatmul.mubr.bf16.gmra.mrb[0].mxu0 %v939
  %v1097 = vpop.f32.mrb[0].mxu0
  %v1098 = vadd.f32 0.0, %v1097
  %v1099 = vpop.f32.mrb[0].mxu0
  %v1100 = vpop.f32.mrb[0].mxu0
  %v1101 = vadd.f32 0.0, %v1100
  %v1102 = vpop.f32.mrb[0].mxu0
  %1103 = vmatprep.mubr.bf16.mxu0 0
  %1104 = vmatmul.mubr.bf16.gmra.mrb[0].mxu0 %v942
  %v1105 = vpop.f32.mrb[0].mxu0
  %v1106 = vadd.f32 0.0, %v1105
  %v1107 = vpop.f32.mrb[0].mxu0
  %v1108 = vpop.f32.mrb[0].mxu0
  %v1109 = vadd.f32 0.0, %v1108
  %v1110 = vpop.f32.mrb[0].mxu0
  %1111 = vmatprep.mubr.bf16.mxu0 0
  %1112 = vmatmul.mubr.bf16.gmra.mrb[0].mxu0 %v945
  %v1113 = vpop.f32.mrb[0].mxu0
  %v1114 = vadd.f32 0.0, %v1113
  %v1115 = vpop.f32.mrb[0].mxu0
  %v1116 = vpop.f32.mrb[0].mxu0
  %v1117 = vadd.f32 0.0, %v1116
  %v1118 = vpop.f32.mrb[0].mxu0
  %1119 = vmatprep.mubr.bf16.mxu0 0
  %1120 = vmatmul.mubr.bf16.gmra.mrb[0].mxu0 %v948
  %v1121 = vpop.f32.mrb[0].mxu0
  %v1122 = vadd.f32 0.0, %v1121
  %v1123 = vpop.f32.mrb[0].mxu0
  %v1124 = vpop.f32.mrb[0].mxu0
  %v1125 = vadd.f32 0.0, %v1124
  %v1126 = vpop.f32.mrb[0].mxu0
  %1127 = vmatprep.mubr.bf16.mxu0 0
  %1128 = vmatmul.mubr.bf16.gmra.mrb[0].mxu0 %v951
  %v1129 = vpop.f32.mrb[0].mxu0
  %v1130 = vadd.f32 0.0, %v1129
  %v1131 = vpop.f32.mrb[0].mxu0
  %v1132 = vpop.f32.mrb[0].mxu0
  %v1133 = vadd.f32 0.0, %v1132
  %v1134 = vpop.f32.mrb[0].mxu0
  %1135 = vmatprep.mubr.bf16.mxu0 0
  %1136 = vmatmul.mubr.bf16.gmra.mrb[0].mxu0 %v954
  %v1137 = vpop.f32.mrb[0].mxu0
  %v1138 = vadd.f32 0.0, %v1137
  %v1139 = vpop.f32.mrb[0].mxu0
  %v1140 = vpop.f32.mrb[0].mxu0
  %v1141 = vadd.f32 0.0, %v1140
  %v1142 = vpop.f32.mrb[0].mxu0
  %1143 = vmatprep.mubr.bf16.mxu0 0
  %1144 = vmatmul.mubr.bf16.gmra.mrb[0].mxu0 %v957
  %v1145 = vpop.f32.mrb[0].mxu0
  %v1146 = vadd.f32 0.0, %v1145
  %v1147 = vpop.f32.mrb[0].mxu0
  %v1148 = vpop.f32.mrb[0].mxu0
  %v1149 = vadd.f32 0.0, %v1148
  %v1150 = vpop.f32.mrb[0].mxu0
  %1151 = vmatprep.mubr.bf16.mxu0 0
  %1152 = vmatmul.mubr.bf16.gmra.mrb[0].mxu0 %v960
  %v1153 = vpop.f32.mrb[0].mxu0
  %v1154 = vadd.f32 0.0, %v1153
  %v1155 = vpop.f32.mrb[0].mxu0
  %v1156 = vpop.f32.mrb[0].mxu0
  %v1157 = vadd.f32 0.0, %v1156
  %v1158 = vpop.f32.mrb[0].mxu0
  %1159 = vmatprep.mubr.bf16.mxu0 0
  %1160 = vmatmul.mubr.bf16.gmra.mrb[0].mxu0 %v963
  %v1161 = vpop.f32.mrb[0].mxu0
  %v1162 = vadd.f32 0.0, %v1161
  %v1163 = vpop.f32.mrb[0].mxu0
  %v1164 = vpop.f32.mrb[0].mxu0
  %v1165 = vadd.f32 0.0, %v1164
  %v1166 = vpop.f32.mrb[0].mxu0
  %1167 = vmatprep.mubr.bf16.mxu0 0
  %1168 = vmatmul.mubr.bf16.gmra.mrb[0].mxu0 %v966
  %v1169 = vpop.f32.mrb[0].mxu0
  %v1170 = vadd.f32 0.0, %v1169
  %v1171 = vpop.f32.mrb[0].mxu0
  %v1172 = vpop.f32.mrb[0].mxu0
  %v1173 = vadd.f32 0.0, %v1172
  %v1174 = vpop.f32.mrb[0].mxu0
  %1175 = vmatprep.mubr.bf16.mxu0 0
  %1176 = vmatmul.mubr.bf16.gmra.mrb[0].mxu0 %v969
  %v1177 = vpop.f32.mrb[0].mxu0
  %v1178 = vadd.f32 0.0, %v1177
  %v1179 = vpop.f32.mrb[0].mxu0
  %v1180 = vpop.f32.mrb[0].mxu0
  %v1181 = vadd.f32 0.0, %v1180
  %v1182 = vpop.f32.mrb[0].mxu0
  %1183 = vmatprep.mubr.bf16.mxu0 0
  %1184 = vmatmul.mubr.bf16.gmra.mrb[0].mxu0 %v972
  %v1185 = vpop.f32.mrb[0].mxu0
  %v1186 = vadd.f32 0.0, %v1185
  %v1187 = vpop.f32.mrb[0].mxu0
  %v1188 = vpop.f32.mrb[0].mxu0
  %v1189 = vadd.f32 0.0, %v1188
  %v1190 = vpop.f32.mrb[0].mxu0
  %1191 = vmatprep.mubr.bf16.mxu0 0
  %1192 = vmatmul.mubr.bf16.gmra.mrb[0].mxu0 %v975
  %v1193 = vpop.f32.mrb[0].mxu0
  %v1194 = vadd.f32 0.0, %v1193
  %v1195 = vpop.f32.mrb[0].mxu0
  %v1196 = vpop.f32.mrb[0].mxu0
  %v1197 = vadd.f32 0.0, %v1196
  %v1198 = vpop.f32.mrb[0].mxu0
  %1199 = vmatprep.mubr.bf16.mxu0 0
  %1200 = vmatmul.mubr.bf16.gmra.mrb[0].mxu0 %v978
  %v1201 = vpop.f32.mrb[0].mxu0
  %v1202 = vadd.f32 0.0, %v1201
  %v1203 = vpop.f32.mrb[0].mxu0
  %v1204 = vpop.f32.mrb[0].mxu0
  %v1205 = vadd.f32 0.0, %v1204
  %v1206 = vpop.f32.mrb[0].mxu0
  %1207 = vmatprep.mubr.bf16.mxu0 0
  %1208 = vmatmul.mubr.bf16.gmra.mrb[0].mxu0 %v981
  %v1209 = vpop.f32.mrb[0].mxu0
  %v1210 = vadd.f32 0.0, %v1209
  %v1211 = vpop.f32.mrb[0].mxu0
  %v1212 = vpop.f32.mrb[0].mxu0
  %v1213 = vadd.f32 0.0, %v1212
  %v1214 = vpop.f32.mrb[0].mxu0
  %1215 = vmatprep.mubr.bf16.mxu0 0
  %1216 = vmatmul.mubr.bf16.gmra.mrb[0].mxu0 %v984
  %v1217 = vpop.f32.mrb[0].mxu0
  %v1218 = vadd.f32 0.0, %v1217
  %v1219 = vpop.f32.mrb[0].mxu0
  %v1220 = vpop.f32.mrb[0].mxu0
  %v1221 = vadd.f32 0.0, %v1220
  %v1222 = vpop.f32.mrb[0].mxu0
  %1223 = vmatprep.mubr.bf16.mxu0 0
  %1224 = vmatmul.mubr.bf16.gmra.mrb[0].mxu0 %v987
  %v1225 = vpop.f32.mrb[0].mxu0
  %v1226 = vadd.f32 0.0, %v1225
  %v1227 = vpop.f32.mrb[0].mxu0
  %v1228 = vpop.f32.mrb[0].mxu0
  %v1229 = vadd.f32 0.0, %v1228
  %v1230 = vpop.f32.mrb[0].mxu0
  %1231 = vmatprep.mubr.bf16.mxu0 0
  %1232 = vmatmul.mubr.bf16.gmra.mrb[0].mxu0 %v990
  %v1233 = vpop.f32.mrb[0].mxu0
  %v1234 = vadd.f32 0.0, %v1233
  %v1235 = vpop.f32.mrb[0].mxu0
  %v1236 = vpop.f32.mrb[0].mxu0
  %v1237 = vadd.f32 0.0, %v1236
  %v1238 = vpop.f32.mrb[0].mxu0
  %1239 = vmatprep.mubr.bf16.mxu0 0
  %1240 = vmatmul.mubr.bf16.gmra.mrb[0].mxu0 %v993
  %v1241 = vpop.f32.mrb[0].mxu0
  %v1242 = vadd.f32 0.0, %v1241
  %v1243 = vpop.f32.mrb[0].mxu0
  %v1244 = vpop.f32.mrb[0].mxu0
  %v1245 = vadd.f32 0.0, %v1244
  %v1246 = vpop.f32.mrb[0].mxu0
  %1247 = vmatprep.mubr.bf16.mxu0 0
  %1248 = vmatmul.mubr.bf16.gmra.mrb[0].mxu0 %v996
  %v1249 = vpop.f32.mrb[0].mxu0
  %v1250 = vadd.f32 0.0, %v1249
  %v1251 = vpop.f32.mrb[0].mxu0
  %v1252 = vpop.f32.mrb[0].mxu0
  %v1253 = vadd.f32 0.0, %v1252
  %v1254 = vpop.f32.mrb[0].mxu0
  %1255 = vmatprep.mubr.bf16.mxu0 0
  %1256 = vmatmul.mubr.bf16.gmra.mrb[0].mxu0 %v999
  %v1257 = vpop.f32.mrb[0].mxu0
  %v1258 = vadd.f32 0.0, %v1257
  %v1259 = vpop.f32.mrb[0].mxu0
  %v1260 = vpop.f32.mrb[0].mxu0
  %v1261 = vadd.f32 0.0, %v1260
  %v1262 = vpop.f32.mrb[0].mxu0
  %1263 = vmatprep.mubr.bf16.mxu0 0
  %1264 = vmatmul.mubr.bf16.gmra.mrb[0].mxu0 %v1002
  %v1265 = vpop.f32.mrb[0].mxu0
  %v1266 = vadd.f32 0.0, %v1265
  %v1267 = vpop.f32.mrb[0].mxu0
  %v1268 = vpop.f32.mrb[0].mxu0
  %v1269 = vadd.f32 0.0, %v1268
  %v1270 = vpop.f32.mrb[0].mxu0
  %1271 = vmatprep.mubr.bf16.mxu0 0
  %1272 = vmatmul.mubr.bf16.gmra.mrb[0].mxu0 %v1005
  %v1273 = vpop.f32.mrb[0].mxu0
  %v1274 = vadd.f32 0.0, %v1273
  %v1275 = vpop.f32.mrb[0].mxu0
  %v1276 = vpop.f32.mrb[0].mxu0
  %v1277 = vadd.f32 0.0, %v1276
  %v1278 = vpop.f32.mrb[0].mxu0
  %1279 = vmatprep.mubr.bf16.mxu0 0
  %1280 = vmatmul.mubr.bf16.gmra.mrb[0].mxu0 %v1008
  %v1281 = vpop.f32.mrb[0].mxu0
  %v1282 = vadd.f32 0.0, %v1281
  %v1283 = vpop.f32.mrb[0].mxu0
  %v1284 = vpop.f32.mrb[0].mxu0
  %v1285 = vadd.f32 0.0, %v1284
  %v1286 = vpop.f32.mrb[0].mxu0
  %1287 = vmatprep.mubr.bf16.mxu0 0
  %1288 = vmatmul.mubr.bf16.gmra.mrb[0].mxu0 %v1011
  %v1289 = vpop.f32.mrb[0].mxu0
  %v1290 = vadd.f32 0.0, %v1289
  %v1291 = vpop.f32.mrb[0].mxu0
  %v1292 = vpop.f32.mrb[0].mxu0
  %v1293 = vadd.f32 0.0, %v1292
  %v1294 = vpop.f32.mrb[0].mxu0
  %1295 = vmatprep.mubr.bf16.mxu0 0
  %1296 = vmatmul.mubr.bf16.gmra.mrb[0].mxu0 %v1014
  %v1297 = vpop.f32.mrb[0].mxu0
  %v1298 = vadd.f32 0.0, %v1297
  %v1299 = vpop.f32.mrb[0].mxu0
  %v1300 = vpop.f32.mrb[0].mxu0
  %v1301 = vadd.f32 0.0, %v1300
  %v1302 = vpop.f32.mrb[0].mxu0
  %1303 = vmatprep.mubr.bf16.mxu0 0
  %1304 = vmatmul.mubr.bf16.gmra.mrb[0].mxu0 %v1017
  %v1305 = vpop.f32.mrb[0].mxu0
  %v1306 = vadd.f32 0.0, %v1305
  %v1307 = vpop.f32.mrb[0].mxu0
  %v1308 = vpop.f32.mrb[0].mxu0
  %v1309 = vadd.f32 0.0, %v1308
  %v1310 = vpop.f32.mrb[0].mxu0
  %1311 = vdwg.mxu0
  %v1313 = vsel %vm41, %v792, 0
  %v1316 = vsel %vm41, %v793, 0
  %v1319 = vsel %vm41, %v794, 0
  %v1322 = vsel %vm41, %v795, 0
  %v1325 = vsel %vm41, %v796, 0
  %v1328 = vsel %vm41, %v797, 0
  %v1331 = vsel %vm41, %v798, 0
  %v1334 = vsel %vm41, %v799, 0
  %v1337 = vsel %vm41, %v800, 0
  %v1340 = vsel %vm41, %v801, 0
  %v1343 = vsel %vm41, %v802, 0
  %v1346 = vsel %vm41, %v803, 0
  %v1349 = vsel %vm41, %v804, 0
  %v1352 = vsel %vm41, %v805, 0
  %v1355 = vsel %vm41, %v806, 0
  %v1358 = vsel %vm41, %v807, 0
  %v1361 = vsel %vm41, %v808, 0
  %v1364 = vsel %vm41, %v809, 0
  %v1367 = vsel %vm41, %v810, 0
  %v1370 = vsel %vm41, %v811, 0
  %v1373 = vsel %vm41, %v812, 0
  %v1376 = vsel %vm41, %v813, 0
  %v1379 = vsel %vm41, %v814, 0
  %v1382 = vsel %vm41, %v815, 0
  %v1385 = vsel %vm41, %v816, 0
  %v1388 = vsel %vm41, %v817, 0
  %v1391 = vsel %vm41, %v818, 0
  %v1394 = vsel %vm41, %v819, 0
  %v1397 = vsel %vm41, %v820, 0
  %v1400 = vsel %vm41, %v821, 0
  %v1403 = vsel %vm41, %v822, 0
  %v1406 = vsel %vm41, %v823, 0
  %v1409 = vsel %vm1019, %v824, 0
  %1411 = vmatprep.subr.bf16.mxu0 0
  %1412 = vmatpush1.bf16.msra.mxu0 %v1409
  %1413 = vmatprep.subr.bf16.mxu0 0
  %1414 = vmatpush1.bf16.msra.mxu0 0
  %1415 = vmatprep.subr.bf16.mxu0 0
  %1416 = vmatpush1.bf16.msra.mxu0 0
  %1417 = vmatprep.subr.bf16.mxu0 0
  %1418 = vmatpush1.bf16.msra.mxu0 0
  %1419 = vmatprep.subr.bf16.mxu0 0
  %1420 = vmatpush1.bf16.msra.mxu0 0
  %1421 = vmatprep.subr.bf16.mxu0 0
  %1422 = vmatpush1.bf16.msra.mxu0 0
  %1423 = vmatprep.subr.bf16.mxu0 0
  %1424 = vmatpush1.bf16.msra.mxu0 0
  %1425 = vmatprep.subr.bf16.mxu0 0
  %1426 = vmatpush1.bf16.msra.mxu0 0
  %1427 = vmatprep.subr.bf16.mxu0 0
  %1428 = vmatpush1.bf16.msra.mxu0 0
  %1429 = vmatprep.subr.bf16.mxu0 0
  %1430 = vmatpush1.bf16.msra.mxu0 0
  %1431 = vmatprep.subr.bf16.mxu0 0
  %1432 = vmatpush1.bf16.msra.mxu0 0
  %1433 = vmatprep.subr.bf16.mxu0 0
  %1434 = vmatpush1.bf16.msra.mxu0 0
  %1435 = vmatprep.subr.bf16.mxu0 0
  %1436 = vmatpush1.bf16.msra.mxu0 0
  %1437 = vmatprep.subr.bf16.mxu0 0
  %1438 = vmatpush1.bf16.msra.mxu0 0
  %1439 = vmatprep.subr.bf16.mxu0 0
  %1440 = vmatpush1.bf16.msra.mxu0 0
  %1441 = vmatprep.subr.bf16.mxu0 0
  %1442 = vmatpush1.bf16.msra.mxu0 0
  %1443 = vmatprep.mubr.bf16.mxu0 0
  %1444 = vmatmul.mubr.bf16.gmra.mrb[0].mxu0 %v1313
  %v1445 = vpop.f32.mrb[0].mxu0
  %v1446 = vadd.f32 %v1058, %v1445
  %v1447 = vpop.f32.mrb[0].mxu0
  %v1448 = vpop.f32.mrb[0].mxu0
  %v1449 = vadd.f32 %v1061, %v1448
  %v1450 = vpop.f32.mrb[0].mxu0
  %1451 = vmatprep.mubr.bf16.mxu0 0
  %1452 = vmatmul.mubr.bf16.gmra.mrb[0].mxu0 %v1316
  %v1453 = vpop.f32.mrb[0].mxu0
  %v1454 = vadd.f32 %v1066, %v1453
  %v1455 = vpop.f32.mrb[0].mxu0
  %v1456 = vpop.f32.mrb[0].mxu0
  %v1457 = vadd.f32 %v1069, %v1456
  %v1458 = vpop.f32.mrb[0].mxu0
  %1459 = vmatprep.mubr.bf16.mxu0 0
  %1460 = vmatmul.mubr.bf16.gmra.mrb[0].mxu0 %v1319
  %v1461 = vpop.f32.mrb[0].mxu0
  %v1462 = vadd.f32 %v1074, %v1461
  %v1463 = vpop.f32.mrb[0].mxu0
  %v1464 = vpop.f32.mrb[0].mxu0
  %v1465 = vadd.f32 %v1077, %v1464
  %v1466 = vpop.f32.mrb[0].mxu0
  %1467 = vmatprep.mubr.bf16.mxu0 0
  %1468 = vmatmul.mubr.bf16.gmra.mrb[0].mxu0 %v1322
  %v1469 = vpop.f32.mrb[0].mxu0
  %v1470 = vadd.f32 %v1082, %v1469
  %v1471 = vpop.f32.mrb[0].mxu0
  %v1472 = vpop.f32.mrb[0].mxu0
  %v1473 = vadd.f32 %v1085, %v1472
  %v1474 = vpop.f32.mrb[0].mxu0
  %1475 = vmatprep.mubr.bf16.mxu0 0
  %1476 = vmatmul.mubr.bf16.gmra.mrb[0].mxu0 %v1325
  %v1477 = vpop.f32.mrb[0].mxu0
  %v1478 = vadd.f32 %v1090, %v1477
  %v1479 = vpop.f32.mrb[0].mxu0
  %v1480 = vpop.f32.mrb[0].mxu0
  %v1481 = vadd.f32 %v1093, %v1480
  %v1482 = vpop.f32.mrb[0].mxu0
  %1483 = vmatprep.mubr.bf16.mxu0 0
  %1484 = vmatmul.mubr.bf16.gmra.mrb[0].mxu0 %v1328
  %v1485 = vpop.f32.mrb[0].mxu0
  %v1486 = vadd.f32 %v1098, %v1485
  %v1487 = vpop.f32.mrb[0].mxu0
  %v1488 = vpop.f32.mrb[0].mxu0
  %v1489 = vadd.f32 %v1101, %v1488
  %v1490 = vpop.f32.mrb[0].mxu0
  %1491 = vmatprep.mubr.bf16.mxu0 0
  %1492 = vmatmul.mubr.bf16.gmra.mrb[0].mxu0 %v1331
  %v1493 = vpop.f32.mrb[0].mxu0
  %v1494 = vadd.f32 %v1106, %v1493
  %v1495 = vpop.f32.mrb[0].mxu0
  %v1496 = vpop.f32.mrb[0].mxu0
  %v1497 = vadd.f32 %v1109, %v1496
  %v1498 = vpop.f32.mrb[0].mxu0
  %1499 = vmatprep.mubr.bf16.mxu0 0
  %1500 = vmatmul.mubr.bf16.gmra.mrb[0].mxu0 %v1334
  %v1501 = vpop.f32.mrb[0].mxu0
  %v1502 = vadd.f32 %v1114, %v1501
  %v1503 = vpop.f32.mrb[0].mxu0
  %v1504 = vpop.f32.mrb[0].mxu0
  %v1505 = vadd.f32 %v1117, %v1504
  %v1506 = vpop.f32.mrb[0].mxu0
  %1507 = vmatprep.mubr.bf16.mxu0 0
  %1508 = vmatmul.mubr.bf16.gmra.mrb[0].mxu0 %v1337
  %v1509 = vpop.f32.mrb[0].mxu0
  %v1510 = vadd.f32 %v1122, %v1509
  %v1511 = vpop.f32.mrb[0].mxu0
  %v1512 = vpop.f32.mrb[0].mxu0
  %v1513 = vadd.f32 %v1125, %v1512
  %v1514 = vpop.f32.mrb[0].mxu0
  %1515 = vmatprep.mubr.bf16.mxu0 0
  %1516 = vmatmul.mubr.bf16.gmra.mrb[0].mxu0 %v1340
  %v1517 = vpop.f32.mrb[0].mxu0
  %v1518 = vadd.f32 %v1130, %v1517
  %v1519 = vpop.f32.mrb[0].mxu0
  %v1520 = vpop.f32.mrb[0].mxu0
  %v1521 = vadd.f32 %v1133, %v1520
  %v1522 = vpop.f32.mrb[0].mxu0
  %1523 = vmatprep.mubr.bf16.mxu0 0
  %1524 = vmatmul.mubr.bf16.gmra.mrb[0].mxu0 %v1343
  %v1525 = vpop.f32.mrb[0].mxu0
  %v1526 = vadd.f32 %v1138, %v1525
  %v1527 = vpop.f32.mrb[0].mxu0
  %v1528 = vpop.f32.mrb[0].mxu0
  %v1529 = vadd.f32 %v1141, %v1528
  %v1530 = vpop.f32.mrb[0].mxu0
  %1531 = vmatprep.mubr.bf16.mxu0 0
  %1532 = vmatmul.mubr.bf16.gmra.mrb[0].mxu0 %v1346
  %v1533 = vpop.f32.mrb[0].mxu0
  %v1534 = vadd.f32 %v1146, %v1533
  %v1535 = vpop.f32.mrb[0].mxu0
  %v1536 = vpop.f32.mrb[0].mxu0
  %v1537 = vadd.f32 %v1149, %v1536
  %v1538 = vpop.f32.mrb[0].mxu0
  %1539 = vmatprep.mubr.bf16.mxu0 0
  %1540 = vmatmul.mubr.bf16.gmra.mrb[0].mxu0 %v1349
  %v1541 = vpop.f32.mrb[0].mxu0
  %v1542 = vadd.f32 %v1154, %v1541
  %v1543 = vpop.f32.mrb[0].mxu0
  %v1544 = vpop.f32.mrb[0].mxu0
  %v1545 = vadd.f32 %v1157, %v1544
  %v1546 = vpop.f32.mrb[0].mxu0
  %1547 = vmatprep.mubr.bf16.mxu0 0
  %1548 = vmatmul.mubr.bf16.gmra.mrb[0].mxu0 %v1352
  %v1549 = vpop.f32.mrb[0].mxu0
  %v1550 = vadd.f32 %v1162, %v1549
  %v1551 = vpop.f32.mrb[0].mxu0
  %v1552 = vpop.f32.mrb[0].mxu0
  %v1553 = vadd.f32 %v1165, %v1552
  %v1554 = vpop.f32.mrb[0].mxu0
  %1555 = vmatprep.mubr.bf16.mxu0 0
  %1556 = vmatmul.mubr.bf16.gmra.mrb[0].mxu0 %v1355
  %v1557 = vpop.f32.mrb[0].mxu0
  %v1558 = vadd.f32 %v1170, %v1557
  %v1559 = vpop.f32.mrb[0].mxu0
  %v1560 = vpop.f32.mrb[0].mxu0
  %v1561 = vadd.f32 %v1173, %v1560
  %v1562 = vpop.f32.mrb[0].mxu0
  %1563 = vmatprep.mubr.bf16.mxu0 0
  %1564 = vmatmul.mubr.bf16.gmra.mrb[0].mxu0 %v1358
  %v1565 = vpop.f32.mrb[0].mxu0
  %v1566 = vadd.f32 %v1178, %v1565
  %v1567 = vpop.f32.mrb[0].mxu0
  %v1568 = vpop.f32.mrb[0].mxu0
  %v1569 = vadd.f32 %v1181, %v1568
  %v1570 = vpop.f32.mrb[0].mxu0
  %1571 = vmatprep.mubr.bf16.mxu0 0
  %1572 = vmatmul.mubr.bf16.gmra.mrb[0].mxu0 %v1361
  %v1573 = vpop.f32.mrb[0].mxu0
  %v1574 = vadd.f32 %v1186, %v1573
  %v1575 = vpop.f32.mrb[0].mxu0
  %v1576 = vpop.f32.mrb[0].mxu0
  %v1577 = vadd.f32 %v1189, %v1576
  %v1578 = vpop.f32.mrb[0].mxu0
  %1579 = vmatprep.mubr.bf16.mxu0 0
  %1580 = vmatmul.mubr.bf16.gmra.mrb[0].mxu0 %v1364
  %v1581 = vpop.f32.mrb[0].mxu0
  %v1582 = vadd.f32 %v1194, %v1581
  %v1583 = vpop.f32.mrb[0].mxu0
  %v1584 = vpop.f32.mrb[0].mxu0
  %v1585 = vadd.f32 %v1197, %v1584
  %v1586 = vpop.f32.mrb[0].mxu0
  %1587 = vmatprep.mubr.bf16.mxu0 0
  %1588 = vmatmul.mubr.bf16.gmra.mrb[0].mxu0 %v1367
  %v1589 = vpop.f32.mrb[0].mxu0
  %v1590 = vadd.f32 %v1202, %v1589
  %v1591 = vpop.f32.mrb[0].mxu0
  %v1592 = vpop.f32.mrb[0].mxu0
  %v1593 = vadd.f32 %v1205, %v1592
  %v1594 = vpop.f32.mrb[0].mxu0
  %1595 = vmatprep.mubr.bf16.mxu0 0
  %1596 = vmatmul.mubr.bf16.gmra.mrb[0].mxu0 %v1370
  %v1597 = vpop.f32.mrb[0].mxu0
  %v1598 = vadd.f32 %v1210, %v1597
  %v1599 = vpop.f32.mrb[0].mxu0
  %v1600 = vpop.f32.mrb[0].mxu0
  %v1601 = vadd.f32 %v1213, %v1600
  %v1602 = vpop.f32.mrb[0].mxu0
  %1603 = vmatprep.mubr.bf16.mxu0 0
  %1604 = vmatmul.mubr.bf16.gmra.mrb[0].mxu0 %v1373
  %v1605 = vpop.f32.mrb[0].mxu0
  %v1606 = vadd.f32 %v1218, %v1605
  %v1607 = vpop.f32.mrb[0].mxu0
  %v1608 = vpop.f32.mrb[0].mxu0
  %v1609 = vadd.f32 %v1221, %v1608
  %v1610 = vpop.f32.mrb[0].mxu0
  %1611 = vmatprep.mubr.bf16.mxu0 0
  %1612 = vmatmul.mubr.bf16.gmra.mrb[0].mxu0 %v1376
  %v1613 = vpop.f32.mrb[0].mxu0
  %v1614 = vadd.f32 %v1226, %v1613
  %v1615 = vpop.f32.mrb[0].mxu0
  %v1616 = vpop.f32.mrb[0].mxu0
  %v1617 = vadd.f32 %v1229, %v1616
  %v1618 = vpop.f32.mrb[0].mxu0
  %1619 = vmatprep.mubr.bf16.mxu0 0
  %1620 = vmatmul.mubr.bf16.gmra.mrb[0].mxu0 %v1379
  %v1621 = vpop.f32.mrb[0].mxu0
  %v1622 = vadd.f32 %v1234, %v1621
  %v1623 = vpop.f32.mrb[0].mxu0
  %v1624 = vpop.f32.mrb[0].mxu0
  %v1625 = vadd.f32 %v1237, %v1624
  %v1626 = vpop.f32.mrb[0].mxu0
  %1627 = vmatprep.mubr.bf16.mxu0 0
  %1628 = vmatmul.mubr.bf16.gmra.mrb[0].mxu0 %v1382
  %v1629 = vpop.f32.mrb[0].mxu0
  %v1630 = vadd.f32 %v1242, %v1629
  %v1631 = vpop.f32.mrb[0].mxu0
  %v1632 = vpop.f32.mrb[0].mxu0
  %v1633 = vadd.f32 %v1245, %v1632
  %v1634 = vpop.f32.mrb[0].mxu0
  %1635 = vmatprep.mubr.bf16.mxu0 0
  %1636 = vmatmul.mubr.bf16.gmra.mrb[0].mxu0 %v1385
  %v1637 = vpop.f32.mrb[0].mxu0
  %v1638 = vadd.f32 %v1250, %v1637
  %v1639 = vpop.f32.mrb[0].mxu0
  %v1640 = vpop.f32.mrb[0].mxu0
  %v1641 = vadd.f32 %v1253, %v1640
  %v1642 = vpop.f32.mrb[0].mxu0
  %1643 = vmatprep.mubr.bf16.mxu0 0
  %1644 = vmatmul.mubr.bf16.gmra.mrb[0].mxu0 %v1388
  %v1645 = vpop.f32.mrb[0].mxu0
  %v1646 = vadd.f32 %v1258, %v1645
  %v1647 = vpop.f32.mrb[0].mxu0
  %v1648 = vpop.f32.mrb[0].mxu0
  %v1649 = vadd.f32 %v1261, %v1648
  %v1650 = vpop.f32.mrb[0].mxu0
  %1651 = vmatprep.mubr.bf16.mxu0 0
  %1652 = vmatmul.mubr.bf16.gmra.mrb[0].mxu0 %v1391
  %v1653 = vpop.f32.mrb[0].mxu0
  %v1654 = vadd.f32 %v1266, %v1653
  %v1655 = vpop.f32.mrb[0].mxu0
  %v1656 = vpop.f32.mrb[0].mxu0
  %v1657 = vadd.f32 %v1269, %v1656
  %v1658 = vpop.f32.mrb[0].mxu0
  %1659 = vmatprep.mubr.bf16.mxu0 0
  %1660 = vmatmul.mubr.bf16.gmra.mrb[0].mxu0 %v1394
  %v1661 = vpop.f32.mrb[0].mxu0
  %v1662 = vadd.f32 %v1274, %v1661
  %v1663 = vpop.f32.mrb[0].mxu0
  %v1664 = vpop.f32.mrb[0].mxu0
  %v1665 = vadd.f32 %v1277, %v1664
  %v1666 = vpop.f32.mrb[0].mxu0
  %1667 = vmatprep.mubr.bf16.mxu0 0
  %1668 = vmatmul.mubr.bf16.gmra.mrb[0].mxu0 %v1397
  %v1669 = vpop.f32.mrb[0].mxu0
  %v1670 = vadd.f32 %v1282, %v1669
  %v1671 = vpop.f32.mrb[0].mxu0
  %v1672 = vpop.f32.mrb[0].mxu0
  %v1673 = vadd.f32 %v1285, %v1672
  %v1674 = vpop.f32.mrb[0].mxu0
  %1675 = vmatprep.mubr.bf16.mxu0 0
  %1676 = vmatmul.mubr.bf16.gmra.mrb[0].mxu0 %v1400
  %v1677 = vpop.f32.mrb[0].mxu0
  %v1678 = vadd.f32 %v1290, %v1677
  %v1679 = vpop.f32.mrb[0].mxu0
  %v1680 = vpop.f32.mrb[0].mxu0
  %v1681 = vadd.f32 %v1293, %v1680
  %v1682 = vpop.f32.mrb[0].mxu0
  %1683 = vmatprep.mubr.bf16.mxu0 0
  %1684 = vmatmul.mubr.bf16.gmra.mrb[0].mxu0 %v1403
  %v1685 = vpop.f32.mrb[0].mxu0
  %v1686 = vadd.f32 %v1298, %v1685
  %v1687 = vpop.f32.mrb[0].mxu0
  %v1688 = vpop.f32.mrb[0].mxu0
  %v1689 = vadd.f32 %v1301, %v1688
  %v1690 = vpop.f32.mrb[0].mxu0
  %1691 = vmatprep.mubr.bf16.mxu0 0
  %1692 = vmatmul.mubr.bf16.gmra.mrb[0].mxu0 %v1406
  %v1693 = vpop.f32.mrb[0].mxu0
  %v1694 = vadd.f32 %v1306, %v1693
  %v1695 = vpop.f32.mrb[0].mxu0
  %v1696 = vpop.f32.mrb[0].mxu0
  %v1697 = vadd.f32 %v1309, %v1696
  %v1698 = vpop.f32.mrb[0].mxu0
  %1699 = vdwg.mxu0
  %s1700 = scalar_lea.vmem [#allocation2], 8
  %v1701 = vld [vmem:[%s1700] sm:$0xff]
  %v1702 = vld [vmem:[%s1700 + $0x8] sm:$0xff]
  %v1703 = vld [vmem:[%s1700 + $0x10] sm:$0xff]
  %v1704 = vld [vmem:[%s1700 + $0x18] sm:$0xff]
  %v1705 = vld [vmem:[%s1700 + $0x20] sm:$0xff]
  %v1706 = vld [vmem:[%s1700 + $0x28] sm:$0xff]
  %v1707 = vld [vmem:[%s1700 + $0x30] sm:$0xff]
  %v1708 = vld [vmem:[%s1700 + $0x38] sm:$0xff]
  %v1709 = vld [vmem:[%s1700 + $0x48] sm:$0xff]
  %v1710 = vld [vmem:[%s1700 + $0x50] sm:$0xff]
  %v1711 = vld [vmem:[%s1700 + $0x58] sm:$0xff]
  %v1712 = vld [vmem:[%s1700 + $0x60] sm:$0xff]
  %v1713 = vld [vmem:[%s1700 + $0x68] sm:$0xff]
  %v1714 = vld [vmem:[%s1700 + $0x70] sm:$0xff]
  %v1715 = vld [vmem:[%s1700 + $0x78] sm:$0xff]
  %v1716 = vld [vmem:[%s1700 + $0x80] sm:$0xff]
  %v1717 = vld [vmem:[%s1700 + $0x90] sm:$0xff]
  %v1718 = vld [vmem:[%s1700 + $0x98] sm:$0xff]
  %v1719 = vld [vmem:[%s1700 + $0xa0] sm:$0xff]
  %v1720 = vld [vmem:[%s1700 + $0xa8] sm:$0xff]
  %v1721 = vld [vmem:[%s1700 + $0xb0] sm:$0xff]
  %v1722 = vld [vmem:[%s1700 + $0xb8] sm:$0xff]
  %v1723 = vld [vmem:[%s1700 + $0xc0] sm:$0xff]
  %v1724 = vld [vmem:[%s1700 + $0xc8] sm:$0xff]
  %v1725 = vld [vmem:[%s1700 + $0xd8] sm:$0xff]
  %v1726 = vld [vmem:[%s1700 + $0xe0] sm:$0xff]
  %v1727 = vld [vmem:[%s1700 + $0xe8] sm:$0xff]
  %v1728 = vld [vmem:[%s1700 + $0xf0] sm:$0xff]
  %v1729 = vld [vmem:[%s1700 + $0xf8] sm:$0xff]
  %v1730 = vld [vmem:[%s1700 + $0x100] sm:$0xff]
  %v1731 = vld [vmem:[%s1700 + $0x108] sm:$0xff]
  %v1732 = vld [vmem:[%s1700 + $0x110] sm:$0xff]
  %v1733 = vld [vmem:[%s1700 + $0x120] sm:$0xff]
  %v1734 = vld [vmem:[%s1700 + $0x128] sm:$0xff]
  %v1735 = vld [vmem:[%s1700 + $0x130] sm:$0xff]
  %v1736 = vld [vmem:[%s1700 + $0x138] sm:$0xff]
  %v1737 = vld [vmem:[%s1700 + $0x140] sm:$0xff]
  %v1738 = vld [vmem:[%s1700 + $0x148] sm:$0xff]
  %v1739 = vld [vmem:[%s1700 + $0x150] sm:$0xff]
  %v1740 = vld [vmem:[%s1700 + $0x158] sm:$0xff]
  %v1741 = vld [vmem:[%s1700 + $0x168] sm:$0xff]
  %v1742 = vld [vmem:[%s1700 + $0x170] sm:$0xff]
  %v1743 = vld [vmem:[%s1700 + $0x178] sm:$0xff]
  %v1744 = vld [vmem:[%s1700 + $0x180] sm:$0xff]
  %v1745 = vld [vmem:[%s1700 + $0x188] sm:$0xff]
  %v1746 = vld [vmem:[%s1700 + $0x190] sm:$0xff]
  %v1747 = vld [vmem:[%s1700 + $0x198] sm:$0xff]
  %v1748 = vld [vmem:[%s1700 + $0x1a0] sm:$0xff]
  %v1749 = vld [vmem:[%s1700 + $0x1b0] sm:$0xff]
  %v1750 = vld [vmem:[%s1700 + $0x1b8] sm:$0xff]
  %v1751 = vld [vmem:[%s1700 + $0x1c0] sm:$0xff]
  %v1752 = vld [vmem:[%s1700 + $0x1c8] sm:$0xff]
  %v1753 = vld [vmem:[%s1700 + $0x1d0] sm:$0xff]
  %v1754 = vld [vmem:[%s1700 + $0x1d8] sm:$0xff]
  %v1755 = vld [vmem:[%s1700 + $0x1e0] sm:$0xff]
  %v1756 = vld [vmem:[%s1700 + $0x1e8] sm:$0xff]
  %v1757 = vld [vmem:[%s1700 + $0x1f8] sm:$0xff]
  %v1758 = vld [vmem:[%s1700 + $0x200] sm:$0xff]
  %v1759 = vld [vmem:[%s1700 + $0x208] sm:$0xff]
  %v1760 = vld [vmem:[%s1700 + $0x210] sm:$0xff]
  %v1761 = vld [vmem:[%s1700 + $0x218] sm:$0xff]
  %v1762 = vld [vmem:[%s1700 + $0x220] sm:$0xff]
  %v1763 = vld [vmem:[%s1700 + $0x228] sm:$0xff]
  %v1764 = vld [vmem:[%s1700 + $0x230] sm:$0xff]
  %v1765 = vpack.c.bf16 %v1702, %v1701
  %v1766 = vpack.c.bf16 %v1704, %v1703
  %v1767 = vpack.c.bf16 %v1706, %v1705
  %v1768 = vpack.c.bf16 %v1708, %v1707
  %v1769 = vpack.c.bf16 %v1710, %v1709
  %v1770 = vpack.c.bf16 %v1712, %v1711
  %v1771 = vpack.c.bf16 %v1714, %v1713
  %v1772 = vpack.c.bf16 %v1716, %v1715
  %v1773 = vpack.c.bf16 %v1718, %v1717
  %v1774 = vpack.c.bf16 %v1720, %v1719
  %v1775 = vpack.c.bf16 %v1722, %v1721
  %v1776 = vpack.c.bf16 %v1724, %v1723
  %v1777 = vpack.c.bf16 %v1726, %v1725
  %v1778 = vpack.c.bf16 %v1728, %v1727
  %v1779 = vpack.c.bf16 %v1730, %v1729
  %v1780 = vpack.c.bf16 %v1732, %v1731
  %v1781 = vpack.c.bf16 %v1734, %v1733
  %v1782 = vpack.c.bf16 %v1736, %v1735
  %v1783 = vpack.c.bf16 %v1738, %v1737
  %v1784 = vpack.c.bf16 %v1740, %v1739
  %v1785 = vpack.c.bf16 %v1742, %v1741
  %v1786 = vpack.c.bf16 %v1744, %v1743
  %v1787 = vpack.c.bf16 %v1746, %v1745
  %v1788 = vpack.c.bf16 %v1748, %v1747
  %v1789 = vpack.c.bf16 %v1750, %v1749
  %v1790 = vpack.c.bf16 %v1752, %v1751
  %v1791 = vpack.c.bf16 %v1754, %v1753
  %v1792 = vpack.c.bf16 %v1756, %v1755
  %v1793 = vpack.c.bf16 %v1758, %v1757
  %v1794 = vpack.c.bf16 %v1760, %v1759
  %v1795 = vpack.c.bf16 %v1762, %v1761
  %v1796 = vpack.c.bf16 %v1764, %v1763
  %s1797 = scalar_lea.vmem %s1, 4
  %v1798 = vld [vmem:[%s1797] sm:$0x3]
  %v1800 = vsel %vm41, %v1765, 0
  %v1803 = vsel %vm41, %v1766, 0
  %v1806 = vsel %vm41, %v1767, 0
  %v1809 = vsel %vm41, %v1768, 0
  %v1812 = vsel %vm41, %v1769, 0
  %v1815 = vsel %vm41, %v1770, 0
  %v1818 = vsel %vm41, %v1771, 0
  %v1821 = vsel %vm41, %v1772, 0
  %v1824 = vsel %vm41, %v1773, 0
  %v1827 = vsel %vm41, %v1774, 0
  %v1830 = vsel %vm41, %v1775, 0
  %v1833 = vsel %vm41, %v1776, 0
  %v1836 = vsel %vm41, %v1777, 0
  %v1839 = vsel %vm41, %v1778, 0
  %v1842 = vsel %vm41, %v1779, 0
  %v1845 = vsel %vm41, %v1780, 0
  %v1848 = vsel %vm41, %v1781, 0
  %v1851 = vsel %vm41, %v1782, 0
  %v1854 = vsel %vm41, %v1783, 0
  %v1857 = vsel %vm41, %v1784, 0
  %v1860 = vsel %vm41, %v1785, 0
  %v1863 = vsel %vm41, %v1786, 0
  %v1866 = vsel %vm41, %v1787, 0
  %v1869 = vsel %vm41, %v1788, 0
  %v1872 = vsel %vm41, %v1789, 0
  %v1875 = vsel %vm41, %v1790, 0
  %v1878 = vsel %vm41, %v1791, 0
  %v1881 = vsel %vm41, %v1792, 0
  %v1884 = vsel %vm41, %v1793, 0
  %v1887 = vsel %vm41, %v1794, 0
  %v1890 = vsel %vm41, %v1795, 0
  %v1893 = vsel %vm41, %v1796, 0
  %v1896 = vsel %vm1019, %v1798, 0
  %1898 = vmatprep.subr.bf16.mxu0 0
  %1899 = vmatpush1.bf16.msra.mxu0 %v1896
  %1900 = vmatprep.subr.bf16.mxu0 0
  %1901 = vmatpush1.bf16.msra.mxu0 0
  %1902 = vmatprep.subr.bf16.mxu0 0
  %1903 = vmatpush1.bf16.msra.mxu0 0
  %1904 = vmatprep.subr.bf16.mxu0 0
  %1905 = vmatpush1.bf16.msra.mxu0 0
  %1906 = vmatprep.subr.bf16.mxu0 0
  %1907 = vmatpush1.bf16.msra.mxu0 0
  %1908 = vmatprep.subr.bf16.mxu0 0
  %1909 = vmatpush1.bf16.msra.mxu0 0
  %1910 = vmatprep.subr.bf16.mxu0 0
  %1911 = vmatpush1.bf16.msra.mxu0 0
  %1912 = vmatprep.subr.bf16.mxu0 0
  %1913 = vmatpush1.bf16.msra.mxu0 0
  %1914 = vmatprep.subr.bf16.mxu0 0
  %1915 = vmatpush1.bf16.msra.mxu0 0
  %1916 = vmatprep.subr.bf16.mxu0 0
  %1917 = vmatpush1.bf16.msra.mxu0 0
  %1918 = vmatprep.subr.bf16.mxu0 0
  %1919 = vmatpush1.bf16.msra.mxu0 0
  %1920 = vmatprep.subr.bf16.mxu0 0
  %1921 = vmatpush1.bf16.msra.mxu0 0
  %1922 = vmatprep.subr.bf16.mxu0 0
  %1923 = vmatpush1.bf16.msra.mxu0 0
  %1924 = vmatprep.subr.bf16.mxu0 0
  %1925 = vmatpush1.bf16.msra.mxu0 0
  %1926 = vmatprep.subr.bf16.mxu0 0
  %1927 = vmatpush1.bf16.msra.mxu0 0
  %1928 = vmatprep.subr.bf16.mxu0 0
  %1929 = vmatpush1.bf16.msra.mxu0 0
  %1930 = vmatprep.mubr.bf16.mxu0 0
  %1931 = vmatmul.mubr.bf16.gmra.mrb[0].mxu0 %v1800
  %v1932 = vpop.f32.mrb[0].mxu0
  %v1933 = vadd.f32 0.0, %v1932
  %v1934 = vpop.f32.mrb[0].mxu0
  %v1935 = vpop.f32.mrb[0].mxu0
  %v1936 = vadd.f32 0.0, %v1935
  %v1937 = vpop.f32.mrb[0].mxu0
  %1938 = vmatprep.mubr.bf16.mxu0 0
  %1939 = vmatmul.mubr.bf16.gmra.mrb[0].mxu0 %v1803
  %v1940 = vpop.f32.mrb[0].mxu0
  %v1941 = vadd.f32 0.0, %v1940
  %v1942 = vpop.f32.mrb[0].mxu0
  %v1943 = vpop.f32.mrb[0].mxu0
  %v1944 = vadd.f32 0.0, %v1943
  %v1945 = vpop.f32.mrb[0].mxu0
  %1946 = vmatprep.mubr.bf16.mxu0 0
  %1947 = vmatmul.mubr.bf16.gmra.mrb[0].mxu0 %v1806
  %v1948 = vpop.f32.mrb[0].mxu0
  %v1949 = vadd.f32 0.0, %v1948
  %v1950 = vpop.f32.mrb[0].mxu0
  %v1951 = vpop.f32.mrb[0].mxu0
  %v1952 = vadd.f32 0.0, %v1951
  %v1953 = vpop.f32.mrb[0].mxu0
  %1954 = vmatprep.mubr.bf16.mxu0 0
  %1955 = vmatmul.mubr.bf16.gmra.mrb[0].mxu0 %v1809
  %v1956 = vpop.f32.mrb[0].mxu0
  %v1957 = vadd.f32 0.0, %v1956
  %v1958 = vpop.f32.mrb[0].mxu0
  %v1959 = vpop.f32.mrb[0].mxu0
  %v1960 = vadd.f32 0.0, %v1959
  %v1961 = vpop.f32.mrb[0].mxu0
  %1962 = vmatprep.mubr.bf16.mxu0 0
  %1963 = vmatmul.mubr.bf16.gmra.mrb[0].mxu0 %v1812
  %v1964 = vpop.f32.mrb[0].mxu0
  %v1965 = vadd.f32 0.0, %v1964
  %v1966 = vpop.f32.mrb[0].mxu0
  %v1967 = vpop.f32.mrb[0].mxu0
  %v1968 = vadd.f32 0.0, %v1967
  %v1969 = vpop.f32.mrb[0].mxu0
  %1970 = vmatprep.mubr.bf16.mxu0 0
  %1971 = vmatmul.mubr.bf16.gmra.mrb[0].mxu0 %v1815
  %v1972 = vpop.f32.mrb[0].mxu0
  %v1973 = vadd.f32 0.0, %v1972
  %v1974 = vpop.f32.mrb[0].mxu0
  %v1975 = vpop.f32.mrb[0].mxu0
  %v1976 = vadd.f32 0.0, %v1975
  %v1977 = vpop.f32.mrb[0].mxu0
  %1978 = vmatprep.mubr.bf16.mxu0 0
  %1979 = vmatmul.mubr.bf16.gmra.mrb[0].mxu0 %v1818
  %v1980 = vpop.f32.mrb[0].mxu0
  %v1981 = vadd.f32 0.0, %v1980
  %v1982 = vpop.f32.mrb[0].mxu0
  %v1983 = vpop.f32.mrb[0].mxu0
  %v1984 = vadd.f32 0.0, %v1983
  %v1985 = vpop.f32.mrb[0].mxu0
  %1986 = vmatprep.mubr.bf16.mxu0 0
  %1987 = vmatmul.mubr.bf16.gmra.mrb[0].mxu0 %v1821
  %v1988 = vpop.f32.mrb[0].mxu0
  %v1989 = vadd.f32 0.0, %v1988
  %v1990 = vpop.f32.mrb[0].mxu0
  %v1991 = vpop.f32.mrb[0].mxu0
  %v1992 = vadd.f32 0.0, %v1991
  %v1993 = vpop.f32.mrb[0].mxu0
  %1994 = vmatprep.mubr.bf16.mxu0 0
  %1995 = vmatmul.mubr.bf16.gmra.mrb[0].mxu0 %v1824
  %v1996 = vpop.f32.mrb[0].mxu0
  %v1997 = vadd.f32 0.0, %v1996
  %v1998 = vpop.f32.mrb[0].mxu0
  %v1999 = vpop.f32.mrb[0].mxu0
  %v2000 = vadd.f32 0.0, %v1999
  %v2001 = vpop.f32.mrb[0].mxu0
  %2002 = vmatprep.mubr.bf16.mxu0 0
  %2003 = vmatmul.mubr.bf16.gmra.mrb[0].mxu0 %v1827
  %v2004 = vpop.f32.mrb[0].mxu0
  %v2005 = vadd.f32 0.0, %v2004
  %v2006 = vpop.f32.mrb[0].mxu0
  %v2007 = vpop.f32.mrb[0].mxu0
  %v2008 = vadd.f32 0.0, %v2007
  %v2009 = vpop.f32.mrb[0].mxu0
  %2010 = vmatprep.mubr.bf16.mxu0 0
  %2011 = vmatmul.mubr.bf16.gmra.mrb[0].mxu0 %v1830
  %v2012 = vpop.f32.mrb[0].mxu0
  %v2013 = vadd.f32 0.0, %v2012
  %v2014 = vpop.f32.mrb[0].mxu0
  %v2015 = vpop.f32.mrb[0].mxu0
  %v2016 = vadd.f32 0.0, %v2015
  %v2017 = vpop.f32.mrb[0].mxu0
  %2018 = vmatprep.mubr.bf16.mxu0 0
  %2019 = vmatmul.mubr.bf16.gmra.mrb[0].mxu0 %v1833
  %v2020 = vpop.f32.mrb[0].mxu0
  %v2021 = vadd.f32 0.0, %v2020
  %v2022 = vpop.f32.mrb[0].mxu0
  %v2023 = vpop.f32.mrb[0].mxu0
  %v2024 = vadd.f32 0.0, %v2023
  %v2025 = vpop.f32.mrb[0].mxu0
  %2026 = vmatprep.mubr.bf16.mxu0 0
  %2027 = vmatmul.mubr.bf16.gmra.mrb[0].mxu0 %v1836
  %v2028 = vpop.f32.mrb[0].mxu0
  %v2029 = vadd.f32 0.0, %v2028
  %v2030 = vpop.f32.mrb[0].mxu0
  %v2031 = vpop.f32.mrb[0].mxu0
  %v2032 = vadd.f32 0.0, %v2031
  %v2033 = vpop.f32.mrb[0].mxu0
  %2034 = vmatprep.mubr.bf16.mxu0 0
  %2035 = vmatmul.mubr.bf16.gmra.mrb[0].mxu0 %v1839
  %v2036 = vpop.f32.mrb[0].mxu0
  %v2037 = vadd.f32 0.0, %v2036
  %v2038 = vpop.f32.mrb[0].mxu0
  %v2039 = vpop.f32.mrb[0].mxu0
  %v2040 = vadd.f32 0.0, %v2039
  %v2041 = vpop.f32.mrb[0].mxu0
  %2042 = vmatprep.mubr.bf16.mxu0 0
  %2043 = vmatmul.mubr.bf16.gmra.mrb[0].mxu0 %v1842
  %v2044 = vpop.f32.mrb[0].mxu0
  %v2045 = vadd.f32 0.0, %v2044
  %v2046 = vpop.f32.mrb[0].mxu0
  %v2047 = vpop.f32.mrb[0].mxu0
  %v2048 = vadd.f32 0.0, %v2047
  %v2049 = vpop.f32.mrb[0].mxu0
  %2050 = vmatprep.mubr.bf16.mxu0 0
  %2051 = vmatmul.mubr.bf16.gmra.mrb[0].mxu0 %v1845
  %v2052 = vpop.f32.mrb[0].mxu0
  %v2053 = vadd.f32 0.0, %v2052
  %v2054 = vpop.f32.mrb[0].mxu0
  %v2055 = vpop.f32.mrb[0].mxu0
  %v2056 = vadd.f32 0.0, %v2055
  %v2057 = vpop.f32.mrb[0].mxu0
  %2058 = vmatprep.mubr.bf16.mxu0 0
  %2059 = vmatmul.mubr.bf16.gmra.mrb[0].mxu0 %v1848
  %v2060 = vpop.f32.mrb[0].mxu0
  %v2061 = vadd.f32 0.0, %v2060
  %v2062 = vpop.f32.mrb[0].mxu0
  %v2063 = vpop.f32.mrb[0].mxu0
  %v2064 = vadd.f32 0.0, %v2063
  %v2065 = vpop.f32.mrb[0].mxu0
  %2066 = vmatprep.mubr.bf16.mxu0 0
  %2067 = vmatmul.mubr.bf16.gmra.mrb[0].mxu0 %v1851
  %v2068 = vpop.f32.mrb[0].mxu0
  %v2069 = vadd.f32 0.0, %v2068
  %v2070 = vpop.f32.mrb[0].mxu0
  %v2071 = vpop.f32.mrb[0].mxu0
  %v2072 = vadd.f32 0.0, %v2071
  %v2073 = vpop.f32.mrb[0].mxu0
  %2074 = vmatprep.mubr.bf16.mxu0 0
  %2075 = vmatmul.mubr.bf16.gmra.mrb[0].mxu0 %v1854
  %v2076 = vpop.f32.mrb[0].mxu0
  %v2077 = vadd.f32 0.0, %v2076
  %v2078 = vpop.f32.mrb[0].mxu0
  %v2079 = vpop.f32.mrb[0].mxu0
  %v2080 = vadd.f32 0.0, %v2079
  %v2081 = vpop.f32.mrb[0].mxu0
  %2082 = vmatprep.mubr.bf16.mxu0 0
  %2083 = vmatmul.mubr.bf16.gmra.mrb[0].mxu0 %v1857
  %v2084 = vpop.f32.mrb[0].mxu0
  %v2085 = vadd.f32 0.0, %v2084
  %v2086 = vpop.f32.mrb[0].mxu0
  %v2087 = vpop.f32.mrb[0].mxu0
  %v2088 = vadd.f32 0.0, %v2087
  %v2089 = vpop.f32.mrb[0].mxu0
  %2090 = vmatprep.mubr.bf16.mxu0 0
  %2091 = vmatmul.mubr.bf16.gmra.mrb[0].mxu0 %v1860
  %v2092 = vpop.f32.mrb[0].mxu0
  %v2093 = vadd.f32 0.0, %v2092
  %v2094 = vpop.f32.mrb[0].mxu0
  %v2095 = vpop.f32.mrb[0].mxu0
  %v2096 = vadd.f32 0.0, %v2095
  %v2097 = vpop.f32.mrb[0].mxu0
  %2098 = vmatprep.mubr.bf16.mxu0 0
  %2099 = vmatmul.mubr.bf16.gmra.mrb[0].mxu0 %v1863
  %v2100 = vpop.f32.mrb[0].mxu0
  %v2101 = vadd.f32 0.0, %v2100
  %v2102 = vpop.f32.mrb[0].mxu0
  %v2103 = vpop.f32.mrb[0].mxu0
  %v2104 = vadd.f32 0.0, %v2103
  %v2105 = vpop.f32.mrb[0].mxu0
  %2106 = vmatprep.mubr.bf16.mxu0 0
  %2107 = vmatmul.mubr.bf16.gmra.mrb[0].mxu0 %v1866
  %v2108 = vpop.f32.mrb[0].mxu0
  %v2109 = vadd.f32 0.0, %v2108
  %v2110 = vpop.f32.mrb[0].mxu0
  %v2111 = vpop.f32.mrb[0].mxu0
  %v2112 = vadd.f32 0.0, %v2111
  %v2113 = vpop.f32.mrb[0].mxu0
  %2114 = vmatprep.mubr.bf16.mxu0 0
  %2115 = vmatmul.mubr.bf16.gmra.mrb[0].mxu0 %v1869
  %v2116 = vpop.f32.mrb[0].mxu0
  %v2117 = vadd.f32 0.0, %v2116
  %v2118 = vpop.f32.mrb[0].mxu0
  %v2119 = vpop.f32.mrb[0].mxu0
  %v2120 = vadd.f32 0.0, %v2119
  %v2121 = vpop.f32.mrb[0].mxu0
  %2122 = vmatprep.mubr.bf16.mxu0 0
  %2123 = vmatmul.mubr.bf16.gmra.mrb[0].mxu0 %v1872
  %v2124 = vpop.f32.mrb[0].mxu0
  %v2125 = vadd.f32 0.0, %v2124
  %v2126 = vpop.f32.mrb[0].mxu0
  %v2127 = vpop.f32.mrb[0].mxu0
  %v2128 = vadd.f32 0.0, %v2127
  %v2129 = vpop.f32.mrb[0].mxu0
  %2130 = vmatprep.mubr.bf16.mxu0 0
  %2131 = vmatmul.mubr.bf16.gmra.mrb[0].mxu0 %v1875
  %v2132 = vpop.f32.mrb[0].mxu0
  %v2133 = vadd.f32 0.0, %v2132
  %v2134 = vpop.f32.mrb[0].mxu0
  %v2135 = vpop.f32.mrb[0].mxu0
  %v2136 = vadd.f32 0.0, %v2135
  %v2137 = vpop.f32.mrb[0].mxu0
  %2138 = vmatprep.mubr.bf16.mxu0 0
  %2139 = vmatmul.mubr.bf16.gmra.mrb[0].mxu0 %v1878
  %v2140 = vpop.f32.mrb[0].mxu0
  %v2141 = vadd.f32 0.0, %v2140
  %v2142 = vpop.f32.mrb[0].mxu0
  %v2143 = vpop.f32.mrb[0].mxu0
  %v2144 = vadd.f32 0.0, %v2143
  %v2145 = vpop.f32.mrb[0].mxu0
  %2146 = vmatprep.mubr.bf16.mxu0 0
  %2147 = vmatmul.mubr.bf16.gmra.mrb[0].mxu0 %v1881
  %v2148 = vpop.f32.mrb[0].mxu0
  %v2149 = vadd.f32 0.0, %v2148
  %v2150 = vpop.f32.mrb[0].mxu0
  %v2151 = vpop.f32.mrb[0].mxu0
  %v2152 = vadd.f32 0.0, %v2151
  %v2153 = vpop.f32.mrb[0].mxu0
  %2154 = vmatprep.mubr.bf16.mxu0 0
  %2155 = vmatmul.mubr.bf16.gmra.mrb[0].mxu0 %v1884
  %v2156 = vpop.f32.mrb[0].mxu0
  %v2157 = vadd.f32 0.0, %v2156
  %v2158 = vpop.f32.mrb[0].mxu0
  %v2159 = vpop.f32.mrb[0].mxu0
  %v2160 = vadd.f32 0.0, %v2159
  %v2161 = vpop.f32.mrb[0].mxu0
  %2162 = vmatprep.mubr.bf16.mxu0 0
  %2163 = vmatmul.mubr.bf16.gmra.mrb[0].mxu0 %v1887
  %v2164 = vpop.f32.mrb[0].mxu0
  %v2165 = vadd.f32 0.0, %v2164
  %v2166 = vpop.f32.mrb[0].mxu0
  %v2167 = vpop.f32.mrb[0].mxu0
  %v2168 = vadd.f32 0.0, %v2167
  %v2169 = vpop.f32.mrb[0].mxu0
  %2170 = vmatprep.mubr.bf16.mxu0 0
  %2171 = vmatmul.mubr.bf16.gmra.mrb[0].mxu0 %v1890
  %v2172 = vpop.f32.mrb[0].mxu0
  %v2173 = vadd.f32 0.0, %v2172
  %v2174 = vpop.f32.mrb[0].mxu0
  %v2175 = vpop.f32.mrb[0].mxu0
  %v2176 = vadd.f32 0.0, %v2175
  %v2177 = vpop.f32.mrb[0].mxu0
  %2178 = vmatprep.mubr.bf16.mxu0 0
  %2179 = vmatmul.mubr.bf16.gmra.mrb[0].mxu0 %v1893
  %v2180 = vpop.f32.mrb[0].mxu0
  %v2181 = vadd.f32 0.0, %v2180
  %v2182 = vpop.f32.mrb[0].mxu0
  %v2183 = vpop.f32.mrb[0].mxu0
  %v2184 = vadd.f32 0.0, %v2183
  %v2185 = vpop.f32.mrb[0].mxu0
  %2186 = vdwg.mxu0
  %v2187 = vadd.f32 %v1446, %v1933
  %v2188 = vadd.f32 %v1449, %v1936
  %v2189 = vadd.f32 %v1454, %v1941
  %v2190 = vadd.f32 %v1457, %v1944
  %v2191 = vadd.f32 %v1462, %v1949
  %v2192 = vadd.f32 %v1465, %v1952
  %v2193 = vadd.f32 %v1470, %v1957
  %v2194 = vadd.f32 %v1473, %v1960
  %v2195 = vadd.f32 %v1478, %v1965
  %v2196 = vadd.f32 %v1481, %v1968
  %v2197 = vadd.f32 %v1486, %v1973
  %v2198 = vadd.f32 %v1489, %v1976
  %v2199 = vadd.f32 %v1494, %v1981
  %v2200 = vadd.f32 %v1497, %v1984
  %v2201 = vadd.f32 %v1502, %v1989
  %v2202 = vadd.f32 %v1505, %v1992
  %v2203 = vadd.f32 %v1510, %v1997
  %v2204 = vadd.f32 %v1513, %v2000
  %v2205 = vadd.f32 %v1518, %v2005
  %v2206 = vadd.f32 %v1521, %v2008
  %v2207 = vadd.f32 %v1526, %v2013
  %v2208 = vadd.f32 %v1529, %v2016
  %v2209 = vadd.f32 %v1534, %v2021
  %v2210 = vadd.f32 %v1537, %v2024
  %v2211 = vadd.f32 %v1542, %v2029
  %v2212 = vadd.f32 %v1545, %v2032
  %v2213 = vadd.f32 %v1550, %v2037
  %v2214 = vadd.f32 %v1553, %v2040
  %v2215 = vadd.f32 %v1558, %v2045
  %v2216 = vadd.f32 %v1561, %v2048
  %v2217 = vadd.f32 %v1566, %v2053
  %v2218 = vadd.f32 %v1569, %v2056
  %v2219 = vadd.f32 %v1574, %v2061
  %v2220 = vadd.f32 %v1577, %v2064
  %v2221 = vadd.f32 %v1582, %v2069
  %v2222 = vadd.f32 %v1585, %v2072
  %v2223 = vadd.f32 %v1590, %v2077
  %v2224 = vadd.f32 %v1593, %v2080
  %v2225 = vadd.f32 %v1598, %v2085
  %v2226 = vadd.f32 %v1601, %v2088
  %v2227 = vadd.f32 %v1606, %v2093
  %v2228 = vadd.f32 %v1609, %v2096
  %v2229 = vadd.f32 %v1614, %v2101
  %v2230 = vadd.f32 %v1617, %v2104
  %v2231 = vadd.f32 %v1622, %v2109
  %v2232 = vadd.f32 %v1625, %v2112
  %v2233 = vadd.f32 %v1630, %v2117
  %v2234 = vadd.f32 %v1633, %v2120
  %v2235 = vadd.f32 %v1638, %v2125
  %v2236 = vadd.f32 %v1641, %v2128
  %v2237 = vadd.f32 %v1646, %v2133
  %v2238 = vadd.f32 %v1649, %v2136
  %v2239 = vadd.f32 %v1654, %v2141
  %v2240 = vadd.f32 %v1657, %v2144
  %v2241 = vadd.f32 %v1662, %v2149
  %v2242 = vadd.f32 %v1665, %v2152
  %v2243 = vadd.f32 %v1670, %v2157
  %v2244 = vadd.f32 %v1673, %v2160
  %v2245 = vadd.f32 %v1678, %v2165
  %v2246 = vadd.f32 %v1681, %v2168
  %v2247 = vadd.f32 %v1686, %v2173
  %v2248 = vadd.f32 %v1689, %v2176
  %v2249 = vadd.f32 %v1694, %v2181
  %v2250 = vadd.f32 %v1697, %v2184
  %v2251 = vld [vmem:[#allocation4] sm:$0xff]
  %v2252 = vld [vmem:[#allocation4 + $0x8] sm:$0xff]
  %v2253 = vld [vmem:[#allocation4 + $0x10] sm:$0xff]
  %v2254 = vld [vmem:[#allocation4 + $0x18] sm:$0xff]
  %v2255 = vld [vmem:[#allocation4 + $0x20] sm:$0xff]
  %v2256 = vld [vmem:[#allocation4 + $0x28] sm:$0xff]
  %v2257 = vld [vmem:[#allocation4 + $0x30] sm:$0xff]
  %v2258 = vld [vmem:[#allocation4 + $0x38] sm:$0xff]
  %v2259 = vld [vmem:[#allocation4 + $0x48] sm:$0xff]
  %v2260 = vld [vmem:[#allocation4 + $0x50] sm:$0xff]
  %v2261 = vld [vmem:[#allocation4 + $0x58] sm:$0xff]
  %v2262 = vld [vmem:[#allocation4 + $0x60] sm:$0xff]
  %v2263 = vld [vmem:[#allocation4 + $0x68] sm:$0xff]
  %v2264 = vld [vmem:[#allocation4 + $0x70] sm:$0xff]
  %v2265 = vld [vmem:[#allocation4 + $0x78] sm:$0xff]
  %v2266 = vld [vmem:[#allocation4 + $0x80] sm:$0xff]
  %v2267 = vld [vmem:[#allocation4 + $0x90] sm:$0xff]
  %v2268 = vld [vmem:[#allocation4 + $0x98] sm:$0xff]
  %v2269 = vld [vmem:[#allocation4 + $0xa0] sm:$0xff]
  %v2270 = vld [vmem:[#allocation4 + $0xa8] sm:$0xff]
  %v2271 = vld [vmem:[#allocation4 + $0xb0] sm:$0xff]
  %v2272 = vld [vmem:[#allocation4 + $0xb8] sm:$0xff]
  %v2273 = vld [vmem:[#allocation4 + $0xc0] sm:$0xff]
  %v2274 = vld [vmem:[#allocation4 + $0xc8] sm:$0xff]
  %v2275 = vld [vmem:[#allocation4 + $0xd8] sm:$0xff]
  %v2276 = vld [vmem:[#allocation4 + $0xe0] sm:$0xff]
  %v2277 = vld [vmem:[#allocation4 + $0xe8] sm:$0xff]
  %v2278 = vld [vmem:[#allocation4 + $0xf0] sm:$0xff]
  %v2279 = vld [vmem:[#allocation4 + $0xf8] sm:$0xff]
  %v2280 = vld [vmem:[#allocation4 + $0x100] sm:$0xff]
  %v2281 = vld [vmem:[#allocation4 + $0x108] sm:$0xff]
  %v2282 = vld [vmem:[#allocation4 + $0x110] sm:$0xff]
  %v2283 = vld [vmem:[#allocation4 + $0x120] sm:$0xff]
  %v2284 = vld [vmem:[#allocation4 + $0x128] sm:$0xff]
  %v2285 = vld [vmem:[#allocation4 + $0x130] sm:$0xff]
  %v2286 = vld [vmem:[#allocation4 + $0x138] sm:$0xff]
  %v2287 = vld [vmem:[#allocation4 + $0x140] sm:$0xff]
  %v2288 = vld [vmem:[#allocation4 + $0x148] sm:$0xff]
  %v2289 = vld [vmem:[#allocation4 + $0x150] sm:$0xff]
  %v2290 = vld [vmem:[#allocation4 + $0x158] sm:$0xff]
  %v2291 = vld [vmem:[#allocation4 + $0x168] sm:$0xff]
  %v2292 = vld [vmem:[#allocation4 + $0x170] sm:$0xff]
  %v2293 = vld [vmem:[#allocation4 + $0x178] sm:$0xff]
  %v2294 = vld [vmem:[#allocation4 + $0x180] sm:$0xff]
  %v2295 = vld [vmem:[#allocation4 + $0x188] sm:$0xff]
  %v2296 = vld [vmem:[#allocation4 + $0x190] sm:$0xff]
  %v2297 = vld [vmem:[#allocation4 + $0x198] sm:$0xff]
  %v2298 = vld [vmem:[#allocation4 + $0x1a0] sm:$0xff]
  %v2299 = vld [vmem:[#allocation4 + $0x1b0] sm:$0xff]
  %v2300 = vld [vmem:[#allocation4 + $0x1b8] sm:$0xff]
  %v2301 = vld [vmem:[#allocation4 + $0x1c0] sm:$0xff]
  %v2302 = vld [vmem:[#allocation4 + $0x1c8] sm:$0xff]
  %v2303 = vld [vmem:[#allocation4 + $0x1d0] sm:$0xff]
  %v2304 = vld [vmem:[#allocation4 + $0x1d8] sm:$0xff]
  %v2305 = vld [vmem:[#allocation4 + $0x1e0] sm:$0xff]
  %v2306 = vld [vmem:[#allocation4 + $0x1e8] sm:$0xff]
  %v2307 = vld [vmem:[#allocation4 + $0x1f8] sm:$0xff]
  %v2308 = vld [vmem:[#allocation4 + $0x200] sm:$0xff]
  %v2309 = vld [vmem:[#allocation4 + $0x208] sm:$0xff]
  %v2310 = vld [vmem:[#allocation4 + $0x210] sm:$0xff]
  %v2311 = vld [vmem:[#allocation4 + $0x218] sm:$0xff]
  %v2312 = vld [vmem:[#allocation4 + $0x220] sm:$0xff]
  %v2313 = vld [vmem:[#allocation4 + $0x228] sm:$0xff]
  %v2314 = vld [vmem:[#allocation4 + $0x230] sm:$0xff]
  %v2315 = vpack.c.bf16 %v2252, %v2251
  %v2316 = vpack.c.bf16 %v2254, %v2253
  %v2317 = vpack.c.bf16 %v2256, %v2255
  %v2318 = vpack.c.bf16 %v2258, %v2257
  %v2319 = vpack.c.bf16 %v2260, %v2259
  %v2320 = vpack.c.bf16 %v2262, %v2261
  %v2321 = vpack.c.bf16 %v2264, %v2263
  %v2322 = vpack.c.bf16 %v2266, %v2265
  %v2323 = vpack.c.bf16 %v2268, %v2267
  %v2324 = vpack.c.bf16 %v2270, %v2269
  %v2325 = vpack.c.bf16 %v2272, %v2271
  %v2326 = vpack.c.bf16 %v2274, %v2273
  %v2327 = vpack.c.bf16 %v2276, %v2275
  %v2328 = vpack.c.bf16 %v2278, %v2277
  %v2329 = vpack.c.bf16 %v2280, %v2279
  %v2330 = vpack.c.bf16 %v2282, %v2281
  %v2331 = vpack.c.bf16 %v2284, %v2283
  %v2332 = vpack.c.bf16 %v2286, %v2285
  %v2333 = vpack.c.bf16 %v2288, %v2287
  %v2334 = vpack.c.bf16 %v2290, %v2289
  %v2335 = vpack.c.bf16 %v2292, %v2291
  %v2336 = vpack.c.bf16 %v2294, %v2293
  %v2337 = vpack.c.bf16 %v2296, %v2295
  %v2338 = vpack.c.bf16 %v2298, %v2297
  %v2339 = vpack.c.bf16 %v2300, %v2299
  %v2340 = vpack.c.bf16 %v2302, %v2301
  %v2341 = vpack.c.bf16 %v2304, %v2303
  %v2342 = vpack.c.bf16 %v2306, %v2305
  %v2343 = vpack.c.bf16 %v2308, %v2307
  %v2344 = vpack.c.bf16 %v2310, %v2309
  %v2345 = vpack.c.bf16 %v2312, %v2311
  %v2346 = vpack.c.bf16 %v2314, %v2313
  %s2347 = scalar_lea.vmem %s1, 6
  %v2348 = vld [vmem:[%s2347] sm:$0x3]
  %v2350 = vsel %vm41, %v2315, 0
  %v2353 = vsel %vm41, %v2316, 0
  %v2356 = vsel %vm41, %v2317, 0
  %v2359 = vsel %vm41, %v2318, 0
  %v2362 = vsel %vm41, %v2319, 0
  %v2365 = vsel %vm41, %v2320, 0
  %v2368 = vsel %vm41, %v2321, 0
  %v2371 = vsel %vm41, %v2322, 0
  %v2374 = vsel %vm41, %v2323, 0
  %v2377 = vsel %vm41, %v2324, 0
  %v2380 = vsel %vm41, %v2325, 0
  %v2383 = vsel %vm41, %v2326, 0
  %v2386 = vsel %vm41, %v2327, 0
  %v2389 = vsel %vm41, %v2328, 0
  %v2392 = vsel %vm41, %v2329, 0
  %v2395 = vsel %vm41, %v2330, 0
  %v2398 = vsel %vm41, %v2331, 0
  %v2401 = vsel %vm41, %v2332, 0
  %v2404 = vsel %vm41, %v2333, 0
  %v2407 = vsel %vm41, %v2334, 0
  %v2410 = vsel %vm41, %v2335, 0
  %v2413 = vsel %vm41, %v2336, 0
  %v2416 = vsel %vm41, %v2337, 0
  %v2419 = vsel %vm41, %v2338, 0
  %v2422 = vsel %vm41, %v2339, 0
  %v2425 = vsel %vm41, %v2340, 0
  %v2428 = vsel %vm41, %v2341, 0
  %v2431 = vsel %vm41, %v2342, 0
  %v2434 = vsel %vm41, %v2343, 0
  %v2437 = vsel %vm41, %v2344, 0
  %v2440 = vsel %vm41, %v2345, 0
  %v2443 = vsel %vm41, %v2346, 0
  %v2446 = vsel %vm1019, %v2348, 0
  %2448 = vmatprep.subr.bf16.mxu0 0
  %2449 = vmatpush1.bf16.msra.mxu0 %v2446
  %2450 = vmatprep.subr.bf16.mxu0 0
  %2451 = vmatpush1.bf16.msra.mxu0 0
  %2452 = vmatprep.subr.bf16.mxu0 0
  %2453 = vmatpush1.bf16.msra.mxu0 0
  %2454 = vmatprep.subr.bf16.mxu0 0
  %2455 = vmatpush1.bf16.msra.mxu0 0
  %2456 = vmatprep.subr.bf16.mxu0 0
  %2457 = vmatpush1.bf16.msra.mxu0 0
  %2458 = vmatprep.subr.bf16.mxu0 0
  %2459 = vmatpush1.bf16.msra.mxu0 0
  %2460 = vmatprep.subr.bf16.mxu0 0
  %2461 = vmatpush1.bf16.msra.mxu0 0
  %2462 = vmatprep.subr.bf16.mxu0 0
  %2463 = vmatpush1.bf16.msra.mxu0 0
  %2464 = vmatprep.subr.bf16.mxu0 0
  %2465 = vmatpush1.bf16.msra.mxu0 0
  %2466 = vmatprep.subr.bf16.mxu0 0
  %2467 = vmatpush1.bf16.msra.mxu0 0
  %2468 = vmatprep.subr.bf16.mxu0 0
  %2469 = vmatpush1.bf16.msra.mxu0 0
  %2470 = vmatprep.subr.bf16.mxu0 0
  %2471 = vmatpush1.bf16.msra.mxu0 0
  %2472 = vmatprep.subr.bf16.mxu0 0
  %2473 = vmatpush1.bf16.msra.mxu0 0
  %2474 = vmatprep.subr.bf16.mxu0 0
  %2475 = vmatpush1.bf16.msra.mxu0 0
  %2476 = vmatprep.subr.bf16.mxu0 0
  %2477 = vmatpush1.bf16.msra.mxu0 0
  %2478 = vmatprep.subr.bf16.mxu0 0
  %2479 = vmatpush1.bf16.msra.mxu0 0
  %2480 = vmatprep.mubr.bf16.mxu0 0
  %2481 = vmatmul.mubr.bf16.gmra.mrb[0].mxu0 %v2350
  %v2482 = vpop.f32.mrb[0].mxu0
  %v2483 = vadd.f32 0.0, %v2482
  %v2484 = vpop.f32.mrb[0].mxu0
  %v2485 = vpop.f32.mrb[0].mxu0
  %v2486 = vadd.f32 0.0, %v2485
  %v2487 = vpop.f32.mrb[0].mxu0
  %2488 = vmatprep.mubr.bf16.mxu0 0
  %2489 = vmatmul.mubr.bf16.gmra.mrb[0].mxu0 %v2353
  %v2490 = vpop.f32.mrb[0].mxu0
  %v2491 = vadd.f32 0.0, %v2490
  %v2492 = vpop.f32.mrb[0].mxu0
  %v2493 = vpop.f32.mrb[0].mxu0
  %v2494 = vadd.f32 0.0, %v2493
  %v2495 = vpop.f32.mrb[0].mxu0
  %2496 = vmatprep.mubr.bf16.mxu0 0
  %2497 = vmatmul.mubr.bf16.gmra.mrb[0].mxu0 %v2356
  %v2498 = vpop.f32.mrb[0].mxu0
  %v2499 = vadd.f32 0.0, %v2498
  %v2500 = vpop.f32.mrb[0].mxu0
  %v2501 = vpop.f32.mrb[0].mxu0
  %v2502 = vadd.f32 0.0, %v2501
  %v2503 = vpop.f32.mrb[0].mxu0
  %2504 = vmatprep.mubr.bf16.mxu0 0
  %2505 = vmatmul.mubr.bf16.gmra.mrb[0].mxu0 %v2359
  %v2506 = vpop.f32.mrb[0].mxu0
  %v2507 = vadd.f32 0.0, %v2506
  %v2508 = vpop.f32.mrb[0].mxu0
  %v2509 = vpop.f32.mrb[0].mxu0
  %v2510 = vadd.f32 0.0, %v2509
  %v2511 = vpop.f32.mrb[0].mxu0
  %2512 = vmatprep.mubr.bf16.mxu0 0
  %2513 = vmatmul.mubr.bf16.gmra.mrb[0].mxu0 %v2362
  %v2514 = vpop.f32.mrb[0].mxu0
  %v2515 = vadd.f32 0.0, %v2514
  %v2516 = vpop.f32.mrb[0].mxu0
  %v2517 = vpop.f32.mrb[0].mxu0
  %v2518 = vadd.f32 0.0, %v2517
  %v2519 = vpop.f32.mrb[0].mxu0
  %2520 = vmatprep.mubr.bf16.mxu0 0
  %2521 = vmatmul.mubr.bf16.gmra.mrb[0].mxu0 %v2365
  %v2522 = vpop.f32.mrb[0].mxu0
  %v2523 = vadd.f32 0.0, %v2522
  %v2524 = vpop.f32.mrb[0].mxu0
  %v2525 = vpop.f32.mrb[0].mxu0
  %v2526 = vadd.f32 0.0, %v2525
  %v2527 = vpop.f32.mrb[0].mxu0
  %2528 = vmatprep.mubr.bf16.mxu0 0
  %2529 = vmatmul.mubr.bf16.gmra.mrb[0].mxu0 %v2368
  %v2530 = vpop.f32.mrb[0].mxu0
  %v2531 = vadd.f32 0.0, %v2530
  %v2532 = vpop.f32.mrb[0].mxu0
  %v2533 = vpop.f32.mrb[0].mxu0
  %v2534 = vadd.f32 0.0, %v2533
  %v2535 = vpop.f32.mrb[0].mxu0
  %2536 = vmatprep.mubr.bf16.mxu0 0
  %2537 = vmatmul.mubr.bf16.gmra.mrb[0].mxu0 %v2371
  %v2538 = vpop.f32.mrb[0].mxu0
  %v2539 = vadd.f32 0.0, %v2538
  %v2540 = vpop.f32.mrb[0].mxu0
  %v2541 = vpop.f32.mrb[0].mxu0
  %v2542 = vadd.f32 0.0, %v2541
  %v2543 = vpop.f32.mrb[0].mxu0
  %2544 = vmatprep.mubr.bf16.mxu0 0
  %2545 = vmatmul.mubr.bf16.gmra.mrb[0].mxu0 %v2374
  %v2546 = vpop.f32.mrb[0].mxu0
  %v2547 = vadd.f32 0.0, %v2546
  %v2548 = vpop.f32.mrb[0].mxu0
  %v2549 = vpop.f32.mrb[0].mxu0
  %v2550 = vadd.f32 0.0, %v2549
  %v2551 = vpop.f32.mrb[0].mxu0
  %2552 = vmatprep.mubr.bf16.mxu0 0
  %2553 = vmatmul.mubr.bf16.gmra.mrb[0].mxu0 %v2377
  %v2554 = vpop.f32.mrb[0].mxu0
  %v2555 = vadd.f32 0.0, %v2554
  %v2556 = vpop.f32.mrb[0].mxu0
  %v2557 = vpop.f32.mrb[0].mxu0
  %v2558 = vadd.f32 0.0, %v2557
  %v2559 = vpop.f32.mrb[0].mxu0
  %2560 = vmatprep.mubr.bf16.mxu0 0
  %2561 = vmatmul.mubr.bf16.gmra.mrb[0].mxu0 %v2380
  %v2562 = vpop.f32.mrb[0].mxu0
  %v2563 = vadd.f32 0.0, %v2562
  %v2564 = vpop.f32.mrb[0].mxu0
  %v2565 = vpop.f32.mrb[0].mxu0
  %v2566 = vadd.f32 0.0, %v2565
  %v2567 = vpop.f32.mrb[0].mxu0
  %2568 = vmatprep.mubr.bf16.mxu0 0
  %2569 = vmatmul.mubr.bf16.gmra.mrb[0].mxu0 %v2383
  %v2570 = vpop.f32.mrb[0].mxu0
  %v2571 = vadd.f32 0.0, %v2570
  %v2572 = vpop.f32.mrb[0].mxu0
  %v2573 = vpop.f32.mrb[0].mxu0
  %v2574 = vadd.f32 0.0, %v2573
  %v2575 = vpop.f32.mrb[0].mxu0
  %2576 = vmatprep.mubr.bf16.mxu0 0
  %2577 = vmatmul.mubr.bf16.gmra.mrb[0].mxu0 %v2386
  %v2578 = vpop.f32.mrb[0].mxu0
  %v2579 = vadd.f32 0.0, %v2578
  %v2580 = vpop.f32.mrb[0].mxu0
  %v2581 = vpop.f32.mrb[0].mxu0
  %v2582 = vadd.f32 0.0, %v2581
  %v2583 = vpop.f32.mrb[0].mxu0
  %2584 = vmatprep.mubr.bf16.mxu0 0
  %2585 = vmatmul.mubr.bf16.gmra.mrb[0].mxu0 %v2389
  %v2586 = vpop.f32.mrb[0].mxu0
  %v2587 = vadd.f32 0.0, %v2586
  %v2588 = vpop.f32.mrb[0].mxu0
  %v2589 = vpop.f32.mrb[0].mxu0
  %v2590 = vadd.f32 0.0, %v2589
  %v2591 = vpop.f32.mrb[0].mxu0
  %2592 = vmatprep.mubr.bf16.mxu0 0
  %2593 = vmatmul.mubr.bf16.gmra.mrb[0].mxu0 %v2392
  %v2594 = vpop.f32.mrb[0].mxu0
  %v2595 = vadd.f32 0.0, %v2594
  %v2596 = vpop.f32.mrb[0].mxu0
  %v2597 = vpop.f32.mrb[0].mxu0
  %v2598 = vadd.f32 0.0, %v2597
  %v2599 = vpop.f32.mrb[0].mxu0
  %2600 = vmatprep.mubr.bf16.mxu0 0
  %2601 = vmatmul.mubr.bf16.gmra.mrb[0].mxu0 %v2395
  %v2602 = vpop.f32.mrb[0].mxu0
  %v2603 = vadd.f32 0.0, %v2602
  %v2604 = vpop.f32.mrb[0].mxu0
  %v2605 = vpop.f32.mrb[0].mxu0
  %v2606 = vadd.f32 0.0, %v2605
  %v2607 = vpop.f32.mrb[0].mxu0
  %2608 = vmatprep.mubr.bf16.mxu0 0
  %2609 = vmatmul.mubr.bf16.gmra.mrb[0].mxu0 %v2398
  %v2610 = vpop.f32.mrb[0].mxu0
  %v2611 = vadd.f32 0.0, %v2610
  %v2612 = vpop.f32.mrb[0].mxu0
  %v2613 = vpop.f32.mrb[0].mxu0
  %v2614 = vadd.f32 0.0, %v2613
  %v2615 = vpop.f32.mrb[0].mxu0
  %2616 = vmatprep.mubr.bf16.mxu0 0
  %2617 = vmatmul.mubr.bf16.gmra.mrb[0].mxu0 %v2401
  %v2618 = vpop.f32.mrb[0].mxu0
  %v2619 = vadd.f32 0.0, %v2618
  %v2620 = vpop.f32.mrb[0].mxu0
  %v2621 = vpop.f32.mrb[0].mxu0
  %v2622 = vadd.f32 0.0, %v2621
  %v2623 = vpop.f32.mrb[0].mxu0
  %2624 = vmatprep.mubr.bf16.mxu0 0
  %2625 = vmatmul.mubr.bf16.gmra.mrb[0].mxu0 %v2404
  %v2626 = vpop.f32.mrb[0].mxu0
  %v2627 = vadd.f32 0.0, %v2626
  %v2628 = vpop.f32.mrb[0].mxu0
  %v2629 = vpop.f32.mrb[0].mxu0
  %v2630 = vadd.f32 0.0, %v2629
  %v2631 = vpop.f32.mrb[0].mxu0
  %2632 = vmatprep.mubr.bf16.mxu0 0
  %2633 = vmatmul.mubr.bf16.gmra.mrb[0].mxu0 %v2407
  %v2634 = vpop.f32.mrb[0].mxu0
  %v2635 = vadd.f32 0.0, %v2634
  %v2636 = vpop.f32.mrb[0].mxu0
  %v2637 = vpop.f32.mrb[0].mxu0
  %v2638 = vadd.f32 0.0, %v2637
  %v2639 = vpop.f32.mrb[0].mxu0
  %2640 = vmatprep.mubr.bf16.mxu0 0
  %2641 = vmatmul.mubr.bf16.gmra.mrb[0].mxu0 %v2410
  %v2642 = vpop.f32.mrb[0].mxu0
  %v2643 = vadd.f32 0.0, %v2642
  %v2644 = vpop.f32.mrb[0].mxu0
  %v2645 = vpop.f32.mrb[0].mxu0
  %v2646 = vadd.f32 0.0, %v2645
  %v2647 = vpop.f32.mrb[0].mxu0
  %2648 = vmatprep.mubr.bf16.mxu0 0
  %2649 = vmatmul.mubr.bf16.gmra.mrb[0].mxu0 %v2413
  %v2650 = vpop.f32.mrb[0].mxu0
  %v2651 = vadd.f32 0.0, %v2650
  %v2652 = vpop.f32.mrb[0].mxu0
  %v2653 = vpop.f32.mrb[0].mxu0
  %v2654 = vadd.f32 0.0, %v2653
  %v2655 = vpop.f32.mrb[0].mxu0
  %2656 = vmatprep.mubr.bf16.mxu0 0
  %2657 = vmatmul.mubr.bf16.gmra.mrb[0].mxu0 %v2416
  %v2658 = vpop.f32.mrb[0].mxu0
  %v2659 = vadd.f32 0.0, %v2658
  %v2660 = vpop.f32.mrb[0].mxu0
  %v2661 = vpop.f32.mrb[0].mxu0
  %v2662 = vadd.f32 0.0, %v2661
  %v2663 = vpop.f32.mrb[0].mxu0
  %2664 = vmatprep.mubr.bf16.mxu0 0
  %2665 = vmatmul.mubr.bf16.gmra.mrb[0].mxu0 %v2419
  %v2666 = vpop.f32.mrb[0].mxu0
  %v2667 = vadd.f32 0.0, %v2666
  %v2668 = vpop.f32.mrb[0].mxu0
  %v2669 = vpop.f32.mrb[0].mxu0
  %v2670 = vadd.f32 0.0, %v2669
  %v2671 = vpop.f32.mrb[0].mxu0
  %2672 = vmatprep.mubr.bf16.mxu0 0
  %2673 = vmatmul.mubr.bf16.gmra.mrb[0].mxu0 %v2422
  %v2674 = vpop.f32.mrb[0].mxu0
  %v2675 = vadd.f32 0.0, %v2674
  %v2676 = vpop.f32.mrb[0].mxu0
  %v2677 = vpop.f32.mrb[0].mxu0
  %v2678 = vadd.f32 0.0, %v2677
  %v2679 = vpop.f32.mrb[0].mxu0
  %2680 = vmatprep.mubr.bf16.mxu0 0
  %2681 = vmatmul.mubr.bf16.gmra.mrb[0].mxu0 %v2425
  %v2682 = vpop.f32.mrb[0].mxu0
  %v2683 = vadd.f32 0.0, %v2682
  %v2684 = vpop.f32.mrb[0].mxu0
  %v2685 = vpop.f32.mrb[0].mxu0
  %v2686 = vadd.f32 0.0, %v2685
  %v2687 = vpop.f32.mrb[0].mxu0
  %2688 = vmatprep.mubr.bf16.mxu0 0
  %2689 = vmatmul.mubr.bf16.gmra.mrb[0].mxu0 %v2428
  %v2690 = vpop.f32.mrb[0].mxu0
  %v2691 = vadd.f32 0.0, %v2690
  %v2692 = vpop.f32.mrb[0].mxu0
  %v2693 = vpop.f32.mrb[0].mxu0
  %v2694 = vadd.f32 0.0, %v2693
  %v2695 = vpop.f32.mrb[0].mxu0
  %2696 = vmatprep.mubr.bf16.mxu0 0
  %2697 = vmatmul.mubr.bf16.gmra.mrb[0].mxu0 %v2431
  %v2698 = vpop.f32.mrb[0].mxu0
  %v2699 = vadd.f32 0.0, %v2698
  %v2700 = vpop.f32.mrb[0].mxu0
  %v2701 = vpop.f32.mrb[0].mxu0
  %v2702 = vadd.f32 0.0, %v2701
  %v2703 = vpop.f32.mrb[0].mxu0
  %2704 = vmatprep.mubr.bf16.mxu0 0
  %2705 = vmatmul.mubr.bf16.gmra.mrb[0].mxu0 %v2434
  %v2706 = vpop.f32.mrb[0].mxu0
  %v2707 = vadd.f32 0.0, %v2706
  %v2708 = vpop.f32.mrb[0].mxu0
  %v2709 = vpop.f32.mrb[0].mxu0
  %v2710 = vadd.f32 0.0, %v2709
  %v2711 = vpop.f32.mrb[0].mxu0
  %2712 = vmatprep.mubr.bf16.mxu0 0
  %2713 = vmatmul.mubr.bf16.gmra.mrb[0].mxu0 %v2437
  %v2714 = vpop.f32.mrb[0].mxu0
  %v2715 = vadd.f32 0.0, %v2714
  %v2716 = vpop.f32.mrb[0].mxu0
  %v2717 = vpop.f32.mrb[0].mxu0
  %v2718 = vadd.f32 0.0, %v2717
  %v2719 = vpop.f32.mrb[0].mxu0
  %2720 = vmatprep.mubr.bf16.mxu0 0
  %2721 = vmatmul.mubr.bf16.gmra.mrb[0].mxu0 %v2440
  %v2722 = vpop.f32.mrb[0].mxu0
  %v2723 = vadd.f32 0.0, %v2722
  %v2724 = vpop.f32.mrb[0].mxu0
  %v2725 = vpop.f32.mrb[0].mxu0
  %v2726 = vadd.f32 0.0, %v2725
  %v2727 = vpop.f32.mrb[0].mxu0
  %2728 = vmatprep.mubr.bf16.mxu0 0
  %2729 = vmatmul.mubr.bf16.gmra.mrb[0].mxu0 %v2443
  %v2730 = vpop.f32.mrb[0].mxu0
  %v2731 = vadd.f32 0.0, %v2730
  %v2732 = vpop.f32.mrb[0].mxu0
  %v2733 = vpop.f32.mrb[0].mxu0
  %v2734 = vadd.f32 0.0, %v2733
  %v2735 = vpop.f32.mrb[0].mxu0
  %2736 = vdwg.mxu0
  %v2737 = vadd.f32 %v2187, %v2483
  %v2738 = vadd.f32 %v2188, %v2486
  %v2739 = vadd.f32 %v2189, %v2491
  %v2740 = vadd.f32 %v2190, %v2494
  %v2741 = vadd.f32 %v2191, %v2499
  %v2742 = vadd.f32 %v2192, %v2502
  %v2743 = vadd.f32 %v2193, %v2507
  %v2744 = vadd.f32 %v2194, %v2510
  %v2745 = vadd.f32 %v2195, %v2515
  %v2746 = vadd.f32 %v2196, %v2518
  %v2747 = vadd.f32 %v2197, %v2523
  %v2748 = vadd.f32 %v2198, %v2526
  %v2749 = vadd.f32 %v2199, %v2531
  %v2750 = vadd.f32 %v2200, %v2534
  %v2751 = vadd.f32 %v2201, %v2539
  %v2752 = vadd.f32 %v2202, %v2542
  %v2753 = vadd.f32 %v2203, %v2547
  %v2754 = vadd.f32 %v2204, %v2550
  %v2755 = vadd.f32 %v2205, %v2555
  %v2756 = vadd.f32 %v2206, %v2558
  %v2757 = vadd.f32 %v2207, %v2563
  %v2758 = vadd.f32 %v2208, %v2566
  %v2759 = vadd.f32 %v2209, %v2571
  %v2760 = vadd.f32 %v2210, %v2574
  %v2761 = vadd.f32 %v2211, %v2579
  %v2762 = vadd.f32 %v2212, %v2582
  %v2763 = vadd.f32 %v2213, %v2587
  %v2764 = vadd.f32 %v2214, %v2590
  %v2765 = vadd.f32 %v2215, %v2595
  %v2766 = vadd.f32 %v2216, %v2598
  %v2767 = vadd.f32 %v2217, %v2603
  %v2768 = vadd.f32 %v2218, %v2606
  %v2769 = vadd.f32 %v2219, %v2611
  %v2770 = vadd.f32 %v2220, %v2614
  %v2771 = vadd.f32 %v2221, %v2619
  %v2772 = vadd.f32 %v2222, %v2622
  %v2773 = vadd.f32 %v2223, %v2627
  %v2774 = vadd.f32 %v2224, %v2630
  %v2775 = vadd.f32 %v2225, %v2635
  %v2776 = vadd.f32 %v2226, %v2638
  %v2777 = vadd.f32 %v2227, %v2643
  %v2778 = vadd.f32 %v2228, %v2646
  %v2779 = vadd.f32 %v2229, %v2651
  %v2780 = vadd.f32 %v2230, %v2654
  %v2781 = vadd.f32 %v2231, %v2659
  %v2782 = vadd.f32 %v2232, %v2662
  %v2783 = vadd.f32 %v2233, %v2667
  %v2784 = vadd.f32 %v2234, %v2670
  %v2785 = vadd.f32 %v2235, %v2675
  %v2786 = vadd.f32 %v2236, %v2678
  %v2787 = vadd.f32 %v2237, %v2683
  %v2788 = vadd.f32 %v2238, %v2686
  %v2789 = vadd.f32 %v2239, %v2691
  %v2790 = vadd.f32 %v2240, %v2694
  %v2791 = vadd.f32 %v2241, %v2699
  %v2792 = vadd.f32 %v2242, %v2702
  %v2793 = vadd.f32 %v2243, %v2707
  %v2794 = vadd.f32 %v2244, %v2710
  %v2795 = vadd.f32 %v2245, %v2715
  %v2796 = vadd.f32 %v2246, %v2718
  %v2797 = vadd.f32 %v2247, %v2723
  %v2798 = vadd.f32 %v2248, %v2726
  %v2799 = vadd.f32 %v2249, %v2731
  %v2800 = vadd.f32 %v2250, %v2734
  %v2801 = vld [vmem:[#allocation5] sm:$0xff]
  %v2802 = vld [vmem:[#allocation5 + $0x8] sm:$0xff]
  %v2803 = vld [vmem:[#allocation5 + $0x10] sm:$0xff]
  %v2804 = vld [vmem:[#allocation5 + $0x18] sm:$0xff]
  %v2805 = vld [vmem:[#allocation5 + $0x20] sm:$0xff]
  %v2806 = vld [vmem:[#allocation5 + $0x28] sm:$0xff]
  %v2807 = vld [vmem:[#allocation5 + $0x30] sm:$0xff]
  %v2808 = vld [vmem:[#allocation5 + $0x38] sm:$0xff]
  %v2809 = vld [vmem:[#allocation5 + $0x48] sm:$0xff]
  %v2810 = vld [vmem:[#allocation5 + $0x50] sm:$0xff]
  %v2811 = vld [vmem:[#allocation5 + $0x58] sm:$0xff]
  %v2812 = vld [vmem:[#allocation5 + $0x60] sm:$0xff]
  %v2813 = vld [vmem:[#allocation5 + $0x68] sm:$0xff]
  %v2814 = vld [vmem:[#allocation5 + $0x70] sm:$0xff]
  %v2815 = vld [vmem:[#allocation5 + $0x78] sm:$0xff]
  %v2816 = vld [vmem:[#allocation5 + $0x80] sm:$0xff]
  %v2817 = vld [vmem:[#allocation5 + $0x90] sm:$0xff]
  %v2818 = vld [vmem:[#allocation5 + $0x98] sm:$0xff]
  %v2819 = vld [vmem:[#allocation5 + $0xa0] sm:$0xff]
  %v2820 = vld [vmem:[#allocation5 + $0xa8] sm:$0xff]
  %v2821 = vld [vmem:[#allocation5 + $0xb0] sm:$0xff]
  %v2822 = vld [vmem:[#allocation5 + $0xb8] sm:$0xff]
  %v2823 = vld [vmem:[#allocation5 + $0xc0] sm:$0xff]
  %v2824 = vld [vmem:[#allocation5 + $0xc8] sm:$0xff]
  %v2825 = vld [vmem:[#allocation5 + $0xd8] sm:$0xff]
  %v2826 = vld [vmem:[#allocation5 + $0xe0] sm:$0xff]
  %v2827 = vld [vmem:[#allocation5 + $0xe8] sm:$0xff]
  %v2828 = vld [vmem:[#allocation5 + $0xf0] sm:$0xff]
  %v2829 = vld [vmem:[#allocation5 + $0xf8] sm:$0xff]
  %v2830 = vld [vmem:[#allocation5 + $0x100] sm:$0xff]
  %v2831 = vld [vmem:[#allocation5 + $0x108] sm:$0xff]
  %v2832 = vld [vmem:[#allocation5 + $0x110] sm:$0xff]
  %v2833 = vld [vmem:[#allocation5 + $0x120] sm:$0xff]
  %v2834 = vld [vmem:[#allocation5 + $0x128] sm:$0xff]
  %v2835 = vld [vmem:[#allocation5 + $0x130] sm:$0xff]
  %v2836 = vld [vmem:[#allocation5 + $0x138] sm:$0xff]
  %v2837 = vld [vmem:[#allocation5 + $0x140] sm:$0xff]
  %v2838 = vld [vmem:[#allocation5 + $0x148] sm:$0xff]
  %v2839 = vld [vmem:[#allocation5 + $0x150] sm:$0xff]
  %v2840 = vld [vmem:[#allocation5 + $0x158] sm:$0xff]
  %v2841 = vld [vmem:[#allocation5 + $0x168] sm:$0xff]
  %v2842 = vld [vmem:[#allocation5 + $0x170] sm:$0xff]
  %v2843 = vld [vmem:[#allocation5 + $0x178] sm:$0xff]
  %v2844 = vld [vmem:[#allocation5 + $0x180] sm:$0xff]
  %v2845 = vld [vmem:[#allocation5 + $0x188] sm:$0xff]
  %v2846 = vld [vmem:[#allocation5 + $0x190] sm:$0xff]
  %v2847 = vld [vmem:[#allocation5 + $0x198] sm:$0xff]
  %v2848 = vld [vmem:[#allocation5 + $0x1a0] sm:$0xff]
  %v2849 = vld [vmem:[#allocation5 + $0x1b0] sm:$0xff]
  %v2850 = vld [vmem:[#allocation5 + $0x1b8] sm:$0xff]
  %v2851 = vld [vmem:[#allocation5 + $0x1c0] sm:$0xff]
  %v2852 = vld [vmem:[#allocation5 + $0x1c8] sm:$0xff]
  %v2853 = vld [vmem:[#allocation5 + $0x1d0] sm:$0xff]
  %v2854 = vld [vmem:[#allocation5 + $0x1d8] sm:$0xff]
  %v2855 = vld [vmem:[#allocation5 + $0x1e0] sm:$0xff]
  %v2856 = vld [vmem:[#allocation5 + $0x1e8] sm:$0xff]
  %v2857 = vld [vmem:[#allocation5 + $0x1f8] sm:$0xff]
  %v2858 = vld [vmem:[#allocation5 + $0x200] sm:$0xff]
  %v2859 = vld [vmem:[#allocation5 + $0x208] sm:$0xff]
  %v2860 = vld [vmem:[#allocation5 + $0x210] sm:$0xff]
  %v2861 = vld [vmem:[#allocation5 + $0x218] sm:$0xff]
  %v2862 = vld [vmem:[#allocation5 + $0x220] sm:$0xff]
  %v2863 = vld [vmem:[#allocation5 + $0x228] sm:$0xff]
  %v2864 = vld [vmem:[#allocation5 + $0x230] sm:$0xff]
  %v2865 = vpack.c.bf16 %v2802, %v2801
  %v2866 = vpack.c.bf16 %v2804, %v2803
  %v2867 = vpack.c.bf16 %v2806, %v2805
  %v2868 = vpack.c.bf16 %v2808, %v2807
  %v2869 = vpack.c.bf16 %v2810, %v2809
  %v2870 = vpack.c.bf16 %v2812, %v2811
  %v2871 = vpack.c.bf16 %v2814, %v2813
  %v2872 = vpack.c.bf16 %v2816, %v2815
  %v2873 = vpack.c.bf16 %v2818, %v2817
  %v2874 = vpack.c.bf16 %v2820, %v2819
  %v2875 = vpack.c.bf16 %v2822, %v2821
  %v2876 = vpack.c.bf16 %v2824, %v2823
  %v2877 = vpack.c.bf16 %v2826, %v2825
  %v2878 = vpack.c.bf16 %v2828, %v2827
  %v2879 = vpack.c.bf16 %v2830, %v2829
  %v2880 = vpack.c.bf16 %v2832, %v2831
  %v2881 = vpack.c.bf16 %v2834, %v2833
  %v2882 = vpack.c.bf16 %v2836, %v2835
  %v2883 = vpack.c.bf16 %v2838, %v2837
  %v2884 = vpack.c.bf16 %v2840, %v2839
  %v2885 = vpack.c.bf16 %v2842, %v2841
  %v2886 = vpack.c.bf16 %v2844, %v2843
  %v2887 = vpack.c.bf16 %v2846, %v2845
  %v2888 = vpack.c.bf16 %v2848, %v2847
  %v2889 = vpack.c.bf16 %v2850, %v2849
  %v2890 = vpack.c.bf16 %v2852, %v2851
  %v2891 = vpack.c.bf16 %v2854, %v2853
  %v2892 = vpack.c.bf16 %v2856, %v2855
  %v2893 = vpack.c.bf16 %v2858, %v2857
  %v2894 = vpack.c.bf16 %v2860, %v2859
  %v2895 = vpack.c.bf16 %v2862, %v2861
  %v2896 = vpack.c.bf16 %v2864, %v2863
  %s2897 = scalar_lea.vmem %s1, 8
  %v2898 = vld [vmem:[%s2897] sm:$0x3]
  %v2900 = vsel %vm41, %v2865, 0
  %v2903 = vsel %vm41, %v2866, 0
  %v2906 = vsel %vm41, %v2867, 0
  %v2909 = vsel %vm41, %v2868, 0
  %v2912 = vsel %vm41, %v2869, 0
  %v2915 = vsel %vm41, %v2870, 0
  %v2918 = vsel %vm41, %v2871, 0
  %v2921 = vsel %vm41, %v2872, 0
  %v2924 = vsel %vm41, %v2873, 0
  %v2927 = vsel %vm41, %v2874, 0
  %v2930 = vsel %vm41, %v2875, 0
  %v2933 = vsel %vm41, %v2876, 0
  %v2936 = vsel %vm41, %v2877, 0
  %v2939 = vsel %vm41, %v2878, 0
  %v2942 = vsel %vm41, %v2879, 0
  %v2945 = vsel %vm41, %v2880, 0
  %v2948 = vsel %vm41, %v2881, 0
  %v2951 = vsel %vm41, %v2882, 0
  %v2954 = vsel %vm41, %v2883, 0
  %v2957 = vsel %vm41, %v2884, 0
  %v2960 = vsel %vm41, %v2885, 0
  %v2963 = vsel %vm41, %v2886, 0
  %v2966 = vsel %vm41, %v2887, 0
  %v2969 = vsel %vm41, %v2888, 0
  %v2972 = vsel %vm41, %v2889, 0
  %v2975 = vsel %vm41, %v2890, 0
  %v2978 = vsel %vm41, %v2891, 0
  %v2981 = vsel %vm41, %v2892, 0
  %v2984 = vsel %vm41, %v2893, 0
  %v2987 = vsel %vm41, %v2894, 0
  %v2990 = vsel %vm41, %v2895, 0
  %v2993 = vsel %vm41, %v2896, 0
  %v2996 = vsel %vm1019, %v2898, 0
  %2998 = vmatprep.subr.bf16.mxu0 0
  %2999 = vmatpush1.bf16.msra.mxu0 %v2996
  %3000 = vmatprep.subr.bf16.mxu0 0
  %3001 = vmatpush1.bf16.msra.mxu0 0
  %3002 = vmatprep.subr.bf16.mxu0 0
  %3003 = vmatpush1.bf16.msra.mxu0 0
  %3004 = vmatprep.subr.bf16.mxu0 0
  %3005 = vmatpush1.bf16.msra.mxu0 0
  %3006 = vmatprep.subr.bf16.mxu0 0
  %3007 = vmatpush1.bf16.msra.mxu0 0
  %3008 = vmatprep.subr.bf16.mxu0 0
  %3009 = vmatpush1.bf16.msra.mxu0 0
  %3010 = vmatprep.subr.bf16.mxu0 0
  %3011 = vmatpush1.bf16.msra.mxu0 0
  %3012 = vmatprep.subr.bf16.mxu0 0
  %3013 = vmatpush1.bf16.msra.mxu0 0
  %3014 = vmatprep.subr.bf16.mxu0 0
  %3015 = vmatpush1.bf16.msra.mxu0 0
  %3016 = vmatprep.subr.bf16.mxu0 0
  %3017 = vmatpush1.bf16.msra.mxu0 0
  %3018 = vmatprep.subr.bf16.mxu0 0
  %3019 = vmatpush1.bf16.msra.mxu0 0
  %3020 = vmatprep.subr.bf16.mxu0 0
  %3021 = vmatpush1.bf16.msra.mxu0 0
  %3022 = vmatprep.subr.bf16.mxu0 0
  %3023 = vmatpush1.bf16.msra.mxu0 0
  %3024 = vmatprep.subr.bf16.mxu0 0
  %3025 = vmatpush1.bf16.msra.mxu0 0
  %3026 = vmatprep.subr.bf16.mxu0 0
  %3027 = vmatpush1.bf16.msra.mxu0 0
  %3028 = vmatprep.subr.bf16.mxu0 0
  %3029 = vmatpush1.bf16.msra.mxu0 0
  %3030 = vmatprep.mubr.bf16.mxu0 0
  %3031 = vmatmul.mubr.bf16.gmra.mrb[0].mxu0 %v2900
  %v3032 = vpop.f32.mrb[0].mxu0
  %v3033 = vadd.f32 0.0, %v3032
  %v3034 = vpop.f32.mrb[0].mxu0
  %v3035 = vpop.f32.mrb[0].mxu0
  %v3036 = vadd.f32 0.0, %v3035
  %v3037 = vpop.f32.mrb[0].mxu0
  %3038 = vmatprep.mubr.bf16.mxu0 0
  %3039 = vmatmul.mubr.bf16.gmra.mrb[0].mxu0 %v2903
  %v3040 = vpop.f32.mrb[0].mxu0
  %v3041 = vadd.f32 0.0, %v3040
  %v3042 = vpop.f32.mrb[0].mxu0
  %v3043 = vpop.f32.mrb[0].mxu0
  %v3044 = vadd.f32 0.0, %v3043
  %v3045 = vpop.f32.mrb[0].mxu0
  %3046 = vmatprep.mubr.bf16.mxu0 0
  %3047 = vmatmul.mubr.bf16.gmra.mrb[0].mxu0 %v2906
  %v3048 = vpop.f32.mrb[0].mxu0
  %v3049 = vadd.f32 0.0, %v3048
  %v3050 = vpop.f32.mrb[0].mxu0
  %v3051 = vpop.f32.mrb[0].mxu0
  %v3052 = vadd.f32 0.0, %v3051
  %v3053 = vpop.f32.mrb[0].mxu0
  %3054 = vmatprep.mubr.bf16.mxu0 0
  %3055 = vmatmul.mubr.bf16.gmra.mrb[0].mxu0 %v2909
  %v3056 = vpop.f32.mrb[0].mxu0
  %v3057 = vadd.f32 0.0, %v3056
  %v3058 = vpop.f32.mrb[0].mxu0
  %v3059 = vpop.f32.mrb[0].mxu0
  %v3060 = vadd.f32 0.0, %v3059
  %v3061 = vpop.f32.mrb[0].mxu0
  %3062 = vmatprep.mubr.bf16.mxu0 0
  %3063 = vmatmul.mubr.bf16.gmra.mrb[0].mxu0 %v2912
  %v3064 = vpop.f32.mrb[0].mxu0
  %v3065 = vadd.f32 0.0, %v3064
  %v3066 = vpop.f32.mrb[0].mxu0
  %v3067 = vpop.f32.mrb[0].mxu0
  %v3068 = vadd.f32 0.0, %v3067
  %v3069 = vpop.f32.mrb[0].mxu0
  %3070 = vmatprep.mubr.bf16.mxu0 0
  %3071 = vmatmul.mubr.bf16.gmra.mrb[0].mxu0 %v2915
  %v3072 = vpop.f32.mrb[0].mxu0
  %v3073 = vadd.f32 0.0, %v3072
  %v3074 = vpop.f32.mrb[0].mxu0
  %v3075 = vpop.f32.mrb[0].mxu0
  %v3076 = vadd.f32 0.0, %v3075
  %v3077 = vpop.f32.mrb[0].mxu0
  %3078 = vmatprep.mubr.bf16.mxu0 0
  %3079 = vmatmul.mubr.bf16.gmra.mrb[0].mxu0 %v2918
  %v3080 = vpop.f32.mrb[0].mxu0
  %v3081 = vadd.f32 0.0, %v3080
  %v3082 = vpop.f32.mrb[0].mxu0
  %v3083 = vpop.f32.mrb[0].mxu0
  %v3084 = vadd.f32 0.0, %v3083
  %v3085 = vpop.f32.mrb[0].mxu0
  %3086 = vmatprep.mubr.bf16.mxu0 0
  %3087 = vmatmul.mubr.bf16.gmra.mrb[0].mxu0 %v2921
  %v3088 = vpop.f32.mrb[0].mxu0
  %v3089 = vadd.f32 0.0, %v3088
  %v3090 = vpop.f32.mrb[0].mxu0
  %v3091 = vpop.f32.mrb[0].mxu0
  %v3092 = vadd.f32 0.0, %v3091
  %v3093 = vpop.f32.mrb[0].mxu0
  %3094 = vmatprep.mubr.bf16.mxu0 0
  %3095 = vmatmul.mubr.bf16.gmra.mrb[0].mxu0 %v2924
  %v3096 = vpop.f32.mrb[0].mxu0
  %v3097 = vadd.f32 0.0, %v3096
  %v3098 = vpop.f32.mrb[0].mxu0
  %v3099 = vpop.f32.mrb[0].mxu0
  %v3100 = vadd.f32 0.0, %v3099
  %v3101 = vpop.f32.mrb[0].mxu0
  %3102 = vmatprep.mubr.bf16.mxu0 0
  %3103 = vmatmul.mubr.bf16.gmra.mrb[0].mxu0 %v2927
  %v3104 = vpop.f32.mrb[0].mxu0
  %v3105 = vadd.f32 0.0, %v3104
  %v3106 = vpop.f32.mrb[0].mxu0
  %v3107 = vpop.f32.mrb[0].mxu0
  %v3108 = vadd.f32 0.0, %v3107
  %v3109 = vpop.f32.mrb[0].mxu0
  %3110 = vmatprep.mubr.bf16.mxu0 0
  %3111 = vmatmul.mubr.bf16.gmra.mrb[0].mxu0 %v2930
  %v3112 = vpop.f32.mrb[0].mxu0
  %v3113 = vadd.f32 0.0, %v3112
  %v3114 = vpop.f32.mrb[0].mxu0
  %v3115 = vpop.f32.mrb[0].mxu0
  %v3116 = vadd.f32 0.0, %v3115
  %v3117 = vpop.f32.mrb[0].mxu0
  %3118 = vmatprep.mubr.bf16.mxu0 0
  %3119 = vmatmul.mubr.bf16.gmra.mrb[0].mxu0 %v2933
  %v3120 = vpop.f32.mrb[0].mxu0
  %v3121 = vadd.f32 0.0, %v3120
  %v3122 = vpop.f32.mrb[0].mxu0
  %v3123 = vpop.f32.mrb[0].mxu0
  %v3124 = vadd.f32 0.0, %v3123
  %v3125 = vpop.f32.mrb[0].mxu0
  %3126 = vmatprep.mubr.bf16.mxu0 0
  %3127 = vmatmul.mubr.bf16.gmra.mrb[0].mxu0 %v2936
  %v3128 = vpop.f32.mrb[0].mxu0
  %v3129 = vadd.f32 0.0, %v3128
  %v3130 = vpop.f32.mrb[0].mxu0
  %v3131 = vpop.f32.mrb[0].mxu0
  %v3132 = vadd.f32 0.0, %v3131
  %v3133 = vpop.f32.mrb[0].mxu0
  %3134 = vmatprep.mubr.bf16.mxu0 0
  %3135 = vmatmul.mubr.bf16.gmra.mrb[0].mxu0 %v2939
  %v3136 = vpop.f32.mrb[0].mxu0
  %v3137 = vadd.f32 0.0, %v3136
  %v3138 = vpop.f32.mrb[0].mxu0
  %v3139 = vpop.f32.mrb[0].mxu0
  %v3140 = vadd.f32 0.0, %v3139
  %v3141 = vpop.f32.mrb[0].mxu0
  %3142 = vmatprep.mubr.bf16.mxu0 0
  %3143 = vmatmul.mubr.bf16.gmra.mrb[0].mxu0 %v2942
  %v3144 = vpop.f32.mrb[0].mxu0
  %v3145 = vadd.f32 0.0, %v3144
  %v3146 = vpop.f32.mrb[0].mxu0
  %v3147 = vpop.f32.mrb[0].mxu0
  %v3148 = vadd.f32 0.0, %v3147
  %v3149 = vpop.f32.mrb[0].mxu0
  %3150 = vmatprep.mubr.bf16.mxu0 0
  %3151 = vmatmul.mubr.bf16.gmra.mrb[0].mxu0 %v2945
  %v3152 = vpop.f32.mrb[0].mxu0
  %v3153 = vadd.f32 0.0, %v3152
  %v3154 = vpop.f32.mrb[0].mxu0
  %v3155 = vpop.f32.mrb[0].mxu0
  %v3156 = vadd.f32 0.0, %v3155
  %v3157 = vpop.f32.mrb[0].mxu0
  %3158 = vmatprep.mubr.bf16.mxu0 0
  %3159 = vmatmul.mubr.bf16.gmra.mrb[0].mxu0 %v2948
  %v3160 = vpop.f32.mrb[0].mxu0
  %v3161 = vadd.f32 0.0, %v3160
  %v3162 = vpop.f32.mrb[0].mxu0
  %v3163 = vpop.f32.mrb[0].mxu0
  %v3164 = vadd.f32 0.0, %v3163
  %v3165 = vpop.f32.mrb[0].mxu0
  %3166 = vmatprep.mubr.bf16.mxu0 0
  %3167 = vmatmul.mubr.bf16.gmra.mrb[0].mxu0 %v2951
  %v3168 = vpop.f32.mrb[0].mxu0
  %v3169 = vadd.f32 0.0, %v3168
  %v3170 = vpop.f32.mrb[0].mxu0
  %v3171 = vpop.f32.mrb[0].mxu0
  %v3172 = vadd.f32 0.0, %v3171
  %v3173 = vpop.f32.mrb[0].mxu0
  %3174 = vmatprep.mubr.bf16.mxu0 0
  %3175 = vmatmul.mubr.bf16.gmra.mrb[0].mxu0 %v2954
  %v3176 = vpop.f32.mrb[0].mxu0
  %v3177 = vadd.f32 0.0, %v3176
  %v3178 = vpop.f32.mrb[0].mxu0
  %v3179 = vpop.f32.mrb[0].mxu0
  %v3180 = vadd.f32 0.0, %v3179
  %v3181 = vpop.f32.mrb[0].mxu0
  %3182 = vmatprep.mubr.bf16.mxu0 0
  %3183 = vmatmul.mubr.bf16.gmra.mrb[0].mxu0 %v2957
  %v3184 = vpop.f32.mrb[0].mxu0
  %v3185 = vadd.f32 0.0, %v3184
  %v3186 = vpop.f32.mrb[0].mxu0
  %v3187 = vpop.f32.mrb[0].mxu0
  %v3188 = vadd.f32 0.0, %v3187
  %v3189 = vpop.f32.mrb[0].mxu0
  %3190 = vmatprep.mubr.bf16.mxu0 0
  %3191 = vmatmul.mubr.bf16.gmra.mrb[0].mxu0 %v2960
  %v3192 = vpop.f32.mrb[0].mxu0
  %v3193 = vadd.f32 0.0, %v3192
  %v3194 = vpop.f32.mrb[0].mxu0
  %v3195 = vpop.f32.mrb[0].mxu0
  %v3196 = vadd.f32 0.0, %v3195
  %v3197 = vpop.f32.mrb[0].mxu0
  %3198 = vmatprep.mubr.bf16.mxu0 0
  %3199 = vmatmul.mubr.bf16.gmra.mrb[0].mxu0 %v2963
  %v3200 = vpop.f32.mrb[0].mxu0
  %v3201 = vadd.f32 0.0, %v3200
  %v3202 = vpop.f32.mrb[0].mxu0
  %v3203 = vpop.f32.mrb[0].mxu0
  %v3204 = vadd.f32 0.0, %v3203
  %v3205 = vpop.f32.mrb[0].mxu0
  %3206 = vmatprep.mubr.bf16.mxu0 0
  %3207 = vmatmul.mubr.bf16.gmra.mrb[0].mxu0 %v2966
  %v3208 = vpop.f32.mrb[0].mxu0
  %v3209 = vadd.f32 0.0, %v3208
  %v3210 = vpop.f32.mrb[0].mxu0
  %v3211 = vpop.f32.mrb[0].mxu0
  %v3212 = vadd.f32 0.0, %v3211
  %v3213 = vpop.f32.mrb[0].mxu0
  %3214 = vmatprep.mubr.bf16.mxu0 0
  %3215 = vmatmul.mubr.bf16.gmra.mrb[0].mxu0 %v2969
  %v3216 = vpop.f32.mrb[0].mxu0
  %v3217 = vadd.f32 0.0, %v3216
  %v3218 = vpop.f32.mrb[0].mxu0
  %v3219 = vpop.f32.mrb[0].mxu0
  %v3220 = vadd.f32 0.0, %v3219
  %v3221 = vpop.f32.mrb[0].mxu0
  %3222 = vmatprep.mubr.bf16.mxu0 0
  %3223 = vmatmul.mubr.bf16.gmra.mrb[0].mxu0 %v2972
  %v3224 = vpop.f32.mrb[0].mxu0
  %v3225 = vadd.f32 0.0, %v3224
  %v3226 = vpop.f32.mrb[0].mxu0
  %v3227 = vpop.f32.mrb[0].mxu0
  %v3228 = vadd.f32 0.0, %v3227
  %v3229 = vpop.f32.mrb[0].mxu0
  %3230 = vmatprep.mubr.bf16.mxu0 0
  %3231 = vmatmul.mubr.bf16.gmra.mrb[0].mxu0 %v2975
  %v3232 = vpop.f32.mrb[0].mxu0
  %v3233 = vadd.f32 0.0, %v3232
  %v3234 = vpop.f32.mrb[0].mxu0
  %v3235 = vpop.f32.mrb[0].mxu0
  %v3236 = vadd.f32 0.0, %v3235
  %v3237 = vpop.f32.mrb[0].mxu0
  %3238 = vmatprep.mubr.bf16.mxu0 0
  %3239 = vmatmul.mubr.bf16.gmra.mrb[0].mxu0 %v2978
  %v3240 = vpop.f32.mrb[0].mxu0
  %v3241 = vadd.f32 0.0, %v3240
  %v3242 = vpop.f32.mrb[0].mxu0
  %v3243 = vpop.f32.mrb[0].mxu0
  %v3244 = vadd.f32 0.0, %v3243
  %v3245 = vpop.f32.mrb[0].mxu0
  %3246 = vmatprep.mubr.bf16.mxu0 0
  %3247 = vmatmul.mubr.bf16.gmra.mrb[0].mxu0 %v2981
  %v3248 = vpop.f32.mrb[0].mxu0
  %v3249 = vadd.f32 0.0, %v3248
  %v3250 = vpop.f32.mrb[0].mxu0
  %v3251 = vpop.f32.mrb[0].mxu0
  %v3252 = vadd.f32 0.0, %v3251
  %v3253 = vpop.f32.mrb[0].mxu0
  %3254 = vmatprep.mubr.bf16.mxu0 0
  %3255 = vmatmul.mubr.bf16.gmra.mrb[0].mxu0 %v2984
  %v3256 = vpop.f32.mrb[0].mxu0
  %v3257 = vadd.f32 0.0, %v3256
  %v3258 = vpop.f32.mrb[0].mxu0
  %v3259 = vpop.f32.mrb[0].mxu0
  %v3260 = vadd.f32 0.0, %v3259
  %v3261 = vpop.f32.mrb[0].mxu0
  %3262 = vmatprep.mubr.bf16.mxu0 0
  %3263 = vmatmul.mubr.bf16.gmra.mrb[0].mxu0 %v2987
  %v3264 = vpop.f32.mrb[0].mxu0
  %v3265 = vadd.f32 0.0, %v3264
  %v3266 = vpop.f32.mrb[0].mxu0
  %v3267 = vpop.f32.mrb[0].mxu0
  %v3268 = vadd.f32 0.0, %v3267
  %v3269 = vpop.f32.mrb[0].mxu0
  %3270 = vmatprep.mubr.bf16.mxu0 0
  %3271 = vmatmul.mubr.bf16.gmra.mrb[0].mxu0 %v2990
  %v3272 = vpop.f32.mrb[0].mxu0
  %v3273 = vadd.f32 0.0, %v3272
  %v3274 = vpop.f32.mrb[0].mxu0
  %v3275 = vpop.f32.mrb[0].mxu0
  %v3276 = vadd.f32 0.0, %v3275
  %v3277 = vpop.f32.mrb[0].mxu0
  %3278 = vmatprep.mubr.bf16.mxu0 0
  %3279 = vmatmul.mubr.bf16.gmra.mrb[0].mxu0 %v2993
  %v3280 = vpop.f32.mrb[0].mxu0
  %v3281 = vadd.f32 0.0, %v3280
  %v3282 = vpop.f32.mrb[0].mxu0
  %v3283 = vpop.f32.mrb[0].mxu0
  %v3284 = vadd.f32 0.0, %v3283
  %v3285 = vpop.f32.mrb[0].mxu0
  %3286 = vdwg.mxu0
  %v3287 = vadd.f32 %v2737, %v3033
  %v3288 = vadd.f32 %v2738, %v3036
  %v3289 = vadd.f32 %v2739, %v3041
  %v3290 = vadd.f32 %v2740, %v3044
  %v3291 = vadd.f32 %v2741, %v3049
  %v3292 = vadd.f32 %v2742, %v3052
  %v3293 = vadd.f32 %v2743, %v3057
  %v3294 = vadd.f32 %v2744, %v3060
  %v3295 = vadd.f32 %v2745, %v3065
  %v3296 = vadd.f32 %v2746, %v3068
  %v3297 = vadd.f32 %v2747, %v3073
  %v3298 = vadd.f32 %v2748, %v3076
  %v3299 = vadd.f32 %v2749, %v3081
  %v3300 = vadd.f32 %v2750, %v3084
  %v3301 = vadd.f32 %v2751, %v3089
  %v3302 = vadd.f32 %v2752, %v3092
  %v3303 = vadd.f32 %v2753, %v3097
  %v3304 = vadd.f32 %v2754, %v3100
  %v3305 = vadd.f32 %v2755, %v3105
  %v3306 = vadd.f32 %v2756, %v3108
  %v3307 = vadd.f32 %v2757, %v3113
  %v3308 = vadd.f32 %v2758, %v3116
  %v3309 = vadd.f32 %v2759, %v3121
  %v3310 = vadd.f32 %v2760, %v3124
  %v3311 = vadd.f32 %v2761, %v3129
  %v3312 = vadd.f32 %v2762, %v3132
  %v3313 = vadd.f32 %v2763, %v3137
  %v3314 = vadd.f32 %v2764, %v3140
  %v3315 = vadd.f32 %v2765, %v3145
  %v3316 = vadd.f32 %v2766, %v3148
  %v3317 = vadd.f32 %v2767, %v3153
  %v3318 = vadd.f32 %v2768, %v3156
  %v3319 = vadd.f32 %v2769, %v3161
  %v3320 = vadd.f32 %v2770, %v3164
  %v3321 = vadd.f32 %v2771, %v3169
  %v3322 = vadd.f32 %v2772, %v3172
  %v3323 = vadd.f32 %v2773, %v3177
  %v3324 = vadd.f32 %v2774, %v3180
  %v3325 = vadd.f32 %v2775, %v3185
  %v3326 = vadd.f32 %v2776, %v3188
  %v3327 = vadd.f32 %v2777, %v3193
  %v3328 = vadd.f32 %v2778, %v3196
  %v3329 = vadd.f32 %v2779, %v3201
  %v3330 = vadd.f32 %v2780, %v3204
  %v3331 = vadd.f32 %v2781, %v3209
  %v3332 = vadd.f32 %v2782, %v3212
  %v3333 = vadd.f32 %v2783, %v3217
  %v3334 = vadd.f32 %v2784, %v3220
  %v3335 = vadd.f32 %v2785, %v3225
  %v3336 = vadd.f32 %v2786, %v3228
  %v3337 = vadd.f32 %v2787, %v3233
  %v3338 = vadd.f32 %v2788, %v3236
  %v3339 = vadd.f32 %v2789, %v3241
  %v3340 = vadd.f32 %v2790, %v3244
  %v3341 = vadd.f32 %v2791, %v3249
  %v3342 = vadd.f32 %v2792, %v3252
  %v3343 = vadd.f32 %v2793, %v3257
  %v3344 = vadd.f32 %v2794, %v3260
  %v3345 = vadd.f32 %v2795, %v3265
  %v3346 = vadd.f32 %v2796, %v3268
  %v3347 = vadd.f32 %v2797, %v3273
  %v3348 = vadd.f32 %v2798, %v3276
  %v3349 = vadd.f32 %v2799, %v3281
  %v3350 = vadd.f32 %v2800, %v3284
  %v3351 = vld [vmem:[%s533] sm:$0xff]
  %v3352 = vld [vmem:[%s533 + $0x8] sm:$0xff]
  %v3353 = vld [vmem:[%s533 + $0x10] sm:$0xff]
  %v3354 = vld [vmem:[%s533 + $0x18] sm:$0xff]
  %v3355 = vld [vmem:[%s533 + $0x20] sm:$0xff]
  %v3356 = vld [vmem:[%s533 + $0x28] sm:$0xff]
  %v3357 = vld [vmem:[%s533 + $0x30] sm:$0xff]
  %v3358 = vld [vmem:[%s533 + $0x38] sm:$0xff]
  %v3359 = vld [vmem:[%s533 + $0x48] sm:$0xff]
  %v3360 = vld [vmem:[%s533 + $0x50] sm:$0xff]
  %v3361 = vld [vmem:[%s533 + $0x58] sm:$0xff]
  %v3362 = vld [vmem:[%s533 + $0x60] sm:$0xff]
  %v3363 = vld [vmem:[%s533 + $0x68] sm:$0xff]
  %v3364 = vld [vmem:[%s533 + $0x70] sm:$0xff]
  %v3365 = vld [vmem:[%s533 + $0x78] sm:$0xff]
  %v3366 = vld [vmem:[%s533 + $0x80] sm:$0xff]
  %v3367 = vld [vmem:[%s533 + $0x90] sm:$0xff]
  %v3368 = vld [vmem:[%s533 + $0x98] sm:$0xff]
  %v3369 = vld [vmem:[%s533 + $0xa0] sm:$0xff]
  %v3370 = vld [vmem:[%s533 + $0xa8] sm:$0xff]
  %v3371 = vld [vmem:[%s533 + $0xb0] sm:$0xff]
  %v3372 = vld [vmem:[%s533 + $0xb8] sm:$0xff]
  %v3373 = vld [vmem:[%s533 + $0xc0] sm:$0xff]
  %v3374 = vld [vmem:[%s533 + $0xc8] sm:$0xff]
  %v3375 = vld [vmem:[%s533 + $0xd8] sm:$0xff]
  %v3376 = vld [vmem:[%s533 + $0xe0] sm:$0xff]
  %v3377 = vld [vmem:[%s533 + $0xe8] sm:$0xff]
  %v3378 = vld [vmem:[%s533 + $0xf0] sm:$0xff]
  %v3379 = vld [vmem:[%s533 + $0xf8] sm:$0xff]
  %v3380 = vld [vmem:[%s533 + $0x100] sm:$0xff]
  %v3381 = vld [vmem:[%s533 + $0x108] sm:$0xff]
  %v3382 = vld [vmem:[%s533 + $0x110] sm:$0xff]
  %v3383 = vld [vmem:[%s533 + $0x120] sm:$0xff]
  %v3384 = vld [vmem:[%s533 + $0x128] sm:$0xff]
  %v3385 = vld [vmem:[%s533 + $0x130] sm:$0xff]
  %v3386 = vld [vmem:[%s533 + $0x138] sm:$0xff]
  %v3387 = vld [vmem:[%s533 + $0x140] sm:$0xff]
  %v3388 = vld [vmem:[%s533 + $0x148] sm:$0xff]
  %v3389 = vld [vmem:[%s533 + $0x150] sm:$0xff]
  %v3390 = vld [vmem:[%s533 + $0x158] sm:$0xff]
  %v3391 = vld [vmem:[%s533 + $0x168] sm:$0xff]
  %v3392 = vld [vmem:[%s533 + $0x170] sm:$0xff]
  %v3393 = vld [vmem:[%s533 + $0x178] sm:$0xff]
  %v3394 = vld [vmem:[%s533 + $0x180] sm:$0xff]
  %v3395 = vld [vmem:[%s533 + $0x188] sm:$0xff]
  %v3396 = vld [vmem:[%s533 + $0x190] sm:$0xff]
  %v3397 = vld [vmem:[%s533 + $0x198] sm:$0xff]
  %v3398 = vld [vmem:[%s533 + $0x1a0] sm:$0xff]
  %v3399 = vld [vmem:[%s533 + $0x1b0] sm:$0xff]
  %v3400 = vld [vmem:[%s533 + $0x1b8] sm:$0xff]
  %v3401 = vld [vmem:[%s533 + $0x1c0] sm:$0xff]
  %v3402 = vld [vmem:[%s533 + $0x1c8] sm:$0xff]
  %v3403 = vld [vmem:[%s533 + $0x1d0] sm:$0xff]
  %v3404 = vld [vmem:[%s533 + $0x1d8] sm:$0xff]
  %v3405 = vld [vmem:[%s533 + $0x1e0] sm:$0xff]
  %v3406 = vld [vmem:[%s533 + $0x1e8] sm:$0xff]
  %v3407 = vld [vmem:[%s533 + $0x1f8] sm:$0xff]
  %v3408 = vld [vmem:[%s533 + $0x200] sm:$0xff]
  %v3409 = vld [vmem:[%s533 + $0x208] sm:$0xff]
  %v3410 = vld [vmem:[%s533 + $0x210] sm:$0xff]
  %v3411 = vld [vmem:[%s533 + $0x218] sm:$0xff]
  %v3412 = vld [vmem:[%s533 + $0x220] sm:$0xff]
  %v3413 = vld [vmem:[%s533 + $0x228] sm:$0xff]
  %v3414 = vld [vmem:[%s533 + $0x230] sm:$0xff]
  %v3415 = vpack.c.bf16 %v3352, %v3351
  %v3416 = vpack.c.bf16 %v3354, %v3353
  %v3417 = vpack.c.bf16 %v3356, %v3355
  %v3418 = vpack.c.bf16 %v3358, %v3357
  %v3419 = vpack.c.bf16 %v3360, %v3359
  %v3420 = vpack.c.bf16 %v3362, %v3361
  %v3421 = vpack.c.bf16 %v3364, %v3363
  %v3422 = vpack.c.bf16 %v3366, %v3365
  %v3423 = vpack.c.bf16 %v3368, %v3367
  %v3424 = vpack.c.bf16 %v3370, %v3369
  %v3425 = vpack.c.bf16 %v3372, %v3371
  %v3426 = vpack.c.bf16 %v3374, %v3373
  %v3427 = vpack.c.bf16 %v3376, %v3375
  %v3428 = vpack.c.bf16 %v3378, %v3377
  %v3429 = vpack.c.bf16 %v3380, %v3379
  %v3430 = vpack.c.bf16 %v3382, %v3381
  %v3431 = vpack.c.bf16 %v3384, %v3383
  %v3432 = vpack.c.bf16 %v3386, %v3385
  %v3433 = vpack.c.bf16 %v3388, %v3387
  %v3434 = vpack.c.bf16 %v3390, %v3389
  %v3435 = vpack.c.bf16 %v3392, %v3391
  %v3436 = vpack.c.bf16 %v3394, %v3393
  %v3437 = vpack.c.bf16 %v3396, %v3395
  %v3438 = vpack.c.bf16 %v3398, %v3397
  %v3439 = vpack.c.bf16 %v3400, %v3399
  %v3440 = vpack.c.bf16 %v3402, %v3401
  %v3441 = vpack.c.bf16 %v3404, %v3403
  %v3442 = vpack.c.bf16 %v3406, %v3405
  %v3443 = vpack.c.bf16 %v3408, %v3407
  %v3444 = vpack.c.bf16 %v3410, %v3409
  %v3445 = vpack.c.bf16 %v3412, %v3411
  %v3446 = vpack.c.bf16 %v3414, %v3413
  %s3447 = scalar_lea.vmem %s1, 10
  %v3448 = vld [vmem:[%s3447] sm:$0x3]
  %v3450 = vsel %vm41, %v3415, 0
  %v3453 = vsel %vm41, %v3416, 0
  %v3456 = vsel %vm41, %v3417, 0
  %v3459 = vsel %vm41, %v3418, 0
  %v3462 = vsel %vm41, %v3419, 0
  %v3465 = vsel %vm41, %v3420, 0
  %v3468 = vsel %vm41, %v3421, 0
  %v3471 = vsel %vm41, %v3422, 0
  %v3474 = vsel %vm41, %v3423, 0
  %v3477 = vsel %vm41, %v3424, 0
  %v3480 = vsel %vm41, %v3425, 0
  %v3483 = vsel %vm41, %v3426, 0
  %v3486 = vsel %vm41, %v3427, 0
  %v3489 = vsel %vm41, %v3428, 0
  %v3492 = vsel %vm41, %v3429, 0
  %v3495 = vsel %vm41, %v3430, 0
  %v3498 = vsel %vm41, %v3431, 0
  %v3501 = vsel %vm41, %v3432, 0
  %v3504 = vsel %vm41, %v3433, 0
  %v3507 = vsel %vm41, %v3434, 0
  %v3510 = vsel %vm41, %v3435, 0
  %v3513 = vsel %vm41, %v3436, 0
  %v3516 = vsel %vm41, %v3437, 0
  %v3519 = vsel %vm41, %v3438, 0
  %v3522 = vsel %vm41, %v3439, 0
  %v3525 = vsel %vm41, %v3440, 0
  %v3528 = vsel %vm41, %v3441, 0
  %v3531 = vsel %vm41, %v3442, 0
  %v3534 = vsel %vm41, %v3443, 0
  %v3537 = vsel %vm41, %v3444, 0
  %v3540 = vsel %vm41, %v3445, 0
  %v3543 = vsel %vm41, %v3446, 0
  %v3546 = vsel %vm1019, %v3448, 0
  %3548 = vmatprep.subr.bf16.mxu0 0
  %3549 = vmatpush1.bf16.msra.mxu0 %v3546
  %3550 = vmatprep.subr.bf16.mxu0 0
  %3551 = vmatpush1.bf16.msra.mxu0 0
  %3552 = vmatprep.subr.bf16.mxu0 0
  %3553 = vmatpush1.bf16.msra.mxu0 0
  %3554 = vmatprep.subr.bf16.mxu0 0
  %3555 = vmatpush1.bf16.msra.mxu0 0
  %3556 = vmatprep.subr.bf16.mxu0 0
  %3557 = vmatpush1.bf16.msra.mxu0 0
  %3558 = vmatprep.subr.bf16.mxu0 0
  %3559 = vmatpush1.bf16.msra.mxu0 0
  %3560 = vmatprep.subr.bf16.mxu0 0
  %3561 = vmatpush1.bf16.msra.mxu0 0
  %3562 = vmatprep.subr.bf16.mxu0 0
  %3563 = vmatpush1.bf16.msra.mxu0 0
  %3564 = vmatprep.subr.bf16.mxu0 0
  %3565 = vmatpush1.bf16.msra.mxu0 0
  %3566 = vmatprep.subr.bf16.mxu0 0
  %3567 = vmatpush1.bf16.msra.mxu0 0
  %3568 = vmatprep.subr.bf16.mxu0 0
  %3569 = vmatpush1.bf16.msra.mxu0 0
  %3570 = vmatprep.subr.bf16.mxu0 0
  %3571 = vmatpush1.bf16.msra.mxu0 0
  %3572 = vmatprep.subr.bf16.mxu0 0
  %3573 = vmatpush1.bf16.msra.mxu0 0
  %3574 = vmatprep.subr.bf16.mxu0 0
  %3575 = vmatpush1.bf16.msra.mxu0 0
  %3576 = vmatprep.subr.bf16.mxu0 0
  %3577 = vmatpush1.bf16.msra.mxu0 0
  %3578 = vmatprep.subr.bf16.mxu0 0
  %3579 = vmatpush1.bf16.msra.mxu0 0
  %3580 = vmatprep.mubr.bf16.mxu0 0
  %3581 = vmatmul.mubr.bf16.gmra.mrb[0].mxu0 %v3450
  %v3582 = vpop.f32.mrb[0].mxu0
  %v3583 = vadd.f32 0.0, %v3582
  %v3584 = vpop.f32.mrb[0].mxu0
  %v3585 = vpop.f32.mrb[0].mxu0
  %v3586 = vadd.f32 0.0, %v3585
  %v3587 = vpop.f32.mrb[0].mxu0
  %3588 = vmatprep.mubr.bf16.mxu0 0
  %3589 = vmatmul.mubr.bf16.gmra.mrb[0].mxu0 %v3453
  %v3590 = vpop.f32.mrb[0].mxu0
  %v3591 = vadd.f32 0.0, %v3590
  %v3592 = vpop.f32.mrb[0].mxu0
  %v3593 = vpop.f32.mrb[0].mxu0
  %v3594 = vadd.f32 0.0, %v3593
  %v3595 = vpop.f32.mrb[0].mxu0
  %3596 = vmatprep.mubr.bf16.mxu0 0
  %3597 = vmatmul.mubr.bf16.gmra.mrb[0].mxu0 %v3456
  %v3598 = vpop.f32.mrb[0].mxu0
  %v3599 = vadd.f32 0.0, %v3598
  %v3600 = vpop.f32.mrb[0].mxu0
  %v3601 = vpop.f32.mrb[0].mxu0
  %v3602 = vadd.f32 0.0, %v3601
  %v3603 = vpop.f32.mrb[0].mxu0
  %3604 = vmatprep.mubr.bf16.mxu0 0
  %3605 = vmatmul.mubr.bf16.gmra.mrb[0].mxu0 %v3459
  %v3606 = vpop.f32.mrb[0].mxu0
  %v3607 = vadd.f32 0.0, %v3606
  %v3608 = vpop.f32.mrb[0].mxu0
  %v3609 = vpop.f32.mrb[0].mxu0
  %v3610 = vadd.f32 0.0, %v3609
  %v3611 = vpop.f32.mrb[0].mxu0
  %3612 = vmatprep.mubr.bf16.mxu0 0
  %3613 = vmatmul.mubr.bf16.gmra.mrb[0].mxu0 %v3462
  %v3614 = vpop.f32.mrb[0].mxu0
  %v3615 = vadd.f32 0.0, %v3614
  %v3616 = vpop.f32.mrb[0].mxu0
  %v3617 = vpop.f32.mrb[0].mxu0
  %v3618 = vadd.f32 0.0, %v3617
  %v3619 = vpop.f32.mrb[0].mxu0
  %3620 = vmatprep.mubr.bf16.mxu0 0
  %3621 = vmatmul.mubr.bf16.gmra.mrb[0].mxu0 %v3465
  %v3622 = vpop.f32.mrb[0].mxu0
  %v3623 = vadd.f32 0.0, %v3622
  %v3624 = vpop.f32.mrb[0].mxu0
  %v3625 = vpop.f32.mrb[0].mxu0
  %v3626 = vadd.f32 0.0, %v3625
  %v3627 = vpop.f32.mrb[0].mxu0
  %3628 = vmatprep.mubr.bf16.mxu0 0
  %3629 = vmatmul.mubr.bf16.gmra.mrb[0].mxu0 %v3468
  %v3630 = vpop.f32.mrb[0].mxu0
  %v3631 = vadd.f32 0.0, %v3630
  %v3632 = vpop.f32.mrb[0].mxu0
  %v3633 = vpop.f32.mrb[0].mxu0
  %v3634 = vadd.f32 0.0, %v3633
  %v3635 = vpop.f32.mrb[0].mxu0
  %3636 = vmatprep.mubr.bf16.mxu0 0
  %3637 = vmatmul.mubr.bf16.gmra.mrb[0].mxu0 %v3471
  %v3638 = vpop.f32.mrb[0].mxu0
  %v3639 = vadd.f32 0.0, %v3638
  %v3640 = vpop.f32.mrb[0].mxu0
  %v3641 = vpop.f32.mrb[0].mxu0
  %v3642 = vadd.f32 0.0, %v3641
  %v3643 = vpop.f32.mrb[0].mxu0
  %3644 = vmatprep.mubr.bf16.mxu0 0
  %3645 = vmatmul.mubr.bf16.gmra.mrb[0].mxu0 %v3474
  %v3646 = vpop.f32.mrb[0].mxu0
  %v3647 = vadd.f32 0.0, %v3646
  %v3648 = vpop.f32.mrb[0].mxu0
  %v3649 = vpop.f32.mrb[0].mxu0
  %v3650 = vadd.f32 0.0, %v3649
  %v3651 = vpop.f32.mrb[0].mxu0
  %3652 = vmatprep.mubr.bf16.mxu0 0
  %3653 = vmatmul.mubr.bf16.gmra.mrb[0].mxu0 %v3477
  %v3654 = vpop.f32.mrb[0].mxu0
  %v3655 = vadd.f32 0.0, %v3654
  %v3656 = vpop.f32.mrb[0].mxu0
  %v3657 = vpop.f32.mrb[0].mxu0
  %v3658 = vadd.f32 0.0, %v3657
  %v3659 = vpop.f32.mrb[0].mxu0
  %3660 = vmatprep.mubr.bf16.mxu0 0
  %3661 = vmatmul.mubr.bf16.gmra.mrb[0].mxu0 %v3480
  %v3662 = vpop.f32.mrb[0].mxu0
  %v3663 = vadd.f32 0.0, %v3662
  %v3664 = vpop.f32.mrb[0].mxu0
  %v3665 = vpop.f32.mrb[0].mxu0
  %v3666 = vadd.f32 0.0, %v3665
  %v3667 = vpop.f32.mrb[0].mxu0
  %3668 = vmatprep.mubr.bf16.mxu0 0
  %3669 = vmatmul.mubr.bf16.gmra.mrb[0].mxu0 %v3483
  %v3670 = vpop.f32.mrb[0].mxu0
  %v3671 = vadd.f32 0.0, %v3670
  %v3672 = vpop.f32.mrb[0].mxu0
  %v3673 = vpop.f32.mrb[0].mxu0
  %v3674 = vadd.f32 0.0, %v3673
  %v3675 = vpop.f32.mrb[0].mxu0
  %3676 = vmatprep.mubr.bf16.mxu0 0
  %3677 = vmatmul.mubr.bf16.gmra.mrb[0].mxu0 %v3486
  %v3678 = vpop.f32.mrb[0].mxu0
  %v3679 = vadd.f32 0.0, %v3678
  %v3680 = vpop.f32.mrb[0].mxu0
  %v3681 = vpop.f32.mrb[0].mxu0
  %v3682 = vadd.f32 0.0, %v3681
  %v3683 = vpop.f32.mrb[0].mxu0
  %3684 = vmatprep.mubr.bf16.mxu0 0
  %3685 = vmatmul.mubr.bf16.gmra.mrb[0].mxu0 %v3489
  %v3686 = vpop.f32.mrb[0].mxu0
  %v3687 = vadd.f32 0.0, %v3686
  %v3688 = vpop.f32.mrb[0].mxu0
  %v3689 = vpop.f32.mrb[0].mxu0
  %v3690 = vadd.f32 0.0, %v3689
  %v3691 = vpop.f32.mrb[0].mxu0
  %3692 = vmatprep.mubr.bf16.mxu0 0
  %3693 = vmatmul.mubr.bf16.gmra.mrb[0].mxu0 %v3492
  %v3694 = vpop.f32.mrb[0].mxu0
  %v3695 = vadd.f32 0.0, %v3694
  %v3696 = vpop.f32.mrb[0].mxu0
  %v3697 = vpop.f32.mrb[0].mxu0
  %v3698 = vadd.f32 0.0, %v3697
  %v3699 = vpop.f32.mrb[0].mxu0
  %3700 = vmatprep.mubr.bf16.mxu0 0
  %3701 = vmatmul.mubr.bf16.gmra.mrb[0].mxu0 %v3495
  %v3702 = vpop.f32.mrb[0].mxu0
  %v3703 = vadd.f32 0.0, %v3702
  %v3704 = vpop.f32.mrb[0].mxu0
  %v3705 = vpop.f32.mrb[0].mxu0
  %v3706 = vadd.f32 0.0, %v3705
  %v3707 = vpop.f32.mrb[0].mxu0
  %3708 = vmatprep.mubr.bf16.mxu0 0
  %3709 = vmatmul.mubr.bf16.gmra.mrb[0].mxu0 %v3498
  %v3710 = vpop.f32.mrb[0].mxu0
  %v3711 = vadd.f32 0.0, %v3710
  %v3712 = vpop.f32.mrb[0].mxu0
  %v3713 = vpop.f32.mrb[0].mxu0
  %v3714 = vadd.f32 0.0, %v3713
  %v3715 = vpop.f32.mrb[0].mxu0
  %3716 = vmatprep.mubr.bf16.mxu0 0
  %3717 = vmatmul.mubr.bf16.gmra.mrb[0].mxu0 %v3501
  %v3718 = vpop.f32.mrb[0].mxu0
  %v3719 = vadd.f32 0.0, %v3718
  %v3720 = vpop.f32.mrb[0].mxu0
  %v3721 = vpop.f32.mrb[0].mxu0
  %v3722 = vadd.f32 0.0, %v3721
  %v3723 = vpop.f32.mrb[0].mxu0
  %3724 = vmatprep.mubr.bf16.mxu0 0
  %3725 = vmatmul.mubr.bf16.gmra.mrb[0].mxu0 %v3504
  %v3726 = vpop.f32.mrb[0].mxu0
  %v3727 = vadd.f32 0.0, %v3726
  %v3728 = vpop.f32.mrb[0].mxu0
  %v3729 = vpop.f32.mrb[0].mxu0
  %v3730 = vadd.f32 0.0, %v3729
  %v3731 = vpop.f32.mrb[0].mxu0
  %3732 = vmatprep.mubr.bf16.mxu0 0
  %3733 = vmatmul.mubr.bf16.gmra.mrb[0].mxu0 %v3507
  %v3734 = vpop.f32.mrb[0].mxu0
  %v3735 = vadd.f32 0.0, %v3734
  %v3736 = vpop.f32.mrb[0].mxu0
  %v3737 = vpop.f32.mrb[0].mxu0
  %v3738 = vadd.f32 0.0, %v3737
  %v3739 = vpop.f32.mrb[0].mxu0
  %3740 = vmatprep.mubr.bf16.mxu0 0
  %3741 = vmatmul.mubr.bf16.gmra.mrb[0].mxu0 %v3510
  %v3742 = vpop.f32.mrb[0].mxu0
  %v3743 = vadd.f32 0.0, %v3742
  %v3744 = vpop.f32.mrb[0].mxu0
  %v3745 = vpop.f32.mrb[0].mxu0
  %v3746 = vadd.f32 0.0, %v3745
  %v3747 = vpop.f32.mrb[0].mxu0
  %3748 = vmatprep.mubr.bf16.mxu0 0
  %3749 = vmatmul.mubr.bf16.gmra.mrb[0].mxu0 %v3513
  %v3750 = vpop.f32.mrb[0].mxu0
  %v3751 = vadd.f32 0.0, %v3750
  %v3752 = vpop.f32.mrb[0].mxu0
  %v3753 = vpop.f32.mrb[0].mxu0
  %v3754 = vadd.f32 0.0, %v3753
  %v3755 = vpop.f32.mrb[0].mxu0
  %3756 = vmatprep.mubr.bf16.mxu0 0
  %3757 = vmatmul.mubr.bf16.gmra.mrb[0].mxu0 %v3516
  %v3758 = vpop.f32.mrb[0].mxu0
  %v3759 = vadd.f32 0.0, %v3758
  %v3760 = vpop.f32.mrb[0].mxu0
  %v3761 = vpop.f32.mrb[0].mxu0
  %v3762 = vadd.f32 0.0, %v3761
  %v3763 = vpop.f32.mrb[0].mxu0
  %3764 = vmatprep.mubr.bf16.mxu0 0
  %3765 = vmatmul.mubr.bf16.gmra.mrb[0].mxu0 %v3519
  %v3766 = vpop.f32.mrb[0].mxu0
  %v3767 = vadd.f32 0.0, %v3766
  %v3768 = vpop.f32.mrb[0].mxu0
  %v3769 = vpop.f32.mrb[0].mxu0
  %v3770 = vadd.f32 0.0, %v3769
  %v3771 = vpop.f32.mrb[0].mxu0
  %3772 = vmatprep.mubr.bf16.mxu0 0
  %3773 = vmatmul.mubr.bf16.gmra.mrb[0].mxu0 %v3522
  %v3774 = vpop.f32.mrb[0].mxu0
  %v3775 = vadd.f32 0.0, %v3774
  %v3776 = vpop.f32.mrb[0].mxu0
  %v3777 = vpop.f32.mrb[0].mxu0
  %v3778 = vadd.f32 0.0, %v3777
  %v3779 = vpop.f32.mrb[0].mxu0
  %3780 = vmatprep.mubr.bf16.mxu0 0
  %3781 = vmatmul.mubr.bf16.gmra.mrb[0].mxu0 %v3525
  %v3782 = vpop.f32.mrb[0].mxu0
  %v3783 = vadd.f32 0.0, %v3782
  %v3784 = vpop.f32.mrb[0].mxu0
  %v3785 = vpop.f32.mrb[0].mxu0
  %v3786 = vadd.f32 0.0, %v3785
  %v3787 = vpop.f32.mrb[0].mxu0
  %3788 = vmatprep.mubr.bf16.mxu0 0
  %3789 = vmatmul.mubr.bf16.gmra.mrb[0].mxu0 %v3528
  %v3790 = vpop.f32.mrb[0].mxu0
  %v3791 = vadd.f32 0.0, %v3790
  %v3792 = vpop.f32.mrb[0].mxu0
  %v3793 = vpop.f32.mrb[0].mxu0
  %v3794 = vadd.f32 0.0, %v3793
  %v3795 = vpop.f32.mrb[0].mxu0
  %3796 = vmatprep.mubr.bf16.mxu0 0
  %3797 = vmatmul.mubr.bf16.gmra.mrb[0].mxu0 %v3531
  %v3798 = vpop.f32.mrb[0].mxu0
  %v3799 = vadd.f32 0.0, %v3798
  %v3800 = vpop.f32.mrb[0].mxu0
  %v3801 = vpop.f32.mrb[0].mxu0
  %v3802 = vadd.f32 0.0, %v3801
  %v3803 = vpop.f32.mrb[0].mxu0
  %3804 = vmatprep.mubr.bf16.mxu0 0
  %3805 = vmatmul.mubr.bf16.gmra.mrb[0].mxu0 %v3534
  %v3806 = vpop.f32.mrb[0].mxu0
  %v3807 = vadd.f32 0.0, %v3806
  %v3808 = vpop.f32.mrb[0].mxu0
  %v3809 = vpop.f32.mrb[0].mxu0
  %v3810 = vadd.f32 0.0, %v3809
  %v3811 = vpop.f32.mrb[0].mxu0
  %3812 = vmatprep.mubr.bf16.mxu0 0
  %3813 = vmatmul.mubr.bf16.gmra.mrb[0].mxu0 %v3537
  %v3814 = vpop.f32.mrb[0].mxu0
  %v3815 = vadd.f32 0.0, %v3814
  %v3816 = vpop.f32.mrb[0].mxu0
  %v3817 = vpop.f32.mrb[0].mxu0
  %v3818 = vadd.f32 0.0, %v3817
  %v3819 = vpop.f32.mrb[0].mxu0
  %3820 = vmatprep.mubr.bf16.mxu0 0
  %3821 = vmatmul.mubr.bf16.gmra.mrb[0].mxu0 %v3540
  %v3822 = vpop.f32.mrb[0].mxu0
  %v3823 = vadd.f32 0.0, %v3822
  %v3824 = vpop.f32.mrb[0].mxu0
  %v3825 = vpop.f32.mrb[0].mxu0
  %v3826 = vadd.f32 0.0, %v3825
  %v3827 = vpop.f32.mrb[0].mxu0
  %3828 = vmatprep.mubr.bf16.mxu0 0
  %3829 = vmatmul.mubr.bf16.gmra.mrb[0].mxu0 %v3543
  %v3830 = vpop.f32.mrb[0].mxu0
  %v3831 = vadd.f32 0.0, %v3830
  %v3832 = vpop.f32.mrb[0].mxu0
  %v3833 = vpop.f32.mrb[0].mxu0
  %v3834 = vadd.f32 0.0, %v3833
  %v3835 = vpop.f32.mrb[0].mxu0
  %3836 = vdwg.mxu0
  %v3837 = vadd.f32 %v3287, %v3583
  %v3838 = vadd.f32 %v3288, %v3586
  %v3839 = vadd.f32 %v3289, %v3591
  %v3840 = vadd.f32 %v3290, %v3594
  %v3841 = vadd.f32 %v3291, %v3599
  %v3842 = vadd.f32 %v3292, %v3602
  %v3843 = vadd.f32 %v3293, %v3607
  %v3844 = vadd.f32 %v3294, %v3610
  %v3845 = vadd.f32 %v3295, %v3615
  %v3846 = vadd.f32 %v3296, %v3618
  %v3847 = vadd.f32 %v3297, %v3623
  %v3848 = vadd.f32 %v3298, %v3626
  %v3849 = vadd.f32 %v3299, %v3631
  %v3850 = vadd.f32 %v3300, %v3634
  %v3851 = vadd.f32 %v3301, %v3639
  %v3852 = vadd.f32 %v3302, %v3642
  %v3853 = vadd.f32 %v3303, %v3647
  %v3854 = vadd.f32 %v3304, %v3650
  %v3855 = vadd.f32 %v3305, %v3655
  %v3856 = vadd.f32 %v3306, %v3658
  %v3857 = vadd.f32 %v3307, %v3663
  %v3858 = vadd.f32 %v3308, %v3666
  %v3859 = vadd.f32 %v3309, %v3671
  %v3860 = vadd.f32 %v3310, %v3674
  %v3861 = vadd.f32 %v3311, %v3679
  %v3862 = vadd.f32 %v3312, %v3682
  %v3863 = vadd.f32 %v3313, %v3687
  %v3864 = vadd.f32 %v3314, %v3690
  %v3865 = vadd.f32 %v3315, %v3695
  %v3866 = vadd.f32 %v3316, %v3698
  %v3867 = vadd.f32 %v3317, %v3703
  %v3868 = vadd.f32 %v3318, %v3706
  %v3869 = vadd.f32 %v3319, %v3711
  %v3870 = vadd.f32 %v3320, %v3714
  %v3871 = vadd.f32 %v3321, %v3719
  %v3872 = vadd.f32 %v3322, %v3722
  %v3873 = vadd.f32 %v3323, %v3727
  %v3874 = vadd.f32 %v3324, %v3730
  %v3875 = vadd.f32 %v3325, %v3735
  %v3876 = vadd.f32 %v3326, %v3738
  %v3877 = vadd.f32 %v3327, %v3743
  %v3878 = vadd.f32 %v3328, %v3746
  %v3879 = vadd.f32 %v3329, %v3751
  %v3880 = vadd.f32 %v3330, %v3754
  %v3881 = vadd.f32 %v3331, %v3759
  %v3882 = vadd.f32 %v3332, %v3762
  %v3883 = vadd.f32 %v3333, %v3767
  %v3884 = vadd.f32 %v3334, %v3770
  %v3885 = vadd.f32 %v3335, %v3775
  %v3886 = vadd.f32 %v3336, %v3778
  %v3887 = vadd.f32 %v3337, %v3783
  %v3888 = vadd.f32 %v3338, %v3786
  %v3889 = vadd.f32 %v3339, %v3791
  %v3890 = vadd.f32 %v3340, %v3794
  %v3891 = vadd.f32 %v3341, %v3799
  %v3892 = vadd.f32 %v3342, %v3802
  %v3893 = vadd.f32 %v3343, %v3807
  %v3894 = vadd.f32 %v3344, %v3810
  %v3895 = vadd.f32 %v3345, %v3815
  %v3896 = vadd.f32 %v3346, %v3818
  %v3897 = vadd.f32 %v3347, %v3823
  %v3898 = vadd.f32 %v3348, %v3826
  %v3899 = vadd.f32 %v3349, %v3831
  %v3900 = vadd.f32 %v3350, %v3834
  %s3901 = scalar_lea.vmem [#allocation2], 72
  %v3902 = vld [vmem:[%s3901] sm:$0xff]
  %v3903 = vld [vmem:[%s3901 + $0x8] sm:$0xff]
  %v3904 = vld [vmem:[%s3901 + $0x10] sm:$0xff]
  %v3905 = vld [vmem:[%s3901 + $0x18] sm:$0xff]
  %v3906 = vld [vmem:[%s3901 + $0x20] sm:$0xff]
  %v3907 = vld [vmem:[%s3901 + $0x28] sm:$0xff]
  %v3908 = vld [vmem:[%s3901 + $0x30] sm:$0xff]
  %v3909 = vld [vmem:[%s3901 + $0x38] sm:$0xff]
  %v3910 = vld [vmem:[%s3901 + $0x48] sm:$0xff]
  %v3911 = vld [vmem:[%s3901 + $0x50] sm:$0xff]
  %v3912 = vld [vmem:[%s3901 + $0x58] sm:$0xff]
  %v3913 = vld [vmem:[%s3901 + $0x60] sm:$0xff]
  %v3914 = vld [vmem:[%s3901 + $0x68] sm:$0xff]
  %v3915 = vld [vmem:[%s3901 + $0x70] sm:$0xff]
  %v3916 = vld [vmem:[%s3901 + $0x78] sm:$0xff]
  %v3917 = vld [vmem:[%s3901 + $0x80] sm:$0xff]
  %v3918 = vld [vmem:[%s3901 + $0x90] sm:$0xff]
  %v3919 = vld [vmem:[%s3901 + $0x98] sm:$0xff]
  %v3920 = vld [vmem:[%s3901 + $0xa0] sm:$0xff]
  %v3921 = vld [vmem:[%s3901 + $0xa8] sm:$0xff]
  %v3922 = vld [vmem:[%s3901 + $0xb0] sm:$0xff]
  %v3923 = vld [vmem:[%s3901 + $0xb8] sm:$0xff]
  %v3924 = vld [vmem:[%s3901 + $0xc0] sm:$0xff]
  %v3925 = vld [vmem:[%s3901 + $0xc8] sm:$0xff]
  %v3926 = vld [vmem:[%s3901 + $0xd8] sm:$0xff]
  %v3927 = vld [vmem:[%s3901 + $0xe0] sm:$0xff]
  %v3928 = vld [vmem:[%s3901 + $0xe8] sm:$0xff]
  %v3929 = vld [vmem:[%s3901 + $0xf0] sm:$0xff]
  %v3930 = vld [vmem:[%s3901 + $0xf8] sm:$0xff]
  %v3931 = vld [vmem:[%s3901 + $0x100] sm:$0xff]
  %v3932 = vld [vmem:[%s3901 + $0x108] sm:$0xff]
  %v3933 = vld [vmem:[%s3901 + $0x110] sm:$0xff]
  %v3934 = vld [vmem:[%s3901 + $0x120] sm:$0xff]
  %v3935 = vld [vmem:[%s3901 + $0x128] sm:$0xff]
  %v3936 = vld [vmem:[%s3901 + $0x130] sm:$0xff]
  %v3937 = vld [vmem:[%s3901 + $0x138] sm:$0xff]
  %v3938 = vld [vmem:[%s3901 + $0x140] sm:$0xff]
  %v3939 = vld [vmem:[%s3901 + $0x148] sm:$0xff]
  %v3940 = vld [vmem:[%s3901 + $0x150] sm:$0xff]
  %v3941 = vld [vmem:[%s3901 + $0x158] sm:$0xff]
  %v3942 = vld [vmem:[%s3901 + $0x168] sm:$0xff]
  %v3943 = vld [vmem:[%s3901 + $0x170] sm:$0xff]
  %v3944 = vld [vmem:[%s3901 + $0x178] sm:$0xff]
  %v3945 = vld [vmem:[%s3901 + $0x180] sm:$0xff]
  %v3946 = vld [vmem:[%s3901 + $0x188] sm:$0xff]
  %v3947 = vld [vmem:[%s3901 + $0x190] sm:$0xff]
  %v3948 = vld [vmem:[%s3901 + $0x198] sm:$0xff]
  %v3949 = vld [vmem:[%s3901 + $0x1a0] sm:$0xff]
  %v3950 = vld [vmem:[%s3901 + $0x1b0] sm:$0xff]
  %v3951 = vld [vmem:[%s3901 + $0x1b8] sm:$0xff]
  %v3952 = vld [vmem:[%s3901 + $0x1c0] sm:$0xff]
  %v3953 = vld [vmem:[%s3901 + $0x1c8] sm:$0xff]
  %v3954 = vld [vmem:[%s3901 + $0x1d0] sm:$0xff]
  %v3955 = vld [vmem:[%s3901 + $0x1d8] sm:$0xff]
  %v3956 = vld [vmem:[%s3901 + $0x1e0] sm:$0xff]
  %v3957 = vld [vmem:[%s3901 + $0x1e8] sm:$0xff]
  %v3958 = vld [vmem:[%s3901 + $0x1f8] sm:$0xff]
  %v3959 = vld [vmem:[%s3901 + $0x200] sm:$0xff]
  %v3960 = vld [vmem:[%s3901 + $0x208] sm:$0xff]
  %v3961 = vld [vmem:[%s3901 + $0x210] sm:$0xff]
  %v3962 = vld [vmem:[%s3901 + $0x218] sm:$0xff]
  %v3963 = vld [vmem:[%s3901 + $0x220] sm:$0xff]
  %v3964 = vld [vmem:[%s3901 + $0x228] sm:$0xff]
  %v3965 = vld [vmem:[%s3901 + $0x230] sm:$0xff]
  %v3966 = vpack.c.bf16 %v3903, %v3902
  %v3967 = vpack.c.bf16 %v3905, %v3904
  %v3968 = vpack.c.bf16 %v3907, %v3906
  %v3969 = vpack.c.bf16 %v3909, %v3908
  %v3970 = vpack.c.bf16 %v3911, %v3910
  %v3971 = vpack.c.bf16 %v3913, %v3912
  %v3972 = vpack.c.bf16 %v3915, %v3914
  %v3973 = vpack.c.bf16 %v3917, %v3916
  %v3974 = vpack.c.bf16 %v3919, %v3918
  %v3975 = vpack.c.bf16 %v3921, %v3920
  %v3976 = vpack.c.bf16 %v3923, %v3922
  %v3977 = vpack.c.bf16 %v3925, %v3924
  %v3978 = vpack.c.bf16 %v3927, %v3926
  %v3979 = vpack.c.bf16 %v3929, %v3928
  %v3980 = vpack.c.bf16 %v3931, %v3930
  %v3981 = vpack.c.bf16 %v3933, %v3932
  %v3982 = vpack.c.bf16 %v3935, %v3934
  %v3983 = vpack.c.bf16 %v3937, %v3936
  %v3984 = vpack.c.bf16 %v3939, %v3938
  %v3985 = vpack.c.bf16 %v3941, %v3940
  %v3986 = vpack.c.bf16 %v3943, %v3942
  %v3987 = vpack.c.bf16 %v3945, %v3944
  %v3988 = vpack.c.bf16 %v3947, %v3946
  %v3989 = vpack.c.bf16 %v3949, %v3948
  %v3990 = vpack.c.bf16 %v3951, %v3950
  %v3991 = vpack.c.bf16 %v3953, %v3952
  %v3992 = vpack.c.bf16 %v3955, %v3954
  %v3993 = vpack.c.bf16 %v3957, %v3956
  %v3994 = vpack.c.bf16 %v3959, %v3958
  %v3995 = vpack.c.bf16 %v3961, %v3960
  %v3996 = vpack.c.bf16 %v3963, %v3962
  %v3997 = vpack.c.bf16 %v3965, %v3964
  %s3998 = scalar_lea.vmem %s1, 12
  %v3999 = vld [vmem:[%s3998] sm:$0x3]
  %v4001 = vsel %vm41, %v3966, 0
  %v4004 = vsel %vm41, %v3967, 0
  %v4007 = vsel %vm41, %v3968, 0
  %v4010 = vsel %vm41, %v3969, 0
  %v4013 = vsel %vm41, %v3970, 0
  %v4016 = vsel %vm41, %v3971, 0
  %v4019 = vsel %vm41, %v3972, 0
  %v4022 = vsel %vm41, %v3973, 0
  %v4025 = vsel %vm41, %v3974, 0
  %v4028 = vsel %vm41, %v3975, 0
  %v4031 = vsel %vm41, %v3976, 0
  %v4034 = vsel %vm41, %v3977, 0
  %v4037 = vsel %vm41, %v3978, 0
  %v4040 = vsel %vm41, %v3979, 0
  %v4043 = vsel %vm41, %v3980, 0
  %v4046 = vsel %vm41, %v3981, 0
  %v4049 = vsel %vm41, %v3982, 0
  %v4052 = vsel %vm41, %v3983, 0
  %v4055 = vsel %vm41, %v3984, 0
  %v4058 = vsel %vm41, %v3985, 0
  %v4061 = vsel %vm41, %v3986, 0
  %v4064 = vsel %vm41, %v3987, 0
  %v4067 = vsel %vm41, %v3988, 0
  %v4070 = vsel %vm41, %v3989, 0
  %v4073 = vsel %vm41, %v3990, 0
  %v4076 = vsel %vm41, %v3991, 0
  %v4079 = vsel %vm41, %v3992, 0
  %v4082 = vsel %vm41, %v3993, 0
  %v4085 = vsel %vm41, %v3994, 0
  %v4088 = vsel %vm41, %v3995, 0
  %v4091 = vsel %vm41, %v3996, 0
  %v4094 = vsel %vm41, %v3997, 0
  %v4097 = vsel %vm1019, %v3999, 0
  %4099 = vmatprep.subr.bf16.mxu0 0
  %4100 = vmatpush1.bf16.msra.mxu0 %v4097
  %4101 = vmatprep.subr.bf16.mxu0 0
  %4102 = vmatpush1.bf16.msra.mxu0 0
  %4103 = vmatprep.subr.bf16.mxu0 0
  %4104 = vmatpush1.bf16.msra.mxu0 0
  %4105 = vmatprep.subr.bf16.mxu0 0
  %4106 = vmatpush1.bf16.msra.mxu0 0
  %4107 = vmatprep.subr.bf16.mxu0 0
  %4108 = vmatpush1.bf16.msra.mxu0 0
  %4109 = vmatprep.subr.bf16.mxu0 0
  %4110 = vmatpush1.bf16.msra.mxu0 0
  %4111 = vmatprep.subr.bf16.mxu0 0
  %4112 = vmatpush1.bf16.msra.mxu0 0
  %4113 = vmatprep.subr.bf16.mxu0 0
  %4114 = vmatpush1.bf16.msra.mxu0 0
  %4115 = vmatprep.subr.bf16.mxu0 0
  %4116 = vmatpush1.bf16.msra.mxu0 0
  %4117 = vmatprep.subr.bf16.mxu0 0
  %4118 = vmatpush1.bf16.msra.mxu0 0
  %4119 = vmatprep.subr.bf16.mxu0 0
  %4120 = vmatpush1.bf16.msra.mxu0 0
  %4121 = vmatprep.subr.bf16.mxu0 0
  %4122 = vmatpush1.bf16.msra.mxu0 0
  %4123 = vmatprep.subr.bf16.mxu0 0
  %4124 = vmatpush1.bf16.msra.mxu0 0
  %4125 = vmatprep.subr.bf16.mxu0 0
  %4126 = vmatpush1.bf16.msra.mxu0 0
  %4127 = vmatprep.subr.bf16.mxu0 0
  %4128 = vmatpush1.bf16.msra.mxu0 0
  %4129 = vmatprep.subr.bf16.mxu0 0
  %4130 = vmatpush1.bf16.msra.mxu0 0
  %4131 = vmatprep.mubr.bf16.mxu0 0
  %4132 = vmatmul.mubr.bf16.gmra.mrb[0].mxu0 %v4001
  %v4133 = vpop.f32.mrb[0].mxu0
  %v4134 = vadd.f32 0.0, %v4133
  %v4135 = vpop.f32.mrb[0].mxu0
  %v4136 = vpop.f32.mrb[0].mxu0
  %v4137 = vadd.f32 0.0, %v4136
  %v4138 = vpop.f32.mrb[0].mxu0
  %4139 = vmatprep.mubr.bf16.mxu0 0
  %4140 = vmatmul.mubr.bf16.gmra.mrb[0].mxu0 %v4004
  %v4141 = vpop.f32.mrb[0].mxu0
  %v4142 = vadd.f32 0.0, %v4141
  %v4143 = vpop.f32.mrb[0].mxu0
  %v4144 = vpop.f32.mrb[0].mxu0
  %v4145 = vadd.f32 0.0, %v4144
  %v4146 = vpop.f32.mrb[0].mxu0
  %4147 = vmatprep.mubr.bf16.mxu0 0
  %4148 = vmatmul.mubr.bf16.gmra.mrb[0].mxu0 %v4007
  %v4149 = vpop.f32.mrb[0].mxu0
  %v4150 = vadd.f32 0.0, %v4149
  %v4151 = vpop.f32.mrb[0].mxu0
  %v4152 = vpop.f32.mrb[0].mxu0
  %v4153 = vadd.f32 0.0, %v4152
  %v4154 = vpop.f32.mrb[0].mxu0
  %4155 = vmatprep.mubr.bf16.mxu0 0
  %4156 = vmatmul.mubr.bf16.gmra.mrb[0].mxu0 %v4010
  %v4157 = vpop.f32.mrb[0].mxu0
  %v4158 = vadd.f32 0.0, %v4157
  %v4159 = vpop.f32.mrb[0].mxu0
  %v4160 = vpop.f32.mrb[0].mxu0
  %v4161 = vadd.f32 0.0, %v4160
  %v4162 = vpop.f32.mrb[0].mxu0
  %4163 = vmatprep.mubr.bf16.mxu0 0
  %4164 = vmatmul.mubr.bf16.gmra.mrb[0].mxu0 %v4013
  %v4165 = vpop.f32.mrb[0].mxu0
  %v4166 = vadd.f32 0.0, %v4165
  %v4167 = vpop.f32.mrb[0].mxu0
  %v4168 = vpop.f32.mrb[0].mxu0
  %v4169 = vadd.f32 0.0, %v4168
  %v4170 = vpop.f32.mrb[0].mxu0
  %4171 = vmatprep.mubr.bf16.mxu0 0
  %4172 = vmatmul.mubr.bf16.gmra.mrb[0].mxu0 %v4016
  %v4173 = vpop.f32.mrb[0].mxu0
  %v4174 = vadd.f32 0.0, %v4173
  %v4175 = vpop.f32.mrb[0].mxu0
  %v4176 = vpop.f32.mrb[0].mxu0
  %v4177 = vadd.f32 0.0, %v4176
  %v4178 = vpop.f32.mrb[0].mxu0
  %4179 = vmatprep.mubr.bf16.mxu0 0
  %4180 = vmatmul.mubr.bf16.gmra.mrb[0].mxu0 %v4019
  %v4181 = vpop.f32.mrb[0].mxu0
  %v4182 = vadd.f32 0.0, %v4181
  %v4183 = vpop.f32.mrb[0].mxu0
  %v4184 = vpop.f32.mrb[0].mxu0
  %v4185 = vadd.f32 0.0, %v4184
  %v4186 = vpop.f32.mrb[0].mxu0
  %4187 = vmatprep.mubr.bf16.mxu0 0
  %4188 = vmatmul.mubr.bf16.gmra.mrb[0].mxu0 %v4022
  %v4189 = vpop.f32.mrb[0].mxu0
  %v4190 = vadd.f32 0.0, %v4189
  %v4191 = vpop.f32.mrb[0].mxu0
  %v4192 = vpop.f32.mrb[0].mxu0
  %v4193 = vadd.f32 0.0, %v4192
  %v4194 = vpop.f32.mrb[0].mxu0
  %4195 = vmatprep.mubr.bf16.mxu0 0
  %4196 = vmatmul.mubr.bf16.gmra.mrb[0].mxu0 %v4025
  %v4197 = vpop.f32.mrb[0].mxu0
  %v4198 = vadd.f32 0.0, %v4197
  %v4199 = vpop.f32.mrb[0].mxu0
  %v4200 = vpop.f32.mrb[0].mxu0
  %v4201 = vadd.f32 0.0, %v4200
  %v4202 = vpop.f32.mrb[0].mxu0
  %4203 = vmatprep.mubr.bf16.mxu0 0
  %4204 = vmatmul.mubr.bf16.gmra.mrb[0].mxu0 %v4028
  %v4205 = vpop.f32.mrb[0].mxu0
  %v4206 = vadd.f32 0.0, %v4205
  %v4207 = vpop.f32.mrb[0].mxu0
  %v4208 = vpop.f32.mrb[0].mxu0
  %v4209 = vadd.f32 0.0, %v4208
  %v4210 = vpop.f32.mrb[0].mxu0
  %4211 = vmatprep.mubr.bf16.mxu0 0
  %4212 = vmatmul.mubr.bf16.gmra.mrb[0].mxu0 %v4031
  %v4213 = vpop.f32.mrb[0].mxu0
  %v4214 = vadd.f32 0.0, %v4213
  %v4215 = vpop.f32.mrb[0].mxu0
  %v4216 = vpop.f32.mrb[0].mxu0
  %v4217 = vadd.f32 0.0, %v4216
  %v4218 = vpop.f32.mrb[0].mxu0
  %4219 = vmatprep.mubr.bf16.mxu0 0
  %4220 = vmatmul.mubr.bf16.gmra.mrb[0].mxu0 %v4034
  %v4221 = vpop.f32.mrb[0].mxu0
  %v4222 = vadd.f32 0.0, %v4221
  %v4223 = vpop.f32.mrb[0].mxu0
  %v4224 = vpop.f32.mrb[0].mxu0
  %v4225 = vadd.f32 0.0, %v4224
  %v4226 = vpop.f32.mrb[0].mxu0
  %4227 = vmatprep.mubr.bf16.mxu0 0
  %4228 = vmatmul.mubr.bf16.gmra.mrb[0].mxu0 %v4037
  %v4229 = vpop.f32.mrb[0].mxu0
  %v4230 = vadd.f32 0.0, %v4229
  %v4231 = vpop.f32.mrb[0].mxu0
  %v4232 = vpop.f32.mrb[0].mxu0
  %v4233 = vadd.f32 0.0, %v4232
  %v4234 = vpop.f32.mrb[0].mxu0
  %4235 = vmatprep.mubr.bf16.mxu0 0
  %4236 = vmatmul.mubr.bf16.gmra.mrb[0].mxu0 %v4040
  %v4237 = vpop.f32.mrb[0].mxu0
  %v4238 = vadd.f32 0.0, %v4237
  %v4239 = vpop.f32.mrb[0].mxu0
  %v4240 = vpop.f32.mrb[0].mxu0
  %v4241 = vadd.f32 0.0, %v4240
  %v4242 = vpop.f32.mrb[0].mxu0
  %4243 = vmatprep.mubr.bf16.mxu0 0
  %4244 = vmatmul.mubr.bf16.gmra.mrb[0].mxu0 %v4043
  %v4245 = vpop.f32.mrb[0].mxu0
  %v4246 = vadd.f32 0.0, %v4245
  %v4247 = vpop.f32.mrb[0].mxu0
  %v4248 = vpop.f32.mrb[0].mxu0
  %v4249 = vadd.f32 0.0, %v4248
  %v4250 = vpop.f32.mrb[0].mxu0
  %4251 = vmatprep.mubr.bf16.mxu0 0
  %4252 = vmatmul.mubr.bf16.gmra.mrb[0].mxu0 %v4046
  %v4253 = vpop.f32.mrb[0].mxu0
  %v4254 = vadd.f32 0.0, %v4253
  %v4255 = vpop.f32.mrb[0].mxu0
  %v4256 = vpop.f32.mrb[0].mxu0
  %v4257 = vadd.f32 0.0, %v4256
  %v4258 = vpop.f32.mrb[0].mxu0
  %4259 = vmatprep.mubr.bf16.mxu0 0
  %4260 = vmatmul.mubr.bf16.gmra.mrb[0].mxu0 %v4049
  %v4261 = vpop.f32.mrb[0].mxu0
  %v4262 = vadd.f32 0.0, %v4261
  %v4263 = vpop.f32.mrb[0].mxu0
  %v4264 = vpop.f32.mrb[0].mxu0
  %v4265 = vadd.f32 0.0, %v4264
  %v4266 = vpop.f32.mrb[0].mxu0
  %4267 = vmatprep.mubr.bf16.mxu0 0
  %4268 = vmatmul.mubr.bf16.gmra.mrb[0].mxu0 %v4052
  %v4269 = vpop.f32.mrb[0].mxu0
  %v4270 = vadd.f32 0.0, %v4269
  %v4271 = vpop.f32.mrb[0].mxu0
  %v4272 = vpop.f32.mrb[0].mxu0
  %v4273 = vadd.f32 0.0, %v4272
  %v4274 = vpop.f32.mrb[0].mxu0
  %4275 = vmatprep.mubr.bf16.mxu0 0
  %4276 = vmatmul.mubr.bf16.gmra.mrb[0].mxu0 %v4055
  %v4277 = vpop.f32.mrb[0].mxu0
  %v4278 = vadd.f32 0.0, %v4277
  %v4279 = vpop.f32.mrb[0].mxu0
  %v4280 = vpop.f32.mrb[0].mxu0
  %v4281 = vadd.f32 0.0, %v4280
  %v4282 = vpop.f32.mrb[0].mxu0
  %4283 = vmatprep.mubr.bf16.mxu0 0
  %4284 = vmatmul.mubr.bf16.gmra.mrb[0].mxu0 %v4058
  %v4285 = vpop.f32.mrb[0].mxu0
  %v4286 = vadd.f32 0.0, %v4285
  %v4287 = vpop.f32.mrb[0].mxu0
  %v4288 = vpop.f32.mrb[0].mxu0
  %v4289 = vadd.f32 0.0, %v4288
  %v4290 = vpop.f32.mrb[0].mxu0
  %4291 = vmatprep.mubr.bf16.mxu0 0
  %4292 = vmatmul.mubr.bf16.gmra.mrb[0].mxu0 %v4061
  %v4293 = vpop.f32.mrb[0].mxu0
  %v4294 = vadd.f32 0.0, %v4293
  %v4295 = vpop.f32.mrb[0].mxu0
  %v4296 = vpop.f32.mrb[0].mxu0
  %v4297 = vadd.f32 0.0, %v4296
  %v4298 = vpop.f32.mrb[0].mxu0
  %4299 = vmatprep.mubr.bf16.mxu0 0
  %4300 = vmatmul.mubr.bf16.gmra.mrb[0].mxu0 %v4064
  %v4301 = vpop.f32.mrb[0].mxu0
  %v4302 = vadd.f32 0.0, %v4301
  %v4303 = vpop.f32.mrb[0].mxu0
  %v4304 = vpop.f32.mrb[0].mxu0
  %v4305 = vadd.f32 0.0, %v4304
  %v4306 = vpop.f32.mrb[0].mxu0
  %4307 = vmatprep.mubr.bf16.mxu0 0
  %4308 = vmatmul.mubr.bf16.gmra.mrb[0].mxu0 %v4067
  %v4309 = vpop.f32.mrb[0].mxu0
  %v4310 = vadd.f32 0.0, %v4309
  %v4311 = vpop.f32.mrb[0].mxu0
  %v4312 = vpop.f32.mrb[0].mxu0
  %v4313 = vadd.f32 0.0, %v4312
  %v4314 = vpop.f32.mrb[0].mxu0
  %4315 = vmatprep.mubr.bf16.mxu0 0
  %4316 = vmatmul.mubr.bf16.gmra.mrb[0].mxu0 %v4070
  %v4317 = vpop.f32.mrb[0].mxu0
  %v4318 = vadd.f32 0.0, %v4317
  %v4319 = vpop.f32.mrb[0].mxu0
  %v4320 = vpop.f32.mrb[0].mxu0
  %v4321 = vadd.f32 0.0, %v4320
  %v4322 = vpop.f32.mrb[0].mxu0
  %4323 = vmatprep.mubr.bf16.mxu0 0
  %4324 = vmatmul.mubr.bf16.gmra.mrb[0].mxu0 %v4073
  %v4325 = vpop.f32.mrb[0].mxu0
  %v4326 = vadd.f32 0.0, %v4325
  %v4327 = vpop.f32.mrb[0].mxu0
  %v4328 = vpop.f32.mrb[0].mxu0
  %v4329 = vadd.f32 0.0, %v4328
  %v4330 = vpop.f32.mrb[0].mxu0
  %4331 = vmatprep.mubr.bf16.mxu0 0
  %4332 = vmatmul.mubr.bf16.gmra.mrb[0].mxu0 %v4076
  %v4333 = vpop.f32.mrb[0].mxu0
  %v4334 = vadd.f32 0.0, %v4333
  %v4335 = vpop.f32.mrb[0].mxu0
  %v4336 = vpop.f32.mrb[0].mxu0
  %v4337 = vadd.f32 0.0, %v4336
  %v4338 = vpop.f32.mrb[0].mxu0
  %4339 = vmatprep.mubr.bf16.mxu0 0
  %4340 = vmatmul.mubr.bf16.gmra.mrb[0].mxu0 %v4079
  %v4341 = vpop.f32.mrb[0].mxu0
  %v4342 = vadd.f32 0.0, %v4341
  %v4343 = vpop.f32.mrb[0].mxu0
  %v4344 = vpop.f32.mrb[0].mxu0
  %v4345 = vadd.f32 0.0, %v4344
  %v4346 = vpop.f32.mrb[0].mxu0
  %4347 = vmatprep.mubr.bf16.mxu0 0
  %4348 = vmatmul.mubr.bf16.gmra.mrb[0].mxu0 %v4082
  %v4349 = vpop.f32.mrb[0].mxu0
  %v4350 = vadd.f32 0.0, %v4349
  %v4351 = vpop.f32.mrb[0].mxu0
  %v4352 = vpop.f32.mrb[0].mxu0
  %v4353 = vadd.f32 0.0, %v4352
  %v4354 = vpop.f32.mrb[0].mxu0
  %4355 = vmatprep.mubr.bf16.mxu0 0
  %4356 = vmatmul.mubr.bf16.gmra.mrb[0].mxu0 %v4085
  %v4357 = vpop.f32.mrb[0].mxu0
  %v4358 = vadd.f32 0.0, %v4357
  %v4359 = vpop.f32.mrb[0].mxu0
  %v4360 = vpop.f32.mrb[0].mxu0
  %v4361 = vadd.f32 0.0, %v4360
  %v4362 = vpop.f32.mrb[0].mxu0
  %4363 = vmatprep.mubr.bf16.mxu0 0
  %4364 = vmatmul.mubr.bf16.gmra.mrb[0].mxu0 %v4088
  %v4365 = vpop.f32.mrb[0].mxu0
  %v4366 = vadd.f32 0.0, %v4365
  %v4367 = vpop.f32.mrb[0].mxu0
  %v4368 = vpop.f32.mrb[0].mxu0
  %v4369 = vadd.f32 0.0, %v4368
  %v4370 = vpop.f32.mrb[0].mxu0
  %4371 = vmatprep.mubr.bf16.mxu0 0
  %4372 = vmatmul.mubr.bf16.gmra.mrb[0].mxu0 %v4091
  %v4373 = vpop.f32.mrb[0].mxu0
  %v4374 = vadd.f32 0.0, %v4373
  %v4375 = vpop.f32.mrb[0].mxu0
  %v4376 = vpop.f32.mrb[0].mxu0
  %v4377 = vadd.f32 0.0, %v4376
  %v4378 = vpop.f32.mrb[0].mxu0
  %4379 = vmatprep.mubr.bf16.mxu0 0
  %4380 = vmatmul.mubr.bf16.gmra.mrb[0].mxu0 %v4094
  %v4381 = vpop.f32.mrb[0].mxu0
  %v4382 = vadd.f32 0.0, %v4381
  %v4383 = vpop.f32.mrb[0].mxu0
  %v4384 = vpop.f32.mrb[0].mxu0
  %v4385 = vadd.f32 0.0, %v4384
  %v4386 = vpop.f32.mrb[0].mxu0
  %4387 = vdwg.mxu0
  %v4388 = vadd.f32 %v3837, %v4134
  %v4389 = vadd.f32 %v3838, %v4137
  %v4390 = vadd.f32 %v3839, %v4142
  %v4391 = vadd.f32 %v3840, %v4145
  %v4392 = vadd.f32 %v3841, %v4150
  %v4393 = vadd.f32 %v3842, %v4153
  %v4394 = vadd.f32 %v3843, %v4158
  %v4395 = vadd.f32 %v3844, %v4161
  %v4396 = vadd.f32 %v3845, %v4166
  %v4397 = vadd.f32 %v3846, %v4169
  %v4398 = vadd.f32 %v3847, %v4174
  %v4399 = vadd.f32 %v3848, %v4177
  %v4400 = vadd.f32 %v3849, %v4182
  %v4401 = vadd.f32 %v3850, %v4185
  %v4402 = vadd.f32 %v3851, %v4190
  %v4403 = vadd.f32 %v3852, %v4193
  %v4404 = vadd.f32 %v3853, %v4198
  %v4405 = vadd.f32 %v3854, %v4201
  %v4406 = vadd.f32 %v3855, %v4206
  %v4407 = vadd.f32 %v3856, %v4209
  %v4408 = vadd.f32 %v3857, %v4214
  %v4409 = vadd.f32 %v3858, %v4217
  %v4410 = vadd.f32 %v3859, %v4222
  %v4411 = vadd.f32 %v3860, %v4225
  %v4412 = vadd.f32 %v3861, %v4230
  %v4413 = vadd.f32 %v3862, %v4233
  %v4414 = vadd.f32 %v3863, %v4238
  %v4415 = vadd.f32 %v3864, %v4241
  %v4416 = vadd.f32 %v3865, %v4246
  %v4417 = vadd.f32 %v3866, %v4249
  %v4418 = vadd.f32 %v3867, %v4254
  %v4419 = vadd.f32 %v3868, %v4257
  %v4420 = vadd.f32 %v3869, %v4262
  %v4421 = vadd.f32 %v3870, %v4265
  %v4422 = vadd.f32 %v3871, %v4270
  %v4423 = vadd.f32 %v3872, %v4273
  %v4424 = vadd.f32 %v3873, %v4278
  %v4425 = vadd.f32 %v3874, %v4281
  %v4426 = vadd.f32 %v3875, %v4286
  %v4427 = vadd.f32 %v3876, %v4289
  %v4428 = vadd.f32 %v3877, %v4294
  %v4429 = vadd.f32 %v3878, %v4297
  %v4430 = vadd.f32 %v3879, %v4302
  %v4431 = vadd.f32 %v3880, %v4305
  %v4432 = vadd.f32 %v3881, %v4310
  %v4433 = vadd.f32 %v3882, %v4313
  %v4434 = vadd.f32 %v3883, %v4318
  %v4435 = vadd.f32 %v3884, %v4321
  %v4436 = vadd.f32 %v3885, %v4326
  %v4437 = vadd.f32 %v3886, %v4329
  %v4438 = vadd.f32 %v3887, %v4334
  %v4439 = vadd.f32 %v3888, %v4337
  %v4440 = vadd.f32 %v3889, %v4342
  %v4441 = vadd.f32 %v3890, %v4345
  %v4442 = vadd.f32 %v3891, %v4350
  %v4443 = vadd.f32 %v3892, %v4353
  %v4444 = vadd.f32 %v3893, %v4358
  %v4445 = vadd.f32 %v3894, %v4361
  %v4446 = vadd.f32 %v3895, %v4366
  %v4447 = vadd.f32 %v3896, %v4369
  %v4448 = vadd.f32 %v3897, %v4374
  %v4449 = vadd.f32 %v3898, %v4377
  %v4450 = vadd.f32 %v3899, %v4382
  %v4451 = vadd.f32 %v3900, %v4385
  %v4452 = vld [vmem:[%s598] sm:$0xff]
  %v4453 = vld [vmem:[%s598 + $0x8] sm:$0xff]
  %v4454 = vld [vmem:[%s598 + $0x10] sm:$0xff]
  %v4455 = vld [vmem:[%s598 + $0x18] sm:$0xff]
  %v4456 = vld [vmem:[%s598 + $0x20] sm:$0xff]
  %v4457 = vld [vmem:[%s598 + $0x28] sm:$0xff]
  %v4458 = vld [vmem:[%s598 + $0x30] sm:$0xff]
  %v4459 = vld [vmem:[%s598 + $0x38] sm:$0xff]
  %v4460 = vld [vmem:[%s598 + $0x48] sm:$0xff]
  %v4461 = vld [vmem:[%s598 + $0x50] sm:$0xff]
  %v4462 = vld [vmem:[%s598 + $0x58] sm:$0xff]
  %v4463 = vld [vmem:[%s598 + $0x60] sm:$0xff]
  %v4464 = vld [vmem:[%s598 + $0x68] sm:$0xff]
  %v4465 = vld [vmem:[%s598 + $0x70] sm:$0xff]
  %v4466 = vld [vmem:[%s598 + $0x78] sm:$0xff]
  %v4467 = vld [vmem:[%s598 + $0x80] sm:$0xff]
  %v4468 = vld [vmem:[%s598 + $0x90] sm:$0xff]
  %v4469 = vld [vmem:[%s598 + $0x98] sm:$0xff]
  %v4470 = vld [vmem:[%s598 + $0xa0] sm:$0xff]
  %v4471 = vld [vmem:[%s598 + $0xa8] sm:$0xff]
  %v4472 = vld [vmem:[%s598 + $0xb0] sm:$0xff]
  %v4473 = vld [vmem:[%s598 + $0xb8] sm:$0xff]
  %v4474 = vld [vmem:[%s598 + $0xc0] sm:$0xff]
  %v4475 = vld [vmem:[%s598 + $0xc8] sm:$0xff]
  %v4476 = vld [vmem:[%s598 + $0xd8] sm:$0xff]
  %v4477 = vld [vmem:[%s598 + $0xe0] sm:$0xff]
  %v4478 = vld [vmem:[%s598 + $0xe8] sm:$0xff]
  %v4479 = vld [vmem:[%s598 + $0xf0] sm:$0xff]
  %v4480 = vld [vmem:[%s598 + $0xf8] sm:$0xff]
  %v4481 = vld [vmem:[%s598 + $0x100] sm:$0xff]
  %v4482 = vld [vmem:[%s598 + $0x108] sm:$0xff]
  %v4483 = vld [vmem:[%s598 + $0x110] sm:$0xff]
  %v4484 = vld [vmem:[%s598 + $0x120] sm:$0xff]
  %v4485 = vld [vmem:[%s598 + $0x128] sm:$0xff]
  %v4486 = vld [vmem:[%s598 + $0x130] sm:$0xff]
  %v4487 = vld [vmem:[%s598 + $0x138] sm:$0xff]
  %v4488 = vld [vmem:[%s598 + $0x140] sm:$0xff]
  %v4489 = vld [vmem:[%s598 + $0x148] sm:$0xff]
  %v4490 = vld [vmem:[%s598 + $0x150] sm:$0xff]
  %v4491 = vld [vmem:[%s598 + $0x158] sm:$0xff]
  %v4492 = vld [vmem:[%s598 + $0x168] sm:$0xff]
  %v4493 = vld [vmem:[%s598 + $0x170] sm:$0xff]
  %v4494 = vld [vmem:[%s598 + $0x178] sm:$0xff]
  %v4495 = vld [vmem:[%s598 + $0x180] sm:$0xff]
  %v4496 = vld [vmem:[%s598 + $0x188] sm:$0xff]
  %v4497 = vld [vmem:[%s598 + $0x190] sm:$0xff]
  %v4498 = vld [vmem:[%s598 + $0x198] sm:$0xff]
  %v4499 = vld [vmem:[%s598 + $0x1a0] sm:$0xff]
  %v4500 = vld [vmem:[%s598 + $0x1b0] sm:$0xff]
  %v4501 = vld [vmem:[%s598 + $0x1b8] sm:$0xff]
  %v4502 = vld [vmem:[%s598 + $0x1c0] sm:$0xff]
  %v4503 = vld [vmem:[%s598 + $0x1c8] sm:$0xff]
  %v4504 = vld [vmem:[%s598 + $0x1d0] sm:$0xff]
  %v4505 = vld [vmem:[%s598 + $0x1d8] sm:$0xff]
  %v4506 = vld [vmem:[%s598 + $0x1e0] sm:$0xff]
  %v4507 = vld [vmem:[%s598 + $0x1e8] sm:$0xff]
  %v4508 = vld [vmem:[%s598 + $0x1f8] sm:$0xff]
  %v4509 = vld [vmem:[%s598 + $0x200] sm:$0xff]
  %v4510 = vld [vmem:[%s598 + $0x208] sm:$0xff]
  %v4511 = vld [vmem:[%s598 + $0x210] sm:$0xff]
  %v4512 = vld [vmem:[%s598 + $0x218] sm:$0xff]
  %v4513 = vld [vmem:[%s598 + $0x220] sm:$0xff]
  %v4514 = vld [vmem:[%s598 + $0x228] sm:$0xff]
  %v4515 = vld [vmem:[%s598 + $0x230] sm:$0xff]
  %v4516 = vpack.c.bf16 %v4453, %v4452
  %v4517 = vpack.c.bf16 %v4455, %v4454
  %v4518 = vpack.c.bf16 %v4457, %v4456
  %v4519 = vpack.c.bf16 %v4459, %v4458
  %v4520 = vpack.c.bf16 %v4461, %v4460
  %v4521 = vpack.c.bf16 %v4463, %v4462
  %v4522 = vpack.c.bf16 %v4465, %v4464
  %v4523 = vpack.c.bf16 %v4467, %v4466
  %v4524 = vpack.c.bf16 %v4469, %v4468
  %v4525 = vpack.c.bf16 %v4471, %v4470
  %v4526 = vpack.c.bf16 %v4473, %v4472
  %v4527 = vpack.c.bf16 %v4475, %v4474
  %v4528 = vpack.c.bf16 %v4477, %v4476
  %v4529 = vpack.c.bf16 %v4479, %v4478
  %v4530 = vpack.c.bf16 %v4481, %v4480
  %v4531 = vpack.c.bf16 %v4483, %v4482
  %v4532 = vpack.c.bf16 %v4485, %v4484
  %v4533 = vpack.c.bf16 %v4487, %v4486
  %v4534 = vpack.c.bf16 %v4489, %v4488
  %v4535 = vpack.c.bf16 %v4491, %v4490
  %v4536 = vpack.c.bf16 %v4493, %v4492
  %v4537 = vpack.c.bf16 %v4495, %v4494
  %v4538 = vpack.c.bf16 %v4497, %v4496
  %v4539 = vpack.c.bf16 %v4499, %v4498
  %v4540 = vpack.c.bf16 %v4501, %v4500
  %v4541 = vpack.c.bf16 %v4503, %v4502
  %v4542 = vpack.c.bf16 %v4505, %v4504
  %v4543 = vpack.c.bf16 %v4507, %v4506
  %v4544 = vpack.c.bf16 %v4509, %v4508
  %v4545 = vpack.c.bf16 %v4511, %v4510
  %v4546 = vpack.c.bf16 %v4513, %v4512
  %v4547 = vpack.c.bf16 %v4515, %v4514
  %s4548 = scalar_lea.vmem %s1, 14
  %v4549 = vld [vmem:[%s4548] sm:$0x3]
  %v4551 = vsel %vm41, %v4516, 0
  %v4554 = vsel %vm41, %v4517, 0
  %v4557 = vsel %vm41, %v4518, 0
  %v4560 = vsel %vm41, %v4519, 0
  %v4563 = vsel %vm41, %v4520, 0
  %v4566 = vsel %vm41, %v4521, 0
  %v4569 = vsel %vm41, %v4522, 0
  %v4572 = vsel %vm41, %v4523, 0
  %v4575 = vsel %vm41, %v4524, 0
  %v4578 = vsel %vm41, %v4525, 0
  %v4581 = vsel %vm41, %v4526, 0
  %v4584 = vsel %vm41, %v4527, 0
  %v4587 = vsel %vm41, %v4528, 0
  %v4590 = vsel %vm41, %v4529, 0
  %v4593 = vsel %vm41, %v4530, 0
  %v4596 = vsel %vm41, %v4531, 0
  %v4599 = vsel %vm41, %v4532, 0
  %v4602 = vsel %vm41, %v4533, 0
  %v4605 = vsel %vm41, %v4534, 0
  %v4608 = vsel %vm41, %v4535, 0
  %v4611 = vsel %vm41, %v4536, 0
  %v4614 = vsel %vm41, %v4537, 0
  %v4617 = vsel %vm41, %v4538, 0
  %v4620 = vsel %vm41, %v4539, 0
  %v4623 = vsel %vm41, %v4540, 0
  %v4626 = vsel %vm41, %v4541, 0
  %v4629 = vsel %vm41, %v4542, 0
  %v4632 = vsel %vm41, %v4543, 0
  %v4635 = vsel %vm41, %v4544, 0
  %v4638 = vsel %vm41, %v4545, 0
  %v4641 = vsel %vm41, %v4546, 0
  %v4644 = vsel %vm41, %v4547, 0
  %v4647 = vsel %vm1019, %v4549, 0
  %4649 = vmatprep.subr.bf16.mxu0 0
  %4650 = vmatpush1.bf16.msra.mxu0 %v4647
  %4651 = vmatprep.subr.bf16.mxu0 0
  %4652 = vmatpush1.bf16.msra.mxu0 0
  %4653 = vmatprep.subr.bf16.mxu0 0
  %4654 = vmatpush1.bf16.msra.mxu0 0
  %4655 = vmatprep.subr.bf16.mxu0 0
  %4656 = vmatpush1.bf16.msra.mxu0 0
  %4657 = vmatprep.subr.bf16.mxu0 0
  %4658 = vmatpush1.bf16.msra.mxu0 0
  %4659 = vmatprep.subr.bf16.mxu0 0
  %4660 = vmatpush1.bf16.msra.mxu0 0
  %4661 = vmatprep.subr.bf16.mxu0 0
  %4662 = vmatpush1.bf16.msra.mxu0 0
  %4663 = vmatprep.subr.bf16.mxu0 0
  %4664 = vmatpush1.bf16.msra.mxu0 0
  %4665 = vmatprep.subr.bf16.mxu0 0
  %4666 = vmatpush1.bf16.msra.mxu0 0
  %4667 = vmatprep.subr.bf16.mxu0 0
  %4668 = vmatpush1.bf16.msra.mxu0 0
  %4669 = vmatprep.subr.bf16.mxu0 0
  %4670 = vmatpush1.bf16.msra.mxu0 0
  %4671 = vmatprep.subr.bf16.mxu0 0
  %4672 = vmatpush1.bf16.msra.mxu0 0
  %4673 = vmatprep.subr.bf16.mxu0 0
  %4674 = vmatpush1.bf16.msra.mxu0 0
  %4675 = vmatprep.subr.bf16.mxu0 0
  %4676 = vmatpush1.bf16.msra.mxu0 0
  %4677 = vmatprep.subr.bf16.mxu0 0
  %4678 = vmatpush1.bf16.msra.mxu0 0
  %4679 = vmatprep.subr.bf16.mxu0 0
  %4680 = vmatpush1.bf16.msra.mxu0 0
  %4681 = vmatprep.mubr.bf16.mxu0 0
  %4682 = vmatmul.mubr.bf16.gmra.mrb[0].mxu0 %v4551
  %v4683 = vpop.f32.mrb[0].mxu0
  %v4684 = vadd.f32 0.0, %v4683
  %v4685 = vpop.f32.mrb[0].mxu0
  %v4686 = vpop.f32.mrb[0].mxu0
  %v4687 = vadd.f32 0.0, %v4686
  %v4688 = vpop.f32.mrb[0].mxu0
  %4689 = vmatprep.mubr.bf16.mxu0 0
  %4690 = vmatmul.mubr.bf16.gmra.mrb[0].mxu0 %v4554
  %v4691 = vpop.f32.mrb[0].mxu0
  %v4692 = vadd.f32 0.0, %v4691
  %v4693 = vpop.f32.mrb[0].mxu0
  %v4694 = vpop.f32.mrb[0].mxu0
  %v4695 = vadd.f32 0.0, %v4694
  %v4696 = vpop.f32.mrb[0].mxu0
  %4697 = vmatprep.mubr.bf16.mxu0 0
  %4698 = vmatmul.mubr.bf16.gmra.mrb[0].mxu0 %v4557
  %v4699 = vpop.f32.mrb[0].mxu0
  %v4700 = vadd.f32 0.0, %v4699
  %v4701 = vpop.f32.mrb[0].mxu0
  %v4702 = vpop.f32.mrb[0].mxu0
  %v4703 = vadd.f32 0.0, %v4702
  %v4704 = vpop.f32.mrb[0].mxu0
  %4705 = vmatprep.mubr.bf16.mxu0 0
  %4706 = vmatmul.mubr.bf16.gmra.mrb[0].mxu0 %v4560
  %v4707 = vpop.f32.mrb[0].mxu0
  %v4708 = vadd.f32 0.0, %v4707
  %v4709 = vpop.f32.mrb[0].mxu0
  %v4710 = vpop.f32.mrb[0].mxu0
  %v4711 = vadd.f32 0.0, %v4710
  %v4712 = vpop.f32.mrb[0].mxu0
  %4713 = vmatprep.mubr.bf16.mxu0 0
  %4714 = vmatmul.mubr.bf16.gmra.mrb[0].mxu0 %v4563
  %v4715 = vpop.f32.mrb[0].mxu0
  %v4716 = vadd.f32 0.0, %v4715
  %v4717 = vpop.f32.mrb[0].mxu0
  %v4718 = vpop.f32.mrb[0].mxu0
  %v4719 = vadd.f32 0.0, %v4718
  %v4720 = vpop.f32.mrb[0].mxu0
  %4721 = vmatprep.mubr.bf16.mxu0 0
  %4722 = vmatmul.mubr.bf16.gmra.mrb[0].mxu0 %v4566
  %v4723 = vpop.f32.mrb[0].mxu0
  %v4724 = vadd.f32 0.0, %v4723
  %v4725 = vpop.f32.mrb[0].mxu0
  %v4726 = vpop.f32.mrb[0].mxu0
  %v4727 = vadd.f32 0.0, %v4726
  %v4728 = vpop.f32.mrb[0].mxu0
  %4729 = vmatprep.mubr.bf16.mxu0 0
  %4730 = vmatmul.mubr.bf16.gmra.mrb[0].mxu0 %v4569
  %v4731 = vpop.f32.mrb[0].mxu0
  %v4732 = vadd.f32 0.0, %v4731
  %v4733 = vpop.f32.mrb[0].mxu0
  %v4734 = vpop.f32.mrb[0].mxu0
  %v4735 = vadd.f32 0.0, %v4734
  %v4736 = vpop.f32.mrb[0].mxu0
  %4737 = vmatprep.mubr.bf16.mxu0 0
  %4738 = vmatmul.mubr.bf16.gmra.mrb[0].mxu0 %v4572
  %v4739 = vpop.f32.mrb[0].mxu0
  %v4740 = vadd.f32 0.0, %v4739
  %v4741 = vpop.f32.mrb[0].mxu0
  %v4742 = vpop.f32.mrb[0].mxu0
  %v4743 = vadd.f32 0.0, %v4742
  %v4744 = vpop.f32.mrb[0].mxu0
  %4745 = vmatprep.mubr.bf16.mxu0 0
  %4746 = vmatmul.mubr.bf16.gmra.mrb[0].mxu0 %v4575
  %v4747 = vpop.f32.mrb[0].mxu0
  %v4748 = vadd.f32 0.0, %v4747
  %v4749 = vpop.f32.mrb[0].mxu0
  %v4750 = vpop.f32.mrb[0].mxu0
  %v4751 = vadd.f32 0.0, %v4750
  %v4752 = vpop.f32.mrb[0].mxu0
  %4753 = vmatprep.mubr.bf16.mxu0 0
  %4754 = vmatmul.mubr.bf16.gmra.mrb[0].mxu0 %v4578
  %v4755 = vpop.f32.mrb[0].mxu0
  %v4756 = vadd.f32 0.0, %v4755
  %v4757 = vpop.f32.mrb[0].mxu0
  %v4758 = vpop.f32.mrb[0].mxu0
  %v4759 = vadd.f32 0.0, %v4758
  %v4760 = vpop.f32.mrb[0].mxu0
  %4761 = vmatprep.mubr.bf16.mxu0 0
  %4762 = vmatmul.mubr.bf16.gmra.mrb[0].mxu0 %v4581
  %v4763 = vpop.f32.mrb[0].mxu0
  %v4764 = vadd.f32 0.0, %v4763
  %v4765 = vpop.f32.mrb[0].mxu0
  %v4766 = vpop.f32.mrb[0].mxu0
  %v4767 = vadd.f32 0.0, %v4766
  %v4768 = vpop.f32.mrb[0].mxu0
  %4769 = vmatprep.mubr.bf16.mxu0 0
  %4770 = vmatmul.mubr.bf16.gmra.mrb[0].mxu0 %v4584
  %v4771 = vpop.f32.mrb[0].mxu0
  %v4772 = vadd.f32 0.0, %v4771
  %v4773 = vpop.f32.mrb[0].mxu0
  %v4774 = vpop.f32.mrb[0].mxu0
  %v4775 = vadd.f32 0.0, %v4774
  %v4776 = vpop.f32.mrb[0].mxu0
  %4777 = vmatprep.mubr.bf16.mxu0 0
  %4778 = vmatmul.mubr.bf16.gmra.mrb[0].mxu0 %v4587
  %v4779 = vpop.f32.mrb[0].mxu0
  %v4780 = vadd.f32 0.0, %v4779
  %v4781 = vpop.f32.mrb[0].mxu0
  %v4782 = vpop.f32.mrb[0].mxu0
  %v4783 = vadd.f32 0.0, %v4782
  %v4784 = vpop.f32.mrb[0].mxu0
  %4785 = vmatprep.mubr.bf16.mxu0 0
  %4786 = vmatmul.mubr.bf16.gmra.mrb[0].mxu0 %v4590
  %v4787 = vpop.f32.mrb[0].mxu0
  %v4788 = vadd.f32 0.0, %v4787
  %v4789 = vpop.f32.mrb[0].mxu0
  %v4790 = vpop.f32.mrb[0].mxu0
  %v4791 = vadd.f32 0.0, %v4790
  %v4792 = vpop.f32.mrb[0].mxu0
  %4793 = vmatprep.mubr.bf16.mxu0 0
  %4794 = vmatmul.mubr.bf16.gmra.mrb[0].mxu0 %v4593
  %v4795 = vpop.f32.mrb[0].mxu0
  %v4796 = vadd.f32 0.0, %v4795
  %v4797 = vpop.f32.mrb[0].mxu0
  %v4798 = vpop.f32.mrb[0].mxu0
  %v4799 = vadd.f32 0.0, %v4798
  %v4800 = vpop.f32.mrb[0].mxu0
  %4801 = vmatprep.mubr.bf16.mxu0 0
  %4802 = vmatmul.mubr.bf16.gmra.mrb[0].mxu0 %v4596
  %v4803 = vpop.f32.mrb[0].mxu0
  %v4804 = vadd.f32 0.0, %v4803
  %v4805 = vpop.f32.mrb[0].mxu0
  %v4806 = vpop.f32.mrb[0].mxu0
  %v4807 = vadd.f32 0.0, %v4806
  %v4808 = vpop.f32.mrb[0].mxu0
  %4809 = vmatprep.mubr.bf16.mxu0 0
  %4810 = vmatmul.mubr.bf16.gmra.mrb[0].mxu0 %v4599
  %v4811 = vpop.f32.mrb[0].mxu0
  %v4812 = vadd.f32 0.0, %v4811
  %v4813 = vpop.f32.mrb[0].mxu0
  %v4814 = vpop.f32.mrb[0].mxu0
  %v4815 = vadd.f32 0.0, %v4814
  %v4816 = vpop.f32.mrb[0].mxu0
  %4817 = vmatprep.mubr.bf16.mxu0 0
  %4818 = vmatmul.mubr.bf16.gmra.mrb[0].mxu0 %v4602
  %v4819 = vpop.f32.mrb[0].mxu0
  %v4820 = vadd.f32 0.0, %v4819
  %v4821 = vpop.f32.mrb[0].mxu0
  %v4822 = vpop.f32.mrb[0].mxu0
  %v4823 = vadd.f32 0.0, %v4822
  %v4824 = vpop.f32.mrb[0].mxu0
  %4825 = vmatprep.mubr.bf16.mxu0 0
  %4826 = vmatmul.mubr.bf16.gmra.mrb[0].mxu0 %v4605
  %v4827 = vpop.f32.mrb[0].mxu0
  %v4828 = vadd.f32 0.0, %v4827
  %v4829 = vpop.f32.mrb[0].mxu0
  %v4830 = vpop.f32.mrb[0].mxu0
  %v4831 = vadd.f32 0.0, %v4830
  %v4832 = vpop.f32.mrb[0].mxu0
  %4833 = vmatprep.mubr.bf16.mxu0 0
  %4834 = vmatmul.mubr.bf16.gmra.mrb[0].mxu0 %v4608
  %v4835 = vpop.f32.mrb[0].mxu0
  %v4836 = vadd.f32 0.0, %v4835
  %v4837 = vpop.f32.mrb[0].mxu0
  %v4838 = vpop.f32.mrb[0].mxu0
  %v4839 = vadd.f32 0.0, %v4838
  %v4840 = vpop.f32.mrb[0].mxu0
  %4841 = vmatprep.mubr.bf16.mxu0 0
  %4842 = vmatmul.mubr.bf16.gmra.mrb[0].mxu0 %v4611
  %v4843 = vpop.f32.mrb[0].mxu0
  %v4844 = vadd.f32 0.0, %v4843
  %v4845 = vpop.f32.mrb[0].mxu0
  %v4846 = vpop.f32.mrb[0].mxu0
  %v4847 = vadd.f32 0.0, %v4846
  %v4848 = vpop.f32.mrb[0].mxu0
  %4849 = vmatprep.mubr.bf16.mxu0 0
  %4850 = vmatmul.mubr.bf16.gmra.mrb[0].mxu0 %v4614
  %v4851 = vpop.f32.mrb[0].mxu0
  %v4852 = vadd.f32 0.0, %v4851
  %v4853 = vpop.f32.mrb[0].mxu0
  %v4854 = vpop.f32.mrb[0].mxu0
  %v4855 = vadd.f32 0.0, %v4854
  %v4856 = vpop.f32.mrb[0].mxu0
  %4857 = vmatprep.mubr.bf16.mxu0 0
  %4858 = vmatmul.mubr.bf16.gmra.mrb[0].mxu0 %v4617
  %v4859 = vpop.f32.mrb[0].mxu0
  %v4860 = vadd.f32 0.0, %v4859
  %v4861 = vpop.f32.mrb[0].mxu0
  %v4862 = vpop.f32.mrb[0].mxu0
  %v4863 = vadd.f32 0.0, %v4862
  %v4864 = vpop.f32.mrb[0].mxu0
  %4865 = vmatprep.mubr.bf16.mxu0 0
  %4866 = vmatmul.mubr.bf16.gmra.mrb[0].mxu0 %v4620
  %v4867 = vpop.f32.mrb[0].mxu0
  %v4868 = vadd.f32 0.0, %v4867
  %v4869 = vpop.f32.mrb[0].mxu0
  %v4870 = vpop.f32.mrb[0].mxu0
  %v4871 = vadd.f32 0.0, %v4870
  %v4872 = vpop.f32.mrb[0].mxu0
  %4873 = vmatprep.mubr.bf16.mxu0 0
  %4874 = vmatmul.mubr.bf16.gmra.mrb[0].mxu0 %v4623
  %v4875 = vpop.f32.mrb[0].mxu0
  %v4876 = vadd.f32 0.0, %v4875
  %v4877 = vpop.f32.mrb[0].mxu0
  %v4878 = vpop.f32.mrb[0].mxu0
  %v4879 = vadd.f32 0.0, %v4878
  %v4880 = vpop.f32.mrb[0].mxu0
  %4881 = vmatprep.mubr.bf16.mxu0 0
  %4882 = vmatmul.mubr.bf16.gmra.mrb[0].mxu0 %v4626
  %v4883 = vpop.f32.mrb[0].mxu0
  %v4884 = vadd.f32 0.0, %v4883
  %v4885 = vpop.f32.mrb[0].mxu0
  %v4886 = vpop.f32.mrb[0].mxu0
  %v4887 = vadd.f32 0.0, %v4886
  %v4888 = vpop.f32.mrb[0].mxu0
  %4889 = vmatprep.mubr.bf16.mxu0 0
  %4890 = vmatmul.mubr.bf16.gmra.mrb[0].mxu0 %v4629
  %v4891 = vpop.f32.mrb[0].mxu0
  %v4892 = vadd.f32 0.0, %v4891
  %v4893 = vpop.f32.mrb[0].mxu0
  %v4894 = vpop.f32.mrb[0].mxu0
  %v4895 = vadd.f32 0.0, %v4894
  %v4896 = vpop.f32.mrb[0].mxu0
  %4897 = vmatprep.mubr.bf16.mxu0 0
  %4898 = vmatmul.mubr.bf16.gmra.mrb[0].mxu0 %v4632
  %v4899 = vpop.f32.mrb[0].mxu0
  %v4900 = vadd.f32 0.0, %v4899
  %v4901 = vpop.f32.mrb[0].mxu0
  %v4902 = vpop.f32.mrb[0].mxu0
  %v4903 = vadd.f32 0.0, %v4902
  %v4904 = vpop.f32.mrb[0].mxu0
  %4905 = vmatprep.mubr.bf16.mxu0 0
  %4906 = vmatmul.mubr.bf16.gmra.mrb[0].mxu0 %v4635
  %v4907 = vpop.f32.mrb[0].mxu0
  %v4908 = vadd.f32 0.0, %v4907
  %v4909 = vpop.f32.mrb[0].mxu0
  %v4910 = vpop.f32.mrb[0].mxu0
  %v4911 = vadd.f32 0.0, %v4910
  %v4912 = vpop.f32.mrb[0].mxu0
  %4913 = vmatprep.mubr.bf16.mxu0 0
  %4914 = vmatmul.mubr.bf16.gmra.mrb[0].mxu0 %v4638
  %v4915 = vpop.f32.mrb[0].mxu0
  %v4916 = vadd.f32 0.0, %v4915
  %v4917 = vpop.f32.mrb[0].mxu0
  %v4918 = vpop.f32.mrb[0].mxu0
  %v4919 = vadd.f32 0.0, %v4918
  %v4920 = vpop.f32.mrb[0].mxu0
  %4921 = vmatprep.mubr.bf16.mxu0 0
  %4922 = vmatmul.mubr.bf16.gmra.mrb[0].mxu0 %v4641
  %v4923 = vpop.f32.mrb[0].mxu0
  %v4924 = vadd.f32 0.0, %v4923
  %v4925 = vpop.f32.mrb[0].mxu0
  %v4926 = vpop.f32.mrb[0].mxu0
  %v4927 = vadd.f32 0.0, %v4926
  %v4928 = vpop.f32.mrb[0].mxu0
  %4929 = vmatprep.mubr.bf16.mxu0 0
  %4930 = vmatmul.mubr.bf16.gmra.mrb[0].mxu0 %v4644
  %v4931 = vpop.f32.mrb[0].mxu0
  %v4932 = vadd.f32 0.0, %v4931
  %v4933 = vpop.f32.mrb[0].mxu0
  %v4934 = vpop.f32.mrb[0].mxu0
  %v4935 = vadd.f32 0.0, %v4934
  %v4936 = vpop.f32.mrb[0].mxu0
  %4937 = vdwg.mxu0
  %v4938 = vadd.f32 %v4388, %v4684
  %v4939 = vadd.f32 %v4389, %v4687
  %v4940 = vadd.f32 %v4390, %v4692
  %v4941 = vadd.f32 %v4391, %v4695
  %v4942 = vadd.f32 %v4392, %v4700
  %v4943 = vadd.f32 %v4393, %v4703
  %v4944 = vadd.f32 %v4394, %v4708
  %v4945 = vadd.f32 %v4395, %v4711
  %v4946 = vadd.f32 %v4396, %v4716
  %v4947 = vadd.f32 %v4397, %v4719
  %v4948 = vadd.f32 %v4398, %v4724
  %v4949 = vadd.f32 %v4399, %v4727
  %v4950 = vadd.f32 %v4400, %v4732
  %v4951 = vadd.f32 %v4401, %v4735
  %v4952 = vadd.f32 %v4402, %v4740
  %v4953 = vadd.f32 %v4403, %v4743
  %v4954 = vadd.f32 %v4404, %v4748
  %v4955 = vadd.f32 %v4405, %v4751
  %v4956 = vadd.f32 %v4406, %v4756
  %v4957 = vadd.f32 %v4407, %v4759
  %v4958 = vadd.f32 %v4408, %v4764
  %v4959 = vadd.f32 %v4409, %v4767
  %v4960 = vadd.f32 %v4410, %v4772
  %v4961 = vadd.f32 %v4411, %v4775
  %v4962 = vadd.f32 %v4412, %v4780
  %v4963 = vadd.f32 %v4413, %v4783
  %v4964 = vadd.f32 %v4414, %v4788
  %v4965 = vadd.f32 %v4415, %v4791
  %v4966 = vadd.f32 %v4416, %v4796
  %v4967 = vadd.f32 %v4417, %v4799
  %v4968 = vadd.f32 %v4418, %v4804
  %v4969 = vadd.f32 %v4419, %v4807
  %v4970 = vadd.f32 %v4420, %v4812
  %v4971 = vadd.f32 %v4421, %v4815
  %v4972 = vadd.f32 %v4422, %v4820
  %v4973 = vadd.f32 %v4423, %v4823
  %v4974 = vadd.f32 %v4424, %v4828
  %v4975 = vadd.f32 %v4425, %v4831
  %v4976 = vadd.f32 %v4426, %v4836
  %v4977 = vadd.f32 %v4427, %v4839
  %v4978 = vadd.f32 %v4428, %v4844
  %v4979 = vadd.f32 %v4429, %v4847
  %v4980 = vadd.f32 %v4430, %v4852
  %v4981 = vadd.f32 %v4431, %v4855
  %v4982 = vadd.f32 %v4432, %v4860
  %v4983 = vadd.f32 %v4433, %v4863
  %v4984 = vadd.f32 %v4434, %v4868
  %v4985 = vadd.f32 %v4435, %v4871
  %v4986 = vadd.f32 %v4436, %v4876
  %v4987 = vadd.f32 %v4437, %v4879
  %v4988 = vadd.f32 %v4438, %v4884
  %v4989 = vadd.f32 %v4439, %v4887
  %v4990 = vadd.f32 %v4440, %v4892
  %v4991 = vadd.f32 %v4441, %v4895
  %v4992 = vadd.f32 %v4442, %v4900
  %v4993 = vadd.f32 %v4443, %v4903
  %v4994 = vadd.f32 %v4444, %v4908
  %v4995 = vadd.f32 %v4445, %v4911
  %v4996 = vadd.f32 %v4446, %v4916
  %v4997 = vadd.f32 %v4447, %v4919
  %v4998 = vadd.f32 %v4448, %v4924
  %v4999 = vadd.f32 %v4449, %v4927
  %v5000 = vadd.f32 %v4450, %v4932
  %v5001 = vadd.f32 %v4451, %v4935
  %v5002 = vld [vmem:[%s663] sm:$0xff]
  %v5003 = vld [vmem:[%s663 + $0x8] sm:$0xff]
  %v5004 = vld [vmem:[%s663 + $0x10] sm:$0xff]
  %v5005 = vld [vmem:[%s663 + $0x18] sm:$0xff]
  %v5006 = vld [vmem:[%s663 + $0x20] sm:$0xff]
  %v5007 = vld [vmem:[%s663 + $0x28] sm:$0xff]
  %v5008 = vld [vmem:[%s663 + $0x30] sm:$0xff]
  %v5009 = vld [vmem:[%s663 + $0x38] sm:$0xff]
  %v5010 = vld [vmem:[%s663 + $0x48] sm:$0xff]
  %v5011 = vld [vmem:[%s663 + $0x50] sm:$0xff]
  %v5012 = vld [vmem:[%s663 + $0x58] sm:$0xff]
  %v5013 = vld [vmem:[%s663 + $0x60] sm:$0xff]
  %v5014 = vld [vmem:[%s663 + $0x68] sm:$0xff]
  %v5015 = vld [vmem:[%s663 + $0x70] sm:$0xff]
  %v5016 = vld [vmem:[%s663 + $0x78] sm:$0xff]
  %v5017 = vld [vmem:[%s663 + $0x80] sm:$0xff]
  %v5018 = vld [vmem:[%s663 + $0x90] sm:$0xff]
  %v5019 = vld [vmem:[%s663 + $0x98] sm:$0xff]
  %v5020 = vld [vmem:[%s663 + $0xa0] sm:$0xff]
  %v5021 = vld [vmem:[%s663 + $0xa8] sm:$0xff]
  %v5022 = vld [vmem:[%s663 + $0xb0] sm:$0xff]
  %v5023 = vld [vmem:[%s663 + $0xb8] sm:$0xff]
  %v5024 = vld [vmem:[%s663 + $0xc0] sm:$0xff]
  %v5025 = vld [vmem:[%s663 + $0xc8] sm:$0xff]
  %v5026 = vld [vmem:[%s663 + $0xd8] sm:$0xff]
  %v5027 = vld [vmem:[%s663 + $0xe0] sm:$0xff]
  %v5028 = vld [vmem:[%s663 + $0xe8] sm:$0xff]
  %v5029 = vld [vmem:[%s663 + $0xf0] sm:$0xff]
  %v5030 = vld [vmem:[%s663 + $0xf8] sm:$0xff]
  %v5031 = vld [vmem:[%s663 + $0x100] sm:$0xff]
  %v5032 = vld [vmem:[%s663 + $0x108] sm:$0xff]
  %v5033 = vld [vmem:[%s663 + $0x110] sm:$0xff]
  %v5034 = vld [vmem:[%s663 + $0x120] sm:$0xff]
  %v5035 = vld [vmem:[%s663 + $0x128] sm:$0xff]
  %v5036 = vld [vmem:[%s663 + $0x130] sm:$0xff]
  %v5037 = vld [vmem:[%s663 + $0x138] sm:$0xff]
  %v5038 = vld [vmem:[%s663 + $0x140] sm:$0xff]
  %v5039 = vld [vmem:[%s663 + $0x148] sm:$0xff]
  %v5040 = vld [vmem:[%s663 + $0x150] sm:$0xff]
  %v5041 = vld [vmem:[%s663 + $0x158] sm:$0xff]
  %v5042 = vld [vmem:[%s663 + $0x168] sm:$0xff]
  %v5043 = vld [vmem:[%s663 + $0x170] sm:$0xff]
  %v5044 = vld [vmem:[%s663 + $0x178] sm:$0xff]
  %v5045 = vld [vmem:[%s663 + $0x180] sm:$0xff]
  %v5046 = vld [vmem:[%s663 + $0x188] sm:$0xff]
  %v5047 = vld [vmem:[%s663 + $0x190] sm:$0xff]
  %v5048 = vld [vmem:[%s663 + $0x198] sm:$0xff]
  %v5049 = vld [vmem:[%s663 + $0x1a0] sm:$0xff]
  %v5050 = vld [vmem:[%s663 + $0x1b0] sm:$0xff]
  %v5051 = vld [vmem:[%s663 + $0x1b8] sm:$0xff]
  %v5052 = vld [vmem:[%s663 + $0x1c0] sm:$0xff]
  %v5053 = vld [vmem:[%s663 + $0x1c8] sm:$0xff]
  %v5054 = vld [vmem:[%s663 + $0x1d0] sm:$0xff]
  %v5055 = vld [vmem:[%s663 + $0x1d8] sm:$0xff]
  %v5056 = vld [vmem:[%s663 + $0x1e0] sm:$0xff]
  %v5057 = vld [vmem:[%s663 + $0x1e8] sm:$0xff]
  %v5058 = vld [vmem:[%s663 + $0x1f8] sm:$0xff]
  %v5059 = vld [vmem:[%s663 + $0x200] sm:$0xff]
  %v5060 = vld [vmem:[%s663 + $0x208] sm:$0xff]
  %v5061 = vld [vmem:[%s663 + $0x210] sm:$0xff]
  %v5062 = vld [vmem:[%s663 + $0x218] sm:$0xff]
  %v5063 = vld [vmem:[%s663 + $0x220] sm:$0xff]
  %v5064 = vld [vmem:[%s663 + $0x228] sm:$0xff]
  %v5065 = vld [vmem:[%s663 + $0x230] sm:$0xff]
  %v5066 = vpack.c.bf16 %v5003, %v5002
  %v5067 = vpack.c.bf16 %v5005, %v5004
  %v5068 = vpack.c.bf16 %v5007, %v5006
  %v5069 = vpack.c.bf16 %v5009, %v5008
  %v5070 = vpack.c.bf16 %v5011, %v5010
  %v5071 = vpack.c.bf16 %v5013, %v5012
  %v5072 = vpack.c.bf16 %v5015, %v5014
  %v5073 = vpack.c.bf16 %v5017, %v5016
  %v5074 = vpack.c.bf16 %v5019, %v5018
  %v5075 = vpack.c.bf16 %v5021, %v5020
  %v5076 = vpack.c.bf16 %v5023, %v5022
  %v5077 = vpack.c.bf16 %v5025, %v5024
  %v5078 = vpack.c.bf16 %v5027, %v5026
  %v5079 = vpack.c.bf16 %v5029, %v5028
  %v5080 = vpack.c.bf16 %v5031, %v5030
  %v5081 = vpack.c.bf16 %v5033, %v5032
  %v5082 = vpack.c.bf16 %v5035, %v5034
  %v5083 = vpack.c.bf16 %v5037, %v5036
  %v5084 = vpack.c.bf16 %v5039, %v5038
  %v5085 = vpack.c.bf16 %v5041, %v5040
  %v5086 = vpack.c.bf16 %v5043, %v5042
  %v5087 = vpack.c.bf16 %v5045, %v5044
  %v5088 = vpack.c.bf16 %v5047, %v5046
  %v5089 = vpack.c.bf16 %v5049, %v5048
  %v5090 = vpack.c.bf16 %v5051, %v5050
  %v5091 = vpack.c.bf16 %v5053, %v5052
  %v5092 = vpack.c.bf16 %v5055, %v5054
  %v5093 = vpack.c.bf16 %v5057, %v5056
  %v5094 = vpack.c.bf16 %v5059, %v5058
  %v5095 = vpack.c.bf16 %v5061, %v5060
  %v5096 = vpack.c.bf16 %v5063, %v5062
  %v5097 = vpack.c.bf16 %v5065, %v5064
  %s5098 = scalar_lea.vmem %s1, 16
  %v5099 = vld [vmem:[%s5098] sm:$0x3]
  %v5101 = vsel %vm41, %v5066, 0
  %v5104 = vsel %vm41, %v5067, 0
  %v5107 = vsel %vm41, %v5068, 0
  %v5110 = vsel %vm41, %v5069, 0
  %v5113 = vsel %vm41, %v5070, 0
  %v5116 = vsel %vm41, %v5071, 0
  %v5119 = vsel %vm41, %v5072, 0
  %v5122 = vsel %vm41, %v5073, 0
  %v5125 = vsel %vm41, %v5074, 0
  %v5128 = vsel %vm41, %v5075, 0
  %v5131 = vsel %vm41, %v5076, 0
  %v5134 = vsel %vm41, %v5077, 0
  %v5137 = vsel %vm41, %v5078, 0
  %v5140 = vsel %vm41, %v5079, 0
  %v5143 = vsel %vm41, %v5080, 0
  %v5146 = vsel %vm41, %v5081, 0
  %v5149 = vsel %vm41, %v5082, 0
  %v5152 = vsel %vm41, %v5083, 0
  %v5155 = vsel %vm41, %v5084, 0
  %v5158 = vsel %vm41, %v5085, 0
  %v5161 = vsel %vm41, %v5086, 0
  %v5164 = vsel %vm41, %v5087, 0
  %v5167 = vsel %vm41, %v5088, 0
  %v5170 = vsel %vm41, %v5089, 0
  %v5173 = vsel %vm41, %v5090, 0
  %v5176 = vsel %vm41, %v5091, 0
  %v5179 = vsel %vm41, %v5092, 0
  %v5182 = vsel %vm41, %v5093, 0
  %v5185 = vsel %vm41, %v5094, 0
  %v5188 = vsel %vm41, %v5095, 0
  %v5191 = vsel %vm41, %v5096, 0
  %v5194 = vsel %vm41, %v5097, 0
  %v5197 = vsel %vm1019, %v5099, 0
  %5199 = vmatprep.subr.bf16.mxu0 0
  %5200 = vmatpush1.bf16.msra.mxu0 %v5197
  %5201 = vmatprep.subr.bf16.mxu0 0
  %5202 = vmatpush1.bf16.msra.mxu0 0
  %5203 = vmatprep.subr.bf16.mxu0 0
  %5204 = vmatpush1.bf16.msra.mxu0 0
  %5205 = vmatprep.subr.bf16.mxu0 0
  %5206 = vmatpush1.bf16.msra.mxu0 0
  %5207 = vmatprep.subr.bf16.mxu0 0
  %5208 = vmatpush1.bf16.msra.mxu0 0
  %5209 = vmatprep.subr.bf16.mxu0 0
  %5210 = vmatpush1.bf16.msra.mxu0 0
  %5211 = vmatprep.subr.bf16.mxu0 0
  %5212 = vmatpush1.bf16.msra.mxu0 0
  %5213 = vmatprep.subr.bf16.mxu0 0
  %5214 = vmatpush1.bf16.msra.mxu0 0
  %5215 = vmatprep.subr.bf16.mxu0 0
  %5216 = vmatpush1.bf16.msra.mxu0 0
  %5217 = vmatprep.subr.bf16.mxu0 0
  %5218 = vmatpush1.bf16.msra.mxu0 0
  %5219 = vmatprep.subr.bf16.mxu0 0
  %5220 = vmatpush1.bf16.msra.mxu0 0
  %5221 = vmatprep.subr.bf16.mxu0 0
  %5222 = vmatpush1.bf16.msra.mxu0 0
  %5223 = vmatprep.subr.bf16.mxu0 0
  %5224 = vmatpush1.bf16.msra.mxu0 0
  %5225 = vmatprep.subr.bf16.mxu0 0
  %5226 = vmatpush1.bf16.msra.mxu0 0
  %5227 = vmatprep.subr.bf16.mxu0 0
  %5228 = vmatpush1.bf16.msra.mxu0 0
  %5229 = vmatprep.subr.bf16.mxu0 0
  %5230 = vmatpush1.bf16.msra.mxu0 0
  %5231 = vmatprep.mubr.bf16.mxu0 0
  %5232 = vmatmul.mubr.bf16.gmra.mrb[0].mxu0 %v5101
  %v5233 = vpop.f32.mrb[0].mxu0
  %v5234 = vadd.f32 0.0, %v5233
  %v5235 = vpop.f32.mrb[0].mxu0
  %v5236 = vpop.f32.mrb[0].mxu0
  %v5237 = vadd.f32 0.0, %v5236
  %v5238 = vpop.f32.mrb[0].mxu0
  %5239 = vmatprep.mubr.bf16.mxu0 0
  %5240 = vmatmul.mubr.bf16.gmra.mrb[0].mxu0 %v5104
  %v5241 = vpop.f32.mrb[0].mxu0
  %v5242 = vadd.f32 0.0, %v5241
  %v5243 = vpop.f32.mrb[0].mxu0
  %v5244 = vpop.f32.mrb[0].mxu0
  %v5245 = vadd.f32 0.0, %v5244
  %v5246 = vpop.f32.mrb[0].mxu0
  %5247 = vmatprep.mubr.bf16.mxu0 0
  %5248 = vmatmul.mubr.bf16.gmra.mrb[0].mxu0 %v5107
  %v5249 = vpop.f32.mrb[0].mxu0
  %v5250 = vadd.f32 0.0, %v5249
  %v5251 = vpop.f32.mrb[0].mxu0
  %v5252 = vpop.f32.mrb[0].mxu0
  %v5253 = vadd.f32 0.0, %v5252
  %v5254 = vpop.f32.mrb[0].mxu0
  %5255 = vmatprep.mubr.bf16.mxu0 0
  %5256 = vmatmul.mubr.bf16.gmra.mrb[0].mxu0 %v5110
  %v5257 = vpop.f32.mrb[0].mxu0
  %v5258 = vadd.f32 0.0, %v5257
  %v5259 = vpop.f32.mrb[0].mxu0
  %v5260 = vpop.f32.mrb[0].mxu0
  %v5261 = vadd.f32 0.0, %v5260
  %v5262 = vpop.f32.mrb[0].mxu0
  %5263 = vmatprep.mubr.bf16.mxu0 0
  %5264 = vmatmul.mubr.bf16.gmra.mrb[0].mxu0 %v5113
  %v5265 = vpop.f32.mrb[0].mxu0
  %v5266 = vadd.f32 0.0, %v5265
  %v5267 = vpop.f32.mrb[0].mxu0
  %v5268 = vpop.f32.mrb[0].mxu0
  %v5269 = vadd.f32 0.0, %v5268
  %v5270 = vpop.f32.mrb[0].mxu0
  %5271 = vmatprep.mubr.bf16.mxu0 0
  %5272 = vmatmul.mubr.bf16.gmra.mrb[0].mxu0 %v5116
  %v5273 = vpop.f32.mrb[0].mxu0
  %v5274 = vadd.f32 0.0, %v5273
  %v5275 = vpop.f32.mrb[0].mxu0
  %v5276 = vpop.f32.mrb[0].mxu0
  %v5277 = vadd.f32 0.0, %v5276
  %v5278 = vpop.f32.mrb[0].mxu0
  %5279 = vmatprep.mubr.bf16.mxu0 0
  %5280 = vmatmul.mubr.bf16.gmra.mrb[0].mxu0 %v5119
  %v5281 = vpop.f32.mrb[0].mxu0
  %v5282 = vadd.f32 0.0, %v5281
  %v5283 = vpop.f32.mrb[0].mxu0
  %v5284 = vpop.f32.mrb[0].mxu0
  %v5285 = vadd.f32 0.0, %v5284
  %v5286 = vpop.f32.mrb[0].mxu0
  %5287 = vmatprep.mubr.bf16.mxu0 0
  %5288 = vmatmul.mubr.bf16.gmra.mrb[0].mxu0 %v5122
  %v5289 = vpop.f32.mrb[0].mxu0
  %v5290 = vadd.f32 0.0, %v5289
  %v5291 = vpop.f32.mrb[0].mxu0
  %v5292 = vpop.f32.mrb[0].mxu0
  %v5293 = vadd.f32 0.0, %v5292
  %v5294 = vpop.f32.mrb[0].mxu0
  %5295 = vmatprep.mubr.bf16.mxu0 0
  %5296 = vmatmul.mubr.bf16.gmra.mrb[0].mxu0 %v5125
  %v5297 = vpop.f32.mrb[0].mxu0
  %v5298 = vadd.f32 0.0, %v5297
  %v5299 = vpop.f32.mrb[0].mxu0
  %v5300 = vpop.f32.mrb[0].mxu0
  %v5301 = vadd.f32 0.0, %v5300
  %v5302 = vpop.f32.mrb[0].mxu0
  %5303 = vmatprep.mubr.bf16.mxu0 0
  %5304 = vmatmul.mubr.bf16.gmra.mrb[0].mxu0 %v5128
  %v5305 = vpop.f32.mrb[0].mxu0
  %v5306 = vadd.f32 0.0, %v5305
  %v5307 = vpop.f32.mrb[0].mxu0
  %v5308 = vpop.f32.mrb[0].mxu0
  %v5309 = vadd.f32 0.0, %v5308
  %v5310 = vpop.f32.mrb[0].mxu0
  %5311 = vmatprep.mubr.bf16.mxu0 0
  %5312 = vmatmul.mubr.bf16.gmra.mrb[0].mxu0 %v5131
  %v5313 = vpop.f32.mrb[0].mxu0
  %v5314 = vadd.f32 0.0, %v5313
  %v5315 = vpop.f32.mrb[0].mxu0
  %v5316 = vpop.f32.mrb[0].mxu0
  %v5317 = vadd.f32 0.0, %v5316
  %v5318 = vpop.f32.mrb[0].mxu0
  %5319 = vmatprep.mubr.bf16.mxu0 0
  %5320 = vmatmul.mubr.bf16.gmra.mrb[0].mxu0 %v5134
  %v5321 = vpop.f32.mrb[0].mxu0
  %v5322 = vadd.f32 0.0, %v5321
  %v5323 = vpop.f32.mrb[0].mxu0
  %v5324 = vpop.f32.mrb[0].mxu0
  %v5325 = vadd.f32 0.0, %v5324
  %v5326 = vpop.f32.mrb[0].mxu0
  %5327 = vmatprep.mubr.bf16.mxu0 0
  %5328 = vmatmul.mubr.bf16.gmra.mrb[0].mxu0 %v5137
  %v5329 = vpop.f32.mrb[0].mxu0
  %v5330 = vadd.f32 0.0, %v5329
  %v5331 = vpop.f32.mrb[0].mxu0
  %v5332 = vpop.f32.mrb[0].mxu0
  %v5333 = vadd.f32 0.0, %v5332
  %v5334 = vpop.f32.mrb[0].mxu0
  %5335 = vmatprep.mubr.bf16.mxu0 0
  %5336 = vmatmul.mubr.bf16.gmra.mrb[0].mxu0 %v5140
  %v5337 = vpop.f32.mrb[0].mxu0
  %v5338 = vadd.f32 0.0, %v5337
  %v5339 = vpop.f32.mrb[0].mxu0
  %v5340 = vpop.f32.mrb[0].mxu0
  %v5341 = vadd.f32 0.0, %v5340
  %v5342 = vpop.f32.mrb[0].mxu0
  %5343 = vmatprep.mubr.bf16.mxu0 0
  %5344 = vmatmul.mubr.bf16.gmra.mrb[0].mxu0 %v5143
  %v5345 = vpop.f32.mrb[0].mxu0
  %v5346 = vadd.f32 0.0, %v5345
  %v5347 = vpop.f32.mrb[0].mxu0
  %v5348 = vpop.f32.mrb[0].mxu0
  %v5349 = vadd.f32 0.0, %v5348
  %v5350 = vpop.f32.mrb[0].mxu0
  %5351 = vmatprep.mubr.bf16.mxu0 0
  %5352 = vmatmul.mubr.bf16.gmra.mrb[0].mxu0 %v5146
  %v5353 = vpop.f32.mrb[0].mxu0
  %v5354 = vadd.f32 0.0, %v5353
  %v5355 = vpop.f32.mrb[0].mxu0
  %v5356 = vpop.f32.mrb[0].mxu0
  %v5357 = vadd.f32 0.0, %v5356
  %v5358 = vpop.f32.mrb[0].mxu0
  %5359 = vmatprep.mubr.bf16.mxu0 0
  %5360 = vmatmul.mubr.bf16.gmra.mrb[0].mxu0 %v5149
  %v5361 = vpop.f32.mrb[0].mxu0
  %v5362 = vadd.f32 0.0, %v5361
  %v5363 = vpop.f32.mrb[0].mxu0
  %v5364 = vpop.f32.mrb[0].mxu0
  %v5365 = vadd.f32 0.0, %v5364
  %v5366 = vpop.f32.mrb[0].mxu0
  %5367 = vmatprep.mubr.bf16.mxu0 0
  %5368 = vmatmul.mubr.bf16.gmra.mrb[0].mxu0 %v5152
  %v5369 = vpop.f32.mrb[0].mxu0
  %v5370 = vadd.f32 0.0, %v5369
  %v5371 = vpop.f32.mrb[0].mxu0
  %v5372 = vpop.f32.mrb[0].mxu0
  %v5373 = vadd.f32 0.0, %v5372
  %v5374 = vpop.f32.mrb[0].mxu0
  %5375 = vmatprep.mubr.bf16.mxu0 0
  %5376 = vmatmul.mubr.bf16.gmra.mrb[0].mxu0 %v5155
  %v5377 = vpop.f32.mrb[0].mxu0
  %v5378 = vadd.f32 0.0, %v5377
  %v5379 = vpop.f32.mrb[0].mxu0
  %v5380 = vpop.f32.mrb[0].mxu0
  %v5381 = vadd.f32 0.0, %v5380
  %v5382 = vpop.f32.mrb[0].mxu0
  %5383 = vmatprep.mubr.bf16.mxu0 0
  %5384 = vmatmul.mubr.bf16.gmra.mrb[0].mxu0 %v5158
  %v5385 = vpop.f32.mrb[0].mxu0
  %v5386 = vadd.f32 0.0, %v5385
  %v5387 = vpop.f32.mrb[0].mxu0
  %v5388 = vpop.f32.mrb[0].mxu0
  %v5389 = vadd.f32 0.0, %v5388
  %v5390 = vpop.f32.mrb[0].mxu0
  %5391 = vmatprep.mubr.bf16.mxu0 0
  %5392 = vmatmul.mubr.bf16.gmra.mrb[0].mxu0 %v5161
  %v5393 = vpop.f32.mrb[0].mxu0
  %v5394 = vadd.f32 0.0, %v5393
  %v5395 = vpop.f32.mrb[0].mxu0
  %v5396 = vpop.f32.mrb[0].mxu0
  %v5397 = vadd.f32 0.0, %v5396
  %v5398 = vpop.f32.mrb[0].mxu0
  %5399 = vmatprep.mubr.bf16.mxu0 0
  %5400 = vmatmul.mubr.bf16.gmra.mrb[0].mxu0 %v5164
  %v5401 = vpop.f32.mrb[0].mxu0
  %v5402 = vadd.f32 0.0, %v5401
  %v5403 = vpop.f32.mrb[0].mxu0
  %v5404 = vpop.f32.mrb[0].mxu0
  %v5405 = vadd.f32 0.0, %v5404
  %v5406 = vpop.f32.mrb[0].mxu0
  %5407 = vmatprep.mubr.bf16.mxu0 0
  %5408 = vmatmul.mubr.bf16.gmra.mrb[0].mxu0 %v5167
  %v5409 = vpop.f32.mrb[0].mxu0
  %v5410 = vadd.f32 0.0, %v5409
  %v5411 = vpop.f32.mrb[0].mxu0
  %v5412 = vpop.f32.mrb[0].mxu0
  %v5413 = vadd.f32 0.0, %v5412
  %v5414 = vpop.f32.mrb[0].mxu0
  %5415 = vmatprep.mubr.bf16.mxu0 0
  %5416 = vmatmul.mubr.bf16.gmra.mrb[0].mxu0 %v5170
  %v5417 = vpop.f32.mrb[0].mxu0
  %v5418 = vadd.f32 0.0, %v5417
  %v5419 = vpop.f32.mrb[0].mxu0
  %v5420 = vpop.f32.mrb[0].mxu0
  %v5421 = vadd.f32 0.0, %v5420
  %v5422 = vpop.f32.mrb[0].mxu0
  %5423 = vmatprep.mubr.bf16.mxu0 0
  %5424 = vmatmul.mubr.bf16.gmra.mrb[0].mxu0 %v5173
  %v5425 = vpop.f32.mrb[0].mxu0
  %v5426 = vadd.f32 0.0, %v5425
  %v5427 = vpop.f32.mrb[0].mxu0
  %v5428 = vpop.f32.mrb[0].mxu0
  %v5429 = vadd.f32 0.0, %v5428
  %v5430 = vpop.f32.mrb[0].mxu0
  %5431 = vmatprep.mubr.bf16.mxu0 0
  %5432 = vmatmul.mubr.bf16.gmra.mrb[0].mxu0 %v5176
  %v5433 = vpop.f32.mrb[0].mxu0
  %v5434 = vadd.f32 0.0, %v5433
  %v5435 = vpop.f32.mrb[0].mxu0
  %v5436 = vpop.f32.mrb[0].mxu0
  %v5437 = vadd.f32 0.0, %v5436
  %v5438 = vpop.f32.mrb[0].mxu0
  %5439 = vmatprep.mubr.bf16.mxu0 0
  %5440 = vmatmul.mubr.bf16.gmra.mrb[0].mxu0 %v5179
  %v5441 = vpop.f32.mrb[0].mxu0
  %v5442 = vadd.f32 0.0, %v5441
  %v5443 = vpop.f32.mrb[0].mxu0
  %v5444 = vpop.f32.mrb[0].mxu0
  %v5445 = vadd.f32 0.0, %v5444
  %v5446 = vpop.f32.mrb[0].mxu0
  %5447 = vmatprep.mubr.bf16.mxu0 0
  %5448 = vmatmul.mubr.bf16.gmra.mrb[0].mxu0 %v5182
  %v5449 = vpop.f32.mrb[0].mxu0
  %v5450 = vadd.f32 0.0, %v5449
  %v5451 = vpop.f32.mrb[0].mxu0
  %v5452 = vpop.f32.mrb[0].mxu0
  %v5453 = vadd.f32 0.0, %v5452
  %v5454 = vpop.f32.mrb[0].mxu0
  %5455 = vmatprep.mubr.bf16.mxu0 0
  %5456 = vmatmul.mubr.bf16.gmra.mrb[0].mxu0 %v5185
  %v5457 = vpop.f32.mrb[0].mxu0
  %v5458 = vadd.f32 0.0, %v5457
  %v5459 = vpop.f32.mrb[0].mxu0
  %v5460 = vpop.f32.mrb[0].mxu0
  %v5461 = vadd.f32 0.0, %v5460
  %v5462 = vpop.f32.mrb[0].mxu0
  %5463 = vmatprep.mubr.bf16.mxu0 0
  %5464 = vmatmul.mubr.bf16.gmra.mrb[0].mxu0 %v5188
  %v5465 = vpop.f32.mrb[0].mxu0
  %v5466 = vadd.f32 0.0, %v5465
  %v5467 = vpop.f32.mrb[0].mxu0
  %v5468 = vpop.f32.mrb[0].mxu0
  %v5469 = vadd.f32 0.0, %v5468
  %v5470 = vpop.f32.mrb[0].mxu0
  %5471 = vmatprep.mubr.bf16.mxu0 0
  %5472 = vmatmul.mubr.bf16.gmra.mrb[0].mxu0 %v5191
  %v5473 = vpop.f32.mrb[0].mxu0
  %v5474 = vadd.f32 0.0, %v5473
  %v5475 = vpop.f32.mrb[0].mxu0
  %v5476 = vpop.f32.mrb[0].mxu0
  %v5477 = vadd.f32 0.0, %v5476
  %v5478 = vpop.f32.mrb[0].mxu0
  %5479 = vmatprep.mubr.bf16.mxu0 0
  %5480 = vmatmul.mubr.bf16.gmra.mrb[0].mxu0 %v5194
  %v5481 = vpop.f32.mrb[0].mxu0
  %v5482 = vadd.f32 0.0, %v5481
  %v5483 = vpop.f32.mrb[0].mxu0
  %v5484 = vpop.f32.mrb[0].mxu0
  %v5485 = vadd.f32 0.0, %v5484
  %v5486 = vpop.f32.mrb[0].mxu0
  %5487 = vdwg.mxu0
  %v5488 = vadd.f32 %v4938, %v5234
  %v5489 = vadd.f32 %v4939, %v5237
  %v5490 = vadd.f32 %v4940, %v5242
  %v5491 = vadd.f32 %v4941, %v5245
  %v5492 = vadd.f32 %v4942, %v5250
  %v5493 = vadd.f32 %v4943, %v5253
  %v5494 = vadd.f32 %v4944, %v5258
  %v5495 = vadd.f32 %v4945, %v5261
  %v5496 = vadd.f32 %v4946, %v5266
  %v5497 = vadd.f32 %v4947, %v5269
  %v5498 = vadd.f32 %v4948, %v5274
  %v5499 = vadd.f32 %v4949, %v5277
  %v5500 = vadd.f32 %v4950, %v5282
  %v5501 = vadd.f32 %v4951, %v5285
  %v5502 = vadd.f32 %v4952, %v5290
  %v5503 = vadd.f32 %v4953, %v5293
  %v5504 = vadd.f32 %v4954, %v5298
  %v5505 = vadd.f32 %v4955, %v5301
  %v5506 = vadd.f32 %v4956, %v5306
  %v5507 = vadd.f32 %v4957, %v5309
  %v5508 = vadd.f32 %v4958, %v5314
  %v5509 = vadd.f32 %v4959, %v5317
  %v5510 = vadd.f32 %v4960, %v5322
  %v5511 = vadd.f32 %v4961, %v5325
  %v5512 = vadd.f32 %v4962, %v5330
  %v5513 = vadd.f32 %v4963, %v5333
  %v5514 = vadd.f32 %v4964, %v5338
  %v5515 = vadd.f32 %v4965, %v5341
  %v5516 = vadd.f32 %v4966, %v5346
  %v5517 = vadd.f32 %v4967, %v5349
  %v5518 = vadd.f32 %v4968, %v5354
  %v5519 = vadd.f32 %v4969, %v5357
  %v5520 = vadd.f32 %v4970, %v5362
  %v5521 = vadd.f32 %v4971, %v5365
  %v5522 = vadd.f32 %v4972, %v5370
  %v5523 = vadd.f32 %v4973, %v5373
  %v5524 = vadd.f32 %v4974, %v5378
  %v5525 = vadd.f32 %v4975, %v5381
  %v5526 = vadd.f32 %v4976, %v5386
  %v5527 = vadd.f32 %v4977, %v5389
  %v5528 = vadd.f32 %v4978, %v5394
  %v5529 = vadd.f32 %v4979, %v5397
  %v5530 = vadd.f32 %v4980, %v5402
  %v5531 = vadd.f32 %v4981, %v5405
  %v5532 = vadd.f32 %v4982, %v5410
  %v5533 = vadd.f32 %v4983, %v5413
  %v5534 = vadd.f32 %v4984, %v5418
  %v5535 = vadd.f32 %v4985, %v5421
  %v5536 = vadd.f32 %v4986, %v5426
  %v5537 = vadd.f32 %v4987, %v5429
  %v5538 = vadd.f32 %v4988, %v5434
  %v5539 = vadd.f32 %v4989, %v5437
  %v5540 = vadd.f32 %v4990, %v5442
  %v5541 = vadd.f32 %v4991, %v5445
  %v5542 = vadd.f32 %v4992, %v5450
  %v5543 = vadd.f32 %v4993, %v5453
  %v5544 = vadd.f32 %v4994, %v5458
  %v5545 = vadd.f32 %v4995, %v5461
  %v5546 = vadd.f32 %v4996, %v5466
  %v5547 = vadd.f32 %v4997, %v5469
  %v5548 = vadd.f32 %v4998, %v5474
  %v5549 = vadd.f32 %v4999, %v5477
  %v5550 = vadd.f32 %v5000, %v5482
  %v5551 = vadd.f32 %v5001, %v5485
  %v5552 = vld [vmem:[%s2] sm:$0x1]
  %v5554 = vlaneseq
  %v5555 = vshrl.u32 %v5554, 7
  %v5556 = vsub.s32 0, %v5555
  %v5557 = vrot.slane %v5552, %v5556
  %v5559 = vadd.f32 %v5488, %v5557
  %v5560 = vadd.f32 %v5489, %v5557
  %v5561 = vadd.f32 %v5490, %v5557
  %v5562 = vadd.f32 %v5491, %v5557
  %v5563 = vadd.f32 %v5492, %v5557
  %v5564 = vadd.f32 %v5493, %v5557
  %v5565 = vadd.f32 %v5494, %v5557
  %v5566 = vadd.f32 %v5495, %v5557
  %v5567 = vadd.f32 %v5496, %v5557
  %v5568 = vadd.f32 %v5497, %v5557
  %v5569 = vadd.f32 %v5498, %v5557
  %v5570 = vadd.f32 %v5499, %v5557
  %v5571 = vadd.f32 %v5500, %v5557
  %v5572 = vadd.f32 %v5501, %v5557
  %v5573 = vadd.f32 %v5502, %v5557
  %v5574 = vadd.f32 %v5503, %v5557
  %v5575 = vadd.f32 %v5504, %v5557
  %v5576 = vadd.f32 %v5505, %v5557
  %v5577 = vadd.f32 %v5506, %v5557
  %v5578 = vadd.f32 %v5507, %v5557
  %v5579 = vadd.f32 %v5508, %v5557
  %v5580 = vadd.f32 %v5509, %v5557
  %v5581 = vadd.f32 %v5510, %v5557
  %v5582 = vadd.f32 %v5511, %v5557
  %v5583 = vadd.f32 %v5512, %v5557
  %v5584 = vadd.f32 %v5513, %v5557
  %v5585 = vadd.f32 %v5514, %v5557
  %v5586 = vadd.f32 %v5515, %v5557
  %v5587 = vadd.f32 %v5516, %v5557
  %v5588 = vadd.f32 %v5517, %v5557
  %v5589 = vadd.f32 %v5518, %v5557
  %v5590 = vadd.f32 %v5519, %v5557
  %v5591 = vadd.f32 %v5520, %v5557
  %v5592 = vadd.f32 %v5521, %v5557
  %v5593 = vadd.f32 %v5522, %v5557
  %v5594 = vadd.f32 %v5523, %v5557
  %v5595 = vadd.f32 %v5524, %v5557
  %v5596 = vadd.f32 %v5525, %v5557
  %v5597 = vadd.f32 %v5526, %v5557
  %v5598 = vadd.f32 %v5527, %v5557
  %v5599 = vadd.f32 %v5528, %v5557
  %v5600 = vadd.f32 %v5529, %v5557
  %v5601 = vadd.f32 %v5530, %v5557
  %v5602 = vadd.f32 %v5531, %v5557
  %v5603 = vadd.f32 %v5532, %v5557
  %v5604 = vadd.f32 %v5533, %v5557
  %v5605 = vadd.f32 %v5534, %v5557
  %v5606 = vadd.f32 %v5535, %v5557
  %v5607 = vadd.f32 %v5536, %v5557
  %v5608 = vadd.f32 %v5537, %v5557
  %v5609 = vadd.f32 %v5538, %v5557
  %v5610 = vadd.f32 %v5539, %v5557
  %v5611 = vadd.f32 %v5540, %v5557
  %v5612 = vadd.f32 %v5541, %v5557
  %v5613 = vadd.f32 %v5542, %v5557
  %v5614 = vadd.f32 %v5543, %v5557
  %v5615 = vadd.f32 %v5544, %v5557
  %v5616 = vadd.f32 %v5545, %v5557
  %v5617 = vadd.f32 %v5546, %v5557
  %v5618 = vadd.f32 %v5547, %v5557
  %v5619 = vadd.f32 %v5548, %v5557
  %v5620 = vadd.f32 %v5549, %v5557
  %v5621 = vadd.f32 %v5550, %v5557
  %v5622 = vadd.f32 %v5551, %v5557
  %vm5623 = vcmp.gt.f32.partialorder %v5559, 0.0
  %vm5624 = vcmp.gt.f32.partialorder %v5560, 0.0
  %vm5625 = vcmp.gt.f32.partialorder %v5561, 0.0
  %vm5626 = vcmp.gt.f32.partialorder %v5562, 0.0
  %vm5627 = vcmp.gt.f32.partialorder %v5563, 0.0
  %vm5628 = vcmp.gt.f32.partialorder %v5564, 0.0
  %vm5629 = vcmp.gt.f32.partialorder %v5565, 0.0
  %vm5630 = vcmp.gt.f32.partialorder %v5566, 0.0
  %vm5631 = vcmp.gt.f32.partialorder %v5567, 0.0
  %vm5632 = vcmp.gt.f32.partialorder %v5568, 0.0
  %vm5633 = vcmp.gt.f32.partialorder %v5569, 0.0
  %vm5634 = vcmp.gt.f32.partialorder %v5570, 0.0
  %vm5635 = vcmp.gt.f32.partialorder %v5571, 0.0
  %vm5636 = vcmp.gt.f32.partialorder %v5572, 0.0
  %vm5637 = vcmp.gt.f32.partialorder %v5573, 0.0
  %vm5638 = vcmp.gt.f32.partialorder %v5574, 0.0
  %vm5639 = vcmp.gt.f32.partialorder %v5575, 0.0
  %vm5640 = vcmp.gt.f32.partialorder %v5576, 0.0
  %vm5641 = vcmp.gt.f32.partialorder %v5577, 0.0
  %vm5642 = vcmp.gt.f32.partialorder %v5578, 0.0
  %vm5643 = vcmp.gt.f32.partialorder %v5579, 0.0
  %vm5644 = vcmp.gt.f32.partialorder %v5580, 0.0
  %vm5645 = vcmp.gt.f32.partialorder %v5581, 0.0
  %vm5646 = vcmp.gt.f32.partialorder %v5582, 0.0
  %vm5647 = vcmp.gt.f32.partialorder %v5583, 0.0
  %vm5648 = vcmp.gt.f32.partialorder %v5584, 0.0
  %vm5649 = vcmp.gt.f32.partialorder %v5585, 0.0
  %vm5650 = vcmp.gt.f32.partialorder %v5586, 0.0
  %vm5651 = vcmp.gt.f32.partialorder %v5587, 0.0
  %vm5652 = vcmp.gt.f32.partialorder %v5588, 0.0
  %vm5653 = vcmp.gt.f32.partialorder %v5589, 0.0
  %vm5654 = vcmp.gt.f32.partialorder %v5590, 0.0
  %vm5655 = vcmp.gt.f32.partialorder %v5591, 0.0
  %vm5656 = vcmp.gt.f32.partialorder %v5592, 0.0
  %vm5657 = vcmp.gt.f32.partialorder %v5593, 0.0
  %vm5658 = vcmp.gt.f32.partialorder %v5594, 0.0
  %vm5659 = vcmp.gt.f32.partialorder %v5595, 0.0
  %vm5660 = vcmp.gt.f32.partialorder %v5596, 0.0
  %vm5661 = vcmp.gt.f32.partialorder %v5597, 0.0
  %vm5662 = vcmp.gt.f32.partialorder %v5598, 0.0
  %vm5663 = vcmp.gt.f32.partialorder %v5599, 0.0
  %vm5664 = vcmp.gt.f32.partialorder %v5600, 0.0
  %vm5665 = vcmp.gt.f32.partialorder %v5601, 0.0
  %vm5666 = vcmp.gt.f32.partialorder %v5602, 0.0
  %vm5667 = vcmp.gt.f32.partialorder %v5603, 0.0
  %vm5668 = vcmp.gt.f32.partialorder %v5604, 0.0
  %vm5669 = vcmp.gt.f32.partialorder %v5605, 0.0
  %vm5670 = vcmp.gt.f32.partialorder %v5606, 0.0
  %vm5671 = vcmp.gt.f32.partialorder %v5607, 0.0
  %vm5672 = vcmp.gt.f32.partialorder %v5608, 0.0
  %vm5673 = vcmp.gt.f32.partialorder %v5609, 0.0
  %vm5674 = vcmp.gt.f32.partialorder %v5610, 0.0
  %vm5675 = vcmp.gt.f32.partialorder %v5611, 0.0
  %vm5676 = vcmp.gt.f32.partialorder %v5612, 0.0
  %vm5677 = vcmp.gt.f32.partialorder %v5613, 0.0
  %vm5678 = vcmp.gt.f32.partialorder %v5614, 0.0
  %vm5679 = vcmp.gt.f32.partialorder %v5615, 0.0
  %vm5680 = vcmp.gt.f32.partialorder %v5616, 0.0
  %vm5681 = vcmp.gt.f32.partialorder %v5617, 0.0
  %vm5682 = vcmp.gt.f32.partialorder %v5618, 0.0
  %vm5683 = vcmp.gt.f32.partialorder %v5619, 0.0
  %vm5684 = vcmp.gt.f32.partialorder %v5620, 0.0
  %vm5685 = vcmp.gt.f32.partialorder %v5621, 0.0
  %vm5686 = vcmp.gt.f32.partialorder %v5622, 0.0
  %v5687 = vmul.f32 %v5559, 0.2
  %v5688 = vmul.f32 %v5560, 0.2
  %v5689 = vmul.f32 %v5561, 0.2
  %v5690 = vmul.f32 %v5562, 0.2
  %v5691 = vmul.f32 %v5563, 0.2
  %v5692 = vmul.f32 %v5564, 0.2
  %v5693 = vmul.f32 %v5565, 0.2
  %v5694 = vmul.f32 %v5566, 0.2
  %v5695 = vmul.f32 %v5567, 0.2
  %v5696 = vmul.f32 %v5568, 0.2
  %v5697 = vmul.f32 %v5569, 0.2
  %v5698 = vmul.f32 %v5570, 0.2
  %v5699 = vmul.f32 %v5571, 0.2
  %v5700 = vmul.f32 %v5572, 0.2
  %v5701 = vmul.f32 %v5573, 0.2
  %v5702 = vmul.f32 %v5574, 0.2
  %v5703 = vmul.f32 %v5575, 0.2
  %v5704 = vmul.f32 %v5576, 0.2
  %v5705 = vmul.f32 %v5577, 0.2
  %v5706 = vmul.f32 %v5578, 0.2
  %v5707 = vmul.f32 %v5579, 0.2
  %v5708 = vmul.f32 %v5580, 0.2
  %v5709 = vmul.f32 %v5581, 0.2
  %v5710 = vmul.f32 %v5582, 0.2
  %v5711 = vmul.f32 %v5583, 0.2
  %v5712 = vmul.f32 %v5584, 0.2
  %v5713 = vmul.f32 %v5585, 0.2
  %v5714 = vmul.f32 %v5586, 0.2
  %v5715 = vmul.f32 %v5587, 0.2
  %v5716 = vmul.f32 %v5588, 0.2
  %v5717 = vmul.f32 %v5589, 0.2
  %v5718 = vmul.f32 %v5590, 0.2
  %v5719 = vmul.f32 %v5591, 0.2
  %v5720 = vmul.f32 %v5592, 0.2
  %v5721 = vmul.f32 %v5593, 0.2
  %v5722 = vmul.f32 %v5594, 0.2
  %v5723 = vmul.f32 %v5595, 0.2
  %v5724 = vmul.f32 %v5596, 0.2
  %v5725 = vmul.f32 %v5597, 0.2
  %v5726 = vmul.f32 %v5598, 0.2
  %v5727 = vmul.f32 %v5599, 0.2
  %v5728 = vmul.f32 %v5600, 0.2
  %v5729 = vmul.f32 %v5601, 0.2
  %v5730 = vmul.f32 %v5602, 0.2
  %v5731 = vmul.f32 %v5603, 0.2
  %v5732 = vmul.f32 %v5604, 0.2
  %v5733 = vmul.f32 %v5605, 0.2
  %v5734 = vmul.f32 %v5606, 0.2
  %v5735 = vmul.f32 %v5607, 0.2
  %v5736 = vmul.f32 %v5608, 0.2
  %v5737 = vmul.f32 %v5609, 0.2
  %v5738 = vmul.f32 %v5610, 0.2
  %v5739 = vmul.f32 %v5611, 0.2
  %v5740 = vmul.f32 %v5612, 0.2
  %v5741 = vmul.f32 %v5613, 0.2
  %v5742 = vmul.f32 %v5614, 0.2
  %v5743 = vmul.f32 %v5615, 0.2
  %v5744 = vmul.f32 %v5616, 0.2
  %v5745 = vmul.f32 %v5617, 0.2
  %v5746 = vmul.f32 %v5618, 0.2
  %v5747 = vmul.f32 %v5619, 0.2
  %v5748 = vmul.f32 %v5620, 0.2
  %v5749 = vmul.f32 %v5621, 0.2
  %v5750 = vmul.f32 %v5622, 0.2
  %v5751 = vsel %vm5623, %v5559, %v5687
  %v5752 = vsel %vm5624, %v5560, %v5688
  %v5753 = vsel %vm5625, %v5561, %v5689
  %v5754 = vsel %vm5626, %v5562, %v5690
  %v5755 = vsel %vm5627, %v5563, %v5691
  %v5756 = vsel %vm5628, %v5564, %v5692
  %v5757 = vsel %vm5629, %v5565, %v5693
  %v5758 = vsel %vm5630, %v5566, %v5694
  %v5759 = vsel %vm5631, %v5567, %v5695
  %v5760 = vsel %vm5632, %v5568, %v5696
  %v5761 = vsel %vm5633, %v5569, %v5697
  %v5762 = vsel %vm5634, %v5570, %v5698
  %v5763 = vsel %vm5635, %v5571, %v5699
  %v5764 = vsel %vm5636, %v5572, %v5700
  %v5765 = vsel %vm5637, %v5573, %v5701
  %v5766 = vsel %vm5638, %v5574, %v5702
  %v5767 = vsel %vm5639, %v5575, %v5703
  %v5768 = vsel %vm5640, %v5576, %v5704
  %v5769 = vsel %vm5641, %v5577, %v5705
  %v5770 = vsel %vm5642, %v5578, %v5706
  %v5771 = vsel %vm5643, %v5579, %v5707
  %v5772 = vsel %vm5644, %v5580, %v5708
  %v5773 = vsel %vm5645, %v5581, %v5709
  %v5774 = vsel %vm5646, %v5582, %v5710
  %v5775 = vsel %vm5647, %v5583, %v5711
  %v5776 = vsel %vm5648, %v5584, %v5712
  %v5777 = vsel %vm5649, %v5585, %v5713
  %v5778 = vsel %vm5650, %v5586, %v5714
  %v5779 = vsel %vm5651, %v5587, %v5715
  %v5780 = vsel %vm5652, %v5588, %v5716
  %v5781 = vsel %vm5653, %v5589, %v5717
  %v5782 = vsel %vm5654, %v5590, %v5718
  %v5783 = vsel %vm5655, %v5591, %v5719
  %v5784 = vsel %vm5656, %v5592, %v5720
  %v5785 = vsel %vm5657, %v5593, %v5721
  %v5786 = vsel %vm5658, %v5594, %v5722
  %v5787 = vsel %vm5659, %v5595, %v5723
  %v5788 = vsel %vm5660, %v5596, %v5724
  %v5789 = vsel %vm5661, %v5597, %v5725
  %v5790 = vsel %vm5662, %v5598, %v5726
  %v5791 = vsel %vm5663, %v5599, %v5727
  %v5792 = vsel %vm5664, %v5600, %v5728
  %v5793 = vsel %vm5665, %v5601, %v5729
  %v5794 = vsel %vm5666, %v5602, %v5730
  %v5795 = vsel %vm5667, %v5603, %v5731
  %v5796 = vsel %vm5668, %v5604, %v5732
  %v5797 = vsel %vm5669, %v5605, %v5733
  %v5798 = vsel %vm5670, %v5606, %v5734
  %v5799 = vsel %vm5671, %v5607, %v5735
  %v5800 = vsel %vm5672, %v5608, %v5736
  %v5801 = vsel %vm5673, %v5609, %v5737
  %v5802 = vsel %vm5674, %v5610, %v5738
  %v5803 = vsel %vm5675, %v5611, %v5739
  %v5804 = vsel %vm5676, %v5612, %v5740
  %v5805 = vsel %vm5677, %v5613, %v5741
  %v5806 = vsel %vm5678, %v5614, %v5742
  %v5807 = vsel %vm5679, %v5615, %v5743
  %v5808 = vsel %vm5680, %v5616, %v5744
  %v5809 = vsel %vm5681, %v5617, %v5745
  %v5810 = vsel %vm5682, %v5618, %v5746
  %v5811 = vsel %vm5683, %v5619, %v5747
  %v5812 = vsel %vm5684, %v5620, %v5748
  %v5813 = vsel %vm5685, %v5621, %v5749
  %v5814 = vsel %vm5686, %v5622, %v5750
  %s5815 = scalar_lea.vmem %s2, 1
  %v5816 = vld [vmem:[%s5815] sm:$0x1]
  %v5818 = vlaneseq
  %v5819 = vshrl.u32 %v5818, 7
  %v5820 = vsub.s32 0, %v5819
  %v5821 = vrot.slane %v5816, %v5820
  %v5823 = vmul.f32 %v5751, %v5821
  %v5824 = vmul.f32 %v5752, %v5821
  %v5825 = vmul.f32 %v5753, %v5821
  %v5826 = vmul.f32 %v5754, %v5821
  %v5827 = vmul.f32 %v5755, %v5821
  %v5828 = vmul.f32 %v5756, %v5821
  %v5829 = vmul.f32 %v5757, %v5821
  %v5830 = vmul.f32 %v5758, %v5821
  %v5831 = vmul.f32 %v5759, %v5821
  %v5832 = vmul.f32 %v5760, %v5821
  %v5833 = vmul.f32 %v5761, %v5821
  %v5834 = vmul.f32 %v5762, %v5821
  %v5835 = vmul.f32 %v5763, %v5821
  %v5836 = vmul.f32 %v5764, %v5821
  %v5837 = vmul.f32 %v5765, %v5821
  %v5838 = vmul.f32 %v5766, %v5821
  %v5839 = vmul.f32 %v5767, %v5821
  %v5840 = vmul.f32 %v5768, %v5821
  %v5841 = vmul.f32 %v5769, %v5821
  %v5842 = vmul.f32 %v5770, %v5821
  %v5843 = vmul.f32 %v5771, %v5821
  %v5844 = vmul.f32 %v5772, %v5821
  %v5845 = vmul.f32 %v5773, %v5821
  %v5846 = vmul.f32 %v5774, %v5821
  %v5847 = vmul.f32 %v5775, %v5821
  %v5848 = vmul.f32 %v5776, %v5821
  %v5849 = vmul.f32 %v5777, %v5821
  %v5850 = vmul.f32 %v5778, %v5821
  %v5851 = vmul.f32 %v5779, %v5821
  %v5852 = vmul.f32 %v5780, %v5821
  %v5853 = vmul.f32 %v5781, %v5821
  %v5854 = vmul.f32 %v5782, %v5821
  %v5855 = vmul.f32 %v5783, %v5821
  %v5856 = vmul.f32 %v5784, %v5821
  %v5857 = vmul.f32 %v5785, %v5821
  %v5858 = vmul.f32 %v5786, %v5821
  %v5859 = vmul.f32 %v5787, %v5821
  %v5860 = vmul.f32 %v5788, %v5821
  %v5861 = vmul.f32 %v5789, %v5821
  %v5862 = vmul.f32 %v5790, %v5821
  %v5863 = vmul.f32 %v5791, %v5821
  %v5864 = vmul.f32 %v5792, %v5821
  %v5865 = vmul.f32 %v5793, %v5821
  %v5866 = vmul.f32 %v5794, %v5821
  %v5867 = vmul.f32 %v5795, %v5821
  %v5868 = vmul.f32 %v5796, %v5821
  %v5869 = vmul.f32 %v5797, %v5821
  %v5870 = vmul.f32 %v5798, %v5821
  %v5871 = vmul.f32 %v5799, %v5821
  %v5872 = vmul.f32 %v5800, %v5821
  %v5873 = vmul.f32 %v5801, %v5821
  %v5874 = vmul.f32 %v5802, %v5821
  %v5875 = vmul.f32 %v5803, %v5821
  %v5876 = vmul.f32 %v5804, %v5821
  %v5877 = vmul.f32 %v5805, %v5821
  %v5878 = vmul.f32 %v5806, %v5821
  %v5879 = vmul.f32 %v5807, %v5821
  %v5880 = vmul.f32 %v5808, %v5821
  %v5881 = vmul.f32 %v5809, %v5821
  %v5882 = vmul.f32 %v5810, %v5821
  %v5883 = vmul.f32 %v5811, %v5821
  %v5884 = vmul.f32 %v5812, %v5821
  %v5885 = vmul.f32 %v5813, %v5821
  %v5886 = vmul.f32 %v5814, %v5821
  %s5887 = scalar_lea.vmem %s2, 2
  %v5888 = vld [vmem:[%s5887] sm:$0x1]
  %v5890 = vlaneseq
  %v5891 = vshrl.u32 %v5890, 7
  %v5892 = vsub.s32 0, %v5891
  %v5893 = vrot.slane %v5888, %v5892
  %v5895 = vadd.f32 %v5823, %v5893
  %v5896 = vadd.f32 %v5824, %v5893
  %v5897 = vadd.f32 %v5825, %v5893
  %v5898 = vadd.f32 %v5826, %v5893
  %v5899 = vadd.f32 %v5827, %v5893
  %v5900 = vadd.f32 %v5828, %v5893
  %v5901 = vadd.f32 %v5829, %v5893
  %v5902 = vadd.f32 %v5830, %v5893
  %v5903 = vadd.f32 %v5831, %v5893
  %v5904 = vadd.f32 %v5832, %v5893
  %v5905 = vadd.f32 %v5833, %v5893
  %v5906 = vadd.f32 %v5834, %v5893
  %v5907 = vadd.f32 %v5835, %v5893
  %v5908 = vadd.f32 %v5836, %v5893
  %v5909 = vadd.f32 %v5837, %v5893
  %v5910 = vadd.f32 %v5838, %v5893
  %v5911 = vadd.f32 %v5839, %v5893
  %v5912 = vadd.f32 %v5840, %v5893
  %v5913 = vadd.f32 %v5841, %v5893
  %v5914 = vadd.f32 %v5842, %v5893
  %v5915 = vadd.f32 %v5843, %v5893
  %v5916 = vadd.f32 %v5844, %v5893
  %v5917 = vadd.f32 %v5845, %v5893
  %v5918 = vadd.f32 %v5846, %v5893
  %v5919 = vadd.f32 %v5847, %v5893
  %v5920 = vadd.f32 %v5848, %v5893
  %v5921 = vadd.f32 %v5849, %v5893
  %v5922 = vadd.f32 %v5850, %v5893
  %v5923 = vadd.f32 %v5851, %v5893
  %v5924 = vadd.f32 %v5852, %v5893
  %v5925 = vadd.f32 %v5853, %v5893
  %v5926 = vadd.f32 %v5854, %v5893
  %v5927 = vadd.f32 %v5855, %v5893
  %v5928 = vadd.f32 %v5856, %v5893
  %v5929 = vadd.f32 %v5857, %v5893
  %v5930 = vadd.f32 %v5858, %v5893
  %v5931 = vadd.f32 %v5859, %v5893
  %v5932 = vadd.f32 %v5860, %v5893
  %v5933 = vadd.f32 %v5861, %v5893
  %v5934 = vadd.f32 %v5862, %v5893
  %v5935 = vadd.f32 %v5863, %v5893
  %v5936 = vadd.f32 %v5864, %v5893
  %v5937 = vadd.f32 %v5865, %v5893
  %v5938 = vadd.f32 %v5866, %v5893
  %v5939 = vadd.f32 %v5867, %v5893
  %v5940 = vadd.f32 %v5868, %v5893
  %v5941 = vadd.f32 %v5869, %v5893
  %v5942 = vadd.f32 %v5870, %v5893
  %v5943 = vadd.f32 %v5871, %v5893
  %v5944 = vadd.f32 %v5872, %v5893
  %v5945 = vadd.f32 %v5873, %v5893
  %v5946 = vadd.f32 %v5874, %v5893
  %v5947 = vadd.f32 %v5875, %v5893
  %v5948 = vadd.f32 %v5876, %v5893
  %v5949 = vadd.f32 %v5877, %v5893
  %v5950 = vadd.f32 %v5878, %v5893
  %v5951 = vadd.f32 %v5879, %v5893
  %v5952 = vadd.f32 %v5880, %v5893
  %v5953 = vadd.f32 %v5881, %v5893
  %v5954 = vadd.f32 %v5882, %v5893
  %v5955 = vadd.f32 %v5883, %v5893
  %v5956 = vadd.f32 %v5884, %v5893
  %v5957 = vadd.f32 %v5885, %v5893
  %v5958 = vadd.f32 %v5886, %v5893
  %5959 = vst.msk [vmem:[#allocation9] sm:$0xff] %vm118, %v5895
  %5960 = vst.msk [vmem:[#allocation9 + $0x8] sm:$0xff] %vm118, %v5897
  %5961 = vst.msk [vmem:[#allocation9 + $0x10] sm:$0xff] %vm118, %v5899
  %5962 = vst.msk [vmem:[#allocation9 + $0x18] sm:$0xff] %vm118, %v5901
  %5963 = vst.msk [vmem:[#allocation9 + $0x28] sm:$0xff] %vm118, %v5911
  %5964 = vst.msk [vmem:[#allocation9 + $0x30] sm:$0xff] %vm118, %v5913
  %5965 = vst.msk [vmem:[#allocation9 + $0x38] sm:$0xff] %vm118, %v5915
  %5966 = vst.msk [vmem:[#allocation9 + $0x40] sm:$0xff] %vm118, %v5917
  %5967 = vst.msk [vmem:[#allocation9 + $0x50] sm:$0xff] %vm118, %v5927
  %5968 = vst.msk [vmem:[#allocation9 + $0x58] sm:$0xff] %vm118, %v5929
  %5969 = vst.msk [vmem:[#allocation9 + $0x60] sm:$0xff] %vm118, %v5931
  %5970 = vst.msk [vmem:[#allocation9 + $0x68] sm:$0xff] %vm118, %v5933
  %5971 = vst.msk [vmem:[#allocation9 + $0x78] sm:$0xff] %vm118, %v5943
  %5972 = vst.msk [vmem:[#allocation9 + $0x80] sm:$0xff] %vm118, %v5945
  %5973 = vst.msk [vmem:[#allocation9 + $0x88] sm:$0xff] %vm118, %v5947
  %5974 = vst.msk [vmem:[#allocation9 + $0x90] sm:$0xff] %vm118, %v5949
  %s5975 = scalar_lea.vmem [#allocation8], 8
  %5976 = vst.msk [vmem:[%s5975] sm:$0xff] %vm118, %v5896
  %5977 = vst.msk [vmem:[%s5975 + $0x8] sm:$0xff] %vm118, %v5898
  %5978 = vst.msk [vmem:[%s5975 + $0x10] sm:$0xff] %vm118, %v5900
  %5979 = vst.msk [vmem:[%s5975 + $0x18] sm:$0xff] %vm118, %v5902
  %5980 = vst.msk [vmem:[%s5975 + $0x28] sm:$0xff] %vm118, %v5912
  %5981 = vst.msk [vmem:[%s5975 + $0x30] sm:$0xff] %vm118, %v5914
  %5982 = vst.msk [vmem:[%s5975 + $0x38] sm:$0xff] %vm118, %v5916
  %5983 = vst.msk [vmem:[%s5975 + $0x40] sm:$0xff] %vm118, %v5918
  %5984 = vst.msk [vmem:[%s5975 + $0x50] sm:$0xff] %vm118, %v5928
  %5985 = vst.msk [vmem:[%s5975 + $0x58] sm:$0xff] %vm118, %v5930
  %5986 = vst.msk [vmem:[%s5975 + $0x60] sm:$0xff] %vm118, %v5932
  %5987 = vst.msk [vmem:[%s5975 + $0x68] sm:$0xff] %vm118, %v5934
  %5988 = vst.msk [vmem:[%s5975 + $0x78] sm:$0xff] %vm118, %v5944
  %5989 = vst.msk [vmem:[%s5975 + $0x80] sm:$0xff] %vm118, %v5946
  %5990 = vst.msk [vmem:[%s5975 + $0x88] sm:$0xff] %vm118, %v5948
  %5991 = vst.msk [vmem:[%s5975 + $0x90] sm:$0xff] %vm118, %v5950
  %s5992 = scalar_lea.vmem [#allocation7], 40
  %5993 = vst.msk [vmem:[%s5992] sm:$0xff] %vm118, %v5903
  %5994 = vst.msk [vmem:[%s5992 + $0x8] sm:$0xff] %vm118, %v5905
  %5995 = vst.msk [vmem:[%s5992 + $0x10] sm:$0xff] %vm118, %v5907
  %5996 = vst.msk [vmem:[%s5992 + $0x18] sm:$0xff] %vm118, %v5909
  %5997 = vst.msk [vmem:[%s5992 + $0x28] sm:$0xff] %vm118, %v5919
  %5998 = vst.msk [vmem:[%s5992 + $0x30] sm:$0xff] %vm118, %v5921
  %5999 = vst.msk [vmem:[%s5992 + $0x38] sm:$0xff] %vm118, %v5923
  %6000 = vst.msk [vmem:[%s5992 + $0x40] sm:$0xff] %vm118, %v5925
  %6001 = vst.msk [vmem:[%s5992 + $0x50] sm:$0xff] %vm118, %v5935
  %6002 = vst.msk [vmem:[%s5992 + $0x58] sm:$0xff] %vm118, %v5937
  %6003 = vst.msk [vmem:[%s5992 + $0x60] sm:$0xff] %vm118, %v5939
  %6004 = vst.msk [vmem:[%s5992 + $0x68] sm:$0xff] %vm118, %v5941
  %6005 = vst.msk [vmem:[%s5992 + $0x78] sm:$0xff] %vm118, %v5951
  %6006 = vst.msk [vmem:[%s5992 + $0x80] sm:$0xff] %vm118, %v5953
  %6007 = vst.msk [vmem:[%s5992 + $0x88] sm:$0xff] %vm118, %v5955
  %6008 = vst.msk [vmem:[%s5992 + $0x90] sm:$0xff] %vm118, %v5957
  %s6009 = scalar_lea.vmem [#allocation6], 48
  %6010 = vst.msk [vmem:[%s6009] sm:$0xff] %vm118, %v5904
  %6011 = vst.msk [vmem:[%s6009 + $0x8] sm:$0xff] %vm118, %v5906
  %6012 = vst.msk [vmem:[%s6009 + $0x10] sm:$0xff] %vm118, %v5908
  %6013 = vst.msk [vmem:[%s6009 + $0x18] sm:$0xff] %vm118, %v5910
  %6014 = vst.msk [vmem:[%s6009 + $0x28] sm:$0xff] %vm118, %v5920
  %6015 = vst.msk [vmem:[%s6009 + $0x30] sm:$0xff] %vm118, %v5922
  %6016 = vst.msk [vmem:[%s6009 + $0x38] sm:$0xff] %vm118, %v5924
  %6017 = vst.msk [vmem:[%s6009 + $0x40] sm:$0xff] %vm118, %v5926
  %6018 = vst.msk [vmem:[%s6009 + $0x50] sm:$0xff] %vm118, %v5936
  %6019 = vst.msk [vmem:[%s6009 + $0x58] sm:$0xff] %vm118, %v5938
  %6020 = vst.msk [vmem:[%s6009 + $0x60] sm:$0xff] %vm118, %v5940
  %6021 = vst.msk [vmem:[%s6009 + $0x68] sm:$0xff] %vm118, %v5942
  %6022 = vst.msk [vmem:[%s6009 + $0x78] sm:$0xff] %vm118, %v5952
  %6023 = vst.msk [vmem:[%s6009 + $0x80] sm:$0xff] %vm118, %v5954
  %6024 = vst.msk [vmem:[%s6009 + $0x88] sm:$0xff] %vm118, %v5956
  %6025 = vst.msk [vmem:[%s6009 + $0x90] sm:$0xff] %vm118, %v5958
  %v6026 = vld [vmem:[#allocation6] sm:$0xff]
  %v6027 = vld [vmem:[#allocation6 + $0x8] sm:$0xff]
  %v6028 = vld [vmem:[#allocation6 + $0x10] sm:$0xff]
  %v6029 = vld [vmem:[#allocation6 + $0x18] sm:$0xff]
  %v6030 = vld [vmem:[#allocation6 + $0x28] sm:$0xff]
  %v6031 = vld [vmem:[#allocation6 + $0x30] sm:$0xff]
  %v6032 = vld [vmem:[#allocation6 + $0x38] sm:$0xff]
  %v6033 = vld [vmem:[#allocation6 + $0x40] sm:$0xff]
  %v6034 = vld [vmem:[#allocation6 + $0x50] sm:$0xff]
  %v6035 = vld [vmem:[#allocation6 + $0x58] sm:$0xff]
  %v6036 = vld [vmem:[#allocation6 + $0x60] sm:$0xff]
  %v6037 = vld [vmem:[#allocation6 + $0x68] sm:$0xff]
  %v6038 = vld [vmem:[#allocation6 + $0x78] sm:$0xff]
  %v6039 = vld [vmem:[#allocation6 + $0x80] sm:$0xff]
  %v6040 = vld [vmem:[#allocation6 + $0x88] sm:$0xff]
  %v6041 = vld [vmem:[#allocation6 + $0x90] sm:$0xff]
  %v6042 = vpack.c.bf16 %v6027, %v6026
  %v6043 = vpack.c.bf16 %v6029, %v6028
  %v6044 = vpack.c.bf16 %v6031, %v6030
  %v6045 = vpack.c.bf16 %v6033, %v6032
  %v6046 = vpack.c.bf16 %v6035, %v6034
  %v6047 = vpack.c.bf16 %v6037, %v6036
  %v6048 = vpack.c.bf16 %v6039, %v6038
  %v6049 = vpack.c.bf16 %v6041, %v6040
  %v6050 = vld [vmem:[%s3] sm:$0xf]
  %v6051 = vld [vmem:[%s3 + $0x4] sm:$0xf]
  %v6052 = vld [vmem:[#allocation7] sm:$0xff]
  %v6053 = vld [vmem:[#allocation7 + $0x8] sm:$0xff]
  %v6054 = vld [vmem:[#allocation7 + $0x10] sm:$0xff]
  %v6055 = vld [vmem:[#allocation7 + $0x18] sm:$0xff]
  %v6056 = vld [vmem:[#allocation7 + $0x28] sm:$0xff]
  %v6057 = vld [vmem:[#allocation7 + $0x30] sm:$0xff]
  %v6058 = vld [vmem:[#allocation7 + $0x38] sm:$0xff]
  %v6059 = vld [vmem:[#allocation7 + $0x40] sm:$0xff]
  %v6060 = vld [vmem:[#allocation7 + $0x50] sm:$0xff]
  %v6061 = vld [vmem:[#allocation7 + $0x58] sm:$0xff]
  %v6062 = vld [vmem:[#allocation7 + $0x60] sm:$0xff]
  %v6063 = vld [vmem:[#allocation7 + $0x68] sm:$0xff]
  %v6064 = vld [vmem:[#allocation7 + $0x78] sm:$0xff]
  %v6065 = vld [vmem:[#allocation7 + $0x80] sm:$0xff]
  %v6066 = vld [vmem:[#allocation7 + $0x88] sm:$0xff]
  %v6067 = vld [vmem:[#allocation7 + $0x90] sm:$0xff]
  %v6068 = vpack.c.bf16 %v6053, %v6052
  %v6069 = vpack.c.bf16 %v6055, %v6054
  %v6070 = vpack.c.bf16 %v6057, %v6056
  %v6071 = vpack.c.bf16 %v6059, %v6058
  %v6072 = vpack.c.bf16 %v6061, %v6060
  %v6073 = vpack.c.bf16 %v6063, %v6062
  %v6074 = vpack.c.bf16 %v6065, %v6064
  %v6075 = vpack.c.bf16 %v6067, %v6066
  %s6076 = scalar_lea.vmem %s3, 8
  %v6077 = vld [vmem:[%s6076] sm:$0xf]
  %v6078 = vld [vmem:[%s6076 + $0x4] sm:$0xf]
  %v6081 = vunpack.c.l.b16 %v6077
  %v6082 = vunpack.c.l.b16 %v6078
  %v6083 = vpack.c.b16 %v6082, %v6081
  %v6086 = vsel %vm118, %v6068, 0
  %v6089 = vsel %vm118, %v6069, 0
  %v6092 = vsel %vm118, %v6070, 0
  %v6095 = vsel %vm118, %v6071, 0
  %v6098 = vsel %vm118, %v6072, 0
  %v6101 = vsel %vm118, %v6073, 0
  %v6104 = vsel %vm118, %v6074, 0
  %v6107 = vsel %vm118, %v6075, 0
  %6109 = vmatprep.subr.bf16.mxu0 0
  %6110 = vmatpush1.bf16.msra.mxu0 %v6083
  %6111 = vmatprep.subr.bf16.mxu0 0
  %6112 = vmatpush1.bf16.msra.mxu0 0
  %6113 = vmatprep.subr.bf16.mxu0 0
  %6114 = vmatpush1.bf16.msra.mxu0 0
  %6115 = vmatprep.subr.bf16.mxu0 0
  %6116 = vmatpush1.bf16.msra.mxu0 0
  %6117 = vmatprep.subr.bf16.mxu0 0
  %6118 = vmatpush1.bf16.msra.mxu0 0
  %6119 = vmatprep.subr.bf16.mxu0 0
  %6120 = vmatpush1.bf16.msra.mxu0 0
  %6121 = vmatprep.subr.bf16.mxu0 0
  %6122 = vmatpush1.bf16.msra.mxu0 0
  %6123 = vmatprep.subr.bf16.mxu0 0
  %6124 = vmatpush1.bf16.msra.mxu0 0
  %6125 = vmatprep.subr.bf16.mxu0 0
  %6126 = vmatpush1.bf16.msra.mxu0 0
  %6127 = vmatprep.subr.bf16.mxu0 0
  %6128 = vmatpush1.bf16.msra.mxu0 0
  %6129 = vmatprep.subr.bf16.mxu0 0
  %6130 = vmatpush1.bf16.msra.mxu0 0
  %6131 = vmatprep.subr.bf16.mxu0 0
  %6132 = vmatpush1.bf16.msra.mxu0 0
  %6133 = vmatprep.subr.bf16.mxu0 0
  %6134 = vmatpush1.bf16.msra.mxu0 0
  %6135 = vmatprep.subr.bf16.mxu0 0
  %6136 = vmatpush1.bf16.msra.mxu0 0
  %6137 = vmatprep.subr.bf16.mxu0 0
  %6138 = vmatpush1.bf16.msra.mxu0 0
  %6139 = vmatprep.subr.bf16.mxu0 0
  %6140 = vmatpush1.bf16.msra.mxu0 0
  %6141 = vmatprep.mubr.bf16.mxu0 0
  %6142 = vmatmul.mubr.bf16.gmra.mrb[0].mxu0 %v6086
  %v6143 = vpop.f32.mrb[0].mxu0
  %v6144 = vadd.f32 0.0, %v6143
  %v6145 = vpop.f32.mrb[0].mxu0
  %v6146 = vpop.f32.mrb[0].mxu0
  %v6147 = vadd.f32 0.0, %v6146
  %v6148 = vpop.f32.mrb[0].mxu0
  %6149 = vmatprep.mubr.bf16.mxu0 0
  %6150 = vmatmul.mubr.bf16.gmra.mrb[0].mxu0 %v6089
  %v6151 = vpop.f32.mrb[0].mxu0
  %v6152 = vadd.f32 0.0, %v6151
  %v6153 = vpop.f32.mrb[0].mxu0
  %v6154 = vpop.f32.mrb[0].mxu0
  %v6155 = vadd.f32 0.0, %v6154
  %v6156 = vpop.f32.mrb[0].mxu0
  %6157 = vmatprep.mubr.bf16.mxu0 0
  %6158 = vmatmul.mubr.bf16.gmra.mrb[0].mxu0 %v6092
  %v6159 = vpop.f32.mrb[0].mxu0
  %v6160 = vadd.f32 0.0, %v6159
  %v6161 = vpop.f32.mrb[0].mxu0
  %v6162 = vpop.f32.mrb[0].mxu0
  %v6163 = vadd.f32 0.0, %v6162
  %v6164 = vpop.f32.mrb[0].mxu0
  %6165 = vmatprep.mubr.bf16.mxu0 0
  %6166 = vmatmul.mubr.bf16.gmra.mrb[0].mxu0 %v6095
  %v6167 = vpop.f32.mrb[0].mxu0
  %v6168 = vadd.f32 0.0, %v6167
  %v6169 = vpop.f32.mrb[0].mxu0
  %v6170 = vpop.f32.mrb[0].mxu0
  %v6171 = vadd.f32 0.0, %v6170
  %v6172 = vpop.f32.mrb[0].mxu0
  %6173 = vmatprep.mubr.bf16.mxu0 0
  %6174 = vmatmul.mubr.bf16.gmra.mrb[0].mxu0 %v6098
  %v6175 = vpop.f32.mrb[0].mxu0
  %v6176 = vadd.f32 0.0, %v6175
  %v6177 = vpop.f32.mrb[0].mxu0
  %v6178 = vpop.f32.mrb[0].mxu0
  %v6179 = vadd.f32 0.0, %v6178
  %v6180 = vpop.f32.mrb[0].mxu0
  %6181 = vmatprep.mubr.bf16.mxu0 0
  %6182 = vmatmul.mubr.bf16.gmra.mrb[0].mxu0 %v6101
  %v6183 = vpop.f32.mrb[0].mxu0
  %v6184 = vadd.f32 0.0, %v6183
  %v6185 = vpop.f32.mrb[0].mxu0
  %v6186 = vpop.f32.mrb[0].mxu0
  %v6187 = vadd.f32 0.0, %v6186
  %v6188 = vpop.f32.mrb[0].mxu0
  %6189 = vmatprep.mubr.bf16.mxu0 0
  %6190 = vmatmul.mubr.bf16.gmra.mrb[0].mxu0 %v6104
  %v6191 = vpop.f32.mrb[0].mxu0
  %v6192 = vadd.f32 0.0, %v6191
  %v6193 = vpop.f32.mrb[0].mxu0
  %v6194 = vpop.f32.mrb[0].mxu0
  %v6195 = vadd.f32 0.0, %v6194
  %v6196 = vpop.f32.mrb[0].mxu0
  %6197 = vmatprep.mubr.bf16.mxu0 0
  %6198 = vmatmul.mubr.bf16.gmra.mrb[0].mxu0 %v6107
  %v6199 = vpop.f32.mrb[0].mxu0
  %v6200 = vadd.f32 0.0, %v6199
  %v6201 = vpop.f32.mrb[0].mxu0
  %v6202 = vpop.f32.mrb[0].mxu0
  %v6203 = vadd.f32 0.0, %v6202
  %v6204 = vpop.f32.mrb[0].mxu0
  %6205 = vdwg.mxu0
  %v6208 = vunpack.c.l.b16 %v6050
  %v6209 = vunpack.c.l.b16 %v6051
  %v6210 = vpack.c.b16 %v6209, %v6208
  %v6213 = vsel %vm118, %v6042, 0
  %v6216 = vsel %vm118, %v6043, 0
  %v6219 = vsel %vm118, %v6044, 0
  %v6222 = vsel %vm118, %v6045, 0
  %v6225 = vsel %vm118, %v6046, 0
  %v6228 = vsel %vm118, %v6047, 0
  %v6231 = vsel %vm118, %v6048, 0
  %v6234 = vsel %vm118, %v6049, 0
  %6236 = vmatprep.subr.bf16.mxu0 0
  %6237 = vmatpush1.bf16.msra.mxu0 %v6210
  %6238 = vmatprep.subr.bf16.mxu0 0
  %6239 = vmatpush1.bf16.msra.mxu0 0
  %6240 = vmatprep.subr.bf16.mxu0 0
  %6241 = vmatpush1.bf16.msra.mxu0 0
  %6242 = vmatprep.subr.bf16.mxu0 0
  %6243 = vmatpush1.bf16.msra.mxu0 0
  %6244 = vmatprep.subr.bf16.mxu0 0
  %6245 = vmatpush1.bf16.msra.mxu0 0
  %6246 = vmatprep.subr.bf16.mxu0 0
  %6247 = vmatpush1.bf16.msra.mxu0 0
  %6248 = vmatprep.subr.bf16.mxu0 0
  %6249 = vmatpush1.bf16.msra.mxu0 0
  %6250 = vmatprep.subr.bf16.mxu0 0
  %6251 = vmatpush1.bf16.msra.mxu0 0
  %6252 = vmatprep.subr.bf16.mxu0 0
  %6253 = vmatpush1.bf16.msra.mxu0 0
  %6254 = vmatprep.subr.bf16.mxu0 0
  %6255 = vmatpush1.bf16.msra.mxu0 0
  %6256 = vmatprep.subr.bf16.mxu0 0
  %6257 = vmatpush1.bf16.msra.mxu0 0
  %6258 = vmatprep.subr.bf16.mxu0 0
  %6259 = vmatpush1.bf16.msra.mxu0 0
  %6260 = vmatprep.subr.bf16.mxu0 0
  %6261 = vmatpush1.bf16.msra.mxu0 0
  %6262 = vmatprep.subr.bf16.mxu0 0
  %6263 = vmatpush1.bf16.msra.mxu0 0
  %6264 = vmatprep.subr.bf16.mxu0 0
  %6265 = vmatpush1.bf16.msra.mxu0 0
  %6266 = vmatprep.subr.bf16.mxu0 0
  %6267 = vmatpush1.bf16.msra.mxu0 0
  %6268 = vmatprep.mubr.bf16.mxu0 0
  %6269 = vmatmul.mubr.bf16.gmra.mrb[0].mxu0 %v6213
  %v6270 = vpop.f32.mrb[0].mxu0
  %v6271 = vadd.f32 %v6144, %v6270
  %v6272 = vpop.f32.mrb[0].mxu0
  %v6273 = vpop.f32.mrb[0].mxu0
  %v6274 = vadd.f32 %v6147, %v6273
  %v6275 = vpop.f32.mrb[0].mxu0
  %6276 = vmatprep.mubr.bf16.mxu0 0
  %6277 = vmatmul.mubr.bf16.gmra.mrb[0].mxu0 %v6216
  %v6278 = vpop.f32.mrb[0].mxu0
  %v6279 = vadd.f32 %v6152, %v6278
  %v6280 = vpop.f32.mrb[0].mxu0
  %v6281 = vpop.f32.mrb[0].mxu0
  %v6282 = vadd.f32 %v6155, %v6281
  %v6283 = vpop.f32.mrb[0].mxu0
  %6284 = vmatprep.mubr.bf16.mxu0 0
  %6285 = vmatmul.mubr.bf16.gmra.mrb[0].mxu0 %v6219
  %v6286 = vpop.f32.mrb[0].mxu0
  %v6287 = vadd.f32 %v6160, %v6286
  %v6288 = vpop.f32.mrb[0].mxu0
  %v6289 = vpop.f32.mrb[0].mxu0
  %v6290 = vadd.f32 %v6163, %v6289
  %v6291 = vpop.f32.mrb[0].mxu0
  %6292 = vmatprep.mubr.bf16.mxu0 0
  %6293 = vmatmul.mubr.bf16.gmra.mrb[0].mxu0 %v6222
  %v6294 = vpop.f32.mrb[0].mxu0
  %v6295 = vadd.f32 %v6168, %v6294
  %v6296 = vpop.f32.mrb[0].mxu0
  %v6297 = vpop.f32.mrb[0].mxu0
  %v6298 = vadd.f32 %v6171, %v6297
  %v6299 = vpop.f32.mrb[0].mxu0
  %6300 = vmatprep.mubr.bf16.mxu0 0
  %6301 = vmatmul.mubr.bf16.gmra.mrb[0].mxu0 %v6225
  %v6302 = vpop.f32.mrb[0].mxu0
  %v6303 = vadd.f32 %v6176, %v6302
  %v6304 = vpop.f32.mrb[0].mxu0
  %v6305 = vpop.f32.mrb[0].mxu0
  %v6306 = vadd.f32 %v6179, %v6305
  %v6307 = vpop.f32.mrb[0].mxu0
  %6308 = vmatprep.mubr.bf16.mxu0 0
  %6309 = vmatmul.mubr.bf16.gmra.mrb[0].mxu0 %v6228
  %v6310 = vpop.f32.mrb[0].mxu0
  %v6311 = vadd.f32 %v6184, %v6310
  %v6312 = vpop.f32.mrb[0].mxu0
  %v6313 = vpop.f32.mrb[0].mxu0
  %v6314 = vadd.f32 %v6187, %v6313
  %v6315 = vpop.f32.mrb[0].mxu0
  %6316 = vmatprep.mubr.bf16.mxu0 0
  %6317 = vmatmul.mubr.bf16.gmra.mrb[0].mxu0 %v6231
  %v6318 = vpop.f32.mrb[0].mxu0
  %v6319 = vadd.f32 %v6192, %v6318
  %v6320 = vpop.f32.mrb[0].mxu0
  %v6321 = vpop.f32.mrb[0].mxu0
  %v6322 = vadd.f32 %v6195, %v6321
  %v6323 = vpop.f32.mrb[0].mxu0
  %6324 = vmatprep.mubr.bf16.mxu0 0
  %6325 = vmatmul.mubr.bf16.gmra.mrb[0].mxu0 %v6234
  %v6326 = vpop.f32.mrb[0].mxu0
  %v6327 = vadd.f32 %v6200, %v6326
  %v6328 = vpop.f32.mrb[0].mxu0
  %v6329 = vpop.f32.mrb[0].mxu0
  %v6330 = vadd.f32 %v6203, %v6329
  %v6331 = vpop.f32.mrb[0].mxu0
  %6332 = vdwg.mxu0
  %s6333 = scalar_lea.vmem [#allocation6], 8
  %v6334 = vld [vmem:[%s6333] sm:$0xff]
  %v6335 = vld [vmem:[%s6333 + $0x8] sm:$0xff]
  %v6336 = vld [vmem:[%s6333 + $0x10] sm:$0xff]
  %v6337 = vld [vmem:[%s6333 + $0x18] sm:$0xff]
  %v6338 = vld [vmem:[%s6333 + $0x28] sm:$0xff]
  %v6339 = vld [vmem:[%s6333 + $0x30] sm:$0xff]
  %v6340 = vld [vmem:[%s6333 + $0x38] sm:$0xff]
  %v6341 = vld [vmem:[%s6333 + $0x40] sm:$0xff]
  %v6342 = vld [vmem:[%s6333 + $0x50] sm:$0xff]
  %v6343 = vld [vmem:[%s6333 + $0x58] sm:$0xff]
  %v6344 = vld [vmem:[%s6333 + $0x60] sm:$0xff]
  %v6345 = vld [vmem:[%s6333 + $0x68] sm:$0xff]
  %v6346 = vld [vmem:[%s6333 + $0x78] sm:$0xff]
  %v6347 = vld [vmem:[%s6333 + $0x80] sm:$0xff]
  %v6348 = vld [vmem:[%s6333 + $0x88] sm:$0xff]
  %v6349 = vld [vmem:[%s6333 + $0x90] sm:$0xff]
  %v6350 = vpack.c.bf16 %v6335, %v6334
  %v6351 = vpack.c.bf16 %v6337, %v6336
  %v6352 = vpack.c.bf16 %v6339, %v6338
  %v6353 = vpack.c.bf16 %v6341, %v6340
  %v6354 = vpack.c.bf16 %v6343, %v6342
  %v6355 = vpack.c.bf16 %v6345, %v6344
  %v6356 = vpack.c.bf16 %v6347, %v6346
  %v6357 = vpack.c.bf16 %v6349, %v6348
  %s6358 = scalar_lea.vmem %s3, 16
  %v6359 = vld [vmem:[%s6358] sm:$0xf]
  %v6360 = vld [vmem:[%s6358 + $0x4] sm:$0xf]
  %v6363 = vunpack.c.l.b16 %v6359
  %v6364 = vunpack.c.l.b16 %v6360
  %v6365 = vpack.c.b16 %v6364, %v6363
  %v6368 = vsel %vm118, %v6350, 0
  %v6371 = vsel %vm118, %v6351, 0
  %v6374 = vsel %vm118, %v6352, 0
  %v6377 = vsel %vm118, %v6353, 0
  %v6380 = vsel %vm118, %v6354, 0
  %v6383 = vsel %vm118, %v6355, 0
  %v6386 = vsel %vm118, %v6356, 0
  %v6389 = vsel %vm118, %v6357, 0
  %6391 = vmatprep.subr.bf16.mxu0 0
  %6392 = vmatpush1.bf16.msra.mxu0 %v6365
  %6393 = vmatprep.subr.bf16.mxu0 0
  %6394 = vmatpush1.bf16.msra.mxu0 0
  %6395 = vmatprep.subr.bf16.mxu0 0
  %6396 = vmatpush1.bf16.msra.mxu0 0
  %6397 = vmatprep.subr.bf16.mxu0 0
  %6398 = vmatpush1.bf16.msra.mxu0 0
  %6399 = vmatprep.subr.bf16.mxu0 0
  %6400 = vmatpush1.bf16.msra.mxu0 0
  %6401 = vmatprep.subr.bf16.mxu0 0
  %6402 = vmatpush1.bf16.msra.mxu0 0
  %6403 = vmatprep.subr.bf16.mxu0 0
  %6404 = vmatpush1.bf16.msra.mxu0 0
  %6405 = vmatprep.subr.bf16.mxu0 0
  %6406 = vmatpush1.bf16.msra.mxu0 0
  %6407 = vmatprep.subr.bf16.mxu0 0
  %6408 = vmatpush1.bf16.msra.mxu0 0
  %6409 = vmatprep.subr.bf16.mxu0 0
  %6410 = vmatpush1.bf16.msra.mxu0 0
  %6411 = vmatprep.subr.bf16.mxu0 0
  %6412 = vmatpush1.bf16.msra.mxu0 0
  %6413 = vmatprep.subr.bf16.mxu0 0
  %6414 = vmatpush1.bf16.msra.mxu0 0
  %6415 = vmatprep.subr.bf16.mxu0 0
  %6416 = vmatpush1.bf16.msra.mxu0 0
  %6417 = vmatprep.subr.bf16.mxu0 0
  %6418 = vmatpush1.bf16.msra.mxu0 0
  %6419 = vmatprep.subr.bf16.mxu0 0
  %6420 = vmatpush1.bf16.msra.mxu0 0
  %6421 = vmatprep.subr.bf16.mxu0 0
  %6422 = vmatpush1.bf16.msra.mxu0 0
  %6423 = vmatprep.mubr.bf16.mxu0 0
  %6424 = vmatmul.mubr.bf16.gmra.mrb[0].mxu0 %v6368
  %v6425 = vpop.f32.mrb[0].mxu0
  %v6426 = vadd.f32 0.0, %v6425
  %v6427 = vpop.f32.mrb[0].mxu0
  %v6428 = vpop.f32.mrb[0].mxu0
  %v6429 = vadd.f32 0.0, %v6428
  %v6430 = vpop.f32.mrb[0].mxu0
  %6431 = vmatprep.mubr.bf16.mxu0 0
  %6432 = vmatmul.mubr.bf16.gmra.mrb[0].mxu0 %v6371
  %v6433 = vpop.f32.mrb[0].mxu0
  %v6434 = vadd.f32 0.0, %v6433
  %v6435 = vpop.f32.mrb[0].mxu0
  %v6436 = vpop.f32.mrb[0].mxu0
  %v6437 = vadd.f32 0.0, %v6436
  %v6438 = vpop.f32.mrb[0].mxu0
  %6439 = vmatprep.mubr.bf16.mxu0 0
  %6440 = vmatmul.mubr.bf16.gmra.mrb[0].mxu0 %v6374
  %v6441 = vpop.f32.mrb[0].mxu0
  %v6442 = vadd.f32 0.0, %v6441
  %v6443 = vpop.f32.mrb[0].mxu0
  %v6444 = vpop.f32.mrb[0].mxu0
  %v6445 = vadd.f32 0.0, %v6444
  %v6446 = vpop.f32.mrb[0].mxu0
  %6447 = vmatprep.mubr.bf16.mxu0 0
  %6448 = vmatmul.mubr.bf16.gmra.mrb[0].mxu0 %v6377
  %v6449 = vpop.f32.mrb[0].mxu0
  %v6450 = vadd.f32 0.0, %v6449
  %v6451 = vpop.f32.mrb[0].mxu0
  %v6452 = vpop.f32.mrb[0].mxu0
  %v6453 = vadd.f32 0.0, %v6452
  %v6454 = vpop.f32.mrb[0].mxu0
  %6455 = vmatprep.mubr.bf16.mxu0 0
  %6456 = vmatmul.mubr.bf16.gmra.mrb[0].mxu0 %v6380
  %v6457 = vpop.f32.mrb[0].mxu0
  %v6458 = vadd.f32 0.0, %v6457
  %v6459 = vpop.f32.mrb[0].mxu0
  %v6460 = vpop.f32.mrb[0].mxu0
  %v6461 = vadd.f32 0.0, %v6460
  %v6462 = vpop.f32.mrb[0].mxu0
  %6463 = vmatprep.mubr.bf16.mxu0 0
  %6464 = vmatmul.mubr.bf16.gmra.mrb[0].mxu0 %v6383
  %v6465 = vpop.f32.mrb[0].mxu0
  %v6466 = vadd.f32 0.0, %v6465
  %v6467 = vpop.f32.mrb[0].mxu0
  %v6468 = vpop.f32.mrb[0].mxu0
  %v6469 = vadd.f32 0.0, %v6468
  %v6470 = vpop.f32.mrb[0].mxu0
  %6471 = vmatprep.mubr.bf16.mxu0 0
  %6472 = vmatmul.mubr.bf16.gmra.mrb[0].mxu0 %v6386
  %v6473 = vpop.f32.mrb[0].mxu0
  %v6474 = vadd.f32 0.0, %v6473
  %v6475 = vpop.f32.mrb[0].mxu0
  %v6476 = vpop.f32.mrb[0].mxu0
  %v6477 = vadd.f32 0.0, %v6476
  %v6478 = vpop.f32.mrb[0].mxu0
  %6479 = vmatprep.mubr.bf16.mxu0 0
  %6480 = vmatmul.mubr.bf16.gmra.mrb[0].mxu0 %v6389
  %v6481 = vpop.f32.mrb[0].mxu0
  %v6482 = vadd.f32 0.0, %v6481
  %v6483 = vpop.f32.mrb[0].mxu0
  %v6484 = vpop.f32.mrb[0].mxu0
  %v6485 = vadd.f32 0.0, %v6484
  %v6486 = vpop.f32.mrb[0].mxu0
  %6487 = vdwg.mxu0
  %v6488 = vadd.f32 %v6271, %v6426
  %v6489 = vadd.f32 %v6274, %v6429
  %v6490 = vadd.f32 %v6279, %v6434
  %v6491 = vadd.f32 %v6282, %v6437
  %v6492 = vadd.f32 %v6287, %v6442
  %v6493 = vadd.f32 %v6290, %v6445
  %v6494 = vadd.f32 %v6295, %v6450
  %v6495 = vadd.f32 %v6298, %v6453
  %v6496 = vadd.f32 %v6303, %v6458
  %v6497 = vadd.f32 %v6306, %v6461
  %v6498 = vadd.f32 %v6311, %v6466
  %v6499 = vadd.f32 %v6314, %v6469
  %v6500 = vadd.f32 %v6319, %v6474
  %v6501 = vadd.f32 %v6322, %v6477
  %v6502 = vadd.f32 %v6327, %v6482
  %v6503 = vadd.f32 %v6330, %v6485
  %v6504 = vld [vmem:[#allocation8] sm:$0xff]
  %v6505 = vld [vmem:[#allocation8 + $0x8] sm:$0xff]
  %v6506 = vld [vmem:[#allocation8 + $0x10] sm:$0xff]
  %v6507 = vld [vmem:[#allocation8 + $0x18] sm:$0xff]
  %v6508 = vld [vmem:[#allocation8 + $0x28] sm:$0xff]
  %v6509 = vld [vmem:[#allocation8 + $0x30] sm:$0xff]
  %v6510 = vld [vmem:[#allocation8 + $0x38] sm:$0xff]
  %v6511 = vld [vmem:[#allocation8 + $0x40] sm:$0xff]
  %v6512 = vld [vmem:[#allocation8 + $0x50] sm:$0xff]
  %v6513 = vld [vmem:[#allocation8 + $0x58] sm:$0xff]
  %v6514 = vld [vmem:[#allocation8 + $0x60] sm:$0xff]
  %v6515 = vld [vmem:[#allocation8 + $0x68] sm:$0xff]
  %v6516 = vld [vmem:[#allocation8 + $0x78] sm:$0xff]
  %v6517 = vld [vmem:[#allocation8 + $0x80] sm:$0xff]
  %v6518 = vld [vmem:[#allocation8 + $0x88] sm:$0xff]
  %v6519 = vld [vmem:[#allocation8 + $0x90] sm:$0xff]
  %v6520 = vpack.c.bf16 %v6505, %v6504
  %v6521 = vpack.c.bf16 %v6507, %v6506
  %v6522 = vpack.c.bf16 %v6509, %v6508
  %v6523 = vpack.c.bf16 %v6511, %v6510
  %v6524 = vpack.c.bf16 %v6513, %v6512
  %v6525 = vpack.c.bf16 %v6515, %v6514
  %v6526 = vpack.c.bf16 %v6517, %v6516
  %v6527 = vpack.c.bf16 %v6519, %v6518
  %s6528 = scalar_lea.vmem %s3, 24
  %v6529 = vld [vmem:[%s6528] sm:$0xf]
  %v6530 = vld [vmem:[%s6528 + $0x4] sm:$0xf]
  %v6533 = vunpack.c.l.b16 %v6529
  %v6534 = vunpack.c.l.b16 %v6530
  %v6535 = vpack.c.b16 %v6534, %v6533
  %v6538 = vsel %vm118, %v6520, 0
  %v6541 = vsel %vm118, %v6521, 0
  %v6544 = vsel %vm118, %v6522, 0
  %v6547 = vsel %vm118, %v6523, 0
  %v6550 = vsel %vm118, %v6524, 0
  %v6553 = vsel %vm118, %v6525, 0
  %v6556 = vsel %vm118, %v6526, 0
  %v6559 = vsel %vm118, %v6527, 0
  %6561 = vmatprep.subr.bf16.mxu0 0
  %6562 = vmatpush1.bf16.msra.mxu0 %v6535
  %6563 = vmatprep.subr.bf16.mxu0 0
  %6564 = vmatpush1.bf16.msra.mxu0 0
  %6565 = vmatprep.subr.bf16.mxu0 0
  %6566 = vmatpush1.bf16.msra.mxu0 0
  %6567 = vmatprep.subr.bf16.mxu0 0
  %6568 = vmatpush1.bf16.msra.mxu0 0
  %6569 = vmatprep.subr.bf16.mxu0 0
  %6570 = vmatpush1.bf16.msra.mxu0 0
  %6571 = vmatprep.subr.bf16.mxu0 0
  %6572 = vmatpush1.bf16.msra.mxu0 0
  %6573 = vmatprep.subr.bf16.mxu0 0
  %6574 = vmatpush1.bf16.msra.mxu0 0
  %6575 = vmatprep.subr.bf16.mxu0 0
  %6576 = vmatpush1.bf16.msra.mxu0 0
  %6577 = vmatprep.subr.bf16.mxu0 0
  %6578 = vmatpush1.bf16.msra.mxu0 0
  %6579 = vmatprep.subr.bf16.mxu0 0
  %6580 = vmatpush1.bf16.msra.mxu0 0
  %6581 = vmatprep.subr.bf16.mxu0 0
  %6582 = vmatpush1.bf16.msra.mxu0 0
  %6583 = vmatprep.subr.bf16.mxu0 0
  %6584 = vmatpush1.bf16.msra.mxu0 0
  %6585 = vmatprep.subr.bf16.mxu0 0
  %6586 = vmatpush1.bf16.msra.mxu0 0
  %6587 = vmatprep.subr.bf16.mxu0 0
  %6588 = vmatpush1.bf16.msra.mxu0 0
  %6589 = vmatprep.subr.bf16.mxu0 0
  %6590 = vmatpush1.bf16.msra.mxu0 0
  %6591 = vmatprep.subr.bf16.mxu0 0
  %6592 = vmatpush1.bf16.msra.mxu0 0
  %6593 = vmatprep.mubr.bf16.mxu0 0
  %6594 = vmatmul.mubr.bf16.gmra.mrb[0].mxu0 %v6538
  %v6595 = vpop.f32.mrb[0].mxu0
  %v6596 = vadd.f32 0.0, %v6595
  %v6597 = vpop.f32.mrb[0].mxu0
  %v6598 = vpop.f32.mrb[0].mxu0
  %v6599 = vadd.f32 0.0, %v6598
  %v6600 = vpop.f32.mrb[0].mxu0
  %6601 = vmatprep.mubr.bf16.mxu0 0
  %6602 = vmatmul.mubr.bf16.gmra.mrb[0].mxu0 %v6541
  %v6603 = vpop.f32.mrb[0].mxu0
  %v6604 = vadd.f32 0.0, %v6603
  %v6605 = vpop.f32.mrb[0].mxu0
  %v6606 = vpop.f32.mrb[0].mxu0
  %v6607 = vadd.f32 0.0, %v6606
  %v6608 = vpop.f32.mrb[0].mxu0
  %6609 = vmatprep.mubr.bf16.mxu0 0
  %6610 = vmatmul.mubr.bf16.gmra.mrb[0].mxu0 %v6544
  %v6611 = vpop.f32.mrb[0].mxu0
  %v6612 = vadd.f32 0.0, %v6611
  %v6613 = vpop.f32.mrb[0].mxu0
  %v6614 = vpop.f32.mrb[0].mxu0
  %v6615 = vadd.f32 0.0, %v6614
  %v6616 = vpop.f32.mrb[0].mxu0
  %6617 = vmatprep.mubr.bf16.mxu0 0
  %6618 = vmatmul.mubr.bf16.gmra.mrb[0].mxu0 %v6547
  %v6619 = vpop.f32.mrb[0].mxu0
  %v6620 = vadd.f32 0.0, %v6619
  %v6621 = vpop.f32.mrb[0].mxu0
  %v6622 = vpop.f32.mrb[0].mxu0
  %v6623 = vadd.f32 0.0, %v6622
  %v6624 = vpop.f32.mrb[0].mxu0
  %6625 = vmatprep.mubr.bf16.mxu0 0
  %6626 = vmatmul.mubr.bf16.gmra.mrb[0].mxu0 %v6550
  %v6627 = vpop.f32.mrb[0].mxu0
  %v6628 = vadd.f32 0.0, %v6627
  %v6629 = vpop.f32.mrb[0].mxu0
  %v6630 = vpop.f32.mrb[0].mxu0
  %v6631 = vadd.f32 0.0, %v6630
  %v6632 = vpop.f32.mrb[0].mxu0
  %6633 = vmatprep.mubr.bf16.mxu0 0
  %6634 = vmatmul.mubr.bf16.gmra.mrb[0].mxu0 %v6553
  %v6635 = vpop.f32.mrb[0].mxu0
  %v6636 = vadd.f32 0.0, %v6635
  %v6637 = vpop.f32.mrb[0].mxu0
  %v6638 = vpop.f32.mrb[0].mxu0
  %v6639 = vadd.f32 0.0, %v6638
  %v6640 = vpop.f32.mrb[0].mxu0
  %6641 = vmatprep.mubr.bf16.mxu0 0
  %6642 = vmatmul.mubr.bf16.gmra.mrb[0].mxu0 %v6556
  %v6643 = vpop.f32.mrb[0].mxu0
  %v6644 = vadd.f32 0.0, %v6643
  %v6645 = vpop.f32.mrb[0].mxu0
  %v6646 = vpop.f32.mrb[0].mxu0
  %v6647 = vadd.f32 0.0, %v6646
  %v6648 = vpop.f32.mrb[0].mxu0
  %6649 = vmatprep.mubr.bf16.mxu0 0
  %6650 = vmatmul.mubr.bf16.gmra.mrb[0].mxu0 %v6559
  %v6651 = vpop.f32.mrb[0].mxu0
  %v6652 = vadd.f32 0.0, %v6651
  %v6653 = vpop.f32.mrb[0].mxu0
  %v6654 = vpop.f32.mrb[0].mxu0
  %v6655 = vadd.f32 0.0, %v6654
  %v6656 = vpop.f32.mrb[0].mxu0
  %6657 = vdwg.mxu0
  %v6658 = vadd.f32 %v6488, %v6596
  %v6659 = vadd.f32 %v6489, %v6599
  %v6660 = vadd.f32 %v6490, %v6604
  %v6661 = vadd.f32 %v6491, %v6607
  %v6662 = vadd.f32 %v6492, %v6612
  %v6663 = vadd.f32 %v6493, %v6615
  %v6664 = vadd.f32 %v6494, %v6620
  %v6665 = vadd.f32 %v6495, %v6623
  %v6666 = vadd.f32 %v6496, %v6628
  %v6667 = vadd.f32 %v6497, %v6631
  %v6668 = vadd.f32 %v6498, %v6636
  %v6669 = vadd.f32 %v6499, %v6639
  %v6670 = vadd.f32 %v6500, %v6644
  %v6671 = vadd.f32 %v6501, %v6647
  %v6672 = vadd.f32 %v6502, %v6652
  %v6673 = vadd.f32 %v6503, %v6655
  %v6674 = vld [vmem:[#allocation9] sm:$0xff]
  %v6675 = vld [vmem:[#allocation9 + $0x8] sm:$0xff]
  %v6676 = vld [vmem:[#allocation9 + $0x10] sm:$0xff]
  %v6677 = vld [vmem:[#allocation9 + $0x18] sm:$0xff]
  %v6678 = vld [vmem:[#allocation9 + $0x28] sm:$0xff]
  %v6679 = vld [vmem:[#allocation9 + $0x30] sm:$0xff]
  %v6680 = vld [vmem:[#allocation9 + $0x38] sm:$0xff]
  %v6681 = vld [vmem:[#allocation9 + $0x40] sm:$0xff]
  %v6682 = vld [vmem:[#allocation9 + $0x50] sm:$0xff]
  %v6683 = vld [vmem:[#allocation9 + $0x58] sm:$0xff]
  %v6684 = vld [vmem:[#allocation9 + $0x60] sm:$0xff]
  %v6685 = vld [vmem:[#allocation9 + $0x68] sm:$0xff]
  %v6686 = vld [vmem:[#allocation9 + $0x78] sm:$0xff]
  %v6687 = vld [vmem:[#allocation9 + $0x80] sm:$0xff]
  %v6688 = vld [vmem:[#allocation9 + $0x88] sm:$0xff]
  %v6689 = vld [vmem:[#allocation9 + $0x90] sm:$0xff]
  %v6690 = vpack.c.bf16 %v6675, %v6674
  %v6691 = vpack.c.bf16 %v6677, %v6676
  %v6692 = vpack.c.bf16 %v6679, %v6678
  %v6693 = vpack.c.bf16 %v6681, %v6680
  %v6694 = vpack.c.bf16 %v6683, %v6682
  %v6695 = vpack.c.bf16 %v6685, %v6684
  %v6696 = vpack.c.bf16 %v6687, %v6686
  %v6697 = vpack.c.bf16 %v6689, %v6688
  %s6698 = scalar_lea.vmem %s3, 32
  %v6699 = vld [vmem:[%s6698] sm:$0xf]
  %v6700 = vld [vmem:[%s6698 + $0x4] sm:$0xf]
  %v6703 = vunpack.c.l.b16 %v6699
  %v6704 = vunpack.c.l.b16 %v6700
  %v6705 = vpack.c.b16 %v6704, %v6703
  %v6708 = vsel %vm118, %v6690, 0
  %v6711 = vsel %vm118, %v6691, 0
  %v6714 = vsel %vm118, %v6692, 0
  %v6717 = vsel %vm118, %v6693, 0
  %v6720 = vsel %vm118, %v6694, 0
  %v6723 = vsel %vm118, %v6695, 0
  %v6726 = vsel %vm118, %v6696, 0
  %v6729 = vsel %vm118, %v6697, 0
  %6731 = vmatprep.subr.bf16.mxu0 0
  %6732 = vmatpush1.bf16.msra.mxu0 %v6705
  %6733 = vmatprep.subr.bf16.mxu0 0
  %6734 = vmatpush1.bf16.msra.mxu0 0
  %6735 = vmatprep.subr.bf16.mxu0 0
  %6736 = vmatpush1.bf16.msra.mxu0 0
  %6737 = vmatprep.subr.bf16.mxu0 0
  %6738 = vmatpush1.bf16.msra.mxu0 0
  %6739 = vmatprep.subr.bf16.mxu0 0
  %6740 = vmatpush1.bf16.msra.mxu0 0
  %6741 = vmatprep.subr.bf16.mxu0 0
  %6742 = vmatpush1.bf16.msra.mxu0 0
  %6743 = vmatprep.subr.bf16.mxu0 0
  %6744 = vmatpush1.bf16.msra.mxu0 0
  %6745 = vmatprep.subr.bf16.mxu0 0
  %6746 = vmatpush1.bf16.msra.mxu0 0
  %6747 = vmatprep.subr.bf16.mxu0 0
  %6748 = vmatpush1.bf16.msra.mxu0 0
  %6749 = vmatprep.subr.bf16.mxu0 0
  %6750 = vmatpush1.bf16.msra.mxu0 0
  %6751 = vmatprep.subr.bf16.mxu0 0
  %6752 = vmatpush1.bf16.msra.mxu0 0
  %6753 = vmatprep.subr.bf16.mxu0 0
  %6754 = vmatpush1.bf16.msra.mxu0 0
  %6755 = vmatprep.subr.bf16.mxu0 0
  %6756 = vmatpush1.bf16.msra.mxu0 0
  %6757 = vmatprep.subr.bf16.mxu0 0
  %6758 = vmatpush1.bf16.msra.mxu0 0
  %6759 = vmatprep.subr.bf16.mxu0 0
  %6760 = vmatpush1.bf16.msra.mxu0 0
  %6761 = vmatprep.subr.bf16.mxu0 0
  %6762 = vmatpush1.bf16.msra.mxu0 0
  %6763 = vmatprep.mubr.bf16.mxu0 0
  %6764 = vmatmul.mubr.bf16.gmra.mrb[0].mxu0 %v6708
  %v6765 = vpop.f32.mrb[0].mxu0
  %v6766 = vadd.f32 0.0, %v6765
  %v6767 = vpop.f32.mrb[0].mxu0
  %v6768 = vpop.f32.mrb[0].mxu0
  %v6769 = vadd.f32 0.0, %v6768
  %v6770 = vpop.f32.mrb[0].mxu0
  %6771 = vmatprep.mubr.bf16.mxu0 0
  %6772 = vmatmul.mubr.bf16.gmra.mrb[0].mxu0 %v6711
  %v6773 = vpop.f32.mrb[0].mxu0
  %v6774 = vadd.f32 0.0, %v6773
  %v6775 = vpop.f32.mrb[0].mxu0
  %v6776 = vpop.f32.mrb[0].mxu0
  %v6777 = vadd.f32 0.0, %v6776
  %v6778 = vpop.f32.mrb[0].mxu0
  %6779 = vmatprep.mubr.bf16.mxu0 0
  %6780 = vmatmul.mubr.bf16.gmra.mrb[0].mxu0 %v6714
  %v6781 = vpop.f32.mrb[0].mxu0
  %v6782 = vadd.f32 0.0, %v6781
  %v6783 = vpop.f32.mrb[0].mxu0
  %v6784 = vpop.f32.mrb[0].mxu0
  %v6785 = vadd.f32 0.0, %v6784
  %v6786 = vpop.f32.mrb[0].mxu0
  %6787 = vmatprep.mubr.bf16.mxu0 0
  %6788 = vmatmul.mubr.bf16.gmra.mrb[0].mxu0 %v6717
  %v6789 = vpop.f32.mrb[0].mxu0
  %v6790 = vadd.f32 0.0, %v6789
  %v6791 = vpop.f32.mrb[0].mxu0
  %v6792 = vpop.f32.mrb[0].mxu0
  %v6793 = vadd.f32 0.0, %v6792
  %v6794 = vpop.f32.mrb[0].mxu0
  %6795 = vmatprep.mubr.bf16.mxu0 0
  %6796 = vmatmul.mubr.bf16.gmra.mrb[0].mxu0 %v6720
  %v6797 = vpop.f32.mrb[0].mxu0
  %v6798 = vadd.f32 0.0, %v6797
  %v6799 = vpop.f32.mrb[0].mxu0
  %v6800 = vpop.f32.mrb[0].mxu0
  %v6801 = vadd.f32 0.0, %v6800
  %v6802 = vpop.f32.mrb[0].mxu0
  %6803 = vmatprep.mubr.bf16.mxu0 0
  %6804 = vmatmul.mubr.bf16.gmra.mrb[0].mxu0 %v6723
  %v6805 = vpop.f32.mrb[0].mxu0
  %v6806 = vadd.f32 0.0, %v6805
  %v6807 = vpop.f32.mrb[0].mxu0
  %v6808 = vpop.f32.mrb[0].mxu0
  %v6809 = vadd.f32 0.0, %v6808
  %v6810 = vpop.f32.mrb[0].mxu0
  %6811 = vmatprep.mubr.bf16.mxu0 0
  %6812 = vmatmul.mubr.bf16.gmra.mrb[0].mxu0 %v6726
  %v6813 = vpop.f32.mrb[0].mxu0
  %v6814 = vadd.f32 0.0, %v6813
  %v6815 = vpop.f32.mrb[0].mxu0
  %v6816 = vpop.f32.mrb[0].mxu0
  %v6817 = vadd.f32 0.0, %v6816
  %v6818 = vpop.f32.mrb[0].mxu0
  %6819 = vmatprep.mubr.bf16.mxu0 0
  %6820 = vmatmul.mubr.bf16.gmra.mrb[0].mxu0 %v6729
  %v6821 = vpop.f32.mrb[0].mxu0
  %v6822 = vadd.f32 0.0, %v6821
  %v6823 = vpop.f32.mrb[0].mxu0
  %v6824 = vpop.f32.mrb[0].mxu0
  %v6825 = vadd.f32 0.0, %v6824
  %v6826 = vpop.f32.mrb[0].mxu0
  %6827 = vdwg.mxu0
  %v6828 = vadd.f32 %v6658, %v6766
  %v6829 = vadd.f32 %v6659, %v6769
  %v6830 = vadd.f32 %v6660, %v6774
  %v6831 = vadd.f32 %v6661, %v6777
  %v6832 = vadd.f32 %v6662, %v6782
  %v6833 = vadd.f32 %v6663, %v6785
  %v6834 = vadd.f32 %v6664, %v6790
  %v6835 = vadd.f32 %v6665, %v6793
  %v6836 = vadd.f32 %v6666, %v6798
  %v6837 = vadd.f32 %v6667, %v6801
  %v6838 = vadd.f32 %v6668, %v6806
  %v6839 = vadd.f32 %v6669, %v6809
  %v6840 = vadd.f32 %v6670, %v6814
  %v6841 = vadd.f32 %v6671, %v6817
  %v6842 = vadd.f32 %v6672, %v6822
  %v6843 = vadd.f32 %v6673, %v6825
  %v6844 = vld [vmem:[%s5975] sm:$0xff]
  %v6845 = vld [vmem:[%s5975 + $0x8] sm:$0xff]
  %v6846 = vld [vmem:[%s5975 + $0x10] sm:$0xff]
  %v6847 = vld [vmem:[%s5975 + $0x18] sm:$0xff]
  %v6848 = vld [vmem:[%s5975 + $0x28] sm:$0xff]
  %v6849 = vld [vmem:[%s5975 + $0x30] sm:$0xff]
  %v6850 = vld [vmem:[%s5975 + $0x38] sm:$0xff]
  %v6851 = vld [vmem:[%s5975 + $0x40] sm:$0xff]
  %v6852 = vld [vmem:[%s5975 + $0x50] sm:$0xff]
  %v6853 = vld [vmem:[%s5975 + $0x58] sm:$0xff]
  %v6854 = vld [vmem:[%s5975 + $0x60] sm:$0xff]
  %v6855 = vld [vmem:[%s5975 + $0x68] sm:$0xff]
  %v6856 = vld [vmem:[%s5975 + $0x78] sm:$0xff]
  %v6857 = vld [vmem:[%s5975 + $0x80] sm:$0xff]
  %v6858 = vld [vmem:[%s5975 + $0x88] sm:$0xff]
  %v6859 = vld [vmem:[%s5975 + $0x90] sm:$0xff]
  %v6860 = vpack.c.bf16 %v6845, %v6844
  %v6861 = vpack.c.bf16 %v6847, %v6846
  %v6862 = vpack.c.bf16 %v6849, %v6848
  %v6863 = vpack.c.bf16 %v6851, %v6850
  %v6864 = vpack.c.bf16 %v6853, %v6852
  %v6865 = vpack.c.bf16 %v6855, %v6854
  %v6866 = vpack.c.bf16 %v6857, %v6856
  %v6867 = vpack.c.bf16 %v6859, %v6858
  %s6868 = scalar_lea.vmem %s3, 40
  %v6869 = vld [vmem:[%s6868] sm:$0xf]
  %v6870 = vld [vmem:[%s6868 + $0x4] sm:$0xf]
  %v6873 = vunpack.c.l.b16 %v6869
  %v6874 = vunpack.c.l.b16 %v6870
  %v6875 = vpack.c.b16 %v6874, %v6873
  %v6878 = vsel %vm118, %v6860, 0
  %v6881 = vsel %vm118, %v6861, 0
  %v6884 = vsel %vm118, %v6862, 0
  %v6887 = vsel %vm118, %v6863, 0
  %v6890 = vsel %vm118, %v6864, 0
  %v6893 = vsel %vm118, %v6865, 0
  %v6896 = vsel %vm118, %v6866, 0
  %v6899 = vsel %vm118, %v6867, 0
  %6901 = vmatprep.subr.bf16.mxu0 0
  %6902 = vmatpush1.bf16.msra.mxu0 %v6875
  %6903 = vmatprep.subr.bf16.mxu0 0
  %6904 = vmatpush1.bf16.msra.mxu0 0
  %6905 = vmatprep.subr.bf16.mxu0 0
  %6906 = vmatpush1.bf16.msra.mxu0 0
  %6907 = vmatprep.subr.bf16.mxu0 0
  %6908 = vmatpush1.bf16.msra.mxu0 0
  %6909 = vmatprep.subr.bf16.mxu0 0
  %6910 = vmatpush1.bf16.msra.mxu0 0
  %6911 = vmatprep.subr.bf16.mxu0 0
  %6912 = vmatpush1.bf16.msra.mxu0 0
  %6913 = vmatprep.subr.bf16.mxu0 0
  %6914 = vmatpush1.bf16.msra.mxu0 0
  %6915 = vmatprep.subr.bf16.mxu0 0
  %6916 = vmatpush1.bf16.msra.mxu0 0
  %6917 = vmatprep.subr.bf16.mxu0 0
  %6918 = vmatpush1.bf16.msra.mxu0 0
  %6919 = vmatprep.subr.bf16.mxu0 0
  %6920 = vmatpush1.bf16.msra.mxu0 0
  %6921 = vmatprep.subr.bf16.mxu0 0
  %6922 = vmatpush1.bf16.msra.mxu0 0
  %6923 = vmatprep.subr.bf16.mxu0 0
  %6924 = vmatpush1.bf16.msra.mxu0 0
  %6925 = vmatprep.subr.bf16.mxu0 0
  %6926 = vmatpush1.bf16.msra.mxu0 0
  %6927 = vmatprep.subr.bf16.mxu0 0
  %6928 = vmatpush1.bf16.msra.mxu0 0
  %6929 = vmatprep.subr.bf16.mxu0 0
  %6930 = vmatpush1.bf16.msra.mxu0 0
  %6931 = vmatprep.subr.bf16.mxu0 0
  %6932 = vmatpush1.bf16.msra.mxu0 0
  %6933 = vmatprep.mubr.bf16.mxu0 0
  %6934 = vmatmul.mubr.bf16.gmra.mrb[0].mxu0 %v6878
  %v6935 = vpop.f32.mrb[0].mxu0
  %v6936 = vadd.f32 0.0, %v6935
  %v6937 = vpop.f32.mrb[0].mxu0
  %v6938 = vpop.f32.mrb[0].mxu0
  %v6939 = vadd.f32 0.0, %v6938
  %v6940 = vpop.f32.mrb[0].mxu0
  %6941 = vmatprep.mubr.bf16.mxu0 0
  %6942 = vmatmul.mubr.bf16.gmra.mrb[0].mxu0 %v6881
  %v6943 = vpop.f32.mrb[0].mxu0
  %v6944 = vadd.f32 0.0, %v6943
  %v6945 = vpop.f32.mrb[0].mxu0
  %v6946 = vpop.f32.mrb[0].mxu0
  %v6947 = vadd.f32 0.0, %v6946
  %v6948 = vpop.f32.mrb[0].mxu0
  %6949 = vmatprep.mubr.bf16.mxu0 0
  %6950 = vmatmul.mubr.bf16.gmra.mrb[0].mxu0 %v6884
  %v6951 = vpop.f32.mrb[0].mxu0
  %v6952 = vadd.f32 0.0, %v6951
  %v6953 = vpop.f32.mrb[0].mxu0
  %v6954 = vpop.f32.mrb[0].mxu0
  %v6955 = vadd.f32 0.0, %v6954
  %v6956 = vpop.f32.mrb[0].mxu0
  %6957 = vmatprep.mubr.bf16.mxu0 0
  %6958 = vmatmul.mubr.bf16.gmra.mrb[0].mxu0 %v6887
  %v6959 = vpop.f32.mrb[0].mxu0
  %v6960 = vadd.f32 0.0, %v6959
  %v6961 = vpop.f32.mrb[0].mxu0
  %v6962 = vpop.f32.mrb[0].mxu0
  %v6963 = vadd.f32 0.0, %v6962
  %v6964 = vpop.f32.mrb[0].mxu0
  %6965 = vmatprep.mubr.bf16.mxu0 0
  %6966 = vmatmul.mubr.bf16.gmra.mrb[0].mxu0 %v6890
  %v6967 = vpop.f32.mrb[0].mxu0
  %v6968 = vadd.f32 0.0, %v6967
  %v6969 = vpop.f32.mrb[0].mxu0
  %v6970 = vpop.f32.mrb[0].mxu0
  %v6971 = vadd.f32 0.0, %v6970
  %v6972 = vpop.f32.mrb[0].mxu0
  %6973 = vmatprep.mubr.bf16.mxu0 0
  %6974 = vmatmul.mubr.bf16.gmra.mrb[0].mxu0 %v6893
  %v6975 = vpop.f32.mrb[0].mxu0
  %v6976 = vadd.f32 0.0, %v6975
  %v6977 = vpop.f32.mrb[0].mxu0
  %v6978 = vpop.f32.mrb[0].mxu0
  %v6979 = vadd.f32 0.0, %v6978
  %v6980 = vpop.f32.mrb[0].mxu0
  %6981 = vmatprep.mubr.bf16.mxu0 0
  %6982 = vmatmul.mubr.bf16.gmra.mrb[0].mxu0 %v6896
  %v6983 = vpop.f32.mrb[0].mxu0
  %v6984 = vadd.f32 0.0, %v6983
  %v6985 = vpop.f32.mrb[0].mxu0
  %v6986 = vpop.f32.mrb[0].mxu0
  %v6987 = vadd.f32 0.0, %v6986
  %v6988 = vpop.f32.mrb[0].mxu0
  %6989 = vmatprep.mubr.bf16.mxu0 0
  %6990 = vmatmul.mubr.bf16.gmra.mrb[0].mxu0 %v6899
  %v6991 = vpop.f32.mrb[0].mxu0
  %v6992 = vadd.f32 0.0, %v6991
  %v6993 = vpop.f32.mrb[0].mxu0
  %v6994 = vpop.f32.mrb[0].mxu0
  %v6995 = vadd.f32 0.0, %v6994
  %v6996 = vpop.f32.mrb[0].mxu0
  %6997 = vdwg.mxu0
  %v6998 = vadd.f32 %v6828, %v6936
  %v6999 = vadd.f32 %v6829, %v6939
  %v7000 = vadd.f32 %v6830, %v6944
  %v7001 = vadd.f32 %v6831, %v6947
  %v7002 = vadd.f32 %v6832, %v6952
  %v7003 = vadd.f32 %v6833, %v6955
  %v7004 = vadd.f32 %v6834, %v6960
  %v7005 = vadd.f32 %v6835, %v6963
  %v7006 = vadd.f32 %v6836, %v6968
  %v7007 = vadd.f32 %v6837, %v6971
  %v7008 = vadd.f32 %v6838, %v6976
  %v7009 = vadd.f32 %v6839, %v6979
  %v7010 = vadd.f32 %v6840, %v6984
  %v7011 = vadd.f32 %v6841, %v6987
  %v7012 = vadd.f32 %v6842, %v6992
  %v7013 = vadd.f32 %v6843, %v6995
  %s7014 = scalar_lea.vmem [#allocation6], 40
  %v7015 = vld [vmem:[%s7014] sm:$0xff]
  %v7016 = vld [vmem:[%s7014 + $0x8] sm:$0xff]
  %v7017 = vld [vmem:[%s7014 + $0x10] sm:$0xff]
  %v7018 = vld [vmem:[%s7014 + $0x18] sm:$0xff]
  %v7019 = vld [vmem:[%s7014 + $0x28] sm:$0xff]
  %v7020 = vld [vmem:[%s7014 + $0x30] sm:$0xff]
  %v7021 = vld [vmem:[%s7014 + $0x38] sm:$0xff]
  %v7022 = vld [vmem:[%s7014 + $0x40] sm:$0xff]
  %v7023 = vld [vmem:[%s7014 + $0x50] sm:$0xff]
  %v7024 = vld [vmem:[%s7014 + $0x58] sm:$0xff]
  %v7025 = vld [vmem:[%s7014 + $0x60] sm:$0xff]
  %v7026 = vld [vmem:[%s7014 + $0x68] sm:$0xff]
  %v7027 = vld [vmem:[%s7014 + $0x78] sm:$0xff]
  %v7028 = vld [vmem:[%s7014 + $0x80] sm:$0xff]
  %v7029 = vld [vmem:[%s7014 + $0x88] sm:$0xff]
  %v7030 = vld [vmem:[%s7014 + $0x90] sm:$0xff]
  %v7031 = vpack.c.bf16 %v7016, %v7015
  %v7032 = vpack.c.bf16 %v7018, %v7017
  %v7033 = vpack.c.bf16 %v7020, %v7019
  %v7034 = vpack.c.bf16 %v7022, %v7021
  %v7035 = vpack.c.bf16 %v7024, %v7023
  %v7036 = vpack.c.bf16 %v7026, %v7025
  %v7037 = vpack.c.bf16 %v7028, %v7027
  %v7038 = vpack.c.bf16 %v7030, %v7029
  %s7039 = scalar_lea.vmem %s3, 48
  %v7040 = vld [vmem:[%s7039] sm:$0xf]
  %v7041 = vld [vmem:[%s7039 + $0x4] sm:$0xf]
  %v7044 = vunpack.c.l.b16 %v7040
  %v7045 = vunpack.c.l.b16 %v7041
  %v7046 = vpack.c.b16 %v7045, %v7044
  %v7049 = vsel %vm118, %v7031, 0
  %v7052 = vsel %vm118, %v7032, 0
  %v7055 = vsel %vm118, %v7033, 0
  %v7058 = vsel %vm118, %v7034, 0
  %v7061 = vsel %vm118, %v7035, 0
  %v7064 = vsel %vm118, %v7036, 0
  %v7067 = vsel %vm118, %v7037, 0
  %v7070 = vsel %vm118, %v7038, 0
  %7072 = vmatprep.subr.bf16.mxu0 0
  %7073 = vmatpush1.bf16.msra.mxu0 %v7046
  %7074 = vmatprep.subr.bf16.mxu0 0
  %7075 = vmatpush1.bf16.msra.mxu0 0
  %7076 = vmatprep.subr.bf16.mxu0 0
  %7077 = vmatpush1.bf16.msra.mxu0 0
  %7078 = vmatprep.subr.bf16.mxu0 0
  %7079 = vmatpush1.bf16.msra.mxu0 0
  %7080 = vmatprep.subr.bf16.mxu0 0
  %7081 = vmatpush1.bf16.msra.mxu0 0
  %7082 = vmatprep.subr.bf16.mxu0 0
  %7083 = vmatpush1.bf16.msra.mxu0 0
  %7084 = vmatprep.subr.bf16.mxu0 0
  %7085 = vmatpush1.bf16.msra.mxu0 0
  %7086 = vmatprep.subr.bf16.mxu0 0
  %7087 = vmatpush1.bf16.msra.mxu0 0
  %7088 = vmatprep.subr.bf16.mxu0 0
  %7089 = vmatpush1.bf16.msra.mxu0 0
  %7090 = vmatprep.subr.bf16.mxu0 0
  %7091 = vmatpush1.bf16.msra.mxu0 0
  %7092 = vmatprep.subr.bf16.mxu0 0
  %7093 = vmatpush1.bf16.msra.mxu0 0
  %7094 = vmatprep.subr.bf16.mxu0 0
  %7095 = vmatpush1.bf16.msra.mxu0 0
  %7096 = vmatprep.subr.bf16.mxu0 0
  %7097 = vmatpush1.bf16.msra.mxu0 0
  %7098 = vmatprep.subr.bf16.mxu0 0
  %7099 = vmatpush1.bf16.msra.mxu0 0
  %7100 = vmatprep.subr.bf16.mxu0 0
  %7101 = vmatpush1.bf16.msra.mxu0 0
  %7102 = vmatprep.subr.bf16.mxu0 0
  %7103 = vmatpush1.bf16.msra.mxu0 0
  %7104 = vmatprep.mubr.bf16.mxu0 0
  %7105 = vmatmul.mubr.bf16.gmra.mrb[0].mxu0 %v7049
  %v7106 = vpop.f32.mrb[0].mxu0
  %v7107 = vadd.f32 0.0, %v7106
  %v7108 = vpop.f32.mrb[0].mxu0
  %v7109 = vpop.f32.mrb[0].mxu0
  %v7110 = vadd.f32 0.0, %v7109
  %v7111 = vpop.f32.mrb[0].mxu0
  %7112 = vmatprep.mubr.bf16.mxu0 0
  %7113 = vmatmul.mubr.bf16.gmra.mrb[0].mxu0 %v7052
  %v7114 = vpop.f32.mrb[0].mxu0
  %v7115 = vadd.f32 0.0, %v7114
  %v7116 = vpop.f32.mrb[0].mxu0
  %v7117 = vpop.f32.mrb[0].mxu0
  %v7118 = vadd.f32 0.0, %v7117
  %v7119 = vpop.f32.mrb[0].mxu0
  %7120 = vmatprep.mubr.bf16.mxu0 0
  %7121 = vmatmul.mubr.bf16.gmra.mrb[0].mxu0 %v7055
  %v7122 = vpop.f32.mrb[0].mxu0
  %v7123 = vadd.f32 0.0, %v7122
  %v7124 = vpop.f32.mrb[0].mxu0
  %v7125 = vpop.f32.mrb[0].mxu0
  %v7126 = vadd.f32 0.0, %v7125
  %v7127 = vpop.f32.mrb[0].mxu0
  %7128 = vmatprep.mubr.bf16.mxu0 0
  %7129 = vmatmul.mubr.bf16.gmra.mrb[0].mxu0 %v7058
  %v7130 = vpop.f32.mrb[0].mxu0
  %v7131 = vadd.f32 0.0, %v7130
  %v7132 = vpop.f32.mrb[0].mxu0
  %v7133 = vpop.f32.mrb[0].mxu0
  %v7134 = vadd.f32 0.0, %v7133
  %v7135 = vpop.f32.mrb[0].mxu0
  %7136 = vmatprep.mubr.bf16.mxu0 0
  %7137 = vmatmul.mubr.bf16.gmra.mrb[0].mxu0 %v7061
  %v7138 = vpop.f32.mrb[0].mxu0
  %v7139 = vadd.f32 0.0, %v7138
  %v7140 = vpop.f32.mrb[0].mxu0
  %v7141 = vpop.f32.mrb[0].mxu0
  %v7142 = vadd.f32 0.0, %v7141
  %v7143 = vpop.f32.mrb[0].mxu0
  %7144 = vmatprep.mubr.bf16.mxu0 0
  %7145 = vmatmul.mubr.bf16.gmra.mrb[0].mxu0 %v7064
  %v7146 = vpop.f32.mrb[0].mxu0
  %v7147 = vadd.f32 0.0, %v7146
  %v7148 = vpop.f32.mrb[0].mxu0
  %v7149 = vpop.f32.mrb[0].mxu0
  %v7150 = vadd.f32 0.0, %v7149
  %v7151 = vpop.f32.mrb[0].mxu0
  %7152 = vmatprep.mubr.bf16.mxu0 0
  %7153 = vmatmul.mubr.bf16.gmra.mrb[0].mxu0 %v7067
  %v7154 = vpop.f32.mrb[0].mxu0
  %v7155 = vadd.f32 0.0, %v7154
  %v7156 = vpop.f32.mrb[0].mxu0
  %v7157 = vpop.f32.mrb[0].mxu0
  %v7158 = vadd.f32 0.0, %v7157
  %v7159 = vpop.f32.mrb[0].mxu0
  %7160 = vmatprep.mubr.bf16.mxu0 0
  %7161 = vmatmul.mubr.bf16.gmra.mrb[0].mxu0 %v7070
  %v7162 = vpop.f32.mrb[0].mxu0
  %v7163 = vadd.f32 0.0, %v7162
  %v7164 = vpop.f32.mrb[0].mxu0
  %v7165 = vpop.f32.mrb[0].mxu0
  %v7166 = vadd.f32 0.0, %v7165
  %v7167 = vpop.f32.mrb[0].mxu0
  %7168 = vdwg.mxu0
  %v7169 = vadd.f32 %v6998, %v7107
  %v7170 = vadd.f32 %v6999, %v7110
  %v7171 = vadd.f32 %v7000, %v7115
  %v7172 = vadd.f32 %v7001, %v7118
  %v7173 = vadd.f32 %v7002, %v7123
  %v7174 = vadd.f32 %v7003, %v7126
  %v7175 = vadd.f32 %v7004, %v7131
  %v7176 = vadd.f32 %v7005, %v7134
  %v7177 = vadd.f32 %v7006, %v7139
  %v7178 = vadd.f32 %v7007, %v7142
  %v7179 = vadd.f32 %v7008, %v7147
  %v7180 = vadd.f32 %v7009, %v7150
  %v7181 = vadd.f32 %v7010, %v7155
  %v7182 = vadd.f32 %v7011, %v7158
  %v7183 = vadd.f32 %v7012, %v7163
  %v7184 = vadd.f32 %v7013, %v7166
  %v7185 = vld [vmem:[%s5992] sm:$0xff]
  %v7186 = vld [vmem:[%s5992 + $0x8] sm:$0xff]
  %v7187 = vld [vmem:[%s5992 + $0x10] sm:$0xff]
  %v7188 = vld [vmem:[%s5992 + $0x18] sm:$0xff]
  %v7189 = vld [vmem:[%s5992 + $0x28] sm:$0xff]
  %v7190 = vld [vmem:[%s5992 + $0x30] sm:$0xff]
  %v7191 = vld [vmem:[%s5992 + $0x38] sm:$0xff]
  %v7192 = vld [vmem:[%s5992 + $0x40] sm:$0xff]
  %v7193 = vld [vmem:[%s5992 + $0x50] sm:$0xff]
  %v7194 = vld [vmem:[%s5992 + $0x58] sm:$0xff]
  %v7195 = vld [vmem:[%s5992 + $0x60] sm:$0xff]
  %v7196 = vld [vmem:[%s5992 + $0x68] sm:$0xff]
  %v7197 = vld [vmem:[%s5992 + $0x78] sm:$0xff]
  %v7198 = vld [vmem:[%s5992 + $0x80] sm:$0xff]
  %v7199 = vld [vmem:[%s5992 + $0x88] sm:$0xff]
  %v7200 = vld [vmem:[%s5992 + $0x90] sm:$0xff]
  %v7201 = vpack.c.bf16 %v7186, %v7185
  %v7202 = vpack.c.bf16 %v7188, %v7187
  %v7203 = vpack.c.bf16 %v7190, %v7189
  %v7204 = vpack.c.bf16 %v7192, %v7191
  %v7205 = vpack.c.bf16 %v7194, %v7193
  %v7206 = vpack.c.bf16 %v7196, %v7195
  %v7207 = vpack.c.bf16 %v7198, %v7197
  %v7208 = vpack.c.bf16 %v7200, %v7199
  %s7209 = scalar_lea.vmem %s3, 56
  %v7210 = vld [vmem:[%s7209] sm:$0xf]
  %v7211 = vld [vmem:[%s7209 + $0x4] sm:$0xf]
  %v7214 = vunpack.c.l.b16 %v7210
  %v7215 = vunpack.c.l.b16 %v7211
  %v7216 = vpack.c.b16 %v7215, %v7214
  %v7219 = vsel %vm118, %v7201, 0
  %v7222 = vsel %vm118, %v7202, 0
  %v7225 = vsel %vm118, %v7203, 0
  %v7228 = vsel %vm118, %v7204, 0
  %v7231 = vsel %vm118, %v7205, 0
  %v7234 = vsel %vm118, %v7206, 0
  %v7237 = vsel %vm118, %v7207, 0
  %v7240 = vsel %vm118, %v7208, 0
  %7242 = vmatprep.subr.bf16.mxu0 0
  %7243 = vmatpush1.bf16.msra.mxu0 %v7216
  %7244 = vmatprep.subr.bf16.mxu0 0
  %7245 = vmatpush1.bf16.msra.mxu0 0
  %7246 = vmatprep.subr.bf16.mxu0 0
  %7247 = vmatpush1.bf16.msra.mxu0 0
  %7248 = vmatprep.subr.bf16.mxu0 0
  %7249 = vmatpush1.bf16.msra.mxu0 0
  %7250 = vmatprep.subr.bf16.mxu0 0
  %7251 = vmatpush1.bf16.msra.mxu0 0
  %7252 = vmatprep.subr.bf16.mxu0 0
  %7253 = vmatpush1.bf16.msra.mxu0 0
  %7254 = vmatprep.subr.bf16.mxu0 0
  %7255 = vmatpush1.bf16.msra.mxu0 0
  %7256 = vmatprep.subr.bf16.mxu0 0
  %7257 = vmatpush1.bf16.msra.mxu0 0
  %7258 = vmatprep.subr.bf16.mxu0 0
  %7259 = vmatpush1.bf16.msra.mxu0 0
  %7260 = vmatprep.subr.bf16.mxu0 0
  %7261 = vmatpush1.bf16.msra.mxu0 0
  %7262 = vmatprep.subr.bf16.mxu0 0
  %7263 = vmatpush1.bf16.msra.mxu0 0
  %7264 = vmatprep.subr.bf16.mxu0 0
  %7265 = vmatpush1.bf16.msra.mxu0 0
  %7266 = vmatprep.subr.bf16.mxu0 0
  %7267 = vmatpush1.bf16.msra.mxu0 0
  %7268 = vmatprep.subr.bf16.mxu0 0
  %7269 = vmatpush1.bf16.msra.mxu0 0
  %7270 = vmatprep.subr.bf16.mxu0 0
  %7271 = vmatpush1.bf16.msra.mxu0 0
  %7272 = vmatprep.subr.bf16.mxu0 0
  %7273 = vmatpush1.bf16.msra.mxu0 0
  %7274 = vmatprep.mubr.bf16.mxu0 0
  %7275 = vmatmul.mubr.bf16.gmra.mrb[0].mxu0 %v7219
  %v7276 = vpop.f32.mrb[0].mxu0
  %v7277 = vadd.f32 0.0, %v7276
  %v7278 = vpop.f32.mrb[0].mxu0
  %v7279 = vpop.f32.mrb[0].mxu0
  %v7280 = vadd.f32 0.0, %v7279
  %v7281 = vpop.f32.mrb[0].mxu0
  %7282 = vmatprep.mubr.bf16.mxu0 0
  %7283 = vmatmul.mubr.bf16.gmra.mrb[0].mxu0 %v7222
  %v7284 = vpop.f32.mrb[0].mxu0
  %v7285 = vadd.f32 0.0, %v7284
  %v7286 = vpop.f32.mrb[0].mxu0
  %v7287 = vpop.f32.mrb[0].mxu0
  %v7288 = vadd.f32 0.0, %v7287
  %v7289 = vpop.f32.mrb[0].mxu0
  %7290 = vmatprep.mubr.bf16.mxu0 0
  %7291 = vmatmul.mubr.bf16.gmra.mrb[0].mxu0 %v7225
  %v7292 = vpop.f32.mrb[0].mxu0
  %v7293 = vadd.f32 0.0, %v7292
  %v7294 = vpop.f32.mrb[0].mxu0
  %v7295 = vpop.f32.mrb[0].mxu0
  %v7296 = vadd.f32 0.0, %v7295
  %v7297 = vpop.f32.mrb[0].mxu0
  %7298 = vmatprep.mubr.bf16.mxu0 0
  %7299 = vmatmul.mubr.bf16.gmra.mrb[0].mxu0 %v7228
  %v7300 = vpop.f32.mrb[0].mxu0
  %v7301 = vadd.f32 0.0, %v7300
  %v7302 = vpop.f32.mrb[0].mxu0
  %v7303 = vpop.f32.mrb[0].mxu0
  %v7304 = vadd.f32 0.0, %v7303
  %v7305 = vpop.f32.mrb[0].mxu0
  %7306 = vmatprep.mubr.bf16.mxu0 0
  %7307 = vmatmul.mubr.bf16.gmra.mrb[0].mxu0 %v7231
  %v7308 = vpop.f32.mrb[0].mxu0
  %v7309 = vadd.f32 0.0, %v7308
  %v7310 = vpop.f32.mrb[0].mxu0
  %v7311 = vpop.f32.mrb[0].mxu0
  %v7312 = vadd.f32 0.0, %v7311
  %v7313 = vpop.f32.mrb[0].mxu0
  %7314 = vmatprep.mubr.bf16.mxu0 0
  %7315 = vmatmul.mubr.bf16.gmra.mrb[0].mxu0 %v7234
  %v7316 = vpop.f32.mrb[0].mxu0
  %v7317 = vadd.f32 0.0, %v7316
  %v7318 = vpop.f32.mrb[0].mxu0
  %v7319 = vpop.f32.mrb[0].mxu0
  %v7320 = vadd.f32 0.0, %v7319
  %v7321 = vpop.f32.mrb[0].mxu0
  %7322 = vmatprep.mubr.bf16.mxu0 0
  %7323 = vmatmul.mubr.bf16.gmra.mrb[0].mxu0 %v7237
  %v7324 = vpop.f32.mrb[0].mxu0
  %v7325 = vadd.f32 0.0, %v7324
  %v7326 = vpop.f32.mrb[0].mxu0
  %v7327 = vpop.f32.mrb[0].mxu0
  %v7328 = vadd.f32 0.0, %v7327
  %v7329 = vpop.f32.mrb[0].mxu0
  %7330 = vmatprep.mubr.bf16.mxu0 0
  %7331 = vmatmul.mubr.bf16.gmra.mrb[0].mxu0 %v7240
  %v7332 = vpop.f32.mrb[0].mxu0
  %v7333 = vadd.f32 0.0, %v7332
  %v7334 = vpop.f32.mrb[0].mxu0
  %v7335 = vpop.f32.mrb[0].mxu0
  %v7336 = vadd.f32 0.0, %v7335
  %v7337 = vpop.f32.mrb[0].mxu0
  %7338 = vdwg.mxu0
  %v7339 = vadd.f32 %v7169, %v7277
  %v7340 = vadd.f32 %v7170, %v7280
  %v7341 = vadd.f32 %v7171, %v7285
  %v7342 = vadd.f32 %v7172, %v7288
  %v7343 = vadd.f32 %v7173, %v7293
  %v7344 = vadd.f32 %v7174, %v7296
  %v7345 = vadd.f32 %v7175, %v7301
  %v7346 = vadd.f32 %v7176, %v7304
  %v7347 = vadd.f32 %v7177, %v7309
  %v7348 = vadd.f32 %v7178, %v7312
  %v7349 = vadd.f32 %v7179, %v7317
  %v7350 = vadd.f32 %v7180, %v7320
  %v7351 = vadd.f32 %v7181, %v7325
  %v7352 = vadd.f32 %v7182, %v7328
  %v7353 = vadd.f32 %v7183, %v7333
  %v7354 = vadd.f32 %v7184, %v7336
  %v7355 = vld [vmem:[%s6009] sm:$0xff]
  %v7356 = vld [vmem:[%s6009 + $0x8] sm:$0xff]
  %v7357 = vld [vmem:[%s6009 + $0x10] sm:$0xff]
  %v7358 = vld [vmem:[%s6009 + $0x18] sm:$0xff]
  %v7359 = vld [vmem:[%s6009 + $0x28] sm:$0xff]
  %v7360 = vld [vmem:[%s6009 + $0x30] sm:$0xff]
  %v7361 = vld [vmem:[%s6009 + $0x38] sm:$0xff]
  %v7362 = vld [vmem:[%s6009 + $0x40] sm:$0xff]
  %v7363 = vld [vmem:[%s6009 + $0x50] sm:$0xff]
  %v7364 = vld [vmem:[%s6009 + $0x58] sm:$0xff]
  %v7365 = vld [vmem:[%s6009 + $0x60] sm:$0xff]
  %v7366 = vld [vmem:[%s6009 + $0x68] sm:$0xff]
  %v7367 = vld [vmem:[%s6009 + $0x78] sm:$0xff]
  %v7368 = vld [vmem:[%s6009 + $0x80] sm:$0xff]
  %v7369 = vld [vmem:[%s6009 + $0x88] sm:$0xff]
  %v7370 = vld [vmem:[%s6009 + $0x90] sm:$0xff]
  %v7371 = vpack.c.bf16 %v7356, %v7355
  %v7372 = vpack.c.bf16 %v7358, %v7357
  %v7373 = vpack.c.bf16 %v7360, %v7359
  %v7374 = vpack.c.bf16 %v7362, %v7361
  %v7375 = vpack.c.bf16 %v7364, %v7363
  %v7376 = vpack.c.bf16 %v7366, %v7365
  %v7377 = vpack.c.bf16 %v7368, %v7367
  %v7378 = vpack.c.bf16 %v7370, %v7369
  %s7379 = scalar_lea.vmem %s3, 64
  %v7380 = vld [vmem:[%s7379] sm:$0xf]
  %v7381 = vld [vmem:[%s7379 + $0x4] sm:$0xf]
  %v7384 = vunpack.c.l.b16 %v7380
  %v7385 = vunpack.c.l.b16 %v7381
  %v7386 = vpack.c.b16 %v7385, %v7384
  %v7389 = vsel %vm118, %v7371, 0
  %v7392 = vsel %vm118, %v7372, 0
  %v7395 = vsel %vm118, %v7373, 0
  %v7398 = vsel %vm118, %v7374, 0
  %v7401 = vsel %vm118, %v7375, 0
  %v7404 = vsel %vm118, %v7376, 0
  %v7407 = vsel %vm118, %v7377, 0
  %v7410 = vsel %vm118, %v7378, 0
  %7412 = vmatprep.subr.bf16.mxu0 0
  %7413 = vmatpush1.bf16.msra.mxu0 %v7386
  %7414 = vmatprep.subr.bf16.mxu0 0
  %7415 = vmatpush1.bf16.msra.mxu0 0
  %7416 = vmatprep.subr.bf16.mxu0 0
  %7417 = vmatpush1.bf16.msra.mxu0 0
  %7418 = vmatprep.subr.bf16.mxu0 0
  %7419 = vmatpush1.bf16.msra.mxu0 0
  %7420 = vmatprep.subr.bf16.mxu0 0
  %7421 = vmatpush1.bf16.msra.mxu0 0
  %7422 = vmatprep.subr.bf16.mxu0 0
  %7423 = vmatpush1.bf16.msra.mxu0 0
  %7424 = vmatprep.subr.bf16.mxu0 0
  %7425 = vmatpush1.bf16.msra.mxu0 0
  %7426 = vmatprep.subr.bf16.mxu0 0
  %7427 = vmatpush1.bf16.msra.mxu0 0
  %7428 = vmatprep.subr.bf16.mxu0 0
  %7429 = vmatpush1.bf16.msra.mxu0 0
  %7430 = vmatprep.subr.bf16.mxu0 0
  %7431 = vmatpush1.bf16.msra.mxu0 0
  %7432 = vmatprep.subr.bf16.mxu0 0
  %7433 = vmatpush1.bf16.msra.mxu0 0
  %7434 = vmatprep.subr.bf16.mxu0 0
  %7435 = vmatpush1.bf16.msra.mxu0 0
  %7436 = vmatprep.subr.bf16.mxu0 0
  %7437 = vmatpush1.bf16.msra.mxu0 0
  %7438 = vmatprep.subr.bf16.mxu0 0
  %7439 = vmatpush1.bf16.msra.mxu0 0
  %7440 = vmatprep.subr.bf16.mxu0 0
  %7441 = vmatpush1.bf16.msra.mxu0 0
  %7442 = vmatprep.subr.bf16.mxu0 0
  %7443 = vmatpush1.bf16.msra.mxu0 0
  %7444 = vmatprep.mubr.bf16.mxu0 0
  %7445 = vmatmul.mubr.bf16.gmra.mrb[0].mxu0 %v7389
  %v7446 = vpop.f32.mrb[0].mxu0
  %v7447 = vadd.f32 0.0, %v7446
  %v7448 = vpop.f32.mrb[0].mxu0
  %v7449 = vpop.f32.mrb[0].mxu0
  %v7450 = vadd.f32 0.0, %v7449
  %v7451 = vpop.f32.mrb[0].mxu0
  %7452 = vmatprep.mubr.bf16.mxu0 0
  %7453 = vmatmul.mubr.bf16.gmra.mrb[0].mxu0 %v7392
  %v7454 = vpop.f32.mrb[0].mxu0
  %v7455 = vadd.f32 0.0, %v7454
  %v7456 = vpop.f32.mrb[0].mxu0
  %v7457 = vpop.f32.mrb[0].mxu0
  %v7458 = vadd.f32 0.0, %v7457
  %v7459 = vpop.f32.mrb[0].mxu0
  %7460 = vmatprep.mubr.bf16.mxu0 0
  %7461 = vmatmul.mubr.bf16.gmra.mrb[0].mxu0 %v7395
  %v7462 = vpop.f32.mrb[0].mxu0
  %v7463 = vadd.f32 0.0, %v7462
  %v7464 = vpop.f32.mrb[0].mxu0
  %v7465 = vpop.f32.mrb[0].mxu0
  %v7466 = vadd.f32 0.0, %v7465
  %v7467 = vpop.f32.mrb[0].mxu0
  %7468 = vmatprep.mubr.bf16.mxu0 0
  %7469 = vmatmul.mubr.bf16.gmra.mrb[0].mxu0 %v7398
  %v7470 = vpop.f32.mrb[0].mxu0
  %v7471 = vadd.f32 0.0, %v7470
  %v7472 = vpop.f32.mrb[0].mxu0
  %v7473 = vpop.f32.mrb[0].mxu0
  %v7474 = vadd.f32 0.0, %v7473
  %v7475 = vpop.f32.mrb[0].mxu0
  %7476 = vmatprep.mubr.bf16.mxu0 0
  %7477 = vmatmul.mubr.bf16.gmra.mrb[0].mxu0 %v7401
  %v7478 = vpop.f32.mrb[0].mxu0
  %v7479 = vadd.f32 0.0, %v7478
  %v7480 = vpop.f32.mrb[0].mxu0
  %v7481 = vpop.f32.mrb[0].mxu0
  %v7482 = vadd.f32 0.0, %v7481
  %v7483 = vpop.f32.mrb[0].mxu0
  %7484 = vmatprep.mubr.bf16.mxu0 0
  %7485 = vmatmul.mubr.bf16.gmra.mrb[0].mxu0 %v7404
  %v7486 = vpop.f32.mrb[0].mxu0
  %v7487 = vadd.f32 0.0, %v7486
  %v7488 = vpop.f32.mrb[0].mxu0
  %v7489 = vpop.f32.mrb[0].mxu0
  %v7490 = vadd.f32 0.0, %v7489
  %v7491 = vpop.f32.mrb[0].mxu0
  %7492 = vmatprep.mubr.bf16.mxu0 0
  %7493 = vmatmul.mubr.bf16.gmra.mrb[0].mxu0 %v7407
  %v7494 = vpop.f32.mrb[0].mxu0
  %v7495 = vadd.f32 0.0, %v7494
  %v7496 = vpop.f32.mrb[0].mxu0
  %v7497 = vpop.f32.mrb[0].mxu0
  %v7498 = vadd.f32 0.0, %v7497
  %v7499 = vpop.f32.mrb[0].mxu0
  %7500 = vmatprep.mubr.bf16.mxu0 0
  %7501 = vmatmul.mubr.bf16.gmra.mrb[0].mxu0 %v7410
  %v7502 = vpop.f32.mrb[0].mxu0
  %v7503 = vadd.f32 0.0, %v7502
  %v7504 = vpop.f32.mrb[0].mxu0
  %v7505 = vpop.f32.mrb[0].mxu0
  %v7506 = vadd.f32 0.0, %v7505
  %v7507 = vpop.f32.mrb[0].mxu0
  %7508 = vdwg.mxu0
  %v7509 = vadd.f32 %v7339, %v7447
  %v7510 = vadd.f32 %v7340, %v7450
  %v7511 = vadd.f32 %v7341, %v7455
  %v7512 = vadd.f32 %v7342, %v7458
  %v7513 = vadd.f32 %v7343, %v7463
  %v7514 = vadd.f32 %v7344, %v7466
  %v7515 = vadd.f32 %v7345, %v7471
  %v7516 = vadd.f32 %v7346, %v7474
  %v7517 = vadd.f32 %v7347, %v7479
  %v7518 = vadd.f32 %v7348, %v7482
  %v7519 = vadd.f32 %v7349, %v7487
  %v7520 = vadd.f32 %v7350, %v7490
  %v7521 = vadd.f32 %v7351, %v7495
  %v7522 = vadd.f32 %v7352, %v7498
  %v7523 = vadd.f32 %v7353, %v7503
  %v7524 = vadd.f32 %v7354, %v7506
  %v7525 = vld [vmem:[%s4] sm:$0x1]
  %v7527 = vlaneseq
  %v7528 = vshrl.u32 %v7527, 7
  %v7529 = vsub.s32 0, %v7528
  %v7530 = vrot.slane %v7525, %v7529
  %v7532 = vadd.f32 %v7509, %v7530
  %v7533 = vadd.f32 %v7510, %v7530
  %v7534 = vadd.f32 %v7511, %v7530
  %v7535 = vadd.f32 %v7512, %v7530
  %v7536 = vadd.f32 %v7513, %v7530
  %v7537 = vadd.f32 %v7514, %v7530
  %v7538 = vadd.f32 %v7515, %v7530
  %v7539 = vadd.f32 %v7516, %v7530
  %v7540 = vadd.f32 %v7517, %v7530
  %v7541 = vadd.f32 %v7518, %v7530
  %v7542 = vadd.f32 %v7519, %v7530
  %v7543 = vadd.f32 %v7520, %v7530
  %v7544 = vadd.f32 %v7521, %v7530
  %v7545 = vadd.f32 %v7522, %v7530
  %v7546 = vadd.f32 %v7523, %v7530
  %v7547 = vadd.f32 %v7524, %v7530
  %vm7548 = vcmp.gt.f32.partialorder %v7532, 0.0
  %vm7549 = vcmp.gt.f32.partialorder %v7533, 0.0
  %vm7550 = vcmp.gt.f32.partialorder %v7534, 0.0
  %vm7551 = vcmp.gt.f32.partialorder %v7535, 0.0
  %vm7552 = vcmp.gt.f32.partialorder %v7536, 0.0
  %vm7553 = vcmp.gt.f32.partialorder %v7537, 0.0
  %vm7554 = vcmp.gt.f32.partialorder %v7538, 0.0
  %vm7555 = vcmp.gt.f32.partialorder %v7539, 0.0
  %vm7556 = vcmp.gt.f32.partialorder %v7540, 0.0
  %vm7557 = vcmp.gt.f32.partialorder %v7541, 0.0
  %vm7558 = vcmp.gt.f32.partialorder %v7542, 0.0
  %vm7559 = vcmp.gt.f32.partialorder %v7543, 0.0
  %vm7560 = vcmp.gt.f32.partialorder %v7544, 0.0
  %vm7561 = vcmp.gt.f32.partialorder %v7545, 0.0
  %vm7562 = vcmp.gt.f32.partialorder %v7546, 0.0
  %vm7563 = vcmp.gt.f32.partialorder %v7547, 0.0
  %v7564 = vmul.f32 %v7532, 0.2
  %v7565 = vmul.f32 %v7533, 0.2
  %v7566 = vmul.f32 %v7534, 0.2
  %v7567 = vmul.f32 %v7535, 0.2
  %v7568 = vmul.f32 %v7536, 0.2
  %v7569 = vmul.f32 %v7537, 0.2
  %v7570 = vmul.f32 %v7538, 0.2
  %v7571 = vmul.f32 %v7539, 0.2
  %v7572 = vmul.f32 %v7540, 0.2
  %v7573 = vmul.f32 %v7541, 0.2
  %v7574 = vmul.f32 %v7542, 0.2
  %v7575 = vmul.f32 %v7543, 0.2
  %v7576 = vmul.f32 %v7544, 0.2
  %v7577 = vmul.f32 %v7545, 0.2
  %v7578 = vmul.f32 %v7546, 0.2
  %v7579 = vmul.f32 %v7547, 0.2
  %v7580 = vsel %vm7548, %v7532, %v7564
  %v7581 = vsel %vm7549, %v7533, %v7565
  %v7582 = vsel %vm7550, %v7534, %v7566
  %v7583 = vsel %vm7551, %v7535, %v7567
  %v7584 = vsel %vm7552, %v7536, %v7568
  %v7585 = vsel %vm7553, %v7537, %v7569
  %v7586 = vsel %vm7554, %v7538, %v7570
  %v7587 = vsel %vm7555, %v7539, %v7571
  %v7588 = vsel %vm7556, %v7540, %v7572
  %v7589 = vsel %vm7557, %v7541, %v7573
  %v7590 = vsel %vm7558, %v7542, %v7574
  %v7591 = vsel %vm7559, %v7543, %v7575
  %v7592 = vsel %vm7560, %v7544, %v7576
  %v7593 = vsel %vm7561, %v7545, %v7577
  %v7594 = vsel %vm7562, %v7546, %v7578
  %v7595 = vsel %vm7563, %v7547, %v7579
  %s7596 = scalar_lea.vmem %s4, 1
  %v7597 = vld [vmem:[%s7596] sm:$0x1]
  %v7599 = vlaneseq
  %v7600 = vshrl.u32 %v7599, 7
  %v7601 = vsub.s32 0, %v7600
  %v7602 = vrot.slane %v7597, %v7601
  %v7604 = vmul.f32 %v7580, %v7602
  %v7605 = vmul.f32 %v7581, %v7602
  %v7606 = vmul.f32 %v7582, %v7602
  %v7607 = vmul.f32 %v7583, %v7602
  %v7608 = vmul.f32 %v7584, %v7602
  %v7609 = vmul.f32 %v7585, %v7602
  %v7610 = vmul.f32 %v7586, %v7602
  %v7611 = vmul.f32 %v7587, %v7602
  %v7612 = vmul.f32 %v7588, %v7602
  %v7613 = vmul.f32 %v7589, %v7602
  %v7614 = vmul.f32 %v7590, %v7602
  %v7615 = vmul.f32 %v7591, %v7602
  %v7616 = vmul.f32 %v7592, %v7602
  %v7617 = vmul.f32 %v7593, %v7602
  %v7618 = vmul.f32 %v7594, %v7602
  %v7619 = vmul.f32 %v7595, %v7602
  %s7620 = scalar_lea.vmem %s4, 2
  %v7621 = vld [vmem:[%s7620] sm:$0x1]
  %v7623 = vlaneseq
  %v7624 = vshrl.u32 %v7623, 7
  %v7625 = vsub.s32 0, %v7624
  %v7626 = vrot.slane %v7621, %v7625
  %v7628 = vadd.f32 %v7604, %v7626
  %v7629 = vadd.f32 %v7605, %v7626
  %v7630 = vadd.f32 %v7606, %v7626
  %v7631 = vadd.f32 %v7607, %v7626
  %v7632 = vadd.f32 %v7608, %v7626
  %v7633 = vadd.f32 %v7609, %v7626
  %v7634 = vadd.f32 %v7610, %v7626
  %v7635 = vadd.f32 %v7611, %v7626
  %v7636 = vadd.f32 %v7612, %v7626
  %v7637 = vadd.f32 %v7613, %v7626
  %v7638 = vadd.f32 %v7614, %v7626
  %v7639 = vadd.f32 %v7615, %v7626
  %v7640 = vadd.f32 %v7616, %v7626
  %v7641 = vadd.f32 %v7617, %v7626
  %v7642 = vadd.f32 %v7618, %v7626
  %v7643 = vadd.f32 %v7619, %v7626
  %7644 = vst.msk [vmem:[#allocation13] sm:$0xff] %vm163, %v7628
  %7645 = vst.msk [vmem:[#allocation13 + $0x8] sm:$0xff] %vm163, %v7630
  %7646 = vst.msk [vmem:[#allocation13 + $0x18] sm:$0xff] %vm163, %v7636
  %7647 = vst.msk [vmem:[#allocation13 + $0x20] sm:$0xff] %vm163, %v7638
  %s7648 = scalar_lea.vmem [#allocation12], 8
  %7649 = vst.msk [vmem:[%s7648] sm:$0xff] %vm163, %v7629
  %7650 = vst.msk [vmem:[%s7648 + $0x8] sm:$0xff] %vm163, %v7631
  %7651 = vst.msk [vmem:[%s7648 + $0x18] sm:$0xff] %vm163, %v7637
  %7652 = vst.msk [vmem:[%s7648 + $0x20] sm:$0xff] %vm163, %v7639
  %s7653 = scalar_lea.vmem [#allocation11], 24
  %7654 = vst.msk [vmem:[%s7653] sm:$0xff] %vm163, %v7632
  %7655 = vst.msk [vmem:[%s7653 + $0x8] sm:$0xff] %vm163, %v7634
  %7656 = vst.msk [vmem:[%s7653 + $0x18] sm:$0xff] %vm163, %v7640
  %7657 = vst.msk [vmem:[%s7653 + $0x20] sm:$0xff] %vm163, %v7642
  %s7658 = scalar_lea.vmem [#allocation10], 32
  %7659 = vst.msk [vmem:[%s7658] sm:$0xff] %vm163, %v7633
  %7660 = vst.msk [vmem:[%s7658 + $0x8] sm:$0xff] %vm163, %v7635
  %7661 = vst.msk [vmem:[%s7658 + $0x18] sm:$0xff] %vm163, %v7641
  %7662 = vst.msk [vmem:[%s7658 + $0x20] sm:$0xff] %vm163, %v7643
  %v7663 = vld [vmem:[#allocation10] sm:$0xff]
  %v7664 = vld [vmem:[#allocation10 + $0x8] sm:$0xff]
  %v7665 = vld [vmem:[#allocation10 + $0x18] sm:$0xff]
  %v7666 = vld [vmem:[#allocation10 + $0x20] sm:$0xff]
  %v7667 = vpack.c.bf16 %v7664, %v7663
  %v7668 = vpack.c.bf16 %v7666, %v7665
  %v7669 = vld [vmem:[%s5] sm:$0xf]
  %v7670 = vld [vmem:[%s5 + $0x4] sm:$0xf]
  %v7671 = vld [vmem:[%s5 + $0x8] sm:$0xf]
  %v7672 = vld [vmem:[%s5 + $0xc] sm:$0xf]
  %v7673 = vld [vmem:[#allocation11] sm:$0xff]
  %v7674 = vld [vmem:[#allocation11 + $0x8] sm:$0xff]
  %v7675 = vld [vmem:[#allocation11 + $0x18] sm:$0xff]
  %v7676 = vld [vmem:[#allocation11 + $0x20] sm:$0xff]
  %v7677 = vpack.c.bf16 %v7674, %v7673
  %v7678 = vpack.c.bf16 %v7676, %v7675
  %s7679 = scalar_lea.vmem %s5, 16
  %v7680 = vld [vmem:[%s7679] sm:$0xf]
  %v7681 = vld [vmem:[%s7679 + $0x4] sm:$0xf]
  %v7682 = vld [vmem:[%s7679 + $0x8] sm:$0xf]
  %v7683 = vld [vmem:[%s7679 + $0xc] sm:$0xf]
  %v7688 = vunpack.c.l.b16 %v7680
  %v7689 = vunpack.c.l.b16 %v7681
  %v7690 = vunpack.c.l.b16 %v7682
  %v7691 = vunpack.c.l.b16 %v7683
  %v7692 = vpack.c.b16 %v7689, %v7688
  %v7693 = vpack.c.b16 %v7691, %v7690
  %v7697 = vsel %vm163, %v7677, 0
  %v7700 = vsel %vm163, %v7678, 0
  %7702 = vmatprep.subr.bf16.mxu0 0
  %7703 = vmatpush1.bf16.msra.mxu0 %v7692
  %7704 = vmatprep.subr.bf16.mxu0 0
  %7705 = vmatpush1.bf16.msra.mxu0 %v7693
  %7706 = vmatprep.subr.bf16.mxu0 0
  %7707 = vmatpush1.bf16.msra.mxu0 0
  %7708 = vmatprep.subr.bf16.mxu0 0
  %7709 = vmatpush1.bf16.msra.mxu0 0
  %7710 = vmatprep.subr.bf16.mxu0 0
  %7711 = vmatpush1.bf16.msra.mxu0 0
  %7712 = vmatprep.subr.bf16.mxu0 0
  %7713 = vmatpush1.bf16.msra.mxu0 0
  %7714 = vmatprep.subr.bf16.mxu0 0
  %7715 = vmatpush1.bf16.msra.mxu0 0
  %7716 = vmatprep.subr.bf16.mxu0 0
  %7717 = vmatpush1.bf16.msra.mxu0 0
  %7718 = vmatprep.subr.bf16.mxu0 0
  %7719 = vmatpush1.bf16.msra.mxu0 0
  %7720 = vmatprep.subr.bf16.mxu0 0
  %7721 = vmatpush1.bf16.msra.mxu0 0
  %7722 = vmatprep.subr.bf16.mxu0 0
  %7723 = vmatpush1.bf16.msra.mxu0 0
  %7724 = vmatprep.subr.bf16.mxu0 0
  %7725 = vmatpush1.bf16.msra.mxu0 0
  %7726 = vmatprep.subr.bf16.mxu0 0
  %7727 = vmatpush1.bf16.msra.mxu0 0
  %7728 = vmatprep.subr.bf16.mxu0 0
  %7729 = vmatpush1.bf16.msra.mxu0 0
  %7730 = vmatprep.subr.bf16.mxu0 0
  %7731 = vmatpush1.bf16.msra.mxu0 0
  %7732 = vmatprep.subr.bf16.mxu0 0
  %7733 = vmatpush1.bf16.msra.mxu0 0
  %7734 = vmatprep.mubr.bf16.mxu0 0
  %7735 = vmatmul.mubr.bf16.gmra.mrb[0].mxu0 %v7697
  %v7736 = vpop.f32.mrb[0].mxu0
  %v7737 = vadd.f32 0.0, %v7736
  %v7738 = vpop.f32.mrb[0].mxu0
  %v7739 = vpop.f32.mrb[0].mxu0
  %v7740 = vadd.f32 0.0, %v7739
  %v7741 = vpop.f32.mrb[0].mxu0
  %7742 = vmatprep.mubr.bf16.mxu0 0
  %7743 = vmatmul.mubr.bf16.gmra.mrb[0].mxu0 %v7700
  %v7744 = vpop.f32.mrb[0].mxu0
  %v7745 = vadd.f32 0.0, %v7744
  %v7746 = vpop.f32.mrb[0].mxu0
  %v7747 = vpop.f32.mrb[0].mxu0
  %v7748 = vadd.f32 0.0, %v7747
  %v7749 = vpop.f32.mrb[0].mxu0
  %7750 = vdwg.mxu0
  %v7755 = vunpack.c.l.b16 %v7669
  %v7756 = vunpack.c.l.b16 %v7670
  %v7757 = vunpack.c.l.b16 %v7671
  %v7758 = vunpack.c.l.b16 %v7672
  %v7759 = vpack.c.b16 %v7756, %v7755
  %v7760 = vpack.c.b16 %v7758, %v7757
  %v7764 = vsel %vm163, %v7667, 0
  %v7767 = vsel %vm163, %v7668, 0
  %7769 = vmatprep.subr.bf16.mxu0 0
  %7770 = vmatpush1.bf16.msra.mxu0 %v7759
  %7771 = vmatprep.subr.bf16.mxu0 0
  %7772 = vmatpush1.bf16.msra.mxu0 %v7760
  %7773 = vmatprep.subr.bf16.mxu0 0
  %7774 = vmatpush1.bf16.msra.mxu0 0
  %7775 = vmatprep.subr.bf16.mxu0 0
  %7776 = vmatpush1.bf16.msra.mxu0 0
  %7777 = vmatprep.subr.bf16.mxu0 0
  %7778 = vmatpush1.bf16.msra.mxu0 0
  %7779 = vmatprep.subr.bf16.mxu0 0
  %7780 = vmatpush1.bf16.msra.mxu0 0
  %7781 = vmatprep.subr.bf16.mxu0 0
  %7782 = vmatpush1.bf16.msra.mxu0 0
  %7783 = vmatprep.subr.bf16.mxu0 0
  %7784 = vmatpush1.bf16.msra.mxu0 0
  %7785 = vmatprep.subr.bf16.mxu0 0
  %7786 = vmatpush1.bf16.msra.mxu0 0
  %7787 = vmatprep.subr.bf16.mxu0 0
  %7788 = vmatpush1.bf16.msra.mxu0 0
  %7789 = vmatprep.subr.bf16.mxu0 0
  %7790 = vmatpush1.bf16.msra.mxu0 0
  %7791 = vmatprep.subr.bf16.mxu0 0
  %7792 = vmatpush1.bf16.msra.mxu0 0
  %7793 = vmatprep.subr.bf16.mxu0 0
  %7794 = vmatpush1.bf16.msra.mxu0 0
  %7795 = vmatprep.subr.bf16.mxu0 0
  %7796 = vmatpush1.bf16.msra.mxu0 0
  %7797 = vmatprep.subr.bf16.mxu0 0
  %7798 = vmatpush1.bf16.msra.mxu0 0
  %7799 = vmatprep.subr.bf16.mxu0 0
  %7800 = vmatpush1.bf16.msra.mxu0 0
  %7801 = vmatprep.mubr.bf16.mxu0 0
  %7802 = vmatmul.mubr.bf16.gmra.mrb[0].mxu0 %v7764
  %v7803 = vpop.f32.mrb[0].mxu0
  %v7804 = vadd.f32 %v7737, %v7803
  %v7805 = vpop.f32.mrb[0].mxu0
  %v7806 = vpop.f32.mrb[0].mxu0
  %v7807 = vadd.f32 %v7740, %v7806
  %v7808 = vpop.f32.mrb[0].mxu0
  %7809 = vmatprep.mubr.bf16.mxu0 0
  %7810 = vmatmul.mubr.bf16.gmra.mrb[0].mxu0 %v7767
  %v7811 = vpop.f32.mrb[0].mxu0
  %v7812 = vadd.f32 %v7745, %v7811
  %v7813 = vpop.f32.mrb[0].mxu0
  %v7814 = vpop.f32.mrb[0].mxu0
  %v7815 = vadd.f32 %v7748, %v7814
  %v7816 = vpop.f32.mrb[0].mxu0
  %7817 = vdwg.mxu0
  %s7818 = scalar_lea.vmem [#allocation10], 8
  %v7819 = vld [vmem:[%s7818] sm:$0xff]
  %v7820 = vld [vmem:[%s7818 + $0x8] sm:$0xff]
  %v7821 = vld [vmem:[%s7818 + $0x18] sm:$0xff]
  %v7822 = vld [vmem:[%s7818 + $0x20] sm:$0xff]
  %v7823 = vpack.c.bf16 %v7820, %v7819
  %v7824 = vpack.c.bf16 %v7822, %v7821
  %s7825 = scalar_lea.vmem %s5, 32
  %v7826 = vld [vmem:[%s7825] sm:$0xf]
  %v7827 = vld [vmem:[%s7825 + $0x4] sm:$0xf]
  %v7828 = vld [vmem:[%s7825 + $0x8] sm:$0xf]
  %v7829 = vld [vmem:[%s7825 + $0xc] sm:$0xf]
  %v7834 = vunpack.c.l.b16 %v7826
  %v7835 = vunpack.c.l.b16 %v7827
  %v7836 = vunpack.c.l.b16 %v7828
  %v7837 = vunpack.c.l.b16 %v7829
  %v7838 = vpack.c.b16 %v7835, %v7834
  %v7839 = vpack.c.b16 %v7837, %v7836
  %v7843 = vsel %vm163, %v7823, 0
  %v7846 = vsel %vm163, %v7824, 0
  %7848 = vmatprep.subr.bf16.mxu0 0
  %7849 = vmatpush1.bf16.msra.mxu0 %v7838
  %7850 = vmatprep.subr.bf16.mxu0 0
  %7851 = vmatpush1.bf16.msra.mxu0 %v7839
  %7852 = vmatprep.subr.bf16.mxu0 0
  %7853 = vmatpush1.bf16.msra.mxu0 0
  %7854 = vmatprep.subr.bf16.mxu0 0
  %7855 = vmatpush1.bf16.msra.mxu0 0
  %7856 = vmatprep.subr.bf16.mxu0 0
  %7857 = vmatpush1.bf16.msra.mxu0 0
  %7858 = vmatprep.subr.bf16.mxu0 0
  %7859 = vmatpush1.bf16.msra.mxu0 0
  %7860 = vmatprep.subr.bf16.mxu0 0
  %7861 = vmatpush1.bf16.msra.mxu0 0
  %7862 = vmatprep.subr.bf16.mxu0 0
  %7863 = vmatpush1.bf16.msra.mxu0 0
  %7864 = vmatprep.subr.bf16.mxu0 0
  %7865 = vmatpush1.bf16.msra.mxu0 0
  %7866 = vmatprep.subr.bf16.mxu0 0
  %7867 = vmatpush1.bf16.msra.mxu0 0
  %7868 = vmatprep.subr.bf16.mxu0 0
  %7869 = vmatpush1.bf16.msra.mxu0 0
  %7870 = vmatprep.subr.bf16.mxu0 0
  %7871 = vmatpush1.bf16.msra.mxu0 0
  %7872 = vmatprep.subr.bf16.mxu0 0
  %7873 = vmatpush1.bf16.msra.mxu0 0
  %7874 = vmatprep.subr.bf16.mxu0 0
  %7875 = vmatpush1.bf16.msra.mxu0 0
  %7876 = vmatprep.subr.bf16.mxu0 0
  %7877 = vmatpush1.bf16.msra.mxu0 0
  %7878 = vmatprep.subr.bf16.mxu0 0
  %7879 = vmatpush1.bf16.msra.mxu0 0
  %7880 = vmatprep.mubr.bf16.mxu0 0
  %7881 = vmatmul.mubr.bf16.gmra.mrb[0].mxu0 %v7843
  %v7882 = vpop.f32.mrb[0].mxu0
  %v7883 = vadd.f32 0.0, %v7882
  %v7884 = vpop.f32.mrb[0].mxu0
  %v7885 = vpop.f32.mrb[0].mxu0
  %v7886 = vadd.f32 0.0, %v7885
  %v7887 = vpop.f32.mrb[0].mxu0
  %7888 = vmatprep.mubr.bf16.mxu0 0
  %7889 = vmatmul.mubr.bf16.gmra.mrb[0].mxu0 %v7846
  %v7890 = vpop.f32.mrb[0].mxu0
  %v7891 = vadd.f32 0.0, %v7890
  %v7892 = vpop.f32.mrb[0].mxu0
  %v7893 = vpop.f32.mrb[0].mxu0
  %v7894 = vadd.f32 0.0, %v7893
  %v7895 = vpop.f32.mrb[0].mxu0
  %7896 = vdwg.mxu0
  %v7897 = vadd.f32 %v7804, %v7883
  %v7898 = vadd.f32 %v7807, %v7886
  %v7899 = vadd.f32 %v7812, %v7891
  %v7900 = vadd.f32 %v7815, %v7894
  %v7901 = vld [vmem:[#allocation12] sm:$0xff]
  %v7902 = vld [vmem:[#allocation12 + $0x8] sm:$0xff]
  %v7903 = vld [vmem:[#allocation12 + $0x18] sm:$0xff]
  %v7904 = vld [vmem:[#allocation12 + $0x20] sm:$0xff]
  %v7905 = vpack.c.bf16 %v7902, %v7901
  %v7906 = vpack.c.bf16 %v7904, %v7903
  %s7907 = scalar_lea.vmem %s5, 48
  %v7908 = vld [vmem:[%s7907] sm:$0xf]
  %v7909 = vld [vmem:[%s7907 + $0x4] sm:$0xf]
  %v7910 = vld [vmem:[%s7907 + $0x8] sm:$0xf]
  %v7911 = vld [vmem:[%s7907 + $0xc] sm:$0xf]
  %v7916 = vunpack.c.l.b16 %v7908
  %v7917 = vunpack.c.l.b16 %v7909
  %v7918 = vunpack.c.l.b16 %v7910
  %v7919 = vunpack.c.l.b16 %v7911
  %v7920 = vpack.c.b16 %v7917, %v7916
  %v7921 = vpack.c.b16 %v7919, %v7918
  %v7925 = vsel %vm163, %v7905, 0
  %v7928 = vsel %vm163, %v7906, 0
  %7930 = vmatprep.subr.bf16.mxu0 0
  %7931 = vmatpush1.bf16.msra.mxu0 %v7920
  %7932 = vmatprep.subr.bf16.mxu0 0
  %7933 = vmatpush1.bf16.msra.mxu0 %v7921
  %7934 = vmatprep.subr.bf16.mxu0 0
  %7935 = vmatpush1.bf16.msra.mxu0 0
  %7936 = vmatprep.subr.bf16.mxu0 0
  %7937 = vmatpush1.bf16.msra.mxu0 0
  %7938 = vmatprep.subr.bf16.mxu0 0
  %7939 = vmatpush1.bf16.msra.mxu0 0
  %7940 = vmatprep.subr.bf16.mxu0 0
  %7941 = vmatpush1.bf16.msra.mxu0 0
  %7942 = vmatprep.subr.bf16.mxu0 0
  %7943 = vmatpush1.bf16.msra.mxu0 0
  %7944 = vmatprep.subr.bf16.mxu0 0
  %7945 = vmatpush1.bf16.msra.mxu0 0
  %7946 = vmatprep.subr.bf16.mxu0 0
  %7947 = vmatpush1.bf16.msra.mxu0 0
  %7948 = vmatprep.subr.bf16.mxu0 0
  %7949 = vmatpush1.bf16.msra.mxu0 0
  %7950 = vmatprep.subr.bf16.mxu0 0
  %7951 = vmatpush1.bf16.msra.mxu0 0
  %7952 = vmatprep.subr.bf16.mxu0 0
  %7953 = vmatpush1.bf16.msra.mxu0 0
  %7954 = vmatprep.subr.bf16.mxu0 0
  %7955 = vmatpush1.bf16.msra.mxu0 0
  %7956 = vmatprep.subr.bf16.mxu0 0
  %7957 = vmatpush1.bf16.msra.mxu0 0
  %7958 = vmatprep.subr.bf16.mxu0 0
  %7959 = vmatpush1.bf16.msra.mxu0 0
  %7960 = vmatprep.subr.bf16.mxu0 0
  %7961 = vmatpush1.bf16.msra.mxu0 0
  %7962 = vmatprep.mubr.bf16.mxu0 0
  %7963 = vmatmul.mubr.bf16.gmra.mrb[0].mxu0 %v7925
  %v7964 = vpop.f32.mrb[0].mxu0
  %v7965 = vadd.f32 0.0, %v7964
  %v7966 = vpop.f32.mrb[0].mxu0
  %v7967 = vpop.f32.mrb[0].mxu0
  %v7968 = vadd.f32 0.0, %v7967
  %v7969 = vpop.f32.mrb[0].mxu0
  %7970 = vmatprep.mubr.bf16.mxu0 0
  %7971 = vmatmul.mubr.bf16.gmra.mrb[0].mxu0 %v7928
  %v7972 = vpop.f32.mrb[0].mxu0
  %v7973 = vadd.f32 0.0, %v7972
  %v7974 = vpop.f32.mrb[0].mxu0
  %v7975 = vpop.f32.mrb[0].mxu0
  %v7976 = vadd.f32 0.0, %v7975
  %v7977 = vpop.f32.mrb[0].mxu0
  %7978 = vdwg.mxu0
  %v7979 = vadd.f32 %v7897, %v7965
  %v7980 = vadd.f32 %v7898, %v7968
  %v7981 = vadd.f32 %v7899, %v7973
  %v7982 = vadd.f32 %v7900, %v7976
  %v7983 = vld [vmem:[#allocation13] sm:$0xff]
  %v7984 = vld [vmem:[#allocation13 + $0x8] sm:$0xff]
  %v7985 = vld [vmem:[#allocation13 + $0x18] sm:$0xff]
  %v7986 = vld [vmem:[#allocation13 + $0x20] sm:$0xff]
  %v7987 = vpack.c.bf16 %v7984, %v7983
  %v7988 = vpack.c.bf16 %v7986, %v7985
  %s7989 = scalar_lea.vmem %s5, 64
  %v7990 = vld [vmem:[%s7989] sm:$0xf]
  %v7991 = vld [vmem:[%s7989 + $0x4] sm:$0xf]
  %v7992 = vld [vmem:[%s7989 + $0x8] sm:$0xf]
  %v7993 = vld [vmem:[%s7989 + $0xc] sm:$0xf]
  %v7998 = vunpack.c.l.b16 %v7990
  %v7999 = vunpack.c.l.b16 %v7991
  %v8000 = vunpack.c.l.b16 %v7992
  %v8001 = vunpack.c.l.b16 %v7993
  %v8002 = vpack.c.b16 %v7999, %v7998
  %v8003 = vpack.c.b16 %v8001, %v8000
  %v8007 = vsel %vm163, %v7987, 0
  %v8010 = vsel %vm163, %v7988, 0
  %8012 = vmatprep.subr.bf16.mxu0 0
  %8013 = vmatpush1.bf16.msra.mxu0 %v8002
  %8014 = vmatprep.subr.bf16.mxu0 0
  %8015 = vmatpush1.bf16.msra.mxu0 %v8003
  %8016 = vmatprep.subr.bf16.mxu0 0
  %8017 = vmatpush1.bf16.msra.mxu0 0
  %8018 = vmatprep.subr.bf16.mxu0 0
  %8019 = vmatpush1.bf16.msra.mxu0 0
  %8020 = vmatprep.subr.bf16.mxu0 0
  %8021 = vmatpush1.bf16.msra.mxu0 0
  %8022 = vmatprep.subr.bf16.mxu0 0
  %8023 = vmatpush1.bf16.msra.mxu0 0
  %8024 = vmatprep.subr.bf16.mxu0 0
  %8025 = vmatpush1.bf16.msra.mxu0 0
  %8026 = vmatprep.subr.bf16.mxu0 0
  %8027 = vmatpush1.bf16.msra.mxu0 0
  %8028 = vmatprep.subr.bf16.mxu0 0
  %8029 = vmatpush1.bf16.msra.mxu0 0
  %8030 = vmatprep.subr.bf16.mxu0 0
  %8031 = vmatpush1.bf16.msra.mxu0 0
  %8032 = vmatprep.subr.bf16.mxu0 0
  %8033 = vmatpush1.bf16.msra.mxu0 0
  %8034 = vmatprep.subr.bf16.mxu0 0
  %8035 = vmatpush1.bf16.msra.mxu0 0
  %8036 = vmatprep.subr.bf16.mxu0 0
  %8037 = vmatpush1.bf16.msra.mxu0 0
  %8038 = vmatprep.subr.bf16.mxu0 0
  %8039 = vmatpush1.bf16.msra.mxu0 0
  %8040 = vmatprep.subr.bf16.mxu0 0
  %8041 = vmatpush1.bf16.msra.mxu0 0
  %8042 = vmatprep.subr.bf16.mxu0 0
  %8043 = vmatpush1.bf16.msra.mxu0 0
  %8044 = vmatprep.mubr.bf16.mxu0 0
  %8045 = vmatmul.mubr.bf16.gmra.mrb[0].mxu0 %v8007
  %v8046 = vpop.f32.mrb[0].mxu0
  %v8047 = vadd.f32 0.0, %v8046
  %v8048 = vpop.f32.mrb[0].mxu0
  %v8049 = vpop.f32.mrb[0].mxu0
  %v8050 = vadd.f32 0.0, %v8049
  %v8051 = vpop.f32.mrb[0].mxu0
  %8052 = vmatprep.mubr.bf16.mxu0 0
  %8053 = vmatmul.mubr.bf16.gmra.mrb[0].mxu0 %v8010
  %v8054 = vpop.f32.mrb[0].mxu0
  %v8055 = vadd.f32 0.0, %v8054
  %v8056 = vpop.f32.mrb[0].mxu0
  %v8057 = vpop.f32.mrb[0].mxu0
  %v8058 = vadd.f32 0.0, %v8057
  %v8059 = vpop.f32.mrb[0].mxu0
  %8060 = vdwg.mxu0
  %v8061 = vadd.f32 %v7979, %v8047
  %v8062 = vadd.f32 %v7980, %v8050
  %v8063 = vadd.f32 %v7981, %v8055
  %v8064 = vadd.f32 %v7982, %v8058
  %v8065 = vld [vmem:[%s7648] sm:$0xff]
  %v8066 = vld [vmem:[%s7648 + $0x8] sm:$0xff]
  %v8067 = vld [vmem:[%s7648 + $0x18] sm:$0xff]
  %v8068 = vld [vmem:[%s7648 + $0x20] sm:$0xff]
  %v8069 = vpack.c.bf16 %v8066, %v8065
  %v8070 = vpack.c.bf16 %v8068, %v8067
  %s8071 = scalar_lea.vmem %s5, 80
  %v8072 = vld [vmem:[%s8071] sm:$0xf]
  %v8073 = vld [vmem:[%s8071 + $0x4] sm:$0xf]
  %v8074 = vld [vmem:[%s8071 + $0x8] sm:$0xf]
  %v8075 = vld [vmem:[%s8071 + $0xc] sm:$0xf]
  %v8080 = vunpack.c.l.b16 %v8072
  %v8081 = vunpack.c.l.b16 %v8073
  %v8082 = vunpack.c.l.b16 %v8074
  %v8083 = vunpack.c.l.b16 %v8075
  %v8084 = vpack.c.b16 %v8081, %v8080
  %v8085 = vpack.c.b16 %v8083, %v8082
  %v8089 = vsel %vm163, %v8069, 0
  %v8092 = vsel %vm163, %v8070, 0
  %8094 = vmatprep.subr.bf16.mxu0 0
  %8095 = vmatpush1.bf16.msra.mxu0 %v8084
  %8096 = vmatprep.subr.bf16.mxu0 0
  %8097 = vmatpush1.bf16.msra.mxu0 %v8085
  %8098 = vmatprep.subr.bf16.mxu0 0
  %8099 = vmatpush1.bf16.msra.mxu0 0
  %8100 = vmatprep.subr.bf16.mxu0 0
  %8101 = vmatpush1.bf16.msra.mxu0 0
  %8102 = vmatprep.subr.bf16.mxu0 0
  %8103 = vmatpush1.bf16.msra.mxu0 0
  %8104 = vmatprep.subr.bf16.mxu0 0
  %8105 = vmatpush1.bf16.msra.mxu0 0
  %8106 = vmatprep.subr.bf16.mxu0 0
  %8107 = vmatpush1.bf16.msra.mxu0 0
  %8108 = vmatprep.subr.bf16.mxu0 0
  %8109 = vmatpush1.bf16.msra.mxu0 0
  %8110 = vmatprep.subr.bf16.mxu0 0
  %8111 = vmatpush1.bf16.msra.mxu0 0
  %8112 = vmatprep.subr.bf16.mxu0 0
  %8113 = vmatpush1.bf16.msra.mxu0 0
  %8114 = vmatprep.subr.bf16.mxu0 0
  %8115 = vmatpush1.bf16.msra.mxu0 0
  %8116 = vmatprep.subr.bf16.mxu0 0
  %8117 = vmatpush1.bf16.msra.mxu0 0
  %8118 = vmatprep.subr.bf16.mxu0 0
  %8119 = vmatpush1.bf16.msra.mxu0 0
  %8120 = vmatprep.subr.bf16.mxu0 0
  %8121 = vmatpush1.bf16.msra.mxu0 0
  %8122 = vmatprep.subr.bf16.mxu0 0
  %8123 = vmatpush1.bf16.msra.mxu0 0
  %8124 = vmatprep.subr.bf16.mxu0 0
  %8125 = vmatpush1.bf16.msra.mxu0 0
  %8126 = vmatprep.mubr.bf16.mxu0 0
  %8127 = vmatmul.mubr.bf16.gmra.mrb[0].mxu0 %v8089
  %v8128 = vpop.f32.mrb[0].mxu0
  %v8129 = vadd.f32 0.0, %v8128
  %v8130 = vpop.f32.mrb[0].mxu0
  %v8131 = vpop.f32.mrb[0].mxu0
  %v8132 = vadd.f32 0.0, %v8131
  %v8133 = vpop.f32.mrb[0].mxu0
  %8134 = vmatprep.mubr.bf16.mxu0 0
  %8135 = vmatmul.mubr.bf16.gmra.mrb[0].mxu0 %v8092
  %v8136 = vpop.f32.mrb[0].mxu0
  %v8137 = vadd.f32 0.0, %v8136
  %v8138 = vpop.f32.mrb[0].mxu0
  %v8139 = vpop.f32.mrb[0].mxu0
  %v8140 = vadd.f32 0.0, %v8139
  %v8141 = vpop.f32.mrb[0].mxu0
  %8142 = vdwg.mxu0
  %v8143 = vadd.f32 %v8061, %v8129
  %v8144 = vadd.f32 %v8062, %v8132
  %v8145 = vadd.f32 %v8063, %v8137
  %v8146 = vadd.f32 %v8064, %v8140
  %s8147 = scalar_lea.vmem [#allocation10], 24
  %v8148 = vld [vmem:[%s8147] sm:$0xff]
  %v8149 = vld [vmem:[%s8147 + $0x8] sm:$0xff]
  %v8150 = vld [vmem:[%s8147 + $0x18] sm:$0xff]
  %v8151 = vld [vmem:[%s8147 + $0x20] sm:$0xff]
  %v8152 = vpack.c.bf16 %v8149, %v8148
  %v8153 = vpack.c.bf16 %v8151, %v8150
  %s8154 = scalar_lea.vmem %s5, 96
  %v8155 = vld [vmem:[%s8154] sm:$0xf]
  %v8156 = vld [vmem:[%s8154 + $0x4] sm:$0xf]
  %v8157 = vld [vmem:[%s8154 + $0x8] sm:$0xf]
  %v8158 = vld [vmem:[%s8154 + $0xc] sm:$0xf]
  %v8163 = vunpack.c.l.b16 %v8155
  %v8164 = vunpack.c.l.b16 %v8156
  %v8165 = vunpack.c.l.b16 %v8157
  %v8166 = vunpack.c.l.b16 %v8158
  %v8167 = vpack.c.b16 %v8164, %v8163
  %v8168 = vpack.c.b16 %v8166, %v8165
  %v8172 = vsel %vm163, %v8152, 0
  %v8175 = vsel %vm163, %v8153, 0
  %8177 = vmatprep.subr.bf16.mxu0 0
  %8178 = vmatpush1.bf16.msra.mxu0 %v8167
  %8179 = vmatprep.subr.bf16.mxu0 0
  %8180 = vmatpush1.bf16.msra.mxu0 %v8168
  %8181 = vmatprep.subr.bf16.mxu0 0
  %8182 = vmatpush1.bf16.msra.mxu0 0
  %8183 = vmatprep.subr.bf16.mxu0 0
  %8184 = vmatpush1.bf16.msra.mxu0 0
  %8185 = vmatprep.subr.bf16.mxu0 0
  %8186 = vmatpush1.bf16.msra.mxu0 0
  %8187 = vmatprep.subr.bf16.mxu0 0
  %8188 = vmatpush1.bf16.msra.mxu0 0
  %8189 = vmatprep.subr.bf16.mxu0 0
  %8190 = vmatpush1.bf16.msra.mxu0 0
  %8191 = vmatprep.subr.bf16.mxu0 0
  %8192 = vmatpush1.bf16.msra.mxu0 0
  %8193 = vmatprep.subr.bf16.mxu0 0
  %8194 = vmatpush1.bf16.msra.mxu0 0
  %8195 = vmatprep.subr.bf16.mxu0 0
  %8196 = vmatpush1.bf16.msra.mxu0 0
  %8197 = vmatprep.subr.bf16.mxu0 0
  %8198 = vmatpush1.bf16.msra.mxu0 0
  %8199 = vmatprep.subr.bf16.mxu0 0
  %8200 = vmatpush1.bf16.msra.mxu0 0
  %8201 = vmatprep.subr.bf16.mxu0 0
  %8202 = vmatpush1.bf16.msra.mxu0 0
  %8203 = vmatprep.subr.bf16.mxu0 0
  %8204 = vmatpush1.bf16.msra.mxu0 0
  %8205 = vmatprep.subr.bf16.mxu0 0
  %8206 = vmatpush1.bf16.msra.mxu0 0
  %8207 = vmatprep.subr.bf16.mxu0 0
  %8208 = vmatpush1.bf16.msra.mxu0 0
  %8209 = vmatprep.mubr.bf16.mxu0 0
  %8210 = vmatmul.mubr.bf16.gmra.mrb[0].mxu0 %v8172
  %v8211 = vpop.f32.mrb[0].mxu0
  %v8212 = vadd.f32 0.0, %v8211
  %v8213 = vpop.f32.mrb[0].mxu0
  %v8214 = vpop.f32.mrb[0].mxu0
  %v8215 = vadd.f32 0.0, %v8214
  %v8216 = vpop.f32.mrb[0].mxu0
  %8217 = vmatprep.mubr.bf16.mxu0 0
  %8218 = vmatmul.mubr.bf16.gmra.mrb[0].mxu0 %v8175
  %v8219 = vpop.f32.mrb[0].mxu0
  %v8220 = vadd.f32 0.0, %v8219
  %v8221 = vpop.f32.mrb[0].mxu0
  %v8222 = vpop.f32.mrb[0].mxu0
  %v8223 = vadd.f32 0.0, %v8222
  %v8224 = vpop.f32.mrb[0].mxu0
  %8225 = vdwg.mxu0
  %v8226 = vadd.f32 %v8143, %v8212
  %v8227 = vadd.f32 %v8144, %v8215
  %v8228 = vadd.f32 %v8145, %v8220
  %v8229 = vadd.f32 %v8146, %v8223
  %v8230 = vld [vmem:[%s7653] sm:$0xff]
  %v8231 = vld [vmem:[%s7653 + $0x8] sm:$0xff]
  %v8232 = vld [vmem:[%s7653 + $0x18] sm:$0xff]
  %v8233 = vld [vmem:[%s7653 + $0x20] sm:$0xff]
  %v8234 = vpack.c.bf16 %v8231, %v8230
  %v8235 = vpack.c.bf16 %v8233, %v8232
  %s8236 = scalar_lea.vmem %s5, 112
  %v8237 = vld [vmem:[%s8236] sm:$0xf]
  %v8238 = vld [vmem:[%s8236 + $0x4] sm:$0xf]
  %v8239 = vld [vmem:[%s8236 + $0x8] sm:$0xf]
  %v8240 = vld [vmem:[%s8236 + $0xc] sm:$0xf]
  %v8245 = vunpack.c.l.b16 %v8237
  %v8246 = vunpack.c.l.b16 %v8238
  %v8247 = vunpack.c.l.b16 %v8239
  %v8248 = vunpack.c.l.b16 %v8240
  %v8249 = vpack.c.b16 %v8246, %v8245
  %v8250 = vpack.c.b16 %v8248, %v8247
  %v8254 = vsel %vm163, %v8234, 0
  %v8257 = vsel %vm163, %v8235, 0
  %8259 = vmatprep.subr.bf16.mxu0 0
  %8260 = vmatpush1.bf16.msra.mxu0 %v8249
  %8261 = vmatprep.subr.bf16.mxu0 0
  %8262 = vmatpush1.bf16.msra.mxu0 %v8250
  %8263 = vmatprep.subr.bf16.mxu0 0
  %8264 = vmatpush1.bf16.msra.mxu0 0
  %8265 = vmatprep.subr.bf16.mxu0 0
  %8266 = vmatpush1.bf16.msra.mxu0 0
  %8267 = vmatprep.subr.bf16.mxu0 0
  %8268 = vmatpush1.bf16.msra.mxu0 0
  %8269 = vmatprep.subr.bf16.mxu0 0
  %8270 = vmatpush1.bf16.msra.mxu0 0
  %8271 = vmatprep.subr.bf16.mxu0 0
  %8272 = vmatpush1.bf16.msra.mxu0 0
  %8273 = vmatprep.subr.bf16.mxu0 0
  %8274 = vmatpush1.bf16.msra.mxu0 0
  %8275 = vmatprep.subr.bf16.mxu0 0
  %8276 = vmatpush1.bf16.msra.mxu0 0
  %8277 = vmatprep.subr.bf16.mxu0 0
  %8278 = vmatpush1.bf16.msra.mxu0 0
  %8279 = vmatprep.subr.bf16.mxu0 0
  %8280 = vmatpush1.bf16.msra.mxu0 0
  %8281 = vmatprep.subr.bf16.mxu0 0
  %8282 = vmatpush1.bf16.msra.mxu0 0
  %8283 = vmatprep.subr.bf16.mxu0 0
  %8284 = vmatpush1.bf16.msra.mxu0 0
  %8285 = vmatprep.subr.bf16.mxu0 0
  %8286 = vmatpush1.bf16.msra.mxu0 0
  %8287 = vmatprep.subr.bf16.mxu0 0
  %8288 = vmatpush1.bf16.msra.mxu0 0
  %8289 = vmatprep.subr.bf16.mxu0 0
  %8290 = vmatpush1.bf16.msra.mxu0 0
  %8291 = vmatprep.mubr.bf16.mxu0 0
  %8292 = vmatmul.mubr.bf16.gmra.mrb[0].mxu0 %v8254
  %v8293 = vpop.f32.mrb[0].mxu0
  %v8294 = vadd.f32 0.0, %v8293
  %v8295 = vpop.f32.mrb[0].mxu0
  %v8296 = vpop.f32.mrb[0].mxu0
  %v8297 = vadd.f32 0.0, %v8296
  %v8298 = vpop.f32.mrb[0].mxu0
  %8299 = vmatprep.mubr.bf16.mxu0 0
  %8300 = vmatmul.mubr.bf16.gmra.mrb[0].mxu0 %v8257
  %v8301 = vpop.f32.mrb[0].mxu0
  %v8302 = vadd.f32 0.0, %v8301
  %v8303 = vpop.f32.mrb[0].mxu0
  %v8304 = vpop.f32.mrb[0].mxu0
  %v8305 = vadd.f32 0.0, %v8304
  %v8306 = vpop.f32.mrb[0].mxu0
  %8307 = vdwg.mxu0
  %v8308 = vadd.f32 %v8226, %v8294
  %v8309 = vadd.f32 %v8227, %v8297
  %v8310 = vadd.f32 %v8228, %v8302
  %v8311 = vadd.f32 %v8229, %v8305
  %v8312 = vld [vmem:[%s7658] sm:$0xff]
  %v8313 = vld [vmem:[%s7658 + $0x8] sm:$0xff]
  %v8314 = vld [vmem:[%s7658 + $0x18] sm:$0xff]
  %v8315 = vld [vmem:[%s7658 + $0x20] sm:$0xff]
  %v8316 = vpack.c.bf16 %v8313, %v8312
  %v8317 = vpack.c.bf16 %v8315, %v8314
  %s8318 = scalar_lea.vmem %s5, 128
  %v8319 = vld [vmem:[%s8318] sm:$0xf]
  %v8320 = vld [vmem:[%s8318 + $0x4] sm:$0xf]
  %v8321 = vld [vmem:[%s8318 + $0x8] sm:$0xf]
  %v8322 = vld [vmem:[%s8318 + $0xc] sm:$0xf]
  %v8327 = vunpack.c.l.b16 %v8319
  %v8328 = vunpack.c.l.b16 %v8320
  %v8329 = vunpack.c.l.b16 %v8321
  %v8330 = vunpack.c.l.b16 %v8322
  %v8331 = vpack.c.b16 %v8328, %v8327
  %v8332 = vpack.c.b16 %v8330, %v8329
  %v8336 = vsel %vm163, %v8316, 0
  %v8339 = vsel %vm163, %v8317, 0
  %8341 = vmatprep.subr.bf16.mxu0 0
  %8342 = vmatpush1.bf16.msra.mxu0 %v8331
  %8343 = vmatprep.subr.bf16.mxu0 0
  %8344 = vmatpush1.bf16.msra.mxu0 %v8332
  %8345 = vmatprep.subr.bf16.mxu0 0
  %8346 = vmatpush1.bf16.msra.mxu0 0
  %8347 = vmatprep.subr.bf16.mxu0 0
  %8348 = vmatpush1.bf16.msra.mxu0 0
  %8349 = vmatprep.subr.bf16.mxu0 0
  %8350 = vmatpush1.bf16.msra.mxu0 0
  %8351 = vmatprep.subr.bf16.mxu0 0
  %8352 = vmatpush1.bf16.msra.mxu0 0
  %8353 = vmatprep.subr.bf16.mxu0 0
  %8354 = vmatpush1.bf16.msra.mxu0 0
  %8355 = vmatprep.subr.bf16.mxu0 0
  %8356 = vmatpush1.bf16.msra.mxu0 0
  %8357 = vmatprep.subr.bf16.mxu0 0
  %8358 = vmatpush1.bf16.msra.mxu0 0
  %8359 = vmatprep.subr.bf16.mxu0 0
  %8360 = vmatpush1.bf16.msra.mxu0 0
  %8361 = vmatprep.subr.bf16.mxu0 0
  %8362 = vmatpush1.bf16.msra.mxu0 0
  %8363 = vmatprep.subr.bf16.mxu0 0
  %8364 = vmatpush1.bf16.msra.mxu0 0
  %8365 = vmatprep.subr.bf16.mxu0 0
  %8366 = vmatpush1.bf16.msra.mxu0 0
  %8367 = vmatprep.subr.bf16.mxu0 0
  %8368 = vmatpush1.bf16.msra.mxu0 0
  %8369 = vmatprep.subr.bf16.mxu0 0
  %8370 = vmatpush1.bf16.msra.mxu0 0
  %8371 = vmatprep.subr.bf16.mxu0 0
  %8372 = vmatpush1.bf16.msra.mxu0 0
  %8373 = vmatprep.mubr.bf16.mxu0 0
  %8374 = vmatmul.mubr.bf16.gmra.mrb[0].mxu0 %v8336
  %v8375 = vpop.f32.mrb[0].mxu0
  %v8376 = vadd.f32 0.0, %v8375
  %v8377 = vpop.f32.mrb[0].mxu0
  %v8378 = vpop.f32.mrb[0].mxu0
  %v8379 = vadd.f32 0.0, %v8378
  %v8380 = vpop.f32.mrb[0].mxu0
  %8381 = vmatprep.mubr.bf16.mxu0 0
  %8382 = vmatmul.mubr.bf16.gmra.mrb[0].mxu0 %v8339
  %v8383 = vpop.f32.mrb[0].mxu0
  %v8384 = vadd.f32 0.0, %v8383
  %v8385 = vpop.f32.mrb[0].mxu0
  %v8386 = vpop.f32.mrb[0].mxu0
  %v8387 = vadd.f32 0.0, %v8386
  %v8388 = vpop.f32.mrb[0].mxu0
  %8389 = vdwg.mxu0
  %v8390 = vadd.f32 %v8308, %v8376
  %v8391 = vadd.f32 %v8309, %v8379
  %v8392 = vadd.f32 %v8310, %v8384
  %v8393 = vadd.f32 %v8311, %v8387
  %v8394 = vld [vmem:[%s6] sm:$0x1]
  %v8396 = vlaneseq
  %v8397 = vshrl.u32 %v8396, 7
  %v8398 = vsub.s32 0, %v8397
  %v8399 = vrot.slane %v8394, %v8398
  %v8401 = vadd.f32 %v8390, %v8399
  %v8402 = vadd.f32 %v8391, %v8399
  %v8403 = vadd.f32 %v8392, %v8399
  %v8404 = vadd.f32 %v8393, %v8399
  %vm8405 = vcmp.gt.f32.partialorder %v8401, 0.0
  %vm8406 = vcmp.gt.f32.partialorder %v8402, 0.0
  %vm8407 = vcmp.gt.f32.partialorder %v8403, 0.0
  %vm8408 = vcmp.gt.f32.partialorder %v8404, 0.0
  %v8409 = vmul.f32 %v8401, 0.2
  %v8410 = vmul.f32 %v8402, 0.2
  %v8411 = vmul.f32 %v8403, 0.2
  %v8412 = vmul.f32 %v8404, 0.2
  %v8413 = vsel %vm8405, %v8401, %v8409
  %v8414 = vsel %vm8406, %v8402, %v8410
  %v8415 = vsel %vm8407, %v8403, %v8411
  %v8416 = vsel %vm8408, %v8404, %v8412
  %s8417 = scalar_lea.vmem %s6, 1
  %v8418 = vld [vmem:[%s8417] sm:$0x1]
  %v8420 = vlaneseq
  %v8421 = vshrl.u32 %v8420, 7
  %v8422 = vsub.s32 0, %v8421
  %v8423 = vrot.slane %v8418, %v8422
  %v8425 = vmul.f32 %v8413, %v8423
  %v8426 = vmul.f32 %v8414, %v8423
  %v8427 = vmul.f32 %v8415, %v8423
  %v8428 = vmul.f32 %v8416, %v8423
  %s8429 = scalar_lea.vmem %s6, 2
  %v8430 = vld [vmem:[%s8429] sm:$0x1]
  %v8432 = vlaneseq
  %v8433 = vshrl.u32 %v8432, 7
  %v8434 = vsub.s32 0, %v8433
  %v8435 = vrot.slane %v8430, %v8434
  %v8437 = vadd.f32 %v8425, %v8435
  %v8438 = vadd.f32 %v8426, %v8435
  %v8439 = vadd.f32 %v8427, %v8435
  %v8440 = vadd.f32 %v8428, %v8435
  %8441 = vst.msk [vmem:[#allocation17] sm:$0xff] %vm192, %v8437
  %s8442 = scalar_lea.vmem [#allocation16], 8
  %8443 = vst.msk [vmem:[%s8442] sm:$0xff] %vm192, %v8438
  %s8444 = scalar_lea.vmem [#allocation15], 16
  %8445 = vst.msk [vmem:[%s8444] sm:$0xff] %vm192, %v8439
  %s8446 = scalar_lea.vmem [#allocation14], 24
  %8447 = vst.msk [vmem:[%s8446] sm:$0xff] %vm192, %v8440
  %v8448 = vld [vmem:[#allocation14] sm:$0xff]
  %v8449 = vpack.c.bf16 %v8448, %v8448
  %v8450 = vld [vmem:[%s7] sm:$0xf]
  %v8451 = vld [vmem:[%s7 + $0x4] sm:$0xf]
  %v8452 = vld [vmem:[%s7 + $0x8] sm:$0xf]
  %v8453 = vld [vmem:[%s7 + $0xc] sm:$0xf]
  %v8454 = vld [vmem:[%s7 + $0x10] sm:$0xf]
  %v8455 = vld [vmem:[%s7 + $0x14] sm:$0xf]
  %v8456 = vld [vmem:[%s7 + $0x18] sm:$0xf]
  %v8457 = vld [vmem:[%s7 + $0x1c] sm:$0xf]
  %v8458 = vld [vmem:[#allocation15] sm:$0xff]
  %v8459 = vpack.c.bf16 %v8458, %v8458
  %s8460 = scalar_lea.vmem %s7, 32
  %v8461 = vld [vmem:[%s8460] sm:$0xf]
  %v8462 = vld [vmem:[%s8460 + $0x4] sm:$0xf]
  %v8463 = vld [vmem:[%s8460 + $0x8] sm:$0xf]
  %v8464 = vld [vmem:[%s8460 + $0xc] sm:$0xf]
  %v8465 = vld [vmem:[%s8460 + $0x10] sm:$0xf]
  %v8466 = vld [vmem:[%s8460 + $0x14] sm:$0xf]
  %v8467 = vld [vmem:[%s8460 + $0x18] sm:$0xf]
  %v8468 = vld [vmem:[%s8460 + $0x1c] sm:$0xf]
  %v8477 = vunpack.c.l.b16 %v8461
  %v8478 = vunpack.c.l.b16 %v8462
  %v8479 = vunpack.c.l.b16 %v8463
  %v8480 = vunpack.c.l.b16 %v8464
  %v8481 = vunpack.c.l.b16 %v8465
  %v8482 = vunpack.c.l.b16 %v8466
  %v8483 = vunpack.c.l.b16 %v8467
  %v8484 = vunpack.c.l.b16 %v8468
  %v8485 = vpack.c.b16 %v8478, %v8477
  %v8486 = vpack.c.b16 %v8480, %v8479
  %v8487 = vpack.c.b16 %v8482, %v8481
  %v8488 = vpack.c.b16 %v8484, %v8483
  %v8494 = vsel %vm192, %v8459, 0
  %8496 = vmatprep.subr.bf16.mxu0 0
  %8497 = vmatpush1.bf16.msra.mxu0 %v8485
  %8498 = vmatprep.subr.bf16.mxu0 0
  %8499 = vmatpush1.bf16.msra.mxu0 %v8486
  %8500 = vmatprep.subr.bf16.mxu0 0
  %8501 = vmatpush1.bf16.msra.mxu0 %v8487
  %8502 = vmatprep.subr.bf16.mxu0 0
  %8503 = vmatpush1.bf16.msra.mxu0 %v8488
  %8504 = vmatprep.subr.bf16.mxu0 0
  %8505 = vmatpush1.bf16.msra.mxu0 0
  %8506 = vmatprep.subr.bf16.mxu0 0
  %8507 = vmatpush1.bf16.msra.mxu0 0
  %8508 = vmatprep.subr.bf16.mxu0 0
  %8509 = vmatpush1.bf16.msra.mxu0 0
  %8510 = vmatprep.subr.bf16.mxu0 0
  %8511 = vmatpush1.bf16.msra.mxu0 0
  %8512 = vmatprep.subr.bf16.mxu0 0
  %8513 = vmatpush1.bf16.msra.mxu0 0
  %8514 = vmatprep.subr.bf16.mxu0 0
  %8515 = vmatpush1.bf16.msra.mxu0 0
  %8516 = vmatprep.subr.bf16.mxu0 0
  %8517 = vmatpush1.bf16.msra.mxu0 0
  %8518 = vmatprep.subr.bf16.mxu0 0
  %8519 = vmatpush1.bf16.msra.mxu0 0
  %8520 = vmatprep.subr.bf16.mxu0 0
  %8521 = vmatpush1.bf16.msra.mxu0 0
  %8522 = vmatprep.subr.bf16.mxu0 0
  %8523 = vmatpush1.bf16.msra.mxu0 0
  %8524 = vmatprep.subr.bf16.mxu0 0
  %8525 = vmatpush1.bf16.msra.mxu0 0
  %8526 = vmatprep.subr.bf16.mxu0 0
  %8527 = vmatpush1.bf16.msra.mxu0 0
  %8528 = vmatprep.mubr.bf16.mxu0 0
  %8529 = vmatmul.mubr.bf16.gmra.mrb[0].mxu0 %v8494
  %v8530 = vpop.f32.mrb[0].mxu0
  %v8531 = vadd.f32 0.0, %v8530
  %v8532 = vpop.f32.mrb[0].mxu0
  %v8533 = vpop.f32.mrb[0].mxu0
  %v8534 = vpop.f32.mrb[0].mxu0
  %8535 = vdwg.mxu0
  %v8544 = vunpack.c.l.b16 %v8450
  %v8545 = vunpack.c.l.b16 %v8451
  %v8546 = vunpack.c.l.b16 %v8452
  %v8547 = vunpack.c.l.b16 %v8453
  %v8548 = vunpack.c.l.b16 %v8454
  %v8549 = vunpack.c.l.b16 %v8455
  %v8550 = vunpack.c.l.b16 %v8456
  %v8551 = vunpack.c.l.b16 %v8457
  %v8552 = vpack.c.b16 %v8545, %v8544
  %v8553 = vpack.c.b16 %v8547, %v8546
  %v8554 = vpack.c.b16 %v8549, %v8548
  %v8555 = vpack.c.b16 %v8551, %v8550
  %v8561 = vsel %vm192, %v8449, 0
  %8563 = vmatprep.subr.bf16.mxu0 0
  %8564 = vmatpush1.bf16.msra.mxu0 %v8552
  %8565 = vmatprep.subr.bf16.mxu0 0
  %8566 = vmatpush1.bf16.msra.mxu0 %v8553
  %8567 = vmatprep.subr.bf16.mxu0 0
  %8568 = vmatpush1.bf16.msra.mxu0 %v8554
  %8569 = vmatprep.subr.bf16.mxu0 0
  %8570 = vmatpush1.bf16.msra.mxu0 %v8555
  %8571 = vmatprep.subr.bf16.mxu0 0
  %8572 = vmatpush1.bf16.msra.mxu0 0
  %8573 = vmatprep.subr.bf16.mxu0 0
  %8574 = vmatpush1.bf16.msra.mxu0 0
  %8575 = vmatprep.subr.bf16.mxu0 0
  %8576 = vmatpush1.bf16.msra.mxu0 0
  %8577 = vmatprep.subr.bf16.mxu0 0
  %8578 = vmatpush1.bf16.msra.mxu0 0
  %8579 = vmatprep.subr.bf16.mxu0 0
  %8580 = vmatpush1.bf16.msra.mxu0 0
  %8581 = vmatprep.subr.bf16.mxu0 0
  %8582 = vmatpush1.bf16.msra.mxu0 0
  %8583 = vmatprep.subr.bf16.mxu0 0
  %8584 = vmatpush1.bf16.msra.mxu0 0
  %8585 = vmatprep.subr.bf16.mxu0 0
  %8586 = vmatpush1.bf16.msra.mxu0 0
  %8587 = vmatprep.subr.bf16.mxu0 0
  %8588 = vmatpush1.bf16.msra.mxu0 0
  %8589 = vmatprep.subr.bf16.mxu0 0
  %8590 = vmatpush1.bf16.msra.mxu0 0
  %8591 = vmatprep.subr.bf16.mxu0 0
  %8592 = vmatpush1.bf16.msra.mxu0 0
  %8593 = vmatprep.subr.bf16.mxu0 0
  %8594 = vmatpush1.bf16.msra.mxu0 0
  %8595 = vmatprep.mubr.bf16.mxu0 0
  %8596 = vmatmul.mubr.bf16.gmra.mrb[0].mxu0 %v8561
  %v8597 = vpop.f32.mrb[0].mxu0
  %v8598 = vadd.f32 %v8531, %v8597
  %v8599 = vpop.f32.mrb[0].mxu0
  %v8600 = vpop.f32.mrb[0].mxu0
  %v8601 = vpop.f32.mrb[0].mxu0
  %8602 = vdwg.mxu0
  %s8603 = scalar_lea.vmem [#allocation14], 8
  %v8604 = vld [vmem:[%s8603] sm:$0xff]
  %v8605 = vpack.c.bf16 %v8604, %v8604
  %s8606 = scalar_lea.vmem %s7, 64
  %v8607 = vld [vmem:[%s8606] sm:$0xf]
  %v8608 = vld [vmem:[%s8606 + $0x4] sm:$0xf]
  %v8609 = vld [vmem:[%s8606 + $0x8] sm:$0xf]
  %v8610 = vld [vmem:[%s8606 + $0xc] sm:$0xf]
  %v8611 = vld [vmem:[%s8606 + $0x10] sm:$0xf]
  %v8612 = vld [vmem:[%s8606 + $0x14] sm:$0xf]
  %v8613 = vld [vmem:[%s8606 + $0x18] sm:$0xf]
  %v8614 = vld [vmem:[%s8606 + $0x1c] sm:$0xf]
  %v8623 = vunpack.c.l.b16 %v8607
  %v8624 = vunpack.c.l.b16 %v8608
  %v8625 = vunpack.c.l.b16 %v8609
  %v8626 = vunpack.c.l.b16 %v8610
  %v8627 = vunpack.c.l.b16 %v8611
  %v8628 = vunpack.c.l.b16 %v8612
  %v8629 = vunpack.c.l.b16 %v8613
  %v8630 = vunpack.c.l.b16 %v8614
  %v8631 = vpack.c.b16 %v8624, %v8623
  %v8632 = vpack.c.b16 %v8626, %v8625
  %v8633 = vpack.c.b16 %v8628, %v8627
  %v8634 = vpack.c.b16 %v8630, %v8629
  %v8640 = vsel %vm192, %v8605, 0
  %8642 = vmatprep.subr.bf16.mxu0 0
  %8643 = vmatpush1.bf16.msra.mxu0 %v8631
  %8644 = vmatprep.subr.bf16.mxu0 0
  %8645 = vmatpush1.bf16.msra.mxu0 %v8632
  %8646 = vmatprep.subr.bf16.mxu0 0
  %8647 = vmatpush1.bf16.msra.mxu0 %v8633
  %8648 = vmatprep.subr.bf16.mxu0 0
  %8649 = vmatpush1.bf16.msra.mxu0 %v8634
  %8650 = vmatprep.subr.bf16.mxu0 0
  %8651 = vmatpush1.bf16.msra.mxu0 0
  %8652 = vmatprep.subr.bf16.mxu0 0
  %8653 = vmatpush1.bf16.msra.mxu0 0
  %8654 = vmatprep.subr.bf16.mxu0 0
  %8655 = vmatpush1.bf16.msra.mxu0 0
  %8656 = vmatprep.subr.bf16.mxu0 0
  %8657 = vmatpush1.bf16.msra.mxu0 0
  %8658 = vmatprep.subr.bf16.mxu0 0
  %8659 = vmatpush1.bf16.msra.mxu0 0
  %8660 = vmatprep.subr.bf16.mxu0 0
  %8661 = vmatpush1.bf16.msra.mxu0 0
  %8662 = vmatprep.subr.bf16.mxu0 0
  %8663 = vmatpush1.bf16.msra.mxu0 0
  %8664 = vmatprep.subr.bf16.mxu0 0
  %8665 = vmatpush1.bf16.msra.mxu0 0
  %8666 = vmatprep.subr.bf16.mxu0 0
  %8667 = vmatpush1.bf16.msra.mxu0 0
  %8668 = vmatprep.subr.bf16.mxu0 0
  %8669 = vmatpush1.bf16.msra.mxu0 0
  %8670 = vmatprep.subr.bf16.mxu0 0
  %8671 = vmatpush1.bf16.msra.mxu0 0
  %8672 = vmatprep.subr.bf16.mxu0 0
  %8673 = vmatpush1.bf16.msra.mxu0 0
  %8674 = vmatprep.mubr.bf16.mxu0 0
  %8675 = vmatmul.mubr.bf16.gmra.mrb[0].mxu0 %v8640
  %v8676 = vpop.f32.mrb[0].mxu0
  %v8677 = vadd.f32 0.0, %v8676
  %v8678 = vpop.f32.mrb[0].mxu0
  %v8679 = vpop.f32.mrb[0].mxu0
  %v8680 = vpop.f32.mrb[0].mxu0
  %8681 = vdwg.mxu0
  %v8682 = vadd.f32 %v8598, %v8677
  %v8683 = vld [vmem:[#allocation16] sm:$0xff]
  %v8684 = vpack.c.bf16 %v8683, %v8683
  %s8685 = scalar_lea.vmem %s7, 96
  %v8686 = vld [vmem:[%s8685] sm:$0xf]
  %v8687 = vld [vmem:[%s8685 + $0x4] sm:$0xf]
  %v8688 = vld [vmem:[%s8685 + $0x8] sm:$0xf]
  %v8689 = vld [vmem:[%s8685 + $0xc] sm:$0xf]
  %v8690 = vld [vmem:[%s8685 + $0x10] sm:$0xf]
  %v8691 = vld [vmem:[%s8685 + $0x14] sm:$0xf]
  %v8692 = vld [vmem:[%s8685 + $0x18] sm:$0xf]
  %v8693 = vld [vmem:[%s8685 + $0x1c] sm:$0xf]
  %v8702 = vunpack.c.l.b16 %v8686
  %v8703 = vunpack.c.l.b16 %v8687
  %v8704 = vunpack.c.l.b16 %v8688
  %v8705 = vunpack.c.l.b16 %v8689
  %v8706 = vunpack.c.l.b16 %v8690
  %v8707 = vunpack.c.l.b16 %v8691
  %v8708 = vunpack.c.l.b16 %v8692
  %v8709 = vunpack.c.l.b16 %v8693
  %v8710 = vpack.c.b16 %v8703, %v8702
  %v8711 = vpack.c.b16 %v8705, %v8704
  %v8712 = vpack.c.b16 %v8707, %v8706
  %v8713 = vpack.c.b16 %v8709, %v8708
  %v8719 = vsel %vm192, %v8684, 0
  %8721 = vmatprep.subr.bf16.mxu0 0
  %8722 = vmatpush1.bf16.msra.mxu0 %v8710
  %8723 = vmatprep.subr.bf16.mxu0 0
  %8724 = vmatpush1.bf16.msra.mxu0 %v8711
  %8725 = vmatprep.subr.bf16.mxu0 0
  %8726 = vmatpush1.bf16.msra.mxu0 %v8712
  %8727 = vmatprep.subr.bf16.mxu0 0
  %8728 = vmatpush1.bf16.msra.mxu0 %v8713
  %8729 = vmatprep.subr.bf16.mxu0 0
  %8730 = vmatpush1.bf16.msra.mxu0 0
  %8731 = vmatprep.subr.bf16.mxu0 0
  %8732 = vmatpush1.bf16.msra.mxu0 0
  %8733 = vmatprep.subr.bf16.mxu0 0
  %8734 = vmatpush1.bf16.msra.mxu0 0
  %8735 = vmatprep.subr.bf16.mxu0 0
  %8736 = vmatpush1.bf16.msra.mxu0 0
  %8737 = vmatprep.subr.bf16.mxu0 0
  %8738 = vmatpush1.bf16.msra.mxu0 0
  %8739 = vmatprep.subr.bf16.mxu0 0
  %8740 = vmatpush1.bf16.msra.mxu0 0
  %8741 = vmatprep.subr.bf16.mxu0 0
  %8742 = vmatpush1.bf16.msra.mxu0 0
  %8743 = vmatprep.subr.bf16.mxu0 0
  %8744 = vmatpush1.bf16.msra.mxu0 0
  %8745 = vmatprep.subr.bf16.mxu0 0
  %8746 = vmatpush1.bf16.msra.mxu0 0
  %8747 = vmatprep.subr.bf16.mxu0 0
  %8748 = vmatpush1.bf16.msra.mxu0 0
  %8749 = vmatprep.subr.bf16.mxu0 0
  %8750 = vmatpush1.bf16.msra.mxu0 0
  %8751 = vmatprep.subr.bf16.mxu0 0
  %8752 = vmatpush1.bf16.msra.mxu0 0
  %8753 = vmatprep.mubr.bf16.mxu0 0
  %8754 = vmatmul.mubr.bf16.gmra.mrb[0].mxu0 %v8719
  %v8755 = vpop.f32.mrb[0].mxu0
  %v8756 = vadd.f32 0.0, %v8755
  %v8757 = vpop.f32.mrb[0].mxu0
  %v8758 = vpop.f32.mrb[0].mxu0
  %v8759 = vpop.f32.mrb[0].mxu0
  %8760 = vdwg.mxu0
  %v8761 = vadd.f32 %v8682, %v8756
  %v8762 = vld [vmem:[#allocation17] sm:$0xff]
  %v8763 = vpack.c.bf16 %v8762, %v8762
  %s8764 = scalar_lea.vmem %s7, 128
  %v8765 = vld [vmem:[%s8764] sm:$0xf]
  %v8766 = vld [vmem:[%s8764 + $0x4] sm:$0xf]
  %v8767 = vld [vmem:[%s8764 + $0x8] sm:$0xf]
  %v8768 = vld [vmem:[%s8764 + $0xc] sm:$0xf]
  %v8769 = vld [vmem:[%s8764 + $0x10] sm:$0xf]
  %v8770 = vld [vmem:[%s8764 + $0x14] sm:$0xf]
  %v8771 = vld [vmem:[%s8764 + $0x18] sm:$0xf]
  %v8772 = vld [vmem:[%s8764 + $0x1c] sm:$0xf]
  %v8781 = vunpack.c.l.b16 %v8765
  %v8782 = vunpack.c.l.b16 %v8766
  %v8783 = vunpack.c.l.b16 %v8767
  %v8784 = vunpack.c.l.b16 %v8768
  %v8785 = vunpack.c.l.b16 %v8769
  %v8786 = vunpack.c.l.b16 %v8770
  %v8787 = vunpack.c.l.b16 %v8771
  %v8788 = vunpack.c.l.b16 %v8772
  %v8789 = vpack.c.b16 %v8782, %v8781
  %v8790 = vpack.c.b16 %v8784, %v8783
  %v8791 = vpack.c.b16 %v8786, %v8785
  %v8792 = vpack.c.b16 %v8788, %v8787
  %v8798 = vsel %vm192, %v8763, 0
  %8800 = vmatprep.subr.bf16.mxu0 0
  %8801 = vmatpush1.bf16.msra.mxu0 %v8789
  %8802 = vmatprep.subr.bf16.mxu0 0
  %8803 = vmatpush1.bf16.msra.mxu0 %v8790
  %8804 = vmatprep.subr.bf16.mxu0 0
  %8805 = vmatpush1.bf16.msra.mxu0 %v8791
  %8806 = vmatprep.subr.bf16.mxu0 0
  %8807 = vmatpush1.bf16.msra.mxu0 %v8792
  %8808 = vmatprep.subr.bf16.mxu0 0
  %8809 = vmatpush1.bf16.msra.mxu0 0
  %8810 = vmatprep.subr.bf16.mxu0 0
  %8811 = vmatpush1.bf16.msra.mxu0 0
  %8812 = vmatprep.subr.bf16.mxu0 0
  %8813 = vmatpush1.bf16.msra.mxu0 0
  %8814 = vmatprep.subr.bf16.mxu0 0
  %8815 = vmatpush1.bf16.msra.mxu0 0
  %8816 = vmatprep.subr.bf16.mxu0 0
  %8817 = vmatpush1.bf16.msra.mxu0 0
  %8818 = vmatprep.subr.bf16.mxu0 0
  %8819 = vmatpush1.bf16.msra.mxu0 0
  %8820 = vmatprep.subr.bf16.mxu0 0
  %8821 = vmatpush1.bf16.msra.mxu0 0
  %8822 = vmatprep.subr.bf16.mxu0 0
  %8823 = vmatpush1.bf16.msra.mxu0 0
  %8824 = vmatprep.subr.bf16.mxu0 0
  %8825 = vmatpush1.bf16.msra.mxu0 0
  %8826 = vmatprep.subr.bf16.mxu0 0
  %8827 = vmatpush1.bf16.msra.mxu0 0
  %8828 = vmatprep.subr.bf16.mxu0 0
  %8829 = vmatpush1.bf16.msra.mxu0 0
  %8830 = vmatprep.subr.bf16.mxu0 0
  %8831 = vmatpush1.bf16.msra.mxu0 0
  %8832 = vmatprep.mubr.bf16.mxu0 0
  %8833 = vmatmul.mubr.bf16.gmra.mrb[0].mxu0 %v8798
  %v8834 = vpop.f32.mrb[0].mxu0
  %v8835 = vadd.f32 0.0, %v8834
  %v8836 = vpop.f32.mrb[0].mxu0
  %v8837 = vpop.f32.mrb[0].mxu0
  %v8838 = vpop.f32.mrb[0].mxu0
  %8839 = vdwg.mxu0
  %v8840 = vadd.f32 %v8761, %v8835
  %v8841 = vld [vmem:[%s8442] sm:$0xff]
  %v8842 = vpack.c.bf16 %v8841, %v8841
  %s8843 = scalar_lea.vmem %s7, 160
  %v8844 = vld [vmem:[%s8843] sm:$0xf]
  %v8845 = vld [vmem:[%s8843 + $0x4] sm:$0xf]
  %v8846 = vld [vmem:[%s8843 + $0x8] sm:$0xf]
  %v8847 = vld [vmem:[%s8843 + $0xc] sm:$0xf]
  %v8848 = vld [vmem:[%s8843 + $0x10] sm:$0xf]
  %v8849 = vld [vmem:[%s8843 + $0x14] sm:$0xf]
  %v8850 = vld [vmem:[%s8843 + $0x18] sm:$0xf]
  %v8851 = vld [vmem:[%s8843 + $0x1c] sm:$0xf]
  %v8860 = vunpack.c.l.b16 %v8844
  %v8861 = vunpack.c.l.b16 %v8845
  %v8862 = vunpack.c.l.b16 %v8846
  %v8863 = vunpack.c.l.b16 %v8847
  %v8864 = vunpack.c.l.b16 %v8848
  %v8865 = vunpack.c.l.b16 %v8849
  %v8866 = vunpack.c.l.b16 %v8850
  %v8867 = vunpack.c.l.b16 %v8851
  %v8868 = vpack.c.b16 %v8861, %v8860
  %v8869 = vpack.c.b16 %v8863, %v8862
  %v8870 = vpack.c.b16 %v8865, %v8864
  %v8871 = vpack.c.b16 %v8867, %v8866
  %v8877 = vsel %vm192, %v8842, 0
  %8879 = vmatprep.subr.bf16.mxu0 0
  %8880 = vmatpush1.bf16.msra.mxu0 %v8868
  %8881 = vmatprep.subr.bf16.mxu0 0
  %8882 = vmatpush1.bf16.msra.mxu0 %v8869
  %8883 = vmatprep.subr.bf16.mxu0 0
  %8884 = vmatpush1.bf16.msra.mxu0 %v8870
  %8885 = vmatprep.subr.bf16.mxu0 0
  %8886 = vmatpush1.bf16.msra.mxu0 %v8871
  %8887 = vmatprep.subr.bf16.mxu0 0
  %8888 = vmatpush1.bf16.msra.mxu0 0
  %8889 = vmatprep.subr.bf16.mxu0 0
  %8890 = vmatpush1.bf16.msra.mxu0 0
  %8891 = vmatprep.subr.bf16.mxu0 0
  %8892 = vmatpush1.bf16.msra.mxu0 0
  %8893 = vmatprep.subr.bf16.mxu0 0
  %8894 = vmatpush1.bf16.msra.mxu0 0
  %8895 = vmatprep.subr.bf16.mxu0 0
  %8896 = vmatpush1.bf16.msra.mxu0 0
  %8897 = vmatprep.subr.bf16.mxu0 0
  %8898 = vmatpush1.bf16.msra.mxu0 0
  %8899 = vmatprep.subr.bf16.mxu0 0
  %8900 = vmatpush1.bf16.msra.mxu0 0
  %8901 = vmatprep.subr.bf16.mxu0 0
  %8902 = vmatpush1.bf16.msra.mxu0 0
  %8903 = vmatprep.subr.bf16.mxu0 0
  %8904 = vmatpush1.bf16.msra.mxu0 0
  %8905 = vmatprep.subr.bf16.mxu0 0
  %8906 = vmatpush1.bf16.msra.mxu0 0
  %8907 = vmatprep.subr.bf16.mxu0 0
  %8908 = vmatpush1.bf16.msra.mxu0 0
  %8909 = vmatprep.subr.bf16.mxu0 0
  %8910 = vmatpush1.bf16.msra.mxu0 0
  %8911 = vmatprep.mubr.bf16.mxu0 0
  %8912 = vmatmul.mubr.bf16.gmra.mrb[0].mxu0 %v8877
  %v8913 = vpop.f32.mrb[0].mxu0
  %v8914 = vadd.f32 0.0, %v8913
  %v8915 = vpop.f32.mrb[0].mxu0
  %v8916 = vpop.f32.mrb[0].mxu0
  %v8917 = vpop.f32.mrb[0].mxu0
  %8918 = vdwg.mxu0
  %v8919 = vadd.f32 %v8840, %v8914
  %s8920 = scalar_lea.vmem [#allocation14], 16
  %v8921 = vld [vmem:[%s8920] sm:$0xff]
  %v8922 = vpack.c.bf16 %v8921, %v8921
  %s8923 = scalar_lea.vmem %s7, 192
  %v8924 = vld [vmem:[%s8923] sm:$0xf]
  %v8925 = vld [vmem:[%s8923 + $0x4] sm:$0xf]
  %v8926 = vld [vmem:[%s8923 + $0x8] sm:$0xf]
  %v8927 = vld [vmem:[%s8923 + $0xc] sm:$0xf]
  %v8928 = vld [vmem:[%s8923 + $0x10] sm:$0xf]
  %v8929 = vld [vmem:[%s8923 + $0x14] sm:$0xf]
  %v8930 = vld [vmem:[%s8923 + $0x18] sm:$0xf]
  %v8931 = vld [vmem:[%s8923 + $0x1c] sm:$0xf]
  %v8940 = vunpack.c.l.b16 %v8924
  %v8941 = vunpack.c.l.b16 %v8925
  %v8942 = vunpack.c.l.b16 %v8926
  %v8943 = vunpack.c.l.b16 %v8927
  %v8944 = vunpack.c.l.b16 %v8928
  %v8945 = vunpack.c.l.b16 %v8929
  %v8946 = vunpack.c.l.b16 %v8930
  %v8947 = vunpack.c.l.b16 %v8931
  %v8948 = vpack.c.b16 %v8941, %v8940
  %v8949 = vpack.c.b16 %v8943, %v8942
  %v8950 = vpack.c.b16 %v8945, %v8944
  %v8951 = vpack.c.b16 %v8947, %v8946
  %v8957 = vsel %vm192, %v8922, 0
  %8959 = vmatprep.subr.bf16.mxu0 0
  %8960 = vmatpush1.bf16.msra.mxu0 %v8948
  %8961 = vmatprep.subr.bf16.mxu0 0
  %8962 = vmatpush1.bf16.msra.mxu0 %v8949
  %8963 = vmatprep.subr.bf16.mxu0 0
  %8964 = vmatpush1.bf16.msra.mxu0 %v8950
  %8965 = vmatprep.subr.bf16.mxu0 0
  %8966 = vmatpush1.bf16.msra.mxu0 %v8951
  %8967 = vmatprep.subr.bf16.mxu0 0
  %8968 = vmatpush1.bf16.msra.mxu0 0
  %8969 = vmatprep.subr.bf16.mxu0 0
  %8970 = vmatpush1.bf16.msra.mxu0 0
  %8971 = vmatprep.subr.bf16.mxu0 0
  %8972 = vmatpush1.bf16.msra.mxu0 0
  %8973 = vmatprep.subr.bf16.mxu0 0
  %8974 = vmatpush1.bf16.msra.mxu0 0
  %8975 = vmatprep.subr.bf16.mxu0 0
  %8976 = vmatpush1.bf16.msra.mxu0 0
  %8977 = vmatprep.subr.bf16.mxu0 0
  %8978 = vmatpush1.bf16.msra.mxu0 0
  %8979 = vmatprep.subr.bf16.mxu0 0
  %8980 = vmatpush1.bf16.msra.mxu0 0
  %8981 = vmatprep.subr.bf16.mxu0 0
  %8982 = vmatpush1.bf16.msra.mxu0 0
  %8983 = vmatprep.subr.bf16.mxu0 0
  %8984 = vmatpush1.bf16.msra.mxu0 0
  %8985 = vmatprep.subr.bf16.mxu0 0
  %8986 = vmatpush1.bf16.msra.mxu0 0
  %8987 = vmatprep.subr.bf16.mxu0 0
  %8988 = vmatpush1.bf16.msra.mxu0 0
  %8989 = vmatprep.subr.bf16.mxu0 0
  %8990 = vmatpush1.bf16.msra.mxu0 0
  %8991 = vmatprep.mubr.bf16.mxu0 0
  %8992 = vmatmul.mubr.bf16.gmra.mrb[0].mxu0 %v8957
  %v8993 = vpop.f32.mrb[0].mxu0
  %v8994 = vadd.f32 0.0, %v8993
  %v8995 = vpop.f32.mrb[0].mxu0
  %v8996 = vpop.f32.mrb[0].mxu0
  %v8997 = vpop.f32.mrb[0].mxu0
  %8998 = vdwg.mxu0
  %v8999 = vadd.f32 %v8919, %v8994
  %v9000 = vld [vmem:[%s8444] sm:$0xff]
  %v9001 = vpack.c.bf16 %v9000, %v9000
  %s9002 = scalar_lea.vmem %s7, 224
  %v9003 = vld [vmem:[%s9002] sm:$0xf]
  %v9004 = vld [vmem:[%s9002 + $0x4] sm:$0xf]
  %v9005 = vld [vmem:[%s9002 + $0x8] sm:$0xf]
  %v9006 = vld [vmem:[%s9002 + $0xc] sm:$0xf]
  %v9007 = vld [vmem:[%s9002 + $0x10] sm:$0xf]
  %v9008 = vld [vmem:[%s9002 + $0x14] sm:$0xf]
  %v9009 = vld [vmem:[%s9002 + $0x18] sm:$0xf]
  %v9010 = vld [vmem:[%s9002 + $0x1c] sm:$0xf]
  %v9019 = vunpack.c.l.b16 %v9003
  %v9020 = vunpack.c.l.b16 %v9004
  %v9021 = vunpack.c.l.b16 %v9005
  %v9022 = vunpack.c.l.b16 %v9006
  %v9023 = vunpack.c.l.b16 %v9007
  %v9024 = vunpack.c.l.b16 %v9008
  %v9025 = vunpack.c.l.b16 %v9009
  %v9026 = vunpack.c.l.b16 %v9010
  %v9027 = vpack.c.b16 %v9020, %v9019
  %v9028 = vpack.c.b16 %v9022, %v9021
  %v9029 = vpack.c.b16 %v9024, %v9023
  %v9030 = vpack.c.b16 %v9026, %v9025
  %v9036 = vsel %vm192, %v9001, 0
  %9038 = vmatprep.subr.bf16.mxu0 0
  %9039 = vmatpush1.bf16.msra.mxu0 %v9027
  %9040 = vmatprep.subr.bf16.mxu0 0
  %9041 = vmatpush1.bf16.msra.mxu0 %v9028
  %9042 = vmatprep.subr.bf16.mxu0 0
  %9043 = vmatpush1.bf16.msra.mxu0 %v9029
  %9044 = vmatprep.subr.bf16.mxu0 0
  %9045 = vmatpush1.bf16.msra.mxu0 %v9030
  %9046 = vmatprep.subr.bf16.mxu0 0
  %9047 = vmatpush1.bf16.msra.mxu0 0
  %9048 = vmatprep.subr.bf16.mxu0 0
  %9049 = vmatpush1.bf16.msra.mxu0 0
  %9050 = vmatprep.subr.bf16.mxu0 0
  %9051 = vmatpush1.bf16.msra.mxu0 0
  %9052 = vmatprep.subr.bf16.mxu0 0
  %9053 = vmatpush1.bf16.msra.mxu0 0
  %9054 = vmatprep.subr.bf16.mxu0 0
  %9055 = vmatpush1.bf16.msra.mxu0 0
  %9056 = vmatprep.subr.bf16.mxu0 0
  %9057 = vmatpush1.bf16.msra.mxu0 0
  %9058 = vmatprep.subr.bf16.mxu0 0
  %9059 = vmatpush1.bf16.msra.mxu0 0
  %9060 = vmatprep.subr.bf16.mxu0 0
  %9061 = vmatpush1.bf16.msra.mxu0 0
  %9062 = vmatprep.subr.bf16.mxu0 0
  %9063 = vmatpush1.bf16.msra.mxu0 0
  %9064 = vmatprep.subr.bf16.mxu0 0
  %9065 = vmatpush1.bf16.msra.mxu0 0
  %9066 = vmatprep.subr.bf16.mxu0 0
  %9067 = vmatpush1.bf16.msra.mxu0 0
  %9068 = vmatprep.subr.bf16.mxu0 0
  %9069 = vmatpush1.bf16.msra.mxu0 0
  %9070 = vmatprep.mubr.bf16.mxu0 0
  %9071 = vmatmul.mubr.bf16.gmra.mrb[0].mxu0 %v9036
  %v9072 = vpop.f32.mrb[0].mxu0
  %v9073 = vadd.f32 0.0, %v9072
  %v9074 = vpop.f32.mrb[0].mxu0
  %v9075 = vpop.f32.mrb[0].mxu0
  %v9076 = vpop.f32.mrb[0].mxu0
  %9077 = vdwg.mxu0
  %v9078 = vadd.f32 %v8999, %v9073
  %v9079 = vld [vmem:[%s8446] sm:$0xff]
  %v9080 = vpack.c.bf16 %v9079, %v9079
  %s9081 = scalar_lea.vmem %s7, 256
  %v9082 = vld [vmem:[%s9081] sm:$0xf]
  %v9083 = vld [vmem:[%s9081 + $0x4] sm:$0xf]
  %v9084 = vld [vmem:[%s9081 + $0x8] sm:$0xf]
  %v9085 = vld [vmem:[%s9081 + $0xc] sm:$0xf]
  %v9086 = vld [vmem:[%s9081 + $0x10] sm:$0xf]
  %v9087 = vld [vmem:[%s9081 + $0x14] sm:$0xf]
  %v9088 = vld [vmem:[%s9081 + $0x18] sm:$0xf]
  %v9089 = vld [vmem:[%s9081 + $0x1c] sm:$0xf]
  %v9098 = vunpack.c.l.b16 %v9082
  %v9099 = vunpack.c.l.b16 %v9083
  %v9100 = vunpack.c.l.b16 %v9084
  %v9101 = vunpack.c.l.b16 %v9085
  %v9102 = vunpack.c.l.b16 %v9086
  %v9103 = vunpack.c.l.b16 %v9087
  %v9104 = vunpack.c.l.b16 %v9088
  %v9105 = vunpack.c.l.b16 %v9089
  %v9106 = vpack.c.b16 %v9099, %v9098
  %v9107 = vpack.c.b16 %v9101, %v9100
  %v9108 = vpack.c.b16 %v9103, %v9102
  %v9109 = vpack.c.b16 %v9105, %v9104
  %v9115 = vsel %vm192, %v9080, 0
  %9117 = vmatprep.subr.bf16.mxu0 0
  %9118 = vmatpush1.bf16.msra.mxu0 %v9106
  %9119 = vmatprep.subr.bf16.mxu0 0
  %9120 = vmatpush1.bf16.msra.mxu0 %v9107
  %9121 = vmatprep.subr.bf16.mxu0 0
  %9122 = vmatpush1.bf16.msra.mxu0 %v9108
  %9123 = vmatprep.subr.bf16.mxu0 0
  %9124 = vmatpush1.bf16.msra.mxu0 %v9109
  %9125 = vmatprep.subr.bf16.mxu0 0
  %9126 = vmatpush1.bf16.msra.mxu0 0
  %9127 = vmatprep.subr.bf16.mxu0 0
  %9128 = vmatpush1.bf16.msra.mxu0 0
  %9129 = vmatprep.subr.bf16.mxu0 0
  %9130 = vmatpush1.bf16.msra.mxu0 0
  %9131 = vmatprep.subr.bf16.mxu0 0
  %9132 = vmatpush1.bf16.msra.mxu0 0
  %9133 = vmatprep.subr.bf16.mxu0 0
  %9134 = vmatpush1.bf16.msra.mxu0 0
  %9135 = vmatprep.subr.bf16.mxu0 0
  %9136 = vmatpush1.bf16.msra.mxu0 0
  %9137 = vmatprep.subr.bf16.mxu0 0
  %9138 = vmatpush1.bf16.msra.mxu0 0
  %9139 = vmatprep.subr.bf16.mxu0 0
  %9140 = vmatpush1.bf16.msra.mxu0 0
  %9141 = vmatprep.subr.bf16.mxu0 0
  %9142 = vmatpush1.bf16.msra.mxu0 0
  %9143 = vmatprep.subr.bf16.mxu0 0
  %9144 = vmatpush1.bf16.msra.mxu0 0
  %9145 = vmatprep.subr.bf16.mxu0 0
  %9146 = vmatpush1.bf16.msra.mxu0 0
  %9147 = vmatprep.subr.bf16.mxu0 0
  %9148 = vmatpush1.bf16.msra.mxu0 0
  %9149 = vmatprep.mubr.bf16.mxu0 0
  %9150 = vmatmul.mubr.bf16.gmra.mrb[0].mxu0 %v9115
  %v9151 = vpop.f32.mrb[0].mxu0
  %v9152 = vadd.f32 0.0, %v9151
  %v9153 = vpop.f32.mrb[0].mxu0
  %v9154 = vpop.f32.mrb[0].mxu0
  %v9155 = vpop.f32.mrb[0].mxu0
  %9156 = vdwg.mxu0
  %v9157 = vadd.f32 %v9078, %v9152
  %v9158 = vld [vmem:[%s8] sm:$0x1]
  %v9160 = vlaneseq
  %v9161 = vshrl.u32 %v9160, 7
  %v9162 = vsub.s32 0, %v9161
  %v9163 = vrot.slane %v9158, %v9162
  %v9165 = vadd.f32 %v9157, %v9163
  %vm9166 = vcmp.gt.f32.partialorder %v9165, 0.0
  %v9167 = vmul.f32 %v9165, 0.2
  %v9168 = vsel %vm9166, %v9165, %v9167
  %s9169 = scalar_lea.vmem %s8, 1
  %v9170 = vld [vmem:[%s9169] sm:$0x1]
  %v9172 = vlaneseq
  %v9173 = vshrl.u32 %v9172, 7
  %v9174 = vsub.s32 0, %v9173
  %v9175 = vrot.slane %v9170, %v9174
  %v9177 = vmul.f32 %v9168, %v9175
  %s9178 = scalar_lea.vmem %s8, 2
  %v9179 = vld [vmem:[%s9178] sm:$0x1]
  %v9181 = vlaneseq
  %v9182 = vshrl.u32 %v9181, 7
  %v9183 = vsub.s32 0, %v9182
  %v9184 = vrot.slane %v9179, %v9183
  %v9186 = vadd.f32 %v9177, %v9184
  %v9187 = vld [vmem:[%s9] sm:$0x1]
  %v9189 = vlaneseq
  %v9190 = vshrl.u32 %v9189, 7
  %v9191 = vsub.s32 0, %v9190
  %v9192 = vrot.slane %v9187, %v9191
  %v9194 = vmul.f32 %v9186, %v9192
  %9195 = vadd.xlane.f32.xlu0 %v9194
  %v9196 = vpop.xlane.xlu0 %9195
  %v9197 = vadd.f32 %v9196, 0.0
  %v9198 = vld [vmem:[#allocation18] sm:$0x1]
  %v9200 = vlaneseq
  %v9201 = vshrl.u32 %v9200, 7
  %v9202 = vsub.s32 0, %v9201
  %v9203 = vrot.slane %v9198, %v9202
  %v9205 = vadd.f32 %v9197, %v9203
  %v9206 = vsub.f32 0.0, %v9205
  %v9207 = vmul.f32 %v9206, 1.442695
  %v9208 = vpow.pop %v9207
  %v9209 = vadd.f32 %v9208, 1.0
  %v9210 = vrcp.pop %v9209
  %v9211 = vmul.f32 1.0, %v9210
  %vm9212 = vcmask 7168
  %9213 = vst.msk [vmem:[%s11] sm:$0xff] %vm9212, %v9211
  // Predicated region
  $region46: #{discriminator_forward.1} parent=0 // pred_check
    _
  $region47: #{discriminator_forward.1} parent=0 // pred_check_branch
    %9215 = sbr.rel (0) target = $region49
  $region48: #{discriminator_forward.1} parent=0 // pred_region
    _
  $region49: #{discriminator_forward.1} parent=0 // pred_fallthru
    _
  // Predicated region
  $region50: #{discriminator_forward.1} parent=0 // pred_check
    _
  $region51: #{discriminator_forward.1} parent=0 // pred_check_branch
    %9217 = sbr.rel (0) target = $region53
  $region52: #{discriminator_forward.1} parent=0 // pred_region
    _
  $region53: #{discriminator_forward.1} parent=0 // pred_fallthru
    _

</llo_original>
